<compile_context>
chip_gen: v5e
topology: v5e:2x2
jax: 0.10.0
libtpu: 0.0.40
codegen_flags: <defaults>
</compile_context>

<pallas_src>
import functools

import jax
import jax.numpy as jnp
from jax.experimental import pallas as pl
from jax.experimental.pallas import tpu as pltpu

_LANE = 128
_SUBLANE = 8


def _round_up(x, m):
    return ((x + m - 1) // m) * m


# ----------------------------------------------------------------------------
# Fused encoder + greedy-decoder kernel (single invocation, no grid)
# ----------------------------------------------------------------------------
def _make_seq2seq_kernel(n_layers, Ts, Tt, BP, EP, HP, VP):
    """Builds the fused kernel; all shapes are static Python ints."""

    def kernel(x_enc_ref, dec_x0_ref, dec_emb_ref, fc_w_ref, fc_b_ref, *rest):
        enc_w = rest[:3 * n_layers]                 # (w_ih, w_hh, b) per layer
        dec_w = rest[3 * n_layers:5 * n_layers]     # (w_fused, b) per layer
        logits_ref = rest[5 * n_layers]             # [Tt, BP, VP]  output
        proj_ref = rest[5 * n_layers + 1]           # [Ts, BP, 4*HP] scratch
        hseq_ref = rest[5 * n_layers + 2]           # [Ts, BP, HP]   scratch

        zeros_state = jnp.zeros((BP, HP), jnp.float32)

        def cell_math(gates, c):
            # gates: [BP, 4*HP] in PyTorch (i, f, g, o) order, lane-aligned slices.
            i_g = jax.nn.sigmoid(gates[:, 0 * HP:1 * HP])
            f_g = jax.nn.sigmoid(gates[:, 1 * HP:2 * HP])
            g_g = jnp.tanh(gates[:, 2 * HP:3 * HP])
            o_g = jax.nn.sigmoid(gates[:, 3 * HP:4 * HP])
            c_new = f_g * c + i_g * g_g
            h_new = o_g * jnp.tanh(c_new)
            return h_new, c_new

        # --------- Encoder: per layer, batched x@W_ih over all timesteps, then
        # --------- the serial recurrence only does h@W_hh. State in vregs. ---
        enc_h, enc_c = [], []
        for l in range(n_layers):
            w_ih = enc_w[3 * l][...]        # [in_pad, 4*HP]
            w_hh = enc_w[3 * l + 1][...]    # [HP, 4*HP]
            b = enc_w[3 * l + 2][...]       # [1, 4*HP]
            if l == 0:
                xin = x_enc_ref[...].reshape(Ts * BP, EP)
            else:
                xin = hseq_ref[...].reshape(Ts * BP, HP)
            proj = jnp.dot(xin, w_ih, preferred_element_type=jnp.float32) + b
            proj_ref[...] = proj.reshape(Ts, BP, 4 * HP)

            last_layer = (l == n_layers - 1)

            def enc_step(t, carry, _w_hh=w_hh, _last=last_layer):
                h, c = carry
                gates = proj_ref[t] + jnp.dot(
                    h, _w_hh, preferred_element_type=jnp.float32)
                h_new, c_new = cell_math(gates, c)
                if not _last:           # feed the next layer's batched proj
                    hseq_ref[t] = h_new
                return (h_new, c_new)

            h_l, c_l = jax.lax.fori_loop(0, Ts, enc_step,
                                         (zeros_state, zeros_state),
                                         unroll=True)
            enc_h.append(h_l)
            enc_c.append(c_l)

        # --------- Decoder: greedy feedback, (x, h, c) carried in vregs ------
        dec_wf = [dec_w[2 * l][...] for l in range(n_layers)]          # fused
        dec_b = [jnp.broadcast_to(dec_w[2 * l + 1][...], (BP, 4 * HP))
                 for l in range(n_layers)]                              # hoisted
        fc_w = fc_w_ref[...]
        fc_b = jnp.broadcast_to(fc_b_ref[...], (BP, VP))                # hoisted
        dec_emb = dec_emb_ref[...]
        iota_f = jax.lax.broadcasted_iota(jnp.int32, (BP, VP), 1).astype(
            jnp.float32)                                                # hoisted

        logits_ref[0] = jnp.zeros((BP, VP), jnp.float32)  # outputs[:, 0, :] = 0

        def dec_step(t, carry):
            x, hs, cs = carry
            new_hs, new_cs = [], []
            for l in range(n_layers):
                xh = jnp.concatenate([x, hs[l]], axis=-1)     # [BP, in_pad+HP]
                gates = jnp.dot(xh, dec_wf[l],
                                preferred_element_type=jnp.float32) + dec_b[l]
                h_new, c_new = cell_math(gates, cs[l])
                new_hs.append(h_new)
                new_cs.append(c_new)
                x = h_new
            logits = jnp.dot(x, fc_w,
                             preferred_element_type=jnp.float32) + fc_b  # [BP, VP]
            logits_ref[t] = logits                    # lane-dense full-vreg store
            # Greedy argmax (first max wins) only for the in-kernel feedback;
            # padded lanes carry -1e30 bias so they can never win.
            max_val = jnp.max(logits, axis=-1, keepdims=True)
            idx_f = jnp.min(jnp.where(logits == max_val, iota_f, float(VP)),
                            axis=-1, keepdims=True)
            one_hot = (iota_f == idx_f).astype(jnp.float32)
            # Next-step embedding as one-hot @ table (MXU matmul, no gather).
            return (jnp.dot(one_hot, dec_emb,
                            preferred_element_type=jnp.float32),
                    tuple(new_hs), tuple(new_cs))

        jax.lax.fori_loop(1, Tt, dec_step,
                          (dec_x0_ref[...], tuple(enc_h), tuple(enc_c)),
                          unroll=True)

    return kernel


# ----------------------------------------------------------------------------
# Forward wrapper (jit'ed; out_dim static so the pad is sliced off)
# ----------------------------------------------------------------------------
@functools.partial(jax.jit, static_argnames=("out_dim",))
def seq2seq_forward(params, input_ids, target_ids, out_dim):
    """Greedy (teacher_forcing=False) Seq2Seq forward.

    Returns (outputs_idx [B, Tt] f32, outputs [B, Tt, V] f32), matching the
    PyTorch module's return convention.
    """
    B, Ts = input_ids.shape
    Tt = target_ids.shape[1]
    n_layers = len(params["enc_lstm"])
    HP, VP = params["fc_w"].shape           # lane-padded hidden / vocab sizes
    EP = params["dec_emb"].shape[1]         # lane-padded embedding size
    BP = _round_up(B, _SUBLANE)             # sublane-padded batch

    # Host-side (jit-fused) embedding lookups; everything else runs in-kernel.
    x_enc = jnp.transpose(jnp.take(params["enc_emb"], input_ids, axis=0),
                          (1, 0, 2))                                 # [Ts, B, EP]
    x_enc = jnp.pad(x_enc, ((0, 0), (0, BP - B), (0, 0))).astype(jnp.float32)
    dec_x0 = jnp.take(params["dec_emb"], target_ids[:, 0], axis=0)   # [B, EP]
    dec_x0 = jnp.pad(dec_x0, ((0, BP - B), (0, 0))).astype(jnp.float32)

    flat_w = []
    for w_ih, w_hh, b in params["enc_lstm"]:
        flat_w += [w_ih, w_hh, b]
    for w_fused, b in params["dec_lstm"]:
        flat_w += [w_fused, b]

    kernel = _make_seq2seq_kernel(n_layers, Ts, Tt, BP, EP, HP, VP)
    n_inputs = 5 + len(flat_w)
    vmem = pltpu.MemorySpace.VMEM

    logits_tm = pl.pallas_call(
        kernel,
        out_shape=jax.ShapeDtypeStruct((Tt, BP, VP), jnp.float32),
        in_specs=[pl.BlockSpec(memory_space=vmem) for _ in range(n_inputs)],
        out_specs=pl.BlockSpec(memory_space=vmem),
        scratch_shapes=[pltpu.VMEM((Ts, BP, 4 * HP), jnp.float32),   # proj
                        pltpu.VMEM((Ts, BP, HP), jnp.float32)],      # h seq
    )(x_enc, dec_x0, params["dec_emb"], params["fc_w"], params["fc_b"],
      *flat_w)

    outputs = jnp.transpose(logits_tm[:, :B, :out_dim], (1, 0, 2))   # [B, Tt, V]
    outputs_idx = jnp.argmax(outputs, axis=-1).astype(jnp.float32)   # [B, Tt]
    return outputs_idx, outputs


# ----------------------------------------------------------------------------
# Parameters: logical init (PyTorch layout, pre-transposed) + TPU padding
# ----------------------------------------------------------------------------
def init_params(key, input_dim, output_dim, emb_dim, hid_dim, n_layers):
    def nrm(k, shape, scale=0.1):
        return (scale * jax.random.normal(k, shape)).astype(jnp.float32)

    keys = iter(jax.random.split(key, 64))
    params = {
        "enc_emb": nrm(next(keys), (input_dim, emb_dim), 1.0),
        "dec_emb": nrm(next(keys), (output_dim, emb_dim), 1.0),
        "enc_lstm": [],
        "dec_lstm": [],
        "fc_w": nrm(next(keys), (hid_dim, output_dim)),
        "fc_b": nrm(next(keys), (1, output_dim)),
    }
    for which in ("enc_lstm", "dec_lstm"):
        for layer in range(n_layers):
            in_dim = emb_dim if layer == 0 else hid_dim
            # pre-transposed: [in, 4H] / [H, 4H]; bias = b_ih + b_hh; order i,f,g,o
            w_ih = nrm(next(keys), (in_dim, 4 * hid_dim))
            w_hh = nrm(next(keys), (hid_dim, 4 * hid_dim))
            b = nrm(next(keys), (1, 4 * hid_dim))
            params[which].append((w_ih, w_hh, b))
    return params


def _pad_gates(w, hid_dim, hp):
    """Zero-pad the gate axis [..., 4*H] -> [..., 4*HP] gate-block-wise."""
    lead = w.shape[:-1]
    w = w.reshape(lead + (4, hid_dim))
    w = jnp.pad(w, [(0, 0)] * len(lead) + [(0, 0), (0, hp - hid_dim)])
    return w.reshape(lead + (4 * hp,))


def pad_params_for_tpu(params, emb_dim, hid_dim, out_dim, lane=_LANE):
    """Pad hidden / embedding / vocab dims to lane width (exactness-preserving).

    Decoder W_ih/W_hh are fused into one [in_pad+HP, 4*HP] matrix; fc_b's
    padded lanes are -1e30 so the in-kernel greedy argmax ignores them.
    """
    hp = _round_up(hid_dim, lane)
    ep = _round_up(emb_dim, lane)
    vp = _round_up(out_dim, lane)

    out = {
        "enc_emb": jnp.pad(params["enc_emb"], [(0, 0), (0, ep - emb_dim)]),
        "dec_emb": jnp.pad(params["dec_emb"],
                           [(0, vp - out_dim), (0, ep - emb_dim)]),
        "fc_w": jnp.pad(params["fc_w"],
                        [(0, hp - hid_dim), (0, vp - out_dim)]),
        "fc_b": jnp.pad(params["fc_b"], [(0, 0), (0, vp - out_dim)],
                        constant_values=-1e30),
    }

    enc_layers = []
    for layer, (w_ih, w_hh, b) in enumerate(params["enc_lstm"]):
        in_dim = emb_dim if layer == 0 else hid_dim
        in_pad = ep if layer == 0 else hp
        w_ih = jnp.pad(_pad_gates(w_ih, hid_dim, hp),
                       [(0, in_pad - in_dim), (0, 0)])
        w_hh = jnp.pad(_pad_gates(w_hh, hid_dim, hp),
                       [(0, hp - hid_dim), (0, 0)])
        b = _pad_gates(b, hid_dim, hp)
        enc_layers.append((w_ih, w_hh, b))
    out["enc_lstm"] = enc_layers

    dec_layers = []
    for layer, (w_ih, w_hh, b) in enumerate(params["dec_lstm"]):
        in_dim = emb_dim if layer == 0 else hid_dim
        in_pad = ep if layer == 0 else hp
        w_ih = jnp.pad(_pad_gates(w_ih, hid_dim, hp),
                       [(0, in_pad - in_dim), (0, 0)])
        w_hh = jnp.pad(_pad_gates(w_hh, hid_dim, hp),
                       [(0, hp - hid_dim), (0, 0)])
        w_fused = jnp.concatenate([w_ih, w_hh], axis=0)    # [in_pad+HP, 4*HP]
        b = _pad_gates(b, hid_dim, hp)
        dec_layers.append((w_fused, b))
    out["dec_lstm"] = dec_layers
    return out


# ----------------------------------------------------------------------------
if __name__ == "__main__":
    INPUT_DIM = 40    # source vocab
    OUTPUT_DIM = 32   # target vocab
    EMB_DIM = 16
    HID_DIM = 32
    N_LAYERS = 2
    B, T_SRC, T_TGT = 2, 10, 8

    key = jax.random.PRNGKey(0)
    k_par, k_in, k_tgt = jax.random.split(key, 3)
    params = pad_params_for_tpu(
        init_params(k_par, INPUT_DIM, OUTPUT_DIM, EMB_DIM, HID_DIM, N_LAYERS),
        EMB_DIM, HID_DIM, OUTPUT_DIM)

    input_ids = jax.random.randint(k_in, (B, T_SRC), 0, INPUT_DIM,
                                   dtype=jnp.int32)
    target_ids = jax.random.randint(k_tgt, (B, T_TGT), 0, OUTPUT_DIM,
                                    dtype=jnp.int32)

    outputs_idx, outputs = seq2seq_forward(params, input_ids, target_ids,
                                           out_dim=OUTPUT_DIM)
    jax.block_until_ready((outputs_idx, outputs))

    # Shape / dtype contract of Seq2Seq.forward.
    assert outputs.shape == (B, T_TGT, OUTPUT_DIM)
    assert outputs_idx.shape == (B, T_TGT)
    assert outputs.dtype == jnp.float32 and outputs_idx.dtype == jnp.float32
    assert bool(jnp.all(jnp.isfinite(outputs)))
    # t = 0 rows stay zero (the PyTorch loop starts at t = 1).
    assert bool(jnp.all(outputs[:, 0, :] == 0.0))
    assert bool(jnp.all(outputs_idx[:, 0] == 0.0))
    # Reported greedy indices are consistent with the reported logits.
    assert bool(jnp.all(jnp.argmax(outputs[:, 1:, :], axis=-1)
                        == outputs_idx[:, 1:].astype(jnp.int32)))

    print("KERNEL_OK")
</pallas_src>

<mosaic_0001>
module attributes {stable_mosaic.version = 11 : i64} {
  func.func @kernel(%arg0: memref<10x8x128xf32, #tpu.memory_space<vmem>>, %arg1: memref<8x128xf32, #tpu.memory_space<vmem>>, %arg2: memref<128x128xf32, #tpu.memory_space<vmem>>, %arg3: memref<128x128xf32, #tpu.memory_space<vmem>>, %arg4: memref<1x128xf32, #tpu.memory_space<vmem>>, %arg5: memref<128x512xf32, #tpu.memory_space<vmem>>, %arg6: memref<128x512xf32, #tpu.memory_space<vmem>>, %arg7: memref<1x512xf32, #tpu.memory_space<vmem>>, %arg8: memref<128x512xf32, #tpu.memory_space<vmem>>, %arg9: memref<128x512xf32, #tpu.memory_space<vmem>>, %arg10: memref<1x512xf32, #tpu.memory_space<vmem>>, %arg11: memref<256x512xf32, #tpu.memory_space<vmem>>, %arg12: memref<1x512xf32, #tpu.memory_space<vmem>>, %arg13: memref<256x512xf32, #tpu.memory_space<vmem>>, %arg14: memref<1x512xf32, #tpu.memory_space<vmem>>, %arg15: memref<8x8x128xf32, #tpu.memory_space<vmem>>, %arg16: memref<10x8x512xf32, #tpu.memory_space<vmem>>, %arg17: memref<10x8x128xf32, #tpu.memory_space<vmem>>) attributes {dimension_semantics = [], scalar_prefetch = 0 : i64, scratch_operands = 2 : i64, tpu.core_type = #tpu.core_type<tc>} {
    %cst = arith.constant 0.000000e+00 : f32
    %0 = vector.broadcast %cst : f32 to vector<8x128xf32>
    %c0 = arith.constant 0 : index
    %c0_0 = arith.constant 0 : index
    %1 = vector.load %arg5[%c0, %c0_0] : memref<128x512xf32, #tpu.memory_space<vmem>>, vector<128x512xf32>
    %c0_1 = arith.constant 0 : index
    %c0_2 = arith.constant 0 : index
    %2 = vector.load %arg6[%c0_1, %c0_2] : memref<128x512xf32, #tpu.memory_space<vmem>>, vector<128x512xf32>
    %c0_3 = arith.constant 0 : index
    %c0_4 = arith.constant 0 : index
    %3 = vector.load %arg7[%c0_3, %c0_4] : memref<1x512xf32, #tpu.memory_space<vmem>>, vector<1x512xf32>
    %c0_5 = arith.constant 0 : index
    %c0_6 = arith.constant 0 : index
    %c0_7 = arith.constant 0 : index
    %4 = vector.load %arg0[%c0_5, %c0_6, %c0_7] : memref<10x8x128xf32, #tpu.memory_space<vmem>>, vector<10x8x128xf32>
    %5 = vector.shape_cast %4 : vector<10x8x128xf32> to vector<80x128xf32>
    %cst_8 = arith.constant dense<0.000000e+00> : vector<80x512xf32>
    %6 = tpu.matmul %5, %1, %cst_8 {dimension_numbers = #tpu.dot_dimension_numbers<[1], [0], [0], [1], [0, 0, 1, 1], [], []>} : vector<80x128xf32>, vector<128x512xf32>, vector<80x512xf32> -> vector<80x512xf32>
    %7 = vector.broadcast %3 : vector<1x512xf32> to vector<80x512xf32>
    %8 = arith.addf %6, %7 : vector<80x512xf32>
    %9 = vector.shape_cast %8 : vector<80x512xf32> to vector<10x8x512xf32>
    %c0_9 = arith.constant 0 : index
    %c0_10 = arith.constant 0 : index
    %c0_11 = arith.constant 0 : index
    %10 = vector.load %arg16[%c0_9, %c0_10, %c0_11] : memref<10x8x512xf32, #tpu.memory_space<vmem>>, vector<10x8x512xf32>
    tpu.vector_store %arg16[%c0_9, %c0_10, %c0_11], %9 {strides = array<i32>} : memref<10x8x512xf32, #tpu.memory_space<vmem>>, vector<10x8x512xf32>,
    %c0_i32 = arith.constant 0 : i32
    %11 = arith.index_cast %c0_i32 : i32 to index
    %c0_12 = arith.constant 0 : index
    %c0_13 = arith.constant 0 : index
    %12 = vector.load %arg16[%11, %c0_12, %c0_13] : memref<10x8x512xf32, #tpu.memory_space<vmem>>, vector<1x8x512xf32>
    %13 = vector.shape_cast %12 : vector<1x8x512xf32> to vector<8x512xf32>
    %cst_14 = arith.constant dense<0.000000e+00> : vector<8x512xf32>
    %14 = tpu.matmul %0, %2, %cst_14 {dimension_numbers = #tpu.dot_dimension_numbers<[1], [0], [0], [1], [0, 0, 1, 1], [], []>} : vector<8x128xf32>, vector<128x512xf32>, vector<8x512xf32> -> vector<8x512xf32>
    %15 = arith.addf %13, %14 : vector<8x512xf32>
    %16 = vector.extract_strided_slice %15 {offsets = [0, 0], sizes = [8, 128], strides = [1, 1]} : vector<8x512xf32> to vector<8x128xf32>
    %17 = arith.negf %16 : vector<8x128xf32>
    %18 = math.exp %17 : vector<8x128xf32>
    %cst_15 = arith.constant 1.000000e+00 : f32
    %19 = vector.broadcast %cst_15 : f32 to vector<8x128xf32>
    %20 = arith.addf %19, %18 : vector<8x128xf32>
    %21 = arith.divf %19, %20 : vector<8x128xf32>
    %22 = vector.extract_strided_slice %15 {offsets = [0, 128], sizes = [8, 128], strides = [1, 1]} : vector<8x512xf32> to vector<8x128xf32>
    %23 = arith.negf %22 : vector<8x128xf32>
    %24 = math.exp %23 : vector<8x128xf32>
    %cst_16 = arith.constant 1.000000e+00 : f32
    %25 = vector.broadcast %cst_16 : f32 to vector<8x128xf32>
    %26 = arith.addf %25, %24 : vector<8x128xf32>
    %27 = arith.divf %25, %26 : vector<8x128xf32>
    %28 = vector.extract_strided_slice %15 {offsets = [0, 256], sizes = [8, 128], strides = [1, 1]} : vector<8x512xf32> to vector<8x128xf32>
    %29 = math.tanh %28 : vector<8x128xf32>
    %30 = vector.extract_strided_slice %15 {offsets = [0, 384], sizes = [8, 128], strides = [1, 1]} : vector<8x512xf32> to vector<8x128xf32>
    %31 = arith.negf %30 : vector<8x128xf32>
    %32 = math.exp %31 : vector<8x128xf32>
    %cst_17 = arith.constant 1.000000e+00 : f32
    %33 = vector.broadcast %cst_17 : f32 to vector<8x128xf32>
    %34 = arith.addf %33, %32 : vector<8x128xf32>
    %35 = arith.divf %33, %34 : vector<8x128xf32>
    %36 = arith.mulf %27, %0 : vector<8x128xf32>
    %37 = arith.mulf %21, %29 : vector<8x128xf32>
    %38 = arith.addf %36, %37 : vector<8x128xf32>
    %39 = math.tanh %38 : vector<8x128xf32>
    %40 = arith.mulf %35, %39 : vector<8x128xf32>
    %41 = arith.index_cast %c0_i32 : i32 to index
    %c0_18 = arith.constant 0 : index
    %c0_19 = arith.constant 0 : index
    %42 = vector.load %arg17[%41, %c0_18, %c0_19] : memref<10x8x128xf32, #tpu.memory_space<vmem>>, vector<1x8x128xf32>
    %43 = vector.shape_cast %42 : vector<1x8x128xf32> to vector<8x128xf32>
    %44 = vector.shape_cast %40 : vector<8x128xf32> to vector<1x8x128xf32>
    tpu.vector_store %arg17[%41, %c0_18, %c0_19], %44 {strides = array<i32>} : memref<10x8x128xf32, #tpu.memory_space<vmem>>, vector<1x8x128xf32>,
    %c1_i32 = arith.constant 1 : i32
    %45 = arith.index_cast %c1_i32 : i32 to index
    %c0_20 = arith.constant 0 : index
    %c0_21 = arith.constant 0 : index
    %46 = vector.load %arg16[%45, %c0_20, %c0_21] : memref<10x8x512xf32, #tpu.memory_space<vmem>>, vector<1x8x512xf32>
    %47 = vector.shape_cast %46 : vector<1x8x512xf32> to vector<8x512xf32>
    %cst_22 = arith.constant dense<0.000000e+00> : vector<8x512xf32>
    %48 = tpu.matmul %40, %2, %cst_22 {dimension_numbers = #tpu.dot_dimension_numbers<[1], [0], [0], [1], [0, 0, 1, 1], [], []>} : vector<8x128xf32>, vector<128x512xf32>, vector<8x512xf32> -> vector<8x512xf32>
    %49 = arith.addf %47, %48 : vector<8x512xf32>
    %50 = vector.extract_strided_slice %49 {offsets = [0, 0], sizes = [8, 128], strides = [1, 1]} : vector<8x512xf32> to vector<8x128xf32>
    %51 = arith.negf %50 : vector<8x128xf32>
    %52 = math.exp %51 : vector<8x128xf32>
    %cst_23 = arith.constant 1.000000e+00 : f32
    %53 = vector.broadcast %cst_23 : f32 to vector<8x128xf32>
    %54 = arith.addf %53, %52 : vector<8x128xf32>
    %55 = arith.divf %53, %54 : vector<8x128xf32>
    %56 = vector.extract_strided_slice %49 {offsets = [0, 128], sizes = [8, 128], strides = [1, 1]} : vector<8x512xf32> to vector<8x128xf32>
    %57 = arith.negf %56 : vector<8x128xf32>
    %58 = math.exp %57 : vector<8x128xf32>
    %cst_24 = arith.constant 1.000000e+00 : f32
    %59 = vector.broadcast %cst_24 : f32 to vector<8x128xf32>
    %60 = arith.addf %59, %58 : vector<8x128xf32>
    %61 = arith.divf %59, %60 : vector<8x128xf32>
    %62 = vector.extract_strided_slice %49 {offsets = [0, 256], sizes = [8, 128], strides = [1, 1]} : vector<8x512xf32> to vector<8x128xf32>
    %63 = math.tanh %62 : vector<8x128xf32>
    %64 = vector.extract_strided_slice %49 {offsets = [0, 384], sizes = [8, 128], strides = [1, 1]} : vector<8x512xf32> to vector<8x128xf32>
    %65 = arith.negf %64 : vector<8x128xf32>
    %66 = math.exp %65 : vector<8x128xf32>
    %cst_25 = arith.constant 1.000000e+00 : f32
    %67 = vector.broadcast %cst_25 : f32 to vector<8x128xf32>
    %68 = arith.addf %67, %66 : vector<8x128xf32>
    %69 = arith.divf %67, %68 : vector<8x128xf32>
    %70 = arith.mulf %61, %38 : vector<8x128xf32>
    %71 = arith.mulf %55, %63 : vector<8x128xf32>
    %72 = arith.addf %70, %71 : vector<8x128xf32>
    %73 = math.tanh %72 : vector<8x128xf32>
    %74 = arith.mulf %69, %73 : vector<8x128xf32>
    %75 = arith.index_cast %c1_i32 : i32 to index
    %c0_26 = arith.constant 0 : index
    %c0_27 = arith.constant 0 : index
    %76 = vector.load %arg17[%75, %c0_26, %c0_27] : memref<10x8x128xf32, #tpu.memory_space<vmem>>, vector<1x8x128xf32>
    %77 = vector.shape_cast %76 : vector<1x8x128xf32> to vector<8x128xf32>
    %78 = vector.shape_cast %74 : vector<8x128xf32> to vector<1x8x128xf32>
    tpu.vector_store %arg17[%75, %c0_26, %c0_27], %78 {strides = array<i32>} : memref<10x8x128xf32, #tpu.memory_space<vmem>>, vector<1x8x128xf32>,
    %c2_i32 = arith.constant 2 : i32
    %79 = arith.index_cast %c2_i32 : i32 to index
    %c0_28 = arith.constant 0 : index
    %c0_29 = arith.constant 0 : index
    %80 = vector.load %arg16[%79, %c0_28, %c0_29] : memref<10x8x512xf32, #tpu.memory_space<vmem>>, vector<1x8x512xf32>
    %81 = vector.shape_cast %80 : vector<1x8x512xf32> to vector<8x512xf32>
    %cst_30 = arith.constant dense<0.000000e+00> : vector<8x512xf32>
    %82 = tpu.matmul %74, %2, %cst_30 {dimension_numbers = #tpu.dot_dimension_numbers<[1], [0], [0], [1], [0, 0, 1, 1], [], []>} : vector<8x128xf32>, vector<128x512xf32>, vector<8x512xf32> -> vector<8x512xf32>
    %83 = arith.addf %81, %82 : vector<8x512xf32>
    %84 = vector.extract_strided_slice %83 {offsets = [0, 0], sizes = [8, 128], strides = [1, 1]} : vector<8x512xf32> to vector<8x128xf32>
    %85 = arith.negf %84 : vector<8x128xf32>
    %86 = math.exp %85 : vector<8x128xf32>
    %cst_31 = arith.constant 1.000000e+00 : f32
    %87 = vector.broadcast %cst_31 : f32 to vector<8x128xf32>
    %88 = arith.addf %87, %86 : vector<8x128xf32>
    %89 = arith.divf %87, %88 : vector<8x128xf32>
    %90 = vector.extract_strided_slice %83 {offsets = [0, 128], sizes = [8, 128], strides = [1, 1]} : vector<8x512xf32> to vector<8x128xf32>
    %91 = arith.negf %90 : vector<8x128xf32>
    %92 = math.exp %91 : vector<8x128xf32>
    %cst_32 = arith.constant 1.000000e+00 : f32
    %93 = vector.broadcast %cst_32 : f32 to vector<8x128xf32>
    %94 = arith.addf %93, %92 : vector<8x128xf32>
    %95 = arith.divf %93, %94 : vector<8x128xf32>
    %96 = vector.extract_strided_slice %83 {offsets = [0, 256], sizes = [8, 128], strides = [1, 1]} : vector<8x512xf32> to vector<8x128xf32>
    %97 = math.tanh %96 : vector<8x128xf32>
    %98 = vector.extract_strided_slice %83 {offsets = [0, 384], sizes = [8, 128], strides = [1, 1]} : vector<8x512xf32> to vector<8x128xf32>
    %99 = arith.negf %98 : vector<8x128xf32>
    %100 = math.exp %99 : vector<8x128xf32>
    %cst_33 = arith.constant 1.000000e+00 : f32
    %101 = vector.broadcast %cst_33 : f32 to vector<8x128xf32>
    %102 = arith.addf %101, %100 : vector<8x128xf32>
    %103 = arith.divf %101, %102 : vector<8x128xf32>
    %104 = arith.mulf %95, %72 : vector<8x128xf32>
    %105 = arith.mulf %89, %97 : vector<8x128xf32>
    %106 = arith.addf %104, %105 : vector<8x128xf32>
    %107 = math.tanh %106 : vector<8x128xf32>
    %108 = arith.mulf %103, %107 : vector<8x128xf32>
    %109 = arith.index_cast %c2_i32 : i32 to index
    %c0_34 = arith.constant 0 : index
    %c0_35 = arith.constant 0 : index
    %110 = vector.load %arg17[%109, %c0_34, %c0_35] : memref<10x8x128xf32, #tpu.memory_space<vmem>>, vector<1x8x128xf32>
    %111 = vector.shape_cast %110 : vector<1x8x128xf32> to vector<8x128xf32>
    %112 = vector.shape_cast %108 : vector<8x128xf32> to vector<1x8x128xf32>
    tpu.vector_store %arg17[%109, %c0_34, %c0_35], %112 {strides = array<i32>} : memref<10x8x128xf32, #tpu.memory_space<vmem>>, vector<1x8x128xf32>,
    %c3_i32 = arith.constant 3 : i32
    %113 = arith.index_cast %c3_i32 : i32 to index
    %c0_36 = arith.constant 0 : index
    %c0_37 = arith.constant 0 : index
    %114 = vector.load %arg16[%113, %c0_36, %c0_37] : memref<10x8x512xf32, #tpu.memory_space<vmem>>, vector<1x8x512xf32>
    %115 = vector.shape_cast %114 : vector<1x8x512xf32> to vector<8x512xf32>
    %cst_38 = arith.constant dense<0.000000e+00> : vector<8x512xf32>
    %116 = tpu.matmul %108, %2, %cst_38 {dimension_numbers = #tpu.dot_dimension_numbers<[1], [0], [0], [1], [0, 0, 1, 1], [], []>} : vector<8x128xf32>, vector<128x512xf32>, vector<8x512xf32> -> vector<8x512xf32>
    %117 = arith.addf %115, %116 : vector<8x512xf32>
    %118 = vector.extract_strided_slice %117 {offsets = [0, 0], sizes = [8, 128], strides = [1, 1]} : vector<8x512xf32> to vector<8x128xf32>
    %119 = arith.negf %118 : vector<8x128xf32>
    %120 = math.exp %119 : vector<8x128xf32>
    %cst_39 = arith.constant 1.000000e+00 : f32
    %121 = vector.broadcast %cst_39 : f32 to vector<8x128xf32>
    %122 = arith.addf %121, %120 : vector<8x128xf32>
    %123 = arith.divf %121, %122 : vector<8x128xf32>
    %124 = vector.extract_strided_slice %117 {offsets = [0, 128], sizes = [8, 128], strides = [1, 1]} : vector<8x512xf32> to vector<8x128xf32>
    %125 = arith.negf %124 : vector<8x128xf32>
    %126 = math.exp %125 : vector<8x128xf32>
    %cst_40 = arith.constant 1.000000e+00 : f32
    %127 = vector.broadcast %cst_40 : f32 to vector<8x128xf32>
    %128 = arith.addf %127, %126 : vector<8x128xf32>
    %129 = arith.divf %127, %128 : vector<8x128xf32>
    %130 = vector.extract_strided_slice %117 {offsets = [0, 256], sizes = [8, 128], strides = [1, 1]} : vector<8x512xf32> to vector<8x128xf32>
    %131 = math.tanh %130 : vector<8x128xf32>
    %132 = vector.extract_strided_slice %117 {offsets = [0, 384], sizes = [8, 128], strides = [1, 1]} : vector<8x512xf32> to vector<8x128xf32>
    %133 = arith.negf %132 : vector<8x128xf32>
    %134 = math.exp %133 : vector<8x128xf32>
    %cst_41 = arith.constant 1.000000e+00 : f32
    %135 = vector.broadcast %cst_41 : f32 to vector<8x128xf32>
    %136 = arith.addf %135, %134 : vector<8x128xf32>
    %137 = arith.divf %135, %136 : vector<8x128xf32>
    %138 = arith.mulf %129, %106 : vector<8x128xf32>
    %139 = arith.mulf %123, %131 : vector<8x128xf32>
    %140 = arith.addf %138, %139 : vector<8x128xf32>
    %141 = math.tanh %140 : vector<8x128xf32>
    %142 = arith.mulf %137, %141 : vector<8x128xf32>
    %143 = arith.index_cast %c3_i32 : i32 to index
    %c0_42 = arith.constant 0 : index
    %c0_43 = arith.constant 0 : index
    %144 = vector.load %arg17[%143, %c0_42, %c0_43] : memref<10x8x128xf32, #tpu.memory_space<vmem>>, vector<1x8x128xf32>
    %145 = vector.shape_cast %144 : vector<1x8x128xf32> to vector<8x128xf32>
    %146 = vector.shape_cast %142 : vector<8x128xf32> to vector<1x8x128xf32>
    tpu.vector_store %arg17[%143, %c0_42, %c0_43], %146 {strides = array<i32>} : memref<10x8x128xf32, #tpu.memory_space<vmem>>, vector<1x8x128xf32>,
    %c4_i32 = arith.constant 4 : i32
    %147 = arith.index_cast %c4_i32 : i32 to index
    %c0_44 = arith.constant 0 : index
    %c0_45 = arith.constant 0 : index
    %148 = vector.load %arg16[%147, %c0_44, %c0_45] : memref<10x8x512xf32, #tpu.memory_space<vmem>>, vector<1x8x512xf32>
    %149 = vector.shape_cast %148 : vector<1x8x512xf32> to vector<8x512xf32>
    %cst_46 = arith.constant dense<0.000000e+00> : vector<8x512xf32>
    %150 = tpu.matmul %142, %2, %cst_46 {dimension_numbers = #tpu.dot_dimension_numbers<[1], [0], [0], [1], [0, 0, 1, 1], [], []>} : vector<8x128xf32>, vector<128x512xf32>, vector<8x512xf32> -> vector<8x512xf32>
    %151 = arith.addf %149, %150 : vector<8x512xf32>
    %152 = vector.extract_strided_slice %151 {offsets = [0, 0], sizes = [8, 128], strides = [1, 1]} : vector<8x512xf32> to vector<8x128xf32>
    %153 = arith.negf %152 : vector<8x128xf32>
    %154 = math.exp %153 : vector<8x128xf32>
    %cst_47 = arith.constant 1.000000e+00 : f32
    %155 = vector.broadcast %cst_47 : f32 to vector<8x128xf32>
    %156 = arith.addf %155, %154 : vector<8x128xf32>
    %157 = arith.divf %155, %156 : vector<8x128xf32>
    %158 = vector.extract_strided_slice %151 {offsets = [0, 128], sizes = [8, 128], strides = [1, 1]} : vector<8x512xf32> to vector<8x128xf32>
    %159 = arith.negf %158 : vector<8x128xf32>
    %160 = math.exp %159 : vector<8x128xf32>
    %cst_48 = arith.constant 1.000000e+00 : f32
    %161 = vector.broadcast %cst_48 : f32 to vector<8x128xf32>
    %162 = arith.addf %161, %160 : vector<8x128xf32>
    %163 = arith.divf %161, %162 : vector<8x128xf32>
    %164 = vector.extract_strided_slice %151 {offsets = [0, 256], sizes = [8, 128], strides = [1, 1]} : vector<8x512xf32> to vector<8x128xf32>
    %165 = math.tanh %164 : vector<8x128xf32>
    %166 = vector.extract_strided_slice %151 {offsets = [0, 384], sizes = [8, 128], strides = [1, 1]} : vector<8x512xf32> to vector<8x128xf32>
    %167 = arith.negf %166 : vector<8x128xf32>
    %168 = math.exp %167 : vector<8x128xf32>
    %cst_49 = arith.constant 1.000000e+00 : f32
    %169 = vector.broadcast %cst_49 : f32 to vector<8x128xf32>
    %170 = arith.addf %169, %168 : vector<8x128xf32>
    %171 = arith.divf %169, %170 : vector<8x128xf32>
    %172 = arith.mulf %163, %140 : vector<8x128xf32>
    %173 = arith.mulf %157, %165 : vector<8x128xf32>
    %174 = arith.addf %172, %173 : vector<8x128xf32>
    %175 = math.tanh %174 : vector<8x128xf32>
    %176 = arith.mulf %171, %175 : vector<8x128xf32>
    %177 = arith.index_cast %c4_i32 : i32 to index
    %c0_50 = arith.constant 0 : index
    %c0_51 = arith.constant 0 : index
    %178 = vector.load %arg17[%177, %c0_50, %c0_51] : memref<10x8x128xf32, #tpu.memory_space<vmem>>, vector<1x8x128xf32>
    %179 = vector.shape_cast %178 : vector<1x8x128xf32> to vector<8x128xf32>
    %180 = vector.shape_cast %176 : vector<8x128xf32> to vector<1x8x128xf32>
    tpu.vector_store %arg17[%177, %c0_50, %c0_51], %180 {strides = array<i32>} : memref<10x8x128xf32, #tpu.memory_space<vmem>>, vector<1x8x128xf32>,
    %c5_i32 = arith.constant 5 : i32
    %181 = arith.index_cast %c5_i32 : i32 to index
    %c0_52 = arith.constant 0 : index
    %c0_53 = arith.constant 0 : index
    %182 = vector.load %arg16[%181, %c0_52, %c0_53] : memref<10x8x512xf32, #tpu.memory_space<vmem>>, vector<1x8x512xf32>
    %183 = vector.shape_cast %182 : vector<1x8x512xf32> to vector<8x512xf32>
    %cst_54 = arith.constant dense<0.000000e+00> : vector<8x512xf32>
    %184 = tpu.matmul %176, %2, %cst_54 {dimension_numbers = #tpu.dot_dimension_numbers<[1], [0], [0], [1], [0, 0, 1, 1], [], []>} : vector<8x128xf32>, vector<128x512xf32>, vector<8x512xf32> -> vector<8x512xf32>
    %185 = arith.addf %183, %184 : vector<8x512xf32>
    %186 = vector.extract_strided_slice %185 {offsets = [0, 0], sizes = [8, 128], strides = [1, 1]} : vector<8x512xf32> to vector<8x128xf32>
    %187 = arith.negf %186 : vector<8x128xf32>
    %188 = math.exp %187 : vector<8x128xf32>
    %cst_55 = arith.constant 1.000000e+00 : f32
    %189 = vector.broadcast %cst_55 : f32 to vector<8x128xf32>
    %190 = arith.addf %189, %188 : vector<8x128xf32>
    %191 = arith.divf %189, %190 : vector<8x128xf32>
    %192 = vector.extract_strided_slice %185 {offsets = [0, 128], sizes = [8, 128], strides = [1, 1]} : vector<8x512xf32> to vector<8x128xf32>
    %193 = arith.negf %192 : vector<8x128xf32>
    %194 = math.exp %193 : vector<8x128xf32>
    %cst_56 = arith.constant 1.000000e+00 : f32
    %195 = vector.broadcast %cst_56 : f32 to vector<8x128xf32>
    %196 = arith.addf %195, %194 : vector<8x128xf32>
    %197 = arith.divf %195, %196 : vector<8x128xf32>
    %198 = vector.extract_strided_slice %185 {offsets = [0, 256], sizes = [8, 128], strides = [1, 1]} : vector<8x512xf32> to vector<8x128xf32>
    %199 = math.tanh %198 : vector<8x128xf32>
    %200 = vector.extract_strided_slice %185 {offsets = [0, 384], sizes = [8, 128], strides = [1, 1]} : vector<8x512xf32> to vector<8x128xf32>
    %201 = arith.negf %200 : vector<8x128xf32>
    %202 = math.exp %201 : vector<8x128xf32>
    %cst_57 = arith.constant 1.000000e+00 : f32
    %203 = vector.broadcast %cst_57 : f32 to vector<8x128xf32>
    %204 = arith.addf %203, %202 : vector<8x128xf32>
    %205 = arith.divf %203, %204 : vector<8x128xf32>
    %206 = arith.mulf %197, %174 : vector<8x128xf32>
    %207 = arith.mulf %191, %199 : vector<8x128xf32>
    %208 = arith.addf %206, %207 : vector<8x128xf32>
    %209 = math.tanh %208 : vector<8x128xf32>
    %210 = arith.mulf %205, %209 : vector<8x128xf32>
    %211 = arith.index_cast %c5_i32 : i32 to index
    %c0_58 = arith.constant 0 : index
    %c0_59 = arith.constant 0 : index
    %212 = vector.load %arg17[%211, %c0_58, %c0_59] : memref<10x8x128xf32, #tpu.memory_space<vmem>>, vector<1x8x128xf32>
    %213 = vector.shape_cast %212 : vector<1x8x128xf32> to vector<8x128xf32>
    %214 = vector.shape_cast %210 : vector<8x128xf32> to vector<1x8x128xf32>
    tpu.vector_store %arg17[%211, %c0_58, %c0_59], %214 {strides = array<i32>} : memref<10x8x128xf32, #tpu.memory_space<vmem>>, vector<1x8x128xf32>,
    %c6_i32 = arith.constant 6 : i32
    %215 = arith.index_cast %c6_i32 : i32 to index
    %c0_60 = arith.constant 0 : index
    %c0_61 = arith.constant 0 : index
    %216 = vector.load %arg16[%215, %c0_60, %c0_61] : memref<10x8x512xf32, #tpu.memory_space<vmem>>, vector<1x8x512xf32>
    %217 = vector.shape_cast %216 : vector<1x8x512xf32> to vector<8x512xf32>
    %cst_62 = arith.constant dense<0.000000e+00> : vector<8x512xf32>
    %218 = tpu.matmul %210, %2, %cst_62 {dimension_numbers = #tpu.dot_dimension_numbers<[1], [0], [0], [1], [0, 0, 1, 1], [], []>} : vector<8x128xf32>, vector<128x512xf32>, vector<8x512xf32> -> vector<8x512xf32>
    %219 = arith.addf %217, %218 : vector<8x512xf32>
    %220 = vector.extract_strided_slice %219 {offsets = [0, 0], sizes = [8, 128], strides = [1, 1]} : vector<8x512xf32> to vector<8x128xf32>
    %221 = arith.negf %220 : vector<8x128xf32>
    %222 = math.exp %221 : vector<8x128xf32>
    %cst_63 = arith.constant 1.000000e+00 : f32
    %223 = vector.broadcast %cst_63 : f32 to vector<8x128xf32>
    %224 = arith.addf %223, %222 : vector<8x128xf32>
    %225 = arith.divf %223, %224 : vector<8x128xf32>
    %226 = vector.extract_strided_slice %219 {offsets = [0, 128], sizes = [8, 128], strides = [1, 1]} : vector<8x512xf32> to vector<8x128xf32>
    %227 = arith.negf %226 : vector<8x128xf32>
    %228 = math.exp %227 : vector<8x128xf32>
    %cst_64 = arith.constant 1.000000e+00 : f32
    %229 = vector.broadcast %cst_64 : f32 to vector<8x128xf32>
    %230 = arith.addf %229, %228 : vector<8x128xf32>
    %231 = arith.divf %229, %230 : vector<8x128xf32>
    %232 = vector.extract_strided_slice %219 {offsets = [0, 256], sizes = [8, 128], strides = [1, 1]} : vector<8x512xf32> to vector<8x128xf32>
    %233 = math.tanh %232 : vector<8x128xf32>
    %234 = vector.extract_strided_slice %219 {offsets = [0, 384], sizes = [8, 128], strides = [1, 1]} : vector<8x512xf32> to vector<8x128xf32>
    %235 = arith.negf %234 : vector<8x128xf32>
    %236 = math.exp %235 : vector<8x128xf32>
    %cst_65 = arith.constant 1.000000e+00 : f32
    %237 = vector.broadcast %cst_65 : f32 to vector<8x128xf32>
    %238 = arith.addf %237, %236 : vector<8x128xf32>
    %239 = arith.divf %237, %238 : vector<8x128xf32>
    %240 = arith.mulf %231, %208 : vector<8x128xf32>
    %241 = arith.mulf %225, %233 : vector<8x128xf32>
    %242 = arith.addf %240, %241 : vector<8x128xf32>
    %243 = math.tanh %242 : vector<8x128xf32>
    %244 = arith.mulf %239, %243 : vector<8x128xf32>
    %245 = arith.index_cast %c6_i32 : i32 to index
    %c0_66 = arith.constant 0 : index
    %c0_67 = arith.constant 0 : index
    %246 = vector.load %arg17[%245, %c0_66, %c0_67] : memref<10x8x128xf32, #tpu.memory_space<vmem>>, vector<1x8x128xf32>
    %247 = vector.shape_cast %246 : vector<1x8x128xf32> to vector<8x128xf32>
    %248 = vector.shape_cast %244 : vector<8x128xf32> to vector<1x8x128xf32>
    tpu.vector_store %arg17[%245, %c0_66, %c0_67], %248 {strides = array<i32>} : memref<10x8x128xf32, #tpu.memory_space<vmem>>, vector<1x8x128xf32>,
    %c7_i32 = arith.constant 7 : i32
    %249 = arith.index_cast %c7_i32 : i32 to index
    %c0_68 = arith.constant 0 : index
    %c0_69 = arith.constant 0 : index
    %250 = vector.load %arg16[%249, %c0_68, %c0_69] : memref<10x8x512xf32, #tpu.memory_space<vmem>>, vector<1x8x512xf32>
    %251 = vector.shape_cast %250 : vector<1x8x512xf32> to vector<8x512xf32>
    %cst_70 = arith.constant dense<0.000000e+00> : vector<8x512xf32>
    %252 = tpu.matmul %244, %2, %cst_70 {dimension_numbers = #tpu.dot_dimension_numbers<[1], [0], [0], [1], [0, 0, 1, 1], [], []>} : vector<8x128xf32>, vector<128x512xf32>, vector<8x512xf32> -> vector<8x512xf32>
    %253 = arith.addf %251, %252 : vector<8x512xf32>
    %254 = vector.extract_strided_slice %253 {offsets = [0, 0], sizes = [8, 128], strides = [1, 1]} : vector<8x512xf32> to vector<8x128xf32>
    %255 = arith.negf %254 : vector<8x128xf32>
    %256 = math.exp %255 : vector<8x128xf32>
    %cst_71 = arith.constant 1.000000e+00 : f32
    %257 = vector.broadcast %cst_71 : f32 to vector<8x128xf32>
    %258 = arith.addf %257, %256 : vector<8x128xf32>
    %259 = arith.divf %257, %258 : vector<8x128xf32>
    %260 = vector.extract_strided_slice %253 {offsets = [0, 128], sizes = [8, 128], strides = [1, 1]} : vector<8x512xf32> to vector<8x128xf32>
    %261 = arith.negf %260 : vector<8x128xf32>
    %262 = math.exp %261 : vector<8x128xf32>
    %cst_72 = arith.constant 1.000000e+00 : f32
    %263 = vector.broadcast %cst_72 : f32 to vector<8x128xf32>
    %264 = arith.addf %263, %262 : vector<8x128xf32>
    %265 = arith.divf %263, %264 : vector<8x128xf32>
    %266 = vector.extract_strided_slice %253 {offsets = [0, 256], sizes = [8, 128], strides = [1, 1]} : vector<8x512xf32> to vector<8x128xf32>
    %267 = math.tanh %266 : vector<8x128xf32>
    %268 = vector.extract_strided_slice %253 {offsets = [0, 384], sizes = [8, 128], strides = [1, 1]} : vector<8x512xf32> to vector<8x128xf32>
    %269 = arith.negf %268 : vector<8x128xf32>
    %270 = math.exp %269 : vector<8x128xf32>
    %cst_73 = arith.constant 1.000000e+00 : f32
    %271 = vector.broadcast %cst_73 : f32 to vector<8x128xf32>
    %272 = arith.addf %271, %270 : vector<8x128xf32>
    %273 = arith.divf %271, %272 : vector<8x128xf32>
    %274 = arith.mulf %265, %242 : vector<8x128xf32>
    %275 = arith.mulf %259, %267 : vector<8x128xf32>
    %276 = arith.addf %274, %275 : vector<8x128xf32>
    %277 = math.tanh %276 : vector<8x128xf32>
    %278 = arith.mulf %273, %277 : vector<8x128xf32>
    %279 = arith.index_cast %c7_i32 : i32 to index
    %c0_74 = arith.constant 0 : index
    %c0_75 = arith.constant 0 : index
    %280 = vector.load %arg17[%279, %c0_74, %c0_75] : memref<10x8x128xf32, #tpu.memory_space<vmem>>, vector<1x8x128xf32>
    %281 = vector.shape_cast %280 : vector<1x8x128xf32> to vector<8x128xf32>
    %282 = vector.shape_cast %278 : vector<8x128xf32> to vector<1x8x128xf32>
    tpu.vector_store %arg17[%279, %c0_74, %c0_75], %282 {strides = array<i32>} : memref<10x8x128xf32, #tpu.memory_space<vmem>>, vector<1x8x128xf32>,
    %c8_i32 = arith.constant 8 : i32
    %283 = arith.index_cast %c8_i32 : i32 to index
    %c0_76 = arith.constant 0 : index
    %c0_77 = arith.constant 0 : index
    %284 = vector.load %arg16[%283, %c0_76, %c0_77] : memref<10x8x512xf32, #tpu.memory_space<vmem>>, vector<1x8x512xf32>
    %285 = vector.shape_cast %284 : vector<1x8x512xf32> to vector<8x512xf32>
    %cst_78 = arith.constant dense<0.000000e+00> : vector<8x512xf32>
    %286 = tpu.matmul %278, %2, %cst_78 {dimension_numbers = #tpu.dot_dimension_numbers<[1], [0], [0], [1], [0, 0, 1, 1], [], []>} : vector<8x128xf32>, vector<128x512xf32>, vector<8x512xf32> -> vector<8x512xf32>
    %287 = arith.addf %285, %286 : vector<8x512xf32>
    %288 = vector.extract_strided_slice %287 {offsets = [0, 0], sizes = [8, 128], strides = [1, 1]} : vector<8x512xf32> to vector<8x128xf32>
    %289 = arith.negf %288 : vector<8x128xf32>
    %290 = math.exp %289 : vector<8x128xf32>
    %cst_79 = arith.constant 1.000000e+00 : f32
    %291 = vector.broadcast %cst_79 : f32 to vector<8x128xf32>
    %292 = arith.addf %291, %290 : vector<8x128xf32>
    %293 = arith.divf %291, %292 : vector<8x128xf32>
    %294 = vector.extract_strided_slice %287 {offsets = [0, 128], sizes = [8, 128], strides = [1, 1]} : vector<8x512xf32> to vector<8x128xf32>
    %295 = arith.negf %294 : vector<8x128xf32>
    %296 = math.exp %295 : vector<8x128xf32>
    %cst_80 = arith.constant 1.000000e+00 : f32
    %297 = vector.broadcast %cst_80 : f32 to vector<8x128xf32>
    %298 = arith.addf %297, %296 : vector<8x128xf32>
    %299 = arith.divf %297, %298 : vector<8x128xf32>
    %300 = vector.extract_strided_slice %287 {offsets = [0, 256], sizes = [8, 128], strides = [1, 1]} : vector<8x512xf32> to vector<8x128xf32>
    %301 = math.tanh %300 : vector<8x128xf32>
    %302 = vector.extract_strided_slice %287 {offsets = [0, 384], sizes = [8, 128], strides = [1, 1]} : vector<8x512xf32> to vector<8x128xf32>
    %303 = arith.negf %302 : vector<8x128xf32>
    %304 = math.exp %303 : vector<8x128xf32>
    %cst_81 = arith.constant 1.000000e+00 : f32
    %305 = vector.broadcast %cst_81 : f32 to vector<8x128xf32>
    %306 = arith.addf %305, %304 : vector<8x128xf32>
    %307 = arith.divf %305, %306 : vector<8x128xf32>
    %308 = arith.mulf %299, %276 : vector<8x128xf32>
    %309 = arith.mulf %293, %301 : vector<8x128xf32>
    %310 = arith.addf %308, %309 : vector<8x128xf32>
    %311 = math.tanh %310 : vector<8x128xf32>
    %312 = arith.mulf %307, %311 : vector<8x128xf32>
    %313 = arith.index_cast %c8_i32 : i32 to index
    %c0_82 = arith.constant 0 : index
    %c0_83 = arith.constant 0 : index
    %314 = vector.load %arg17[%313, %c0_82, %c0_83] : memref<10x8x128xf32, #tpu.memory_space<vmem>>, vector<1x8x128xf32>
    %315 = vector.shape_cast %314 : vector<1x8x128xf32> to vector<8x128xf32>
    %316 = vector.shape_cast %312 : vector<8x128xf32> to vector<1x8x128xf32>
    tpu.vector_store %arg17[%313, %c0_82, %c0_83], %316 {strides = array<i32>} : memref<10x8x128xf32, #tpu.memory_space<vmem>>, vector<1x8x128xf32>,
    %c9_i32 = arith.constant 9 : i32
    %317 = arith.index_cast %c9_i32 : i32 to index
    %c0_84 = arith.constant 0 : index
    %c0_85 = arith.constant 0 : index
    %318 = vector.load %arg16[%317, %c0_84, %c0_85] : memref<10x8x512xf32, #tpu.memory_space<vmem>>, vector<1x8x512xf32>
    %319 = vector.shape_cast %318 : vector<1x8x512xf32> to vector<8x512xf32>
    %cst_86 = arith.constant dense<0.000000e+00> : vector<8x512xf32>
    %320 = tpu.matmul %312, %2, %cst_86 {dimension_numbers = #tpu.dot_dimension_numbers<[1], [0], [0], [1], [0, 0, 1, 1], [], []>} : vector<8x128xf32>, vector<128x512xf32>, vector<8x512xf32> -> vector<8x512xf32>
    %321 = arith.addf %319, %320 : vector<8x512xf32>
    %322 = vector.extract_strided_slice %321 {offsets = [0, 0], sizes = [8, 128], strides = [1, 1]} : vector<8x512xf32> to vector<8x128xf32>
    %323 = arith.negf %322 : vector<8x128xf32>
    %324 = math.exp %323 : vector<8x128xf32>
    %cst_87 = arith.constant 1.000000e+00 : f32
    %325 = vector.broadcast %cst_87 : f32 to vector<8x128xf32>
    %326 = arith.addf %325, %324 : vector<8x128xf32>
    %327 = arith.divf %325, %326 : vector<8x128xf32>
    %328 = vector.extract_strided_slice %321 {offsets = [0, 128], sizes = [8, 128], strides = [1, 1]} : vector<8x512xf32> to vector<8x128xf32>
    %329 = arith.negf %328 : vector<8x128xf32>
    %330 = math.exp %329 : vector<8x128xf32>
    %cst_88 = arith.constant 1.000000e+00 : f32
    %331 = vector.broadcast %cst_88 : f32 to vector<8x128xf32>
    %332 = arith.addf %331, %330 : vector<8x128xf32>
    %333 = arith.divf %331, %332 : vector<8x128xf32>
    %334 = vector.extract_strided_slice %321 {offsets = [0, 256], sizes = [8, 128], strides = [1, 1]} : vector<8x512xf32> to vector<8x128xf32>
    %335 = math.tanh %334 : vector<8x128xf32>
    %336 = vector.extract_strided_slice %321 {offsets = [0, 384], sizes = [8, 128], strides = [1, 1]} : vector<8x512xf32> to vector<8x128xf32>
    %337 = arith.negf %336 : vector<8x128xf32>
    %338 = math.exp %337 : vector<8x128xf32>
    %cst_89 = arith.constant 1.000000e+00 : f32
    %339 = vector.broadcast %cst_89 : f32 to vector<8x128xf32>
    %340 = arith.addf %339, %338 : vector<8x128xf32>
    %341 = arith.divf %339, %340 : vector<8x128xf32>
    %342 = arith.mulf %333, %310 : vector<8x128xf32>
    %343 = arith.mulf %327, %335 : vector<8x128xf32>
    %344 = arith.addf %342, %343 : vector<8x128xf32>
    %345 = math.tanh %344 : vector<8x128xf32>
    %346 = arith.mulf %341, %345 : vector<8x128xf32>
    %347 = arith.index_cast %c9_i32 : i32 to index
    %c0_90 = arith.constant 0 : index
    %c0_91 = arith.constant 0 : index
    %348 = vector.load %arg17[%347, %c0_90, %c0_91] : memref<10x8x128xf32, #tpu.memory_space<vmem>>, vector<1x8x128xf32>
    %349 = vector.shape_cast %348 : vector<1x8x128xf32> to vector<8x128xf32>
    %350 = vector.shape_cast %346 : vector<8x128xf32> to vector<1x8x128xf32>
    tpu.vector_store %arg17[%347, %c0_90, %c0_91], %350 {strides = array<i32>} : memref<10x8x128xf32, #tpu.memory_space<vmem>>, vector<1x8x128xf32>,
    %c10_i32 = arith.constant 10 : i32
    %c0_92 = arith.constant 0 : index
    %c0_93 = arith.constant 0 : index
    %351 = vector.load %arg8[%c0_92, %c0_93] : memref<128x512xf32, #tpu.memory_space<vmem>>, vector<128x512xf32>
    %c0_94 = arith.constant 0 : index
    %c0_95 = arith.constant 0 : index
    %352 = vector.load %arg9[%c0_94, %c0_95] : memref<128x512xf32, #tpu.memory_space<vmem>>, vector<128x512xf32>
    %c0_96 = arith.constant 0 : index
    %c0_97 = arith.constant 0 : index
    %353 = vector.load %arg10[%c0_96, %c0_97] : memref<1x512xf32, #tpu.memory_space<vmem>>, vector<1x512xf32>
    %c0_98 = arith.constant 0 : index
    %c0_99 = arith.constant 0 : index
    %c0_100 = arith.constant 0 : index
    %354 = vector.load %arg17[%c0_98, %c0_99, %c0_100] : memref<10x8x128xf32, #tpu.memory_space<vmem>>, vector<10x8x128xf32>
    %355 = vector.shape_cast %354 : vector<10x8x128xf32> to vector<80x128xf32>
    %cst_101 = arith.constant dense<0.000000e+00> : vector<80x512xf32>
    %356 = tpu.matmul %355, %351, %cst_101 {dimension_numbers = #tpu.dot_dimension_numbers<[1], [0], [0], [1], [0, 0, 1, 1], [], []>} : vector<80x128xf32>, vector<128x512xf32>, vector<80x512xf32> -> vector<80x512xf32>
    %357 = vector.broadcast %353 : vector<1x512xf32> to vector<80x512xf32>
    %358 = arith.addf %356, %357 : vector<80x512xf32>
    %359 = vector.shape_cast %358 : vector<80x512xf32> to vector<10x8x512xf32>
    %c0_102 = arith.constant 0 : index
    %c0_103 = arith.constant 0 : index
    %c0_104 = arith.constant 0 : index
    %360 = vector.load %arg16[%c0_102, %c0_103, %c0_104] : memref<10x8x512xf32, #tpu.memory_space<vmem>>, vector<10x8x512xf32>
    tpu.vector_store %arg16[%c0_102, %c0_103, %c0_104], %359 {strides = array<i32>} : memref<10x8x512xf32, #tpu.memory_space<vmem>>, vector<10x8x512xf32>,
    %c0_i32_105 = arith.constant 0 : i32
    %361 = arith.index_cast %c0_i32_105 : i32 to index
    %c0_106 = arith.constant 0 : index
    %c0_107 = arith.constant 0 : index
    %362 = vector.load %arg16[%361, %c0_106, %c0_107] : memref<10x8x512xf32, #tpu.memory_space<vmem>>, vector<1x8x512xf32>
    %363 = vector.shape_cast %362 : vector<1x8x512xf32> to vector<8x512xf32>
    %cst_108 = arith.constant dense<0.000000e+00> : vector<8x512xf32>
    %364 = tpu.matmul %0, %352, %cst_108 {dimension_numbers = #tpu.dot_dimension_numbers<[1], [0], [0], [1], [0, 0, 1, 1], [], []>} : vector<8x128xf32>, vector<128x512xf32>, vector<8x512xf32> -> vector<8x512xf32>
    %365 = arith.addf %363, %364 : vector<8x512xf32>
    %366 = vector.extract_strided_slice %365 {offsets = [0, 0], sizes = [8, 128], strides = [1, 1]} : vector<8x512xf32> to vector<8x128xf32>
    %367 = arith.negf %366 : vector<8x128xf32>
    %368 = math.exp %367 : vector<8x128xf32>
    %cst_109 = arith.constant 1.000000e+00 : f32
    %369 = vector.broadcast %cst_109 : f32 to vector<8x128xf32>
    %370 = arith.addf %369, %368 : vector<8x128xf32>
    %371 = arith.divf %369, %370 : vector<8x128xf32>
    %372 = vector.extract_strided_slice %365 {offsets = [0, 128], sizes = [8, 128], strides = [1, 1]} : vector<8x512xf32> to vector<8x128xf32>
    %373 = arith.negf %372 : vector<8x128xf32>
    %374 = math.exp %373 : vector<8x128xf32>
    %cst_110 = arith.constant 1.000000e+00 : f32
    %375 = vector.broadcast %cst_110 : f32 to vector<8x128xf32>
    %376 = arith.addf %375, %374 : vector<8x128xf32>
    %377 = arith.divf %375, %376 : vector<8x128xf32>
    %378 = vector.extract_strided_slice %365 {offsets = [0, 256], sizes = [8, 128], strides = [1, 1]} : vector<8x512xf32> to vector<8x128xf32>
    %379 = math.tanh %378 : vector<8x128xf32>
    %380 = vector.extract_strided_slice %365 {offsets = [0, 384], sizes = [8, 128], strides = [1, 1]} : vector<8x512xf32> to vector<8x128xf32>
    %381 = arith.negf %380 : vector<8x128xf32>
    %382 = math.exp %381 : vector<8x128xf32>
    %cst_111 = arith.constant 1.000000e+00 : f32
    %383 = vector.broadcast %cst_111 : f32 to vector<8x128xf32>
    %384 = arith.addf %383, %382 : vector<8x128xf32>
    %385 = arith.divf %383, %384 : vector<8x128xf32>
    %386 = arith.mulf %377, %0 : vector<8x128xf32>
    %387 = arith.mulf %371, %379 : vector<8x128xf32>
    %388 = arith.addf %386, %387 : vector<8x128xf32>
    %389 = math.tanh %388 : vector<8x128xf32>
    %390 = arith.mulf %385, %389 : vector<8x128xf32>
    %c1_i32_112 = arith.constant 1 : i32
    %391 = arith.index_cast %c1_i32_112 : i32 to index
    %c0_113 = arith.constant 0 : index
    %c0_114 = arith.constant 0 : index
    %392 = vector.load %arg16[%391, %c0_113, %c0_114] : memref<10x8x512xf32, #tpu.memory_space<vmem>>, vector<1x8x512xf32>
    %393 = vector.shape_cast %392 : vector<1x8x512xf32> to vector<8x512xf32>
    %cst_115 = arith.constant dense<0.000000e+00> : vector<8x512xf32>
    %394 = tpu.matmul %390, %352, %cst_115 {dimension_numbers = #tpu.dot_dimension_numbers<[1], [0], [0], [1], [0, 0, 1, 1], [], []>} : vector<8x128xf32>, vector<128x512xf32>, vector<8x512xf32> -> vector<8x512xf32>
    %395 = arith.addf %393, %394 : vector<8x512xf32>
    %396 = vector.extract_strided_slice %395 {offsets = [0, 0], sizes = [8, 128], strides = [1, 1]} : vector<8x512xf32> to vector<8x128xf32>
    %397 = arith.negf %396 : vector<8x128xf32>
    %398 = math.exp %397 : vector<8x128xf32>
    %cst_116 = arith.constant 1.000000e+00 : f32
    %399 = vector.broadcast %cst_116 : f32 to vector<8x128xf32>
    %400 = arith.addf %399, %398 : vector<8x128xf32>
    %401 = arith.divf %399, %400 : vector<8x128xf32>
    %402 = vector.extract_strided_slice %395 {offsets = [0, 128], sizes = [8, 128], strides = [1, 1]} : vector<8x512xf32> to vector<8x128xf32>
    %403 = arith.negf %402 : vector<8x128xf32>
    %404 = math.exp %403 : vector<8x128xf32>
    %cst_117 = arith.constant 1.000000e+00 : f32
    %405 = vector.broadcast %cst_117 : f32 to vector<8x128xf32>
    %406 = arith.addf %405, %404 : vector<8x128xf32>
    %407 = arith.divf %405, %406 : vector<8x128xf32>
    %408 = vector.extract_strided_slice %395 {offsets = [0, 256], sizes = [8, 128], strides = [1, 1]} : vector<8x512xf32> to vector<8x128xf32>
    %409 = math.tanh %408 : vector<8x128xf32>
    %410 = vector.extract_strided_slice %395 {offsets = [0, 384], sizes = [8, 128], strides = [1, 1]} : vector<8x512xf32> to vector<8x128xf32>
    %411 = arith.negf %410 : vector<8x128xf32>
    %412 = math.exp %411 : vector<8x128xf32>
    %cst_118 = arith.constant 1.000000e+00 : f32
    %413 = vector.broadcast %cst_118 : f32 to vector<8x128xf32>
    %414 = arith.addf %413, %412 : vector<8x128xf32>
    %415 = arith.divf %413, %414 : vector<8x128xf32>
    %416 = arith.mulf %407, %388 : vector<8x128xf32>
    %417 = arith.mulf %401, %409 : vector<8x128xf32>
    %418 = arith.addf %416, %417 : vector<8x128xf32>
    %419 = math.tanh %418 : vector<8x128xf32>
    %420 = arith.mulf %415, %419 : vector<8x128xf32>
    %c2_i32_119 = arith.constant 2 : i32
    %421 = arith.index_cast %c2_i32_119 : i32 to index
    %c0_120 = arith.constant 0 : index
    %c0_121 = arith.constant 0 : index
    %422 = vector.load %arg16[%421, %c0_120, %c0_121] : memref<10x8x512xf32, #tpu.memory_space<vmem>>, vector<1x8x512xf32>
    %423 = vector.shape_cast %422 : vector<1x8x512xf32> to vector<8x512xf32>
    %cst_122 = arith.constant dense<0.000000e+00> : vector<8x512xf32>
    %424 = tpu.matmul %420, %352, %cst_122 {dimension_numbers = #tpu.dot_dimension_numbers<[1], [0], [0], [1], [0, 0, 1, 1], [], []>} : vector<8x128xf32>, vector<128x512xf32>, vector<8x512xf32> -> vector<8x512xf32>
    %425 = arith.addf %423, %424 : vector<8x512xf32>
    %426 = vector.extract_strided_slice %425 {offsets = [0, 0], sizes = [8, 128], strides = [1, 1]} : vector<8x512xf32> to vector<8x128xf32>
    %427 = arith.negf %426 : vector<8x128xf32>
    %428 = math.exp %427 : vector<8x128xf32>
    %cst_123 = arith.constant 1.000000e+00 : f32
    %429 = vector.broadcast %cst_123 : f32 to vector<8x128xf32>
    %430 = arith.addf %429, %428 : vector<8x128xf32>
    %431 = arith.divf %429, %430 : vector<8x128xf32>
    %432 = vector.extract_strided_slice %425 {offsets = [0, 128], sizes = [8, 128], strides = [1, 1]} : vector<8x512xf32> to vector<8x128xf32>
    %433 = arith.negf %432 : vector<8x128xf32>
    %434 = math.exp %433 : vector<8x128xf32>
    %cst_124 = arith.constant 1.000000e+00 : f32
    %435 = vector.broadcast %cst_124 : f32 to vector<8x128xf32>
    %436 = arith.addf %435, %434 : vector<8x128xf32>
    %437 = arith.divf %435, %436 : vector<8x128xf32>
    %438 = vector.extract_strided_slice %425 {offsets = [0, 256], sizes = [8, 128], strides = [1, 1]} : vector<8x512xf32> to vector<8x128xf32>
    %439 = math.tanh %438 : vector<8x128xf32>
    %440 = vector.extract_strided_slice %425 {offsets = [0, 384], sizes = [8, 128], strides = [1, 1]} : vector<8x512xf32> to vector<8x128xf32>
    %441 = arith.negf %440 : vector<8x128xf32>
    %442 = math.exp %441 : vector<8x128xf32>
    %cst_125 = arith.constant 1.000000e+00 : f32
    %443 = vector.broadcast %cst_125 : f32 to vector<8x128xf32>
    %444 = arith.addf %443, %442 : vector<8x128xf32>
    %445 = arith.divf %443, %444 : vector<8x128xf32>
    %446 = arith.mulf %437, %418 : vector<8x128xf32>
    %447 = arith.mulf %431, %439 : vector<8x128xf32>
    %448 = arith.addf %446, %447 : vector<8x128xf32>
    %449 = math.tanh %448 : vector<8x128xf32>
    %450 = arith.mulf %445, %449 : vector<8x128xf32>
    %c3_i32_126 = arith.constant 3 : i32
    %451 = arith.index_cast %c3_i32_126 : i32 to index
    %c0_127 = arith.constant 0 : index
    %c0_128 = arith.constant 0 : index
    %452 = vector.load %arg16[%451, %c0_127, %c0_128] : memref<10x8x512xf32, #tpu.memory_space<vmem>>, vector<1x8x512xf32>
    %453 = vector.shape_cast %452 : vector<1x8x512xf32> to vector<8x512xf32>
    %cst_129 = arith.constant dense<0.000000e+00> : vector<8x512xf32>
    %454 = tpu.matmul %450, %352, %cst_129 {dimension_numbers = #tpu.dot_dimension_numbers<[1], [0], [0], [1], [0, 0, 1, 1], [], []>} : vector<8x128xf32>, vector<128x512xf32>, vector<8x512xf32> -> vector<8x512xf32>
    %455 = arith.addf %453, %454 : vector<8x512xf32>
    %456 = vector.extract_strided_slice %455 {offsets = [0, 0], sizes = [8, 128], strides = [1, 1]} : vector<8x512xf32> to vector<8x128xf32>
    %457 = arith.negf %456 : vector<8x128xf32>
    %458 = math.exp %457 : vector<8x128xf32>
    %cst_130 = arith.constant 1.000000e+00 : f32
    %459 = vector.broadcast %cst_130 : f32 to vector<8x128xf32>
    %460 = arith.addf %459, %458 : vector<8x128xf32>
    %461 = arith.divf %459, %460 : vector<8x128xf32>
    %462 = vector.extract_strided_slice %455 {offsets = [0, 128], sizes = [8, 128], strides = [1, 1]} : vector<8x512xf32> to vector<8x128xf32>
    %463 = arith.negf %462 : vector<8x128xf32>
    %464 = math.exp %463 : vector<8x128xf32>
    %cst_131 = arith.constant 1.000000e+00 : f32
    %465 = vector.broadcast %cst_131 : f32 to vector<8x128xf32>
    %466 = arith.addf %465, %464 : vector<8x128xf32>
    %467 = arith.divf %465, %466 : vector<8x128xf32>
    %468 = vector.extract_strided_slice %455 {offsets = [0, 256], sizes = [8, 128], strides = [1, 1]} : vector<8x512xf32> to vector<8x128xf32>
    %469 = math.tanh %468 : vector<8x128xf32>
    %470 = vector.extract_strided_slice %455 {offsets = [0, 384], sizes = [8, 128], strides = [1, 1]} : vector<8x512xf32> to vector<8x128xf32>
    %471 = arith.negf %470 : vector<8x128xf32>
    %472 = math.exp %471 : vector<8x128xf32>
    %cst_132 = arith.constant 1.000000e+00 : f32
    %473 = vector.broadcast %cst_132 : f32 to vector<8x128xf32>
    %474 = arith.addf %473, %472 : vector<8x128xf32>
    %475 = arith.divf %473, %474 : vector<8x128xf32>
    %476 = arith.mulf %467, %448 : vector<8x128xf32>
    %477 = arith.mulf %461, %469 : vector<8x128xf32>
    %478 = arith.addf %476, %477 : vector<8x128xf32>
    %479 = math.tanh %478 : vector<8x128xf32>
    %480 = arith.mulf %475, %479 : vector<8x128xf32>
    %c4_i32_133 = arith.constant 4 : i32
    %481 = arith.index_cast %c4_i32_133 : i32 to index
    %c0_134 = arith.constant 0 : index
    %c0_135 = arith.constant 0 : index
    %482 = vector.load %arg16[%481, %c0_134, %c0_135] : memref<10x8x512xf32, #tpu.memory_space<vmem>>, vector<1x8x512xf32>
    %483 = vector.shape_cast %482 : vector<1x8x512xf32> to vector<8x512xf32>
    %cst_136 = arith.constant dense<0.000000e+00> : vector<8x512xf32>
    %484 = tpu.matmul %480, %352, %cst_136 {dimension_numbers = #tpu.dot_dimension_numbers<[1], [0], [0], [1], [0, 0, 1, 1], [], []>} : vector<8x128xf32>, vector<128x512xf32>, vector<8x512xf32> -> vector<8x512xf32>
    %485 = arith.addf %483, %484 : vector<8x512xf32>
    %486 = vector.extract_strided_slice %485 {offsets = [0, 0], sizes = [8, 128], strides = [1, 1]} : vector<8x512xf32> to vector<8x128xf32>
    %487 = arith.negf %486 : vector<8x128xf32>
    %488 = math.exp %487 : vector<8x128xf32>
    %cst_137 = arith.constant 1.000000e+00 : f32
    %489 = vector.broadcast %cst_137 : f32 to vector<8x128xf32>
    %490 = arith.addf %489, %488 : vector<8x128xf32>
    %491 = arith.divf %489, %490 : vector<8x128xf32>
    %492 = vector.extract_strided_slice %485 {offsets = [0, 128], sizes = [8, 128], strides = [1, 1]} : vector<8x512xf32> to vector<8x128xf32>
    %493 = arith.negf %492 : vector<8x128xf32>
    %494 = math.exp %493 : vector<8x128xf32>
    %cst_138 = arith.constant 1.000000e+00 : f32
    %495 = vector.broadcast %cst_138 : f32 to vector<8x128xf32>
    %496 = arith.addf %495, %494 : vector<8x128xf32>
    %497 = arith.divf %495, %496 : vector<8x128xf32>
    %498 = vector.extract_strided_slice %485 {offsets = [0, 256], sizes = [8, 128], strides = [1, 1]} : vector<8x512xf32> to vector<8x128xf32>
    %499 = math.tanh %498 : vector<8x128xf32>
    %500 = vector.extract_strided_slice %485 {offsets = [0, 384], sizes = [8, 128], strides = [1, 1]} : vector<8x512xf32> to vector<8x128xf32>
    %501 = arith.negf %500 : vector<8x128xf32>
    %502 = math.exp %501 : vector<8x128xf32>
    %cst_139 = arith.constant 1.000000e+00 : f32
    %503 = vector.broadcast %cst_139 : f32 to vector<8x128xf32>
    %504 = arith.addf %503, %502 : vector<8x128xf32>
    %505 = arith.divf %503, %504 : vector<8x128xf32>
    %506 = arith.mulf %497, %478 : vector<8x128xf32>
    %507 = arith.mulf %491, %499 : vector<8x128xf32>
    %508 = arith.addf %506, %507 : vector<8x128xf32>
    %509 = math.tanh %508 : vector<8x128xf32>
    %510 = arith.mulf %505, %509 : vector<8x128xf32>
    %c5_i32_140 = arith.constant 5 : i32
    %511 = arith.index_cast %c5_i32_140 : i32 to index
    %c0_141 = arith.constant 0 : index
    %c0_142 = arith.constant 0 : index
    %512 = vector.load %arg16[%511, %c0_141, %c0_142] : memref<10x8x512xf32, #tpu.memory_space<vmem>>, vector<1x8x512xf32>
    %513 = vector.shape_cast %512 : vector<1x8x512xf32> to vector<8x512xf32>
    %cst_143 = arith.constant dense<0.000000e+00> : vector<8x512xf32>
    %514 = tpu.matmul %510, %352, %cst_143 {dimension_numbers = #tpu.dot_dimension_numbers<[1], [0], [0], [1], [0, 0, 1, 1], [], []>} : vector<8x128xf32>, vector<128x512xf32>, vector<8x512xf32> -> vector<8x512xf32>
    %515 = arith.addf %513, %514 : vector<8x512xf32>
    %516 = vector.extract_strided_slice %515 {offsets = [0, 0], sizes = [8, 128], strides = [1, 1]} : vector<8x512xf32> to vector<8x128xf32>
    %517 = arith.negf %516 : vector<8x128xf32>
    %518 = math.exp %517 : vector<8x128xf32>
    %cst_144 = arith.constant 1.000000e+00 : f32
    %519 = vector.broadcast %cst_144 : f32 to vector<8x128xf32>
    %520 = arith.addf %519, %518 : vector<8x128xf32>
    %521 = arith.divf %519, %520 : vector<8x128xf32>
    %522 = vector.extract_strided_slice %515 {offsets = [0, 128], sizes = [8, 128], strides = [1, 1]} : vector<8x512xf32> to vector<8x128xf32>
    %523 = arith.negf %522 : vector<8x128xf32>
    %524 = math.exp %523 : vector<8x128xf32>
    %cst_145 = arith.constant 1.000000e+00 : f32
    %525 = vector.broadcast %cst_145 : f32 to vector<8x128xf32>
    %526 = arith.addf %525, %524 : vector<8x128xf32>
    %527 = arith.divf %525, %526 : vector<8x128xf32>
    %528 = vector.extract_strided_slice %515 {offsets = [0, 256], sizes = [8, 128], strides = [1, 1]} : vector<8x512xf32> to vector<8x128xf32>
    %529 = math.tanh %528 : vector<8x128xf32>
    %530 = vector.extract_strided_slice %515 {offsets = [0, 384], sizes = [8, 128], strides = [1, 1]} : vector<8x512xf32> to vector<8x128xf32>
    %531 = arith.negf %530 : vector<8x128xf32>
    %532 = math.exp %531 : vector<8x128xf32>
    %cst_146 = arith.constant 1.000000e+00 : f32
    %533 = vector.broadcast %cst_146 : f32 to vector<8x128xf32>
    %534 = arith.addf %533, %532 : vector<8x128xf32>
    %535 = arith.divf %533, %534 : vector<8x128xf32>
    %536 = arith.mulf %527, %508 : vector<8x128xf32>
    %537 = arith.mulf %521, %529 : vector<8x128xf32>
    %538 = arith.addf %536, %537 : vector<8x128xf32>
    %539 = math.tanh %538 : vector<8x128xf32>
    %540 = arith.mulf %535, %539 : vector<8x128xf32>
    %c6_i32_147 = arith.constant 6 : i32
    %541 = arith.index_cast %c6_i32_147 : i32 to index
    %c0_148 = arith.constant 0 : index
    %c0_149 = arith.constant 0 : index
    %542 = vector.load %arg16[%541, %c0_148, %c0_149] : memref<10x8x512xf32, #tpu.memory_space<vmem>>, vector<1x8x512xf32>
    %543 = vector.shape_cast %542 : vector<1x8x512xf32> to vector<8x512xf32>
    %cst_150 = arith.constant dense<0.000000e+00> : vector<8x512xf32>
    %544 = tpu.matmul %540, %352, %cst_150 {dimension_numbers = #tpu.dot_dimension_numbers<[1], [0], [0], [1], [0, 0, 1, 1], [], []>} : vector<8x128xf32>, vector<128x512xf32>, vector<8x512xf32> -> vector<8x512xf32>
    %545 = arith.addf %543, %544 : vector<8x512xf32>
    %546 = vector.extract_strided_slice %545 {offsets = [0, 0], sizes = [8, 128], strides = [1, 1]} : vector<8x512xf32> to vector<8x128xf32>
    %547 = arith.negf %546 : vector<8x128xf32>
    %548 = math.exp %547 : vector<8x128xf32>
    %cst_151 = arith.constant 1.000000e+00 : f32
    %549 = vector.broadcast %cst_151 : f32 to vector<8x128xf32>
    %550 = arith.addf %549, %548 : vector<8x128xf32>
    %551 = arith.divf %549, %550 : vector<8x128xf32>
    %552 = vector.extract_strided_slice %545 {offsets = [0, 128], sizes = [8, 128], strides = [1, 1]} : vector<8x512xf32> to vector<8x128xf32>
    %553 = arith.negf %552 : vector<8x128xf32>
    %554 = math.exp %553 : vector<8x128xf32>
    %cst_152 = arith.constant 1.000000e+00 : f32
    %555 = vector.broadcast %cst_152 : f32 to vector<8x128xf32>
    %556 = arith.addf %555, %554 : vector<8x128xf32>
    %557 = arith.divf %555, %556 : vector<8x128xf32>
    %558 = vector.extract_strided_slice %545 {offsets = [0, 256], sizes = [8, 128], strides = [1, 1]} : vector<8x512xf32> to vector<8x128xf32>
    %559 = math.tanh %558 : vector<8x128xf32>
    %560 = vector.extract_strided_slice %545 {offsets = [0, 384], sizes = [8, 128], strides = [1, 1]} : vector<8x512xf32> to vector<8x128xf32>
    %561 = arith.negf %560 : vector<8x128xf32>
    %562 = math.exp %561 : vector<8x128xf32>
    %cst_153 = arith.constant 1.000000e+00 : f32
    %563 = vector.broadcast %cst_153 : f32 to vector<8x128xf32>
    %564 = arith.addf %563, %562 : vector<8x128xf32>
    %565 = arith.divf %563, %564 : vector<8x128xf32>
    %566 = arith.mulf %557, %538 : vector<8x128xf32>
    %567 = arith.mulf %551, %559 : vector<8x128xf32>
    %568 = arith.addf %566, %567 : vector<8x128xf32>
    %569 = math.tanh %568 : vector<8x128xf32>
    %570 = arith.mulf %565, %569 : vector<8x128xf32>
    %c7_i32_154 = arith.constant 7 : i32
    %571 = arith.index_cast %c7_i32_154 : i32 to index
    %c0_155 = arith.constant 0 : index
    %c0_156 = arith.constant 0 : index
    %572 = vector.load %arg16[%571, %c0_155, %c0_156] : memref<10x8x512xf32, #tpu.memory_space<vmem>>, vector<1x8x512xf32>
    %573 = vector.shape_cast %572 : vector<1x8x512xf32> to vector<8x512xf32>
    %cst_157 = arith.constant dense<0.000000e+00> : vector<8x512xf32>
    %574 = tpu.matmul %570, %352, %cst_157 {dimension_numbers = #tpu.dot_dimension_numbers<[1], [0], [0], [1], [0, 0, 1, 1], [], []>} : vector<8x128xf32>, vector<128x512xf32>, vector<8x512xf32> -> vector<8x512xf32>
    %575 = arith.addf %573, %574 : vector<8x512xf32>
    %576 = vector.extract_strided_slice %575 {offsets = [0, 0], sizes = [8, 128], strides = [1, 1]} : vector<8x512xf32> to vector<8x128xf32>
    %577 = arith.negf %576 : vector<8x128xf32>
    %578 = math.exp %577 : vector<8x128xf32>
    %cst_158 = arith.constant 1.000000e+00 : f32
    %579 = vector.broadcast %cst_158 : f32 to vector<8x128xf32>
    %580 = arith.addf %579, %578 : vector<8x128xf32>
    %581 = arith.divf %579, %580 : vector<8x128xf32>
    %582 = vector.extract_strided_slice %575 {offsets = [0, 128], sizes = [8, 128], strides = [1, 1]} : vector<8x512xf32> to vector<8x128xf32>
    %583 = arith.negf %582 : vector<8x128xf32>
    %584 = math.exp %583 : vector<8x128xf32>
    %cst_159 = arith.constant 1.000000e+00 : f32
    %585 = vector.broadcast %cst_159 : f32 to vector<8x128xf32>
    %586 = arith.addf %585, %584 : vector<8x128xf32>
    %587 = arith.divf %585, %586 : vector<8x128xf32>
    %588 = vector.extract_strided_slice %575 {offsets = [0, 256], sizes = [8, 128], strides = [1, 1]} : vector<8x512xf32> to vector<8x128xf32>
    %589 = math.tanh %588 : vector<8x128xf32>
    %590 = vector.extract_strided_slice %575 {offsets = [0, 384], sizes = [8, 128], strides = [1, 1]} : vector<8x512xf32> to vector<8x128xf32>
    %591 = arith.negf %590 : vector<8x128xf32>
    %592 = math.exp %591 : vector<8x128xf32>
    %cst_160 = arith.constant 1.000000e+00 : f32
    %593 = vector.broadcast %cst_160 : f32 to vector<8x128xf32>
    %594 = arith.addf %593, %592 : vector<8x128xf32>
    %595 = arith.divf %593, %594 : vector<8x128xf32>
    %596 = arith.mulf %587, %568 : vector<8x128xf32>
    %597 = arith.mulf %581, %589 : vector<8x128xf32>
    %598 = arith.addf %596, %597 : vector<8x128xf32>
    %599 = math.tanh %598 : vector<8x128xf32>
    %600 = arith.mulf %595, %599 : vector<8x128xf32>
    %c8_i32_161 = arith.constant 8 : i32
    %601 = arith.index_cast %c8_i32_161 : i32 to index
    %c0_162 = arith.constant 0 : index
    %c0_163 = arith.constant 0 : index
    %602 = vector.load %arg16[%601, %c0_162, %c0_163] : memref<10x8x512xf32, #tpu.memory_space<vmem>>, vector<1x8x512xf32>
    %603 = vector.shape_cast %602 : vector<1x8x512xf32> to vector<8x512xf32>
    %cst_164 = arith.constant dense<0.000000e+00> : vector<8x512xf32>
    %604 = tpu.matmul %600, %352, %cst_164 {dimension_numbers = #tpu.dot_dimension_numbers<[1], [0], [0], [1], [0, 0, 1, 1], [], []>} : vector<8x128xf32>, vector<128x512xf32>, vector<8x512xf32> -> vector<8x512xf32>
    %605 = arith.addf %603, %604 : vector<8x512xf32>
    %606 = vector.extract_strided_slice %605 {offsets = [0, 0], sizes = [8, 128], strides = [1, 1]} : vector<8x512xf32> to vector<8x128xf32>
    %607 = arith.negf %606 : vector<8x128xf32>
    %608 = math.exp %607 : vector<8x128xf32>
    %cst_165 = arith.constant 1.000000e+00 : f32
    %609 = vector.broadcast %cst_165 : f32 to vector<8x128xf32>
    %610 = arith.addf %609, %608 : vector<8x128xf32>
    %611 = arith.divf %609, %610 : vector<8x128xf32>
    %612 = vector.extract_strided_slice %605 {offsets = [0, 128], sizes = [8, 128], strides = [1, 1]} : vector<8x512xf32> to vector<8x128xf32>
    %613 = arith.negf %612 : vector<8x128xf32>
    %614 = math.exp %613 : vector<8x128xf32>
    %cst_166 = arith.constant 1.000000e+00 : f32
    %615 = vector.broadcast %cst_166 : f32 to vector<8x128xf32>
    %616 = arith.addf %615, %614 : vector<8x128xf32>
    %617 = arith.divf %615, %616 : vector<8x128xf32>
    %618 = vector.extract_strided_slice %605 {offsets = [0, 256], sizes = [8, 128], strides = [1, 1]} : vector<8x512xf32> to vector<8x128xf32>
    %619 = math.tanh %618 : vector<8x128xf32>
    %620 = vector.extract_strided_slice %605 {offsets = [0, 384], sizes = [8, 128], strides = [1, 1]} : vector<8x512xf32> to vector<8x128xf32>
    %621 = arith.negf %620 : vector<8x128xf32>
    %622 = math.exp %621 : vector<8x128xf32>
    %cst_167 = arith.constant 1.000000e+00 : f32
    %623 = vector.broadcast %cst_167 : f32 to vector<8x128xf32>
    %624 = arith.addf %623, %622 : vector<8x128xf32>
    %625 = arith.divf %623, %624 : vector<8x128xf32>
    %626 = arith.mulf %617, %598 : vector<8x128xf32>
    %627 = arith.mulf %611, %619 : vector<8x128xf32>
    %628 = arith.addf %626, %627 : vector<8x128xf32>
    %629 = math.tanh %628 : vector<8x128xf32>
    %630 = arith.mulf %625, %629 : vector<8x128xf32>
    %c9_i32_168 = arith.constant 9 : i32
    %631 = arith.index_cast %c9_i32_168 : i32 to index
    %c0_169 = arith.constant 0 : index
    %c0_170 = arith.constant 0 : index
    %632 = vector.load %arg16[%631, %c0_169, %c0_170] : memref<10x8x512xf32, #tpu.memory_space<vmem>>, vector<1x8x512xf32>
    %633 = vector.shape_cast %632 : vector<1x8x512xf32> to vector<8x512xf32>
    %cst_171 = arith.constant dense<0.000000e+00> : vector<8x512xf32>
    %634 = tpu.matmul %630, %352, %cst_171 {dimension_numbers = #tpu.dot_dimension_numbers<[1], [0], [0], [1], [0, 0, 1, 1], [], []>} : vector<8x128xf32>, vector<128x512xf32>, vector<8x512xf32> -> vector<8x512xf32>
    %635 = arith.addf %633, %634 : vector<8x512xf32>
    %636 = vector.extract_strided_slice %635 {offsets = [0, 0], sizes = [8, 128], strides = [1, 1]} : vector<8x512xf32> to vector<8x128xf32>
    %637 = arith.negf %636 : vector<8x128xf32>
    %638 = math.exp %637 : vector<8x128xf32>
    %cst_172 = arith.constant 1.000000e+00 : f32
    %639 = vector.broadcast %cst_172 : f32 to vector<8x128xf32>
    %640 = arith.addf %639, %638 : vector<8x128xf32>
    %641 = arith.divf %639, %640 : vector<8x128xf32>
    %642 = vector.extract_strided_slice %635 {offsets = [0, 128], sizes = [8, 128], strides = [1, 1]} : vector<8x512xf32> to vector<8x128xf32>
    %643 = arith.negf %642 : vector<8x128xf32>
    %644 = math.exp %643 : vector<8x128xf32>
    %cst_173 = arith.constant 1.000000e+00 : f32
    %645 = vector.broadcast %cst_173 : f32 to vector<8x128xf32>
    %646 = arith.addf %645, %644 : vector<8x128xf32>
    %647 = arith.divf %645, %646 : vector<8x128xf32>
    %648 = vector.extract_strided_slice %635 {offsets = [0, 256], sizes = [8, 128], strides = [1, 1]} : vector<8x512xf32> to vector<8x128xf32>
    %649 = math.tanh %648 : vector<8x128xf32>
    %650 = vector.extract_strided_slice %635 {offsets = [0, 384], sizes = [8, 128], strides = [1, 1]} : vector<8x512xf32> to vector<8x128xf32>
    %651 = arith.negf %650 : vector<8x128xf32>
    %652 = math.exp %651 : vector<8x128xf32>
    %cst_174 = arith.constant 1.000000e+00 : f32
    %653 = vector.broadcast %cst_174 : f32 to vector<8x128xf32>
    %654 = arith.addf %653, %652 : vector<8x128xf32>
    %655 = arith.divf %653, %654 : vector<8x128xf32>
    %656 = arith.mulf %647, %628 : vector<8x128xf32>
    %657 = arith.mulf %641, %649 : vector<8x128xf32>
    %658 = arith.addf %656, %657 : vector<8x128xf32>
    %659 = math.tanh %658 : vector<8x128xf32>
    %660 = arith.mulf %655, %659 : vector<8x128xf32>
    %c10_i32_175 = arith.constant 10 : i32
    %c0_176 = arith.constant 0 : index
    %c0_177 = arith.constant 0 : index
    %661 = vector.load %arg11[%c0_176, %c0_177] : memref<256x512xf32, #tpu.memory_space<vmem>>, vector<256x512xf32>
    %c0_178 = arith.constant 0 : index
    %c0_179 = arith.constant 0 : index
    %662 = vector.load %arg13[%c0_178, %c0_179] : memref<256x512xf32, #tpu.memory_space<vmem>>, vector<256x512xf32>
    %c0_180 = arith.constant 0 : index
    %c0_181 = arith.constant 0 : index
    %663 = vector.load %arg12[%c0_180, %c0_181] : memref<1x512xf32, #tpu.memory_space<vmem>>, vector<1x512xf32>
    %664 = vector.shape_cast %663 : vector<1x512xf32> to vector<1x512xf32>
    %665 = vector.broadcast %664 : vector<1x512xf32> to vector<8x512xf32>
    %c0_182 = arith.constant 0 : index
    %c0_183 = arith.constant 0 : index
    %666 = vector.load %arg14[%c0_182, %c0_183] : memref<1x512xf32, #tpu.memory_space<vmem>>, vector<1x512xf32>
    %667 = vector.shape_cast %666 : vector<1x512xf32> to vector<1x512xf32>
    %668 = vector.broadcast %667 : vector<1x512xf32> to vector<8x512xf32>
    %c0_184 = arith.constant 0 : index
    %c0_185 = arith.constant 0 : index
    %669 = vector.load %arg3[%c0_184, %c0_185] : memref<128x128xf32, #tpu.memory_space<vmem>>, vector<128x128xf32>
    %c0_186 = arith.constant 0 : index
    %c0_187 = arith.constant 0 : index
    %670 = vector.load %arg4[%c0_186, %c0_187] : memref<1x128xf32, #tpu.memory_space<vmem>>, vector<1x128xf32>
    %671 = vector.shape_cast %670 : vector<1x128xf32> to vector<1x128xf32>
    %672 = vector.broadcast %671 : vector<1x128xf32> to vector<8x128xf32>
    %c0_188 = arith.constant 0 : index
    %c0_189 = arith.constant 0 : index
    %673 = vector.load %arg2[%c0_188, %c0_189] : memref<128x128xf32, #tpu.memory_space<vmem>>, vector<128x128xf32>
    %674 = tpu.iota {dimensions = array<i32: 1>} : vector<8x128xi32>
    %675 = arith.sitofp %674 : vector<8x128xi32> to vector<8x128xf32>
    %cst_190 = arith.constant 0.000000e+00 : f32
    %676 = vector.broadcast %cst_190 : f32 to vector<8x128xf32>
    %c0_191 = arith.constant 0 : index
    %c0_192 = arith.constant 0 : index
    %c0_193 = arith.constant 0 : index
    %677 = vector.load %arg15[%c0_191, %c0_192, %c0_193] : memref<8x8x128xf32, #tpu.memory_space<vmem>>, vector<1x8x128xf32>
    %678 = vector.shape_cast %677 : vector<1x8x128xf32> to vector<8x128xf32>
    %679 = vector.shape_cast %676 : vector<8x128xf32> to vector<1x8x128xf32>
    tpu.vector_store %arg15[%c0_191, %c0_192, %c0_193], %679 {strides = array<i32>} : memref<8x8x128xf32, #tpu.memory_space<vmem>>, vector<1x8x128xf32>,
    %c0_194 = arith.constant 0 : index
    %c0_195 = arith.constant 0 : index
    %680 = vector.load %arg1[%c0_194, %c0_195] : memref<8x128xf32, #tpu.memory_space<vmem>>, vector<8x128xf32>
    %c1_i32_196 = arith.constant 1 : i32
    %681 = tpu.concatenate %680, %346 in 1 : vector<8x128xf32>, vector<8x128xf32> -> vector<8x256xf32>
    %cst_197 = arith.constant dense<0.000000e+00> : vector<8x512xf32>
    %682 = tpu.matmul %681, %661, %cst_197 {dimension_numbers = #tpu.dot_dimension_numbers<[1], [0], [0], [1], [0, 0, 1, 1], [], []>} : vector<8x256xf32>, vector<256x512xf32>, vector<8x512xf32> -> vector<8x512xf32>
    %683 = arith.addf %682, %665 : vector<8x512xf32>
    %684 = vector.extract_strided_slice %683 {offsets = [0, 0], sizes = [8, 128], strides = [1, 1]} : vector<8x512xf32> to vector<8x128xf32>
    %685 = arith.negf %684 : vector<8x128xf32>
    %686 = math.exp %685 : vector<8x128xf32>
    %cst_198 = arith.constant 1.000000e+00 : f32
    %687 = vector.broadcast %cst_198 : f32 to vector<8x128xf32>
    %688 = arith.addf %687, %686 : vector<8x128xf32>
    %689 = arith.divf %687, %688 : vector<8x128xf32>
    %690 = vector.extract_strided_slice %683 {offsets = [0, 128], sizes = [8, 128], strides = [1, 1]} : vector<8x512xf32> to vector<8x128xf32>
    %691 = arith.negf %690 : vector<8x128xf32>
    %692 = math.exp %691 : vector<8x128xf32>
    %cst_199 = arith.constant 1.000000e+00 : f32
    %693 = vector.broadcast %cst_199 : f32 to vector<8x128xf32>
    %694 = arith.addf %693, %692 : vector<8x128xf32>
    %695 = arith.divf %693, %694 : vector<8x128xf32>
    %696 = vector.extract_strided_slice %683 {offsets = [0, 256], sizes = [8, 128], strides = [1, 1]} : vector<8x512xf32> to vector<8x128xf32>
    %697 = math.tanh %696 : vector<8x128xf32>
    %698 = vector.extract_strided_slice %683 {offsets = [0, 384], sizes = [8, 128], strides = [1, 1]} : vector<8x512xf32> to vector<8x128xf32>
    %699 = arith.negf %698 : vector<8x128xf32>
    %700 = math.exp %699 : vector<8x128xf32>
    %cst_200 = arith.constant 1.000000e+00 : f32
    %701 = vector.broadcast %cst_200 : f32 to vector<8x128xf32>
    %702 = arith.addf %701, %700 : vector<8x128xf32>
    %703 = arith.divf %701, %702 : vector<8x128xf32>
    %704 = arith.mulf %695, %344 : vector<8x128xf32>
    %705 = arith.mulf %689, %697 : vector<8x128xf32>
    %706 = arith.addf %704, %705 : vector<8x128xf32>
    %707 = math.tanh %706 : vector<8x128xf32>
    %708 = arith.mulf %703, %707 : vector<8x128xf32>
    %709 = tpu.concatenate %708, %660 in 1 : vector<8x128xf32>, vector<8x128xf32> -> vector<8x256xf32>
    %cst_201 = arith.constant dense<0.000000e+00> : vector<8x512xf32>
    %710 = tpu.matmul %709, %662, %cst_201 {dimension_numbers = #tpu.dot_dimension_numbers<[1], [0], [0], [1], [0, 0, 1, 1], [], []>} : vector<8x256xf32>, vector<256x512xf32>, vector<8x512xf32> -> vector<8x512xf32>
    %711 = arith.addf %710, %668 : vector<8x512xf32>
    %712 = vector.extract_strided_slice %711 {offsets = [0, 0], sizes = [8, 128], strides = [1, 1]} : vector<8x512xf32> to vector<8x128xf32>
    %713 = arith.negf %712 : vector<8x128xf32>
    %714 = math.exp %713 : vector<8x128xf32>
    %cst_202 = arith.constant 1.000000e+00 : f32
    %715 = vector.broadcast %cst_202 : f32 to vector<8x128xf32>
    %716 = arith.addf %715, %714 : vector<8x128xf32>
    %717 = arith.divf %715, %716 : vector<8x128xf32>
    %718 = vector.extract_strided_slice %711 {offsets = [0, 128], sizes = [8, 128], strides = [1, 1]} : vector<8x512xf32> to vector<8x128xf32>
    %719 = arith.negf %718 : vector<8x128xf32>
    %720 = math.exp %719 : vector<8x128xf32>
    %cst_203 = arith.constant 1.000000e+00 : f32
    %721 = vector.broadcast %cst_203 : f32 to vector<8x128xf32>
    %722 = arith.addf %721, %720 : vector<8x128xf32>
    %723 = arith.divf %721, %722 : vector<8x128xf32>
    %724 = vector.extract_strided_slice %711 {offsets = [0, 256], sizes = [8, 128], strides = [1, 1]} : vector<8x512xf32> to vector<8x128xf32>
    %725 = math.tanh %724 : vector<8x128xf32>
    %726 = vector.extract_strided_slice %711 {offsets = [0, 384], sizes = [8, 128], strides = [1, 1]} : vector<8x512xf32> to vector<8x128xf32>
    %727 = arith.negf %726 : vector<8x128xf32>
    %728 = math.exp %727 : vector<8x128xf32>
    %cst_204 = arith.constant 1.000000e+00 : f32
    %729 = vector.broadcast %cst_204 : f32 to vector<8x128xf32>
    %730 = arith.addf %729, %728 : vector<8x128xf32>
    %731 = arith.divf %729, %730 : vector<8x128xf32>
    %732 = arith.mulf %723, %658 : vector<8x128xf32>
    %733 = arith.mulf %717, %725 : vector<8x128xf32>
    %734 = arith.addf %732, %733 : vector<8x128xf32>
    %735 = math.tanh %734 : vector<8x128xf32>
    %736 = arith.mulf %731, %735 : vector<8x128xf32>
    %cst_205 = arith.constant dense<0.000000e+00> : vector<8x128xf32>
    %737 = tpu.matmul %736, %669, %cst_205 {dimension_numbers = #tpu.dot_dimension_numbers<[1], [0], [0], [1], [0, 0, 1, 1], [], []>} : vector<8x128xf32>, vector<128x128xf32>, vector<8x128xf32> -> vector<8x128xf32>
    %738 = arith.addf %737, %672 : vector<8x128xf32>
    %739 = arith.index_cast %c1_i32_196 : i32 to index
    %c0_206 = arith.constant 0 : index
    %c0_207 = arith.constant 0 : index
    %740 = vector.load %arg15[%739, %c0_206, %c0_207] : memref<8x8x128xf32, #tpu.memory_space<vmem>>, vector<1x8x128xf32>
    %741 = vector.shape_cast %740 : vector<1x8x128xf32> to vector<8x128xf32>
    %742 = vector.shape_cast %738 : vector<8x128xf32> to vector<1x8x128xf32>
    tpu.vector_store %arg15[%739, %c0_206, %c0_207], %742 {strides = array<i32>} : memref<8x8x128xf32, #tpu.memory_space<vmem>>, vector<1x8x128xf32>,
    %cst_208 = arith.constant dense<0xFF800000> : vector<8xf32>
    %743 = vector.multi_reduction <maximumf>, %738, %cst_208 [1] : vector<8x128xf32> to vector<8xf32>
    %744 = vector.shape_cast %743 : vector<8xf32> to vector<8x1xf32>
    %745 = vector.broadcast %744 : vector<8x1xf32> to vector<8x128xf32>
    %746 = arith.cmpf oeq, %738, %745 : vector<8x128xf32>
    %cst_209 = arith.constant 1.280000e+02 : f32
    %747 = vector.broadcast %cst_209 : f32 to vector<8x128xf32>
    %748 = arith.select %746, %675, %747 : vector<8x128xi1>, vector<8x128xf32>
    %cst_210 = arith.constant dense<0x7F800000> : vector<8xf32>
    %749 = vector.multi_reduction <minimumf>, %748, %cst_210 [1] : vector<8x128xf32> to vector<8xf32>
    %750 = vector.shape_cast %749 : vector<8xf32> to vector<8x1xf32>
    %751 = vector.broadcast %750 : vector<8x1xf32> to vector<8x128xf32>
    %752 = arith.cmpf oeq, %675, %751 : vector<8x128xf32>
    %753 = arith.extui %752 : vector<8x128xi1> to vector<8x128xi32>
    %754 = arith.sitofp %753 : vector<8x128xi32> to vector<8x128xf32>
    %cst_211 = arith.constant dense<0.000000e+00> : vector<8x128xf32>
    %755 = tpu.matmul %754, %673, %cst_211 {dimension_numbers = #tpu.dot_dimension_numbers<[1], [0], [0], [1], [0, 0, 1, 1], [], []>} : vector<8x128xf32>, vector<128x128xf32>, vector<8x128xf32> -> vector<8x128xf32>
    %c2_i32_212 = arith.constant 2 : i32
    %756 = tpu.concatenate %755, %708 in 1 : vector<8x128xf32>, vector<8x128xf32> -> vector<8x256xf32>
    %cst_213 = arith.constant dense<0.000000e+00> : vector<8x512xf32>
    %757 = tpu.matmul %756, %661, %cst_213 {dimension_numbers = #tpu.dot_dimension_numbers<[1], [0], [0], [1], [0, 0, 1, 1], [], []>} : vector<8x256xf32>, vector<256x512xf32>, vector<8x512xf32> -> vector<8x512xf32>
    %758 = arith.addf %757, %665 : vector<8x512xf32>
    %759 = vector.extract_strided_slice %758 {offsets = [0, 0], sizes = [8, 128], strides = [1, 1]} : vector<8x512xf32> to vector<8x128xf32>
    %760 = arith.negf %759 : vector<8x128xf32>
    %761 = math.exp %760 : vector<8x128xf32>
    %cst_214 = arith.constant 1.000000e+00 : f32
    %762 = vector.broadcast %cst_214 : f32 to vector<8x128xf32>
    %763 = arith.addf %762, %761 : vector<8x128xf32>
    %764 = arith.divf %762, %763 : vector<8x128xf32>
    %765 = vector.extract_strided_slice %758 {offsets = [0, 128], sizes = [8, 128], strides = [1, 1]} : vector<8x512xf32> to vector<8x128xf32>
    %766 = arith.negf %765 : vector<8x128xf32>
    %767 = math.exp %766 : vector<8x128xf32>
    %cst_215 = arith.constant 1.000000e+00 : f32
    %768 = vector.broadcast %cst_215 : f32 to vector<8x128xf32>
    %769 = arith.addf %768, %767 : vector<8x128xf32>
    %770 = arith.divf %768, %769 : vector<8x128xf32>
    %771 = vector.extract_strided_slice %758 {offsets = [0, 256], sizes = [8, 128], strides = [1, 1]} : vector<8x512xf32> to vector<8x128xf32>
    %772 = math.tanh %771 : vector<8x128xf32>
    %773 = vector.extract_strided_slice %758 {offsets = [0, 384], sizes = [8, 128], strides = [1, 1]} : vector<8x512xf32> to vector<8x128xf32>
    %774 = arith.negf %773 : vector<8x128xf32>
    %775 = math.exp %774 : vector<8x128xf32>
    %cst_216 = arith.constant 1.000000e+00 : f32
    %776 = vector.broadcast %cst_216 : f32 to vector<8x128xf32>
    %777 = arith.addf %776, %775 : vector<8x128xf32>
    %778 = arith.divf %776, %777 : vector<8x128xf32>
    %779 = arith.mulf %770, %706 : vector<8x128xf32>
    %780 = arith.mulf %764, %772 : vector<8x128xf32>
    %781 = arith.addf %779, %780 : vector<8x128xf32>
    %782 = math.tanh %781 : vector<8x128xf32>
    %783 = arith.mulf %778, %782 : vector<8x128xf32>
    %784 = tpu.concatenate %783, %736 in 1 : vector<8x128xf32>, vector<8x128xf32> -> vector<8x256xf32>
    %cst_217 = arith.constant dense<0.000000e+00> : vector<8x512xf32>
    %785 = tpu.matmul %784, %662, %cst_217 {dimension_numbers = #tpu.dot_dimension_numbers<[1], [0], [0], [1], [0, 0, 1, 1], [], []>} : vector<8x256xf32>, vector<256x512xf32>, vector<8x512xf32> -> vector<8x512xf32>
    %786 = arith.addf %785, %668 : vector<8x512xf32>
    %787 = vector.extract_strided_slice %786 {offsets = [0, 0], sizes = [8, 128], strides = [1, 1]} : vector<8x512xf32> to vector<8x128xf32>
    %788 = arith.negf %787 : vector<8x128xf32>
    %789 = math.exp %788 : vector<8x128xf32>
    %cst_218 = arith.constant 1.000000e+00 : f32
    %790 = vector.broadcast %cst_218 : f32 to vector<8x128xf32>
    %791 = arith.addf %790, %789 : vector<8x128xf32>
    %792 = arith.divf %790, %791 : vector<8x128xf32>
    %793 = vector.extract_strided_slice %786 {offsets = [0, 128], sizes = [8, 128], strides = [1, 1]} : vector<8x512xf32> to vector<8x128xf32>
    %794 = arith.negf %793 : vector<8x128xf32>
    %795 = math.exp %794 : vector<8x128xf32>
    %cst_219 = arith.constant 1.000000e+00 : f32
    %796 = vector.broadcast %cst_219 : f32 to vector<8x128xf32>
    %797 = arith.addf %796, %795 : vector<8x128xf32>
    %798 = arith.divf %796, %797 : vector<8x128xf32>
    %799 = vector.extract_strided_slice %786 {offsets = [0, 256], sizes = [8, 128], strides = [1, 1]} : vector<8x512xf32> to vector<8x128xf32>
    %800 = math.tanh %799 : vector<8x128xf32>
    %801 = vector.extract_strided_slice %786 {offsets = [0, 384], sizes = [8, 128], strides = [1, 1]} : vector<8x512xf32> to vector<8x128xf32>
    %802 = arith.negf %801 : vector<8x128xf32>
    %803 = math.exp %802 : vector<8x128xf32>
    %cst_220 = arith.constant 1.000000e+00 : f32
    %804 = vector.broadcast %cst_220 : f32 to vector<8x128xf32>
    %805 = arith.addf %804, %803 : vector<8x128xf32>
    %806 = arith.divf %804, %805 : vector<8x128xf32>
    %807 = arith.mulf %798, %734 : vector<8x128xf32>
    %808 = arith.mulf %792, %800 : vector<8x128xf32>
    %809 = arith.addf %807, %808 : vector<8x128xf32>
    %810 = math.tanh %809 : vector<8x128xf32>
    %811 = arith.mulf %806, %810 : vector<8x128xf32>
    %cst_221 = arith.constant dense<0.000000e+00> : vector<8x128xf32>
    %812 = tpu.matmul %811, %669, %cst_221 {dimension_numbers = #tpu.dot_dimension_numbers<[1], [0], [0], [1], [0, 0, 1, 1], [], []>} : vector<8x128xf32>, vector<128x128xf32>, vector<8x128xf32> -> vector<8x128xf32>
    %813 = arith.addf %812, %672 : vector<8x128xf32>
    %814 = arith.index_cast %c2_i32_212 : i32 to index
    %c0_222 = arith.constant 0 : index
    %c0_223 = arith.constant 0 : index
    %815 = vector.load %arg15[%814, %c0_222, %c0_223] : memref<8x8x128xf32, #tpu.memory_space<vmem>>, vector<1x8x128xf32>
    %816 = vector.shape_cast %815 : vector<1x8x128xf32> to vector<8x128xf32>
    %817 = vector.shape_cast %813 : vector<8x128xf32> to vector<1x8x128xf32>
    tpu.vector_store %arg15[%814, %c0_222, %c0_223], %817 {strides = array<i32>} : memref<8x8x128xf32, #tpu.memory_space<vmem>>, vector<1x8x128xf32>,
    %cst_224 = arith.constant dense<0xFF800000> : vector<8xf32>
    %818 = vector.multi_reduction <maximumf>, %813, %cst_224 [1] : vector<8x128xf32> to vector<8xf32>
    %819 = vector.shape_cast %818 : vector<8xf32> to vector<8x1xf32>
    %820 = vector.broadcast %819 : vector<8x1xf32> to vector<8x128xf32>
    %821 = arith.cmpf oeq, %813, %820 : vector<8x128xf32>
    %cst_225 = arith.constant 1.280000e+02 : f32
    %822 = vector.broadcast %cst_225 : f32 to vector<8x128xf32>
    %823 = arith.select %821, %675, %822 : vector<8x128xi1>, vector<8x128xf32>
    %cst_226 = arith.constant dense<0x7F800000> : vector<8xf32>
    %824 = vector.multi_reduction <minimumf>, %823, %cst_226 [1] : vector<8x128xf32> to vector<8xf32>
    %825 = vector.shape_cast %824 : vector<8xf32> to vector<8x1xf32>
    %826 = vector.broadcast %825 : vector<8x1xf32> to vector<8x128xf32>
    %827 = arith.cmpf oeq, %675, %826 : vector<8x128xf32>
    %828 = arith.extui %827 : vector<8x128xi1> to vector<8x128xi32>
    %829 = arith.sitofp %828 : vector<8x128xi32> to vector<8x128xf32>
    %cst_227 = arith.constant dense<0.000000e+00> : vector<8x128xf32>
    %830 = tpu.matmul %829, %673, %cst_227 {dimension_numbers = #tpu.dot_dimension_numbers<[1], [0], [0], [1], [0, 0, 1, 1], [], []>} : vector<8x128xf32>, vector<128x128xf32>, vector<8x128xf32> -> vector<8x128xf32>
    %c3_i32_228 = arith.constant 3 : i32
    %831 = tpu.concatenate %830, %783 in 1 : vector<8x128xf32>, vector<8x128xf32> -> vector<8x256xf32>
    %cst_229 = arith.constant dense<0.000000e+00> : vector<8x512xf32>
    %832 = tpu.matmul %831, %661, %cst_229 {dimension_numbers = #tpu.dot_dimension_numbers<[1], [0], [0], [1], [0, 0, 1, 1], [], []>} : vector<8x256xf32>, vector<256x512xf32>, vector<8x512xf32> -> vector<8x512xf32>
    %833 = arith.addf %832, %665 : vector<8x512xf32>
    %834 = vector.extract_strided_slice %833 {offsets = [0, 0], sizes = [8, 128], strides = [1, 1]} : vector<8x512xf32> to vector<8x128xf32>
    %835 = arith.negf %834 : vector<8x128xf32>
    %836 = math.exp %835 : vector<8x128xf32>
    %cst_230 = arith.constant 1.000000e+00 : f32
    %837 = vector.broadcast %cst_230 : f32 to vector<8x128xf32>
    %838 = arith.addf %837, %836 : vector<8x128xf32>
    %839 = arith.divf %837, %838 : vector<8x128xf32>
    %840 = vector.extract_strided_slice %833 {offsets = [0, 128], sizes = [8, 128], strides = [1, 1]} : vector<8x512xf32> to vector<8x128xf32>
    %841 = arith.negf %840 : vector<8x128xf32>
    %842 = math.exp %841 : vector<8x128xf32>
    %cst_231 = arith.constant 1.000000e+00 : f32
    %843 = vector.broadcast %cst_231 : f32 to vector<8x128xf32>
    %844 = arith.addf %843, %842 : vector<8x128xf32>
    %845 = arith.divf %843, %844 : vector<8x128xf32>
    %846 = vector.extract_strided_slice %833 {offsets = [0, 256], sizes = [8, 128], strides = [1, 1]} : vector<8x512xf32> to vector<8x128xf32>
    %847 = math.tanh %846 : vector<8x128xf32>
    %848 = vector.extract_strided_slice %833 {offsets = [0, 384], sizes = [8, 128], strides = [1, 1]} : vector<8x512xf32> to vector<8x128xf32>
    %849 = arith.negf %848 : vector<8x128xf32>
    %850 = math.exp %849 : vector<8x128xf32>
    %cst_232 = arith.constant 1.000000e+00 : f32
    %851 = vector.broadcast %cst_232 : f32 to vector<8x128xf32>
    %852 = arith.addf %851, %850 : vector<8x128xf32>
    %853 = arith.divf %851, %852 : vector<8x128xf32>
    %854 = arith.mulf %845, %781 : vector<8x128xf32>
    %855 = arith.mulf %839, %847 : vector<8x128xf32>
    %856 = arith.addf %854, %855 : vector<8x128xf32>
    %857 = math.tanh %856 : vector<8x128xf32>
    %858 = arith.mulf %853, %857 : vector<8x128xf32>
    %859 = tpu.concatenate %858, %811 in 1 : vector<8x128xf32>, vector<8x128xf32> -> vector<8x256xf32>
    %cst_233 = arith.constant dense<0.000000e+00> : vector<8x512xf32>
    %860 = tpu.matmul %859, %662, %cst_233 {dimension_numbers = #tpu.dot_dimension_numbers<[1], [0], [0], [1], [0, 0, 1, 1], [], []>} : vector<8x256xf32>, vector<256x512xf32>, vector<8x512xf32> -> vector<8x512xf32>
    %861 = arith.addf %860, %668 : vector<8x512xf32>
    %862 = vector.extract_strided_slice %861 {offsets = [0, 0], sizes = [8, 128], strides = [1, 1]} : vector<8x512xf32> to vector<8x128xf32>
    %863 = arith.negf %862 : vector<8x128xf32>
    %864 = math.exp %863 : vector<8x128xf32>
    %cst_234 = arith.constant 1.000000e+00 : f32
    %865 = vector.broadcast %cst_234 : f32 to vector<8x128xf32>
    %866 = arith.addf %865, %864 : vector<8x128xf32>
    %867 = arith.divf %865, %866 : vector<8x128xf32>
    %868 = vector.extract_strided_slice %861 {offsets = [0, 128], sizes = [8, 128], strides = [1, 1]} : vector<8x512xf32> to vector<8x128xf32>
    %869 = arith.negf %868 : vector<8x128xf32>
    %870 = math.exp %869 : vector<8x128xf32>
    %cst_235 = arith.constant 1.000000e+00 : f32
    %871 = vector.broadcast %cst_235 : f32 to vector<8x128xf32>
    %872 = arith.addf %871, %870 : vector<8x128xf32>
    %873 = arith.divf %871, %872 : vector<8x128xf32>
    %874 = vector.extract_strided_slice %861 {offsets = [0, 256], sizes = [8, 128], strides = [1, 1]} : vector<8x512xf32> to vector<8x128xf32>
    %875 = math.tanh %874 : vector<8x128xf32>
    %876 = vector.extract_strided_slice %861 {offsets = [0, 384], sizes = [8, 128], strides = [1, 1]} : vector<8x512xf32> to vector<8x128xf32>
    %877 = arith.negf %876 : vector<8x128xf32>
    %878 = math.exp %877 : vector<8x128xf32>
    %cst_236 = arith.constant 1.000000e+00 : f32
    %879 = vector.broadcast %cst_236 : f32 to vector<8x128xf32>
    %880 = arith.addf %879, %878 : vector<8x128xf32>
    %881 = arith.divf %879, %880 : vector<8x128xf32>
    %882 = arith.mulf %873, %809 : vector<8x128xf32>
    %883 = arith.mulf %867, %875 : vector<8x128xf32>
    %884 = arith.addf %882, %883 : vector<8x128xf32>
    %885 = math.tanh %884 : vector<8x128xf32>
    %886 = arith.mulf %881, %885 : vector<8x128xf32>
    %cst_237 = arith.constant dense<0.000000e+00> : vector<8x128xf32>
    %887 = tpu.matmul %886, %669, %cst_237 {dimension_numbers = #tpu.dot_dimension_numbers<[1], [0], [0], [1], [0, 0, 1, 1], [], []>} : vector<8x128xf32>, vector<128x128xf32>, vector<8x128xf32> -> vector<8x128xf32>
    %888 = arith.addf %887, %672 : vector<8x128xf32>
    %889 = arith.index_cast %c3_i32_228 : i32 to index
    %c0_238 = arith.constant 0 : index
    %c0_239 = arith.constant 0 : index
    %890 = vector.load %arg15[%889, %c0_238, %c0_239] : memref<8x8x128xf32, #tpu.memory_space<vmem>>, vector<1x8x128xf32>
    %891 = vector.shape_cast %890 : vector<1x8x128xf32> to vector<8x128xf32>
    %892 = vector.shape_cast %888 : vector<8x128xf32> to vector<1x8x128xf32>
    tpu.vector_store %arg15[%889, %c0_238, %c0_239], %892 {strides = array<i32>} : memref<8x8x128xf32, #tpu.memory_space<vmem>>, vector<1x8x128xf32>,
    %cst_240 = arith.constant dense<0xFF800000> : vector<8xf32>
    %893 = vector.multi_reduction <maximumf>, %888, %cst_240 [1] : vector<8x128xf32> to vector<8xf32>
    %894 = vector.shape_cast %893 : vector<8xf32> to vector<8x1xf32>
    %895 = vector.broadcast %894 : vector<8x1xf32> to vector<8x128xf32>
    %896 = arith.cmpf oeq, %888, %895 : vector<8x128xf32>
    %cst_241 = arith.constant 1.280000e+02 : f32
    %897 = vector.broadcast %cst_241 : f32 to vector<8x128xf32>
    %898 = arith.select %896, %675, %897 : vector<8x128xi1>, vector<8x128xf32>
    %cst_242 = arith.constant dense<0x7F800000> : vector<8xf32>
    %899 = vector.multi_reduction <minimumf>, %898, %cst_242 [1] : vector<8x128xf32> to vector<8xf32>
    %900 = vector.shape_cast %899 : vector<8xf32> to vector<8x1xf32>
    %901 = vector.broadcast %900 : vector<8x1xf32> to vector<8x128xf32>
    %902 = arith.cmpf oeq, %675, %901 : vector<8x128xf32>
    %903 = arith.extui %902 : vector<8x128xi1> to vector<8x128xi32>
    %904 = arith.sitofp %903 : vector<8x128xi32> to vector<8x128xf32>
    %cst_243 = arith.constant dense<0.000000e+00> : vector<8x128xf32>
    %905 = tpu.matmul %904, %673, %cst_243 {dimension_numbers = #tpu.dot_dimension_numbers<[1], [0], [0], [1], [0, 0, 1, 1], [], []>} : vector<8x128xf32>, vector<128x128xf32>, vector<8x128xf32> -> vector<8x128xf32>
    %c4_i32_244 = arith.constant 4 : i32
    %906 = tpu.concatenate %905, %858 in 1 : vector<8x128xf32>, vector<8x128xf32> -> vector<8x256xf32>
    %cst_245 = arith.constant dense<0.000000e+00> : vector<8x512xf32>
    %907 = tpu.matmul %906, %661, %cst_245 {dimension_numbers = #tpu.dot_dimension_numbers<[1], [0], [0], [1], [0, 0, 1, 1], [], []>} : vector<8x256xf32>, vector<256x512xf32>, vector<8x512xf32> -> vector<8x512xf32>
    %908 = arith.addf %907, %665 : vector<8x512xf32>
    %909 = vector.extract_strided_slice %908 {offsets = [0, 0], sizes = [8, 128], strides = [1, 1]} : vector<8x512xf32> to vector<8x128xf32>
    %910 = arith.negf %909 : vector<8x128xf32>
    %911 = math.exp %910 : vector<8x128xf32>
    %cst_246 = arith.constant 1.000000e+00 : f32
    %912 = vector.broadcast %cst_246 : f32 to vector<8x128xf32>
    %913 = arith.addf %912, %911 : vector<8x128xf32>
    %914 = arith.divf %912, %913 : vector<8x128xf32>
    %915 = vector.extract_strided_slice %908 {offsets = [0, 128], sizes = [8, 128], strides = [1, 1]} : vector<8x512xf32> to vector<8x128xf32>
    %916 = arith.negf %915 : vector<8x128xf32>
    %917 = math.exp %916 : vector<8x128xf32>
    %cst_247 = arith.constant 1.000000e+00 : f32
    %918 = vector.broadcast %cst_247 : f32 to vector<8x128xf32>
    %919 = arith.addf %918, %917 : vector<8x128xf32>
    %920 = arith.divf %918, %919 : vector<8x128xf32>
    %921 = vector.extract_strided_slice %908 {offsets = [0, 256], sizes = [8, 128], strides = [1, 1]} : vector<8x512xf32> to vector<8x128xf32>
    %922 = math.tanh %921 : vector<8x128xf32>
    %923 = vector.extract_strided_slice %908 {offsets = [0, 384], sizes = [8, 128], strides = [1, 1]} : vector<8x512xf32> to vector<8x128xf32>
    %924 = arith.negf %923 : vector<8x128xf32>
    %925 = math.exp %924 : vector<8x128xf32>
    %cst_248 = arith.constant 1.000000e+00 : f32
    %926 = vector.broadcast %cst_248 : f32 to vector<8x128xf32>
    %927 = arith.addf %926, %925 : vector<8x128xf32>
    %928 = arith.divf %926, %927 : vector<8x128xf32>
    %929 = arith.mulf %920, %856 : vector<8x128xf32>
    %930 = arith.mulf %914, %922 : vector<8x128xf32>
    %931 = arith.addf %929, %930 : vector<8x128xf32>
    %932 = math.tanh %931 : vector<8x128xf32>
    %933 = arith.mulf %928, %932 : vector<8x128xf32>
    %934 = tpu.concatenate %933, %886 in 1 : vector<8x128xf32>, vector<8x128xf32> -> vector<8x256xf32>
    %cst_249 = arith.constant dense<0.000000e+00> : vector<8x512xf32>
    %935 = tpu.matmul %934, %662, %cst_249 {dimension_numbers = #tpu.dot_dimension_numbers<[1], [0], [0], [1], [0, 0, 1, 1], [], []>} : vector<8x256xf32>, vector<256x512xf32>, vector<8x512xf32> -> vector<8x512xf32>
    %936 = arith.addf %935, %668 : vector<8x512xf32>
    %937 = vector.extract_strided_slice %936 {offsets = [0, 0], sizes = [8, 128], strides = [1, 1]} : vector<8x512xf32> to vector<8x128xf32>
    %938 = arith.negf %937 : vector<8x128xf32>
    %939 = math.exp %938 : vector<8x128xf32>
    %cst_250 = arith.constant 1.000000e+00 : f32
    %940 = vector.broadcast %cst_250 : f32 to vector<8x128xf32>
    %941 = arith.addf %940, %939 : vector<8x128xf32>
    %942 = arith.divf %940, %941 : vector<8x128xf32>
    %943 = vector.extract_strided_slice %936 {offsets = [0, 128], sizes = [8, 128], strides = [1, 1]} : vector<8x512xf32> to vector<8x128xf32>
    %944 = arith.negf %943 : vector<8x128xf32>
    %945 = math.exp %944 : vector<8x128xf32>
    %cst_251 = arith.constant 1.000000e+00 : f32
    %946 = vector.broadcast %cst_251 : f32 to vector<8x128xf32>
    %947 = arith.addf %946, %945 : vector<8x128xf32>
    %948 = arith.divf %946, %947 : vector<8x128xf32>
    %949 = vector.extract_strided_slice %936 {offsets = [0, 256], sizes = [8, 128], strides = [1, 1]} : vector<8x512xf32> to vector<8x128xf32>
    %950 = math.tanh %949 : vector<8x128xf32>
    %951 = vector.extract_strided_slice %936 {offsets = [0, 384], sizes = [8, 128], strides = [1, 1]} : vector<8x512xf32> to vector<8x128xf32>
    %952 = arith.negf %951 : vector<8x128xf32>
    %953 = math.exp %952 : vector<8x128xf32>
    %cst_252 = arith.constant 1.000000e+00 : f32
    %954 = vector.broadcast %cst_252 : f32 to vector<8x128xf32>
    %955 = arith.addf %954, %953 : vector<8x128xf32>
    %956 = arith.divf %954, %955 : vector<8x128xf32>
    %957 = arith.mulf %948, %884 : vector<8x128xf32>
    %958 = arith.mulf %942, %950 : vector<8x128xf32>
    %959 = arith.addf %957, %958 : vector<8x128xf32>
    %960 = math.tanh %959 : vector<8x128xf32>
    %961 = arith.mulf %956, %960 : vector<8x128xf32>
    %cst_253 = arith.constant dense<0.000000e+00> : vector<8x128xf32>
    %962 = tpu.matmul %961, %669, %cst_253 {dimension_numbers = #tpu.dot_dimension_numbers<[1], [0], [0], [1], [0, 0, 1, 1], [], []>} : vector<8x128xf32>, vector<128x128xf32>, vector<8x128xf32> -> vector<8x128xf32>
    %963 = arith.addf %962, %672 : vector<8x128xf32>
    %964 = arith.index_cast %c4_i32_244 : i32 to index
    %c0_254 = arith.constant 0 : index
    %c0_255 = arith.constant 0 : index
    %965 = vector.load %arg15[%964, %c0_254, %c0_255] : memref<8x8x128xf32, #tpu.memory_space<vmem>>, vector<1x8x128xf32>
    %966 = vector.shape_cast %965 : vector<1x8x128xf32> to vector<8x128xf32>
    %967 = vector.shape_cast %963 : vector<8x128xf32> to vector<1x8x128xf32>
    tpu.vector_store %arg15[%964, %c0_254, %c0_255], %967 {strides = array<i32>} : memref<8x8x128xf32, #tpu.memory_space<vmem>>, vector<1x8x128xf32>,
    %cst_256 = arith.constant dense<0xFF800000> : vector<8xf32>
    %968 = vector.multi_reduction <maximumf>, %963, %cst_256 [1] : vector<8x128xf32> to vector<8xf32>
    %969 = vector.shape_cast %968 : vector<8xf32> to vector<8x1xf32>
    %970 = vector.broadcast %969 : vector<8x1xf32> to vector<8x128xf32>
    %971 = arith.cmpf oeq, %963, %970 : vector<8x128xf32>
    %cst_257 = arith.constant 1.280000e+02 : f32
    %972 = vector.broadcast %cst_257 : f32 to vector<8x128xf32>
    %973 = arith.select %971, %675, %972 : vector<8x128xi1>, vector<8x128xf32>
    %cst_258 = arith.constant dense<0x7F800000> : vector<8xf32>
    %974 = vector.multi_reduction <minimumf>, %973, %cst_258 [1] : vector<8x128xf32> to vector<8xf32>
    %975 = vector.shape_cast %974 : vector<8xf32> to vector<8x1xf32>
    %976 = vector.broadcast %975 : vector<8x1xf32> to vector<8x128xf32>
    %977 = arith.cmpf oeq, %675, %976 : vector<8x128xf32>
    %978 = arith.extui %977 : vector<8x128xi1> to vector<8x128xi32>
    %979 = arith.sitofp %978 : vector<8x128xi32> to vector<8x128xf32>
    %cst_259 = arith.constant dense<0.000000e+00> : vector<8x128xf32>
    %980 = tpu.matmul %979, %673, %cst_259 {dimension_numbers = #tpu.dot_dimension_numbers<[1], [0], [0], [1], [0, 0, 1, 1], [], []>} : vector<8x128xf32>, vector<128x128xf32>, vector<8x128xf32> -> vector<8x128xf32>
    %c5_i32_260 = arith.constant 5 : i32
    %981 = tpu.concatenate %980, %933 in 1 : vector<8x128xf32>, vector<8x128xf32> -> vector<8x256xf32>
    %cst_261 = arith.constant dense<0.000000e+00> : vector<8x512xf32>
    %982 = tpu.matmul %981, %661, %cst_261 {dimension_numbers = #tpu.dot_dimension_numbers<[1], [0], [0], [1], [0, 0, 1, 1], [], []>} : vector<8x256xf32>, vector<256x512xf32>, vector<8x512xf32> -> vector<8x512xf32>
    %983 = arith.addf %982, %665 : vector<8x512xf32>
    %984 = vector.extract_strided_slice %983 {offsets = [0, 0], sizes = [8, 128], strides = [1, 1]} : vector<8x512xf32> to vector<8x128xf32>
    %985 = arith.negf %984 : vector<8x128xf32>
    %986 = math.exp %985 : vector<8x128xf32>
    %cst_262 = arith.constant 1.000000e+00 : f32
    %987 = vector.broadcast %cst_262 : f32 to vector<8x128xf32>
    %988 = arith.addf %987, %986 : vector<8x128xf32>
    %989 = arith.divf %987, %988 : vector<8x128xf32>
    %990 = vector.extract_strided_slice %983 {offsets = [0, 128], sizes = [8, 128], strides = [1, 1]} : vector<8x512xf32> to vector<8x128xf32>
    %991 = arith.negf %990 : vector<8x128xf32>
    %992 = math.exp %991 : vector<8x128xf32>
    %cst_263 = arith.constant 1.000000e+00 : f32
    %993 = vector.broadcast %cst_263 : f32 to vector<8x128xf32>
    %994 = arith.addf %993, %992 : vector<8x128xf32>
    %995 = arith.divf %993, %994 : vector<8x128xf32>
    %996 = vector.extract_strided_slice %983 {offsets = [0, 256], sizes = [8, 128], strides = [1, 1]} : vector<8x512xf32> to vector<8x128xf32>
    %997 = math.tanh %996 : vector<8x128xf32>
    %998 = vector.extract_strided_slice %983 {offsets = [0, 384], sizes = [8, 128], strides = [1, 1]} : vector<8x512xf32> to vector<8x128xf32>
    %999 = arith.negf %998 : vector<8x128xf32>
    %1000 = math.exp %999 : vector<8x128xf32>
    %cst_264 = arith.constant 1.000000e+00 : f32
    %1001 = vector.broadcast %cst_264 : f32 to vector<8x128xf32>
    %1002 = arith.addf %1001, %1000 : vector<8x128xf32>
    %1003 = arith.divf %1001, %1002 : vector<8x128xf32>
    %1004 = arith.mulf %995, %931 : vector<8x128xf32>
    %1005 = arith.mulf %989, %997 : vector<8x128xf32>
    %1006 = arith.addf %1004, %1005 : vector<8x128xf32>
    %1007 = math.tanh %1006 : vector<8x128xf32>
    %1008 = arith.mulf %1003, %1007 : vector<8x128xf32>
    %1009 = tpu.concatenate %1008, %961 in 1 : vector<8x128xf32>, vector<8x128xf32> -> vector<8x256xf32>
    %cst_265 = arith.constant dense<0.000000e+00> : vector<8x512xf32>
    %1010 = tpu.matmul %1009, %662, %cst_265 {dimension_numbers = #tpu.dot_dimension_numbers<[1], [0], [0], [1], [0, 0, 1, 1], [], []>} : vector<8x256xf32>, vector<256x512xf32>, vector<8x512xf32> -> vector<8x512xf32>
    %1011 = arith.addf %1010, %668 : vector<8x512xf32>
    %1012 = vector.extract_strided_slice %1011 {offsets = [0, 0], sizes = [8, 128], strides = [1, 1]} : vector<8x512xf32> to vector<8x128xf32>
    %1013 = arith.negf %1012 : vector<8x128xf32>
    %1014 = math.exp %1013 : vector<8x128xf32>
    %cst_266 = arith.constant 1.000000e+00 : f32
    %1015 = vector.broadcast %cst_266 : f32 to vector<8x128xf32>
    %1016 = arith.addf %1015, %1014 : vector<8x128xf32>
    %1017 = arith.divf %1015, %1016 : vector<8x128xf32>
    %1018 = vector.extract_strided_slice %1011 {offsets = [0, 128], sizes = [8, 128], strides = [1, 1]} : vector<8x512xf32> to vector<8x128xf32>
    %1019 = arith.negf %1018 : vector<8x128xf32>
    %1020 = math.exp %1019 : vector<8x128xf32>
    %cst_267 = arith.constant 1.000000e+00 : f32
    %1021 = vector.broadcast %cst_267 : f32 to vector<8x128xf32>
    %1022 = arith.addf %1021, %1020 : vector<8x128xf32>
    %1023 = arith.divf %1021, %1022 : vector<8x128xf32>
    %1024 = vector.extract_strided_slice %1011 {offsets = [0, 256], sizes = [8, 128], strides = [1, 1]} : vector<8x512xf32> to vector<8x128xf32>
    %1025 = math.tanh %1024 : vector<8x128xf32>
    %1026 = vector.extract_strided_slice %1011 {offsets = [0, 384], sizes = [8, 128], strides = [1, 1]} : vector<8x512xf32> to vector<8x128xf32>
    %1027 = arith.negf %1026 : vector<8x128xf32>
    %1028 = math.exp %1027 : vector<8x128xf32>
    %cst_268 = arith.constant 1.000000e+00 : f32
    %1029 = vector.broadcast %cst_268 : f32 to vector<8x128xf32>
    %1030 = arith.addf %1029, %1028 : vector<8x128xf32>
    %1031 = arith.divf %1029, %1030 : vector<8x128xf32>
    %1032 = arith.mulf %1023, %959 : vector<8x128xf32>
    %1033 = arith.mulf %1017, %1025 : vector<8x128xf32>
    %1034 = arith.addf %1032, %1033 : vector<8x128xf32>
    %1035 = math.tanh %1034 : vector<8x128xf32>
    %1036 = arith.mulf %1031, %1035 : vector<8x128xf32>
    %cst_269 = arith.constant dense<0.000000e+00> : vector<8x128xf32>
    %1037 = tpu.matmul %1036, %669, %cst_269 {dimension_numbers = #tpu.dot_dimension_numbers<[1], [0], [0], [1], [0, 0, 1, 1], [], []>} : vector<8x128xf32>, vector<128x128xf32>, vector<8x128xf32> -> vector<8x128xf32>
    %1038 = arith.addf %1037, %672 : vector<8x128xf32>
    %1039 = arith.index_cast %c5_i32_260 : i32 to index
    %c0_270 = arith.constant 0 : index
    %c0_271 = arith.constant 0 : index
    %1040 = vector.load %arg15[%1039, %c0_270, %c0_271] : memref<8x8x128xf32, #tpu.memory_space<vmem>>, vector<1x8x128xf32>
    %1041 = vector.shape_cast %1040 : vector<1x8x128xf32> to vector<8x128xf32>
    %1042 = vector.shape_cast %1038 : vector<8x128xf32> to vector<1x8x128xf32>
    tpu.vector_store %arg15[%1039, %c0_270, %c0_271], %1042 {strides = array<i32>} : memref<8x8x128xf32, #tpu.memory_space<vmem>>, vector<1x8x128xf32>,
    %cst_272 = arith.constant dense<0xFF800000> : vector<8xf32>
    %1043 = vector.multi_reduction <maximumf>, %1038, %cst_272 [1] : vector<8x128xf32> to vector<8xf32>
    %1044 = vector.shape_cast %1043 : vector<8xf32> to vector<8x1xf32>
    %1045 = vector.broadcast %1044 : vector<8x1xf32> to vector<8x128xf32>
    %1046 = arith.cmpf oeq, %1038, %1045 : vector<8x128xf32>
    %cst_273 = arith.constant 1.280000e+02 : f32
    %1047 = vector.broadcast %cst_273 : f32 to vector<8x128xf32>
    %1048 = arith.select %1046, %675, %1047 : vector<8x128xi1>, vector<8x128xf32>
    %cst_274 = arith.constant dense<0x7F800000> : vector<8xf32>
    %1049 = vector.multi_reduction <minimumf>, %1048, %cst_274 [1] : vector<8x128xf32> to vector<8xf32>
    %1050 = vector.shape_cast %1049 : vector<8xf32> to vector<8x1xf32>
    %1051 = vector.broadcast %1050 : vector<8x1xf32> to vector<8x128xf32>
    %1052 = arith.cmpf oeq, %675, %1051 : vector<8x128xf32>
    %1053 = arith.extui %1052 : vector<8x128xi1> to vector<8x128xi32>
    %1054 = arith.sitofp %1053 : vector<8x128xi32> to vector<8x128xf32>
    %cst_275 = arith.constant dense<0.000000e+00> : vector<8x128xf32>
    %1055 = tpu.matmul %1054, %673, %cst_275 {dimension_numbers = #tpu.dot_dimension_numbers<[1], [0], [0], [1], [0, 0, 1, 1], [], []>} : vector<8x128xf32>, vector<128x128xf32>, vector<8x128xf32> -> vector<8x128xf32>
    %c6_i32_276 = arith.constant 6 : i32
    %1056 = tpu.concatenate %1055, %1008 in 1 : vector<8x128xf32>, vector<8x128xf32> -> vector<8x256xf32>
    %cst_277 = arith.constant dense<0.000000e+00> : vector<8x512xf32>
    %1057 = tpu.matmul %1056, %661, %cst_277 {dimension_numbers = #tpu.dot_dimension_numbers<[1], [0], [0], [1], [0, 0, 1, 1], [], []>} : vector<8x256xf32>, vector<256x512xf32>, vector<8x512xf32> -> vector<8x512xf32>
    %1058 = arith.addf %1057, %665 : vector<8x512xf32>
    %1059 = vector.extract_strided_slice %1058 {offsets = [0, 0], sizes = [8, 128], strides = [1, 1]} : vector<8x512xf32> to vector<8x128xf32>
    %1060 = arith.negf %1059 : vector<8x128xf32>
    %1061 = math.exp %1060 : vector<8x128xf32>
    %cst_278 = arith.constant 1.000000e+00 : f32
    %1062 = vector.broadcast %cst_278 : f32 to vector<8x128xf32>
    %1063 = arith.addf %1062, %1061 : vector<8x128xf32>
    %1064 = arith.divf %1062, %1063 : vector<8x128xf32>
    %1065 = vector.extract_strided_slice %1058 {offsets = [0, 128], sizes = [8, 128], strides = [1, 1]} : vector<8x512xf32> to vector<8x128xf32>
    %1066 = arith.negf %1065 : vector<8x128xf32>
    %1067 = math.exp %1066 : vector<8x128xf32>
    %cst_279 = arith.constant 1.000000e+00 : f32
    %1068 = vector.broadcast %cst_279 : f32 to vector<8x128xf32>
    %1069 = arith.addf %1068, %1067 : vector<8x128xf32>
    %1070 = arith.divf %1068, %1069 : vector<8x128xf32>
    %1071 = vector.extract_strided_slice %1058 {offsets = [0, 256], sizes = [8, 128], strides = [1, 1]} : vector<8x512xf32> to vector<8x128xf32>
    %1072 = math.tanh %1071 : vector<8x128xf32>
    %1073 = vector.extract_strided_slice %1058 {offsets = [0, 384], sizes = [8, 128], strides = [1, 1]} : vector<8x512xf32> to vector<8x128xf32>
    %1074 = arith.negf %1073 : vector<8x128xf32>
    %1075 = math.exp %1074 : vector<8x128xf32>
    %cst_280 = arith.constant 1.000000e+00 : f32
    %1076 = vector.broadcast %cst_280 : f32 to vector<8x128xf32>
    %1077 = arith.addf %1076, %1075 : vector<8x128xf32>
    %1078 = arith.divf %1076, %1077 : vector<8x128xf32>
    %1079 = arith.mulf %1070, %1006 : vector<8x128xf32>
    %1080 = arith.mulf %1064, %1072 : vector<8x128xf32>
    %1081 = arith.addf %1079, %1080 : vector<8x128xf32>
    %1082 = math.tanh %1081 : vector<8x128xf32>
    %1083 = arith.mulf %1078, %1082 : vector<8x128xf32>
    %1084 = tpu.concatenate %1083, %1036 in 1 : vector<8x128xf32>, vector<8x128xf32> -> vector<8x256xf32>
    %cst_281 = arith.constant dense<0.000000e+00> : vector<8x512xf32>
    %1085 = tpu.matmul %1084, %662, %cst_281 {dimension_numbers = #tpu.dot_dimension_numbers<[1], [0], [0], [1], [0, 0, 1, 1], [], []>} : vector<8x256xf32>, vector<256x512xf32>, vector<8x512xf32> -> vector<8x512xf32>
    %1086 = arith.addf %1085, %668 : vector<8x512xf32>
    %1087 = vector.extract_strided_slice %1086 {offsets = [0, 0], sizes = [8, 128], strides = [1, 1]} : vector<8x512xf32> to vector<8x128xf32>
    %1088 = arith.negf %1087 : vector<8x128xf32>
    %1089 = math.exp %1088 : vector<8x128xf32>
    %cst_282 = arith.constant 1.000000e+00 : f32
    %1090 = vector.broadcast %cst_282 : f32 to vector<8x128xf32>
    %1091 = arith.addf %1090, %1089 : vector<8x128xf32>
    %1092 = arith.divf %1090, %1091 : vector<8x128xf32>
    %1093 = vector.extract_strided_slice %1086 {offsets = [0, 128], sizes = [8, 128], strides = [1, 1]} : vector<8x512xf32> to vector<8x128xf32>
    %1094 = arith.negf %1093 : vector<8x128xf32>
    %1095 = math.exp %1094 : vector<8x128xf32>
    %cst_283 = arith.constant 1.000000e+00 : f32
    %1096 = vector.broadcast %cst_283 : f32 to vector<8x128xf32>
    %1097 = arith.addf %1096, %1095 : vector<8x128xf32>
    %1098 = arith.divf %1096, %1097 : vector<8x128xf32>
    %1099 = vector.extract_strided_slice %1086 {offsets = [0, 256], sizes = [8, 128], strides = [1, 1]} : vector<8x512xf32> to vector<8x128xf32>
    %1100 = math.tanh %1099 : vector<8x128xf32>
    %1101 = vector.extract_strided_slice %1086 {offsets = [0, 384], sizes = [8, 128], strides = [1, 1]} : vector<8x512xf32> to vector<8x128xf32>
    %1102 = arith.negf %1101 : vector<8x128xf32>
    %1103 = math.exp %1102 : vector<8x128xf32>
    %cst_284 = arith.constant 1.000000e+00 : f32
    %1104 = vector.broadcast %cst_284 : f32 to vector<8x128xf32>
    %1105 = arith.addf %1104, %1103 : vector<8x128xf32>
    %1106 = arith.divf %1104, %1105 : vector<8x128xf32>
    %1107 = arith.mulf %1098, %1034 : vector<8x128xf32>
    %1108 = arith.mulf %1092, %1100 : vector<8x128xf32>
    %1109 = arith.addf %1107, %1108 : vector<8x128xf32>
    %1110 = math.tanh %1109 : vector<8x128xf32>
    %1111 = arith.mulf %1106, %1110 : vector<8x128xf32>
    %cst_285 = arith.constant dense<0.000000e+00> : vector<8x128xf32>
    %1112 = tpu.matmul %1111, %669, %cst_285 {dimension_numbers = #tpu.dot_dimension_numbers<[1], [0], [0], [1], [0, 0, 1, 1], [], []>} : vector<8x128xf32>, vector<128x128xf32>, vector<8x128xf32> -> vector<8x128xf32>
    %1113 = arith.addf %1112, %672 : vector<8x128xf32>
    %1114 = arith.index_cast %c6_i32_276 : i32 to index
    %c0_286 = arith.constant 0 : index
    %c0_287 = arith.constant 0 : index
    %1115 = vector.load %arg15[%1114, %c0_286, %c0_287] : memref<8x8x128xf32, #tpu.memory_space<vmem>>, vector<1x8x128xf32>
    %1116 = vector.shape_cast %1115 : vector<1x8x128xf32> to vector<8x128xf32>
    %1117 = vector.shape_cast %1113 : vector<8x128xf32> to vector<1x8x128xf32>
    tpu.vector_store %arg15[%1114, %c0_286, %c0_287], %1117 {strides = array<i32>} : memref<8x8x128xf32, #tpu.memory_space<vmem>>, vector<1x8x128xf32>,
    %cst_288 = arith.constant dense<0xFF800000> : vector<8xf32>
    %1118 = vector.multi_reduction <maximumf>, %1113, %cst_288 [1] : vector<8x128xf32> to vector<8xf32>
    %1119 = vector.shape_cast %1118 : vector<8xf32> to vector<8x1xf32>
    %1120 = vector.broadcast %1119 : vector<8x1xf32> to vector<8x128xf32>
    %1121 = arith.cmpf oeq, %1113, %1120 : vector<8x128xf32>
    %cst_289 = arith.constant 1.280000e+02 : f32
    %1122 = vector.broadcast %cst_289 : f32 to vector<8x128xf32>
    %1123 = arith.select %1121, %675, %1122 : vector<8x128xi1>, vector<8x128xf32>
    %cst_290 = arith.constant dense<0x7F800000> : vector<8xf32>
    %1124 = vector.multi_reduction <minimumf>, %1123, %cst_290 [1] : vector<8x128xf32> to vector<8xf32>
    %1125 = vector.shape_cast %1124 : vector<8xf32> to vector<8x1xf32>
    %1126 = vector.broadcast %1125 : vector<8x1xf32> to vector<8x128xf32>
    %1127 = arith.cmpf oeq, %675, %1126 : vector<8x128xf32>
    %1128 = arith.extui %1127 : vector<8x128xi1> to vector<8x128xi32>
    %1129 = arith.sitofp %1128 : vector<8x128xi32> to vector<8x128xf32>
    %cst_291 = arith.constant dense<0.000000e+00> : vector<8x128xf32>
    %1130 = tpu.matmul %1129, %673, %cst_291 {dimension_numbers = #tpu.dot_dimension_numbers<[1], [0], [0], [1], [0, 0, 1, 1], [], []>} : vector<8x128xf32>, vector<128x128xf32>, vector<8x128xf32> -> vector<8x128xf32>
    %c7_i32_292 = arith.constant 7 : i32
    %1131 = tpu.concatenate %1130, %1083 in 1 : vector<8x128xf32>, vector<8x128xf32> -> vector<8x256xf32>
    %cst_293 = arith.constant dense<0.000000e+00> : vector<8x512xf32>
    %1132 = tpu.matmul %1131, %661, %cst_293 {dimension_numbers = #tpu.dot_dimension_numbers<[1], [0], [0], [1], [0, 0, 1, 1], [], []>} : vector<8x256xf32>, vector<256x512xf32>, vector<8x512xf32> -> vector<8x512xf32>
    %1133 = arith.addf %1132, %665 : vector<8x512xf32>
    %1134 = vector.extract_strided_slice %1133 {offsets = [0, 0], sizes = [8, 128], strides = [1, 1]} : vector<8x512xf32> to vector<8x128xf32>
    %1135 = arith.negf %1134 : vector<8x128xf32>
    %1136 = math.exp %1135 : vector<8x128xf32>
    %cst_294 = arith.constant 1.000000e+00 : f32
    %1137 = vector.broadcast %cst_294 : f32 to vector<8x128xf32>
    %1138 = arith.addf %1137, %1136 : vector<8x128xf32>
    %1139 = arith.divf %1137, %1138 : vector<8x128xf32>
    %1140 = vector.extract_strided_slice %1133 {offsets = [0, 128], sizes = [8, 128], strides = [1, 1]} : vector<8x512xf32> to vector<8x128xf32>
    %1141 = arith.negf %1140 : vector<8x128xf32>
    %1142 = math.exp %1141 : vector<8x128xf32>
    %cst_295 = arith.constant 1.000000e+00 : f32
    %1143 = vector.broadcast %cst_295 : f32 to vector<8x128xf32>
    %1144 = arith.addf %1143, %1142 : vector<8x128xf32>
    %1145 = arith.divf %1143, %1144 : vector<8x128xf32>
    %1146 = vector.extract_strided_slice %1133 {offsets = [0, 256], sizes = [8, 128], strides = [1, 1]} : vector<8x512xf32> to vector<8x128xf32>
    %1147 = math.tanh %1146 : vector<8x128xf32>
    %1148 = vector.extract_strided_slice %1133 {offsets = [0, 384], sizes = [8, 128], strides = [1, 1]} : vector<8x512xf32> to vector<8x128xf32>
    %1149 = arith.negf %1148 : vector<8x128xf32>
    %1150 = math.exp %1149 : vector<8x128xf32>
    %cst_296 = arith.constant 1.000000e+00 : f32
    %1151 = vector.broadcast %cst_296 : f32 to vector<8x128xf32>
    %1152 = arith.addf %1151, %1150 : vector<8x128xf32>
    %1153 = arith.divf %1151, %1152 : vector<8x128xf32>
    %1154 = arith.mulf %1145, %1081 : vector<8x128xf32>
    %1155 = arith.mulf %1139, %1147 : vector<8x128xf32>
    %1156 = arith.addf %1154, %1155 : vector<8x128xf32>
    %1157 = math.tanh %1156 : vector<8x128xf32>
    %1158 = arith.mulf %1153, %1157 : vector<8x128xf32>
    %1159 = tpu.concatenate %1158, %1111 in 1 : vector<8x128xf32>, vector<8x128xf32> -> vector<8x256xf32>
    %cst_297 = arith.constant dense<0.000000e+00> : vector<8x512xf32>
    %1160 = tpu.matmul %1159, %662, %cst_297 {dimension_numbers = #tpu.dot_dimension_numbers<[1], [0], [0], [1], [0, 0, 1, 1], [], []>} : vector<8x256xf32>, vector<256x512xf32>, vector<8x512xf32> -> vector<8x512xf32>
    %1161 = arith.addf %1160, %668 : vector<8x512xf32>
    %1162 = vector.extract_strided_slice %1161 {offsets = [0, 0], sizes = [8, 128], strides = [1, 1]} : vector<8x512xf32> to vector<8x128xf32>
    %1163 = arith.negf %1162 : vector<8x128xf32>
    %1164 = math.exp %1163 : vector<8x128xf32>
    %cst_298 = arith.constant 1.000000e+00 : f32
    %1165 = vector.broadcast %cst_298 : f32 to vector<8x128xf32>
    %1166 = arith.addf %1165, %1164 : vector<8x128xf32>
    %1167 = arith.divf %1165, %1166 : vector<8x128xf32>
    %1168 = vector.extract_strided_slice %1161 {offsets = [0, 128], sizes = [8, 128], strides = [1, 1]} : vector<8x512xf32> to vector<8x128xf32>
    %1169 = arith.negf %1168 : vector<8x128xf32>
    %1170 = math.exp %1169 : vector<8x128xf32>
    %cst_299 = arith.constant 1.000000e+00 : f32
    %1171 = vector.broadcast %cst_299 : f32 to vector<8x128xf32>
    %1172 = arith.addf %1171, %1170 : vector<8x128xf32>
    %1173 = arith.divf %1171, %1172 : vector<8x128xf32>
    %1174 = vector.extract_strided_slice %1161 {offsets = [0, 256], sizes = [8, 128], strides = [1, 1]} : vector<8x512xf32> to vector<8x128xf32>
    %1175 = math.tanh %1174 : vector<8x128xf32>
    %1176 = vector.extract_strided_slice %1161 {offsets = [0, 384], sizes = [8, 128], strides = [1, 1]} : vector<8x512xf32> to vector<8x128xf32>
    %1177 = arith.negf %1176 : vector<8x128xf32>
    %1178 = math.exp %1177 : vector<8x128xf32>
    %cst_300 = arith.constant 1.000000e+00 : f32
    %1179 = vector.broadcast %cst_300 : f32 to vector<8x128xf32>
    %1180 = arith.addf %1179, %1178 : vector<8x128xf32>
    %1181 = arith.divf %1179, %1180 : vector<8x128xf32>
    %1182 = arith.mulf %1173, %1109 : vector<8x128xf32>
    %1183 = arith.mulf %1167, %1175 : vector<8x128xf32>
    %1184 = arith.addf %1182, %1183 : vector<8x128xf32>
    %1185 = math.tanh %1184 : vector<8x128xf32>
    %1186 = arith.mulf %1181, %1185 : vector<8x128xf32>
    %cst_301 = arith.constant dense<0.000000e+00> : vector<8x128xf32>
    %1187 = tpu.matmul %1186, %669, %cst_301 {dimension_numbers = #tpu.dot_dimension_numbers<[1], [0], [0], [1], [0, 0, 1, 1], [], []>} : vector<8x128xf32>, vector<128x128xf32>, vector<8x128xf32> -> vector<8x128xf32>
    %1188 = arith.addf %1187, %672 : vector<8x128xf32>
    %1189 = arith.index_cast %c7_i32_292 : i32 to index
    %c0_302 = arith.constant 0 : index
    %c0_303 = arith.constant 0 : index
    %1190 = vector.load %arg15[%1189, %c0_302, %c0_303] : memref<8x8x128xf32, #tpu.memory_space<vmem>>, vector<1x8x128xf32>
    %1191 = vector.shape_cast %1190 : vector<1x8x128xf32> to vector<8x128xf32>
    %1192 = vector.shape_cast %1188 : vector<8x128xf32> to vector<1x8x128xf32>
    tpu.vector_store %arg15[%1189, %c0_302, %c0_303], %1192 {strides = array<i32>} : memref<8x8x128xf32, #tpu.memory_space<vmem>>, vector<1x8x128xf32>,
    %cst_304 = arith.constant dense<0xFF800000> : vector<8xf32>
    %1193 = vector.multi_reduction <maximumf>, %1188, %cst_304 [1] : vector<8x128xf32> to vector<8xf32>
    %1194 = vector.shape_cast %1193 : vector<8xf32> to vector<8x1xf32>
    %1195 = vector.broadcast %1194 : vector<8x1xf32> to vector<8x128xf32>
    %1196 = arith.cmpf oeq, %1188, %1195 : vector<8x128xf32>
    %cst_305 = arith.constant 1.280000e+02 : f32
    %1197 = vector.broadcast %cst_305 : f32 to vector<8x128xf32>
    %1198 = arith.select %1196, %675, %1197 : vector<8x128xi1>, vector<8x128xf32>
    %cst_306 = arith.constant dense<0x7F800000> : vector<8xf32>
    %1199 = vector.multi_reduction <minimumf>, %1198, %cst_306 [1] : vector<8x128xf32> to vector<8xf32>
    %1200 = vector.shape_cast %1199 : vector<8xf32> to vector<8x1xf32>
    %1201 = vector.broadcast %1200 : vector<8x1xf32> to vector<8x128xf32>
    %1202 = arith.cmpf oeq, %675, %1201 : vector<8x128xf32>
    %1203 = arith.extui %1202 : vector<8x128xi1> to vector<8x128xi32>
    %1204 = arith.sitofp %1203 : vector<8x128xi32> to vector<8x128xf32>
    %cst_307 = arith.constant dense<0.000000e+00> : vector<8x128xf32>
    %1205 = tpu.matmul %1204, %673, %cst_307 {dimension_numbers = #tpu.dot_dimension_numbers<[1], [0], [0], [1], [0, 0, 1, 1], [], []>} : vector<8x128xf32>, vector<128x128xf32>, vector<8x128xf32> -> vector<8x128xf32>
    %c7_i32_308 = arith.constant 7 : i32
    return
  }
}

</mosaic_0001>

<llo_original>
// kernel: seq2seq_forward.1
$region0: #{seq2seq_forward.1}
  #allocation0 [shape = 'u32[]', space=smem, size = 0x4, offset = 0x4, fixed_abs, tag = 'smem constant byte address 0x4 - core index']
  #allocation1 [shape = 'u32[72,128]{1,0:T(1,128)}', space=vmem, size = 0x9000, scoped, tag = 'internal scratch']
  #allocation2 [shape = 'f32[10,8,512]{2,1,0:T(8,128)}', space=vmem, size = 0x28000, scoped, tag = 'scratch operand']
  #allocation3 [shape = 'f32[10,8,128]{2,1,0:T(8,128)}', space=vmem, size = 0xa000, scoped, tag = 'scratch operand']
  %s0 = inlined_call_operand.vmem [shape: f32[10,8,128], index: 0, kind: input, shape index: {}]
  %s1 = inlined_call_operand.vmem [shape: f32[8,128], index: 1, kind: input, shape index: {}]
  %s2 = inlined_call_operand.vmem [shape: f32[128,128], index: 2, kind: input, shape index: {}]
  %s3 = inlined_call_operand.vmem [shape: f32[128,128], index: 3, kind: input, shape index: {}]
  %s4 = inlined_call_operand.vmem [shape: f32[1,128], index: 4, kind: input, shape index: {}]
  %s5 = inlined_call_operand.hbm [shape: f32[128,512], index: 5, kind: input, shape index: {}]
  %s6 = inlined_call_operand.hbm [shape: f32[128,512], index: 6, kind: input, shape index: {}]
  %s7 = inlined_call_operand.vmem [shape: f32[1,512], index: 7, kind: input, shape index: {}]
  %s8 = inlined_call_operand.hbm [shape: f32[128,512], index: 8, kind: input, shape index: {}]
  %s9 = inlined_call_operand.hbm [shape: f32[128,512], index: 9, kind: input, shape index: {}]
  %s10 = inlined_call_operand.vmem [shape: f32[1,512], index: 10, kind: input, shape index: {}]
  %s11 = inlined_call_operand.hbm [shape: f32[256,512], index: 11, kind: input, shape index: {}]
  %s12 = inlined_call_operand.vmem [shape: f32[1,512], index: 12, kind: input, shape index: {}]
  %s13 = inlined_call_operand.hbm [shape: f32[256,512], index: 13, kind: input, shape index: {}]
  %s14 = inlined_call_operand.vmem [shape: f32[1,512], index: 14, kind: input, shape index: {}]
  %s15 = inlined_call_operand.vmem [shape: f32[8,8,128], index: 15, kind: output, shape index: {}]
  %s16 = sld [smem:[#allocation0]]
  $region94: #{seq2seq_forward.1} parent=0
    _
  %s18 = ssub.s32 1, %s16
  %s19 = scalar_select 0, %s18, %s16
  $region1: #{seq2seq_forward.1} parent=0
    #allocation4 [shape = 'u8[262144]{0}', space=vmem, size = 0x40000, scoped, tag = 'input window, operand 5, single buffered']
    #allocation5 [shape = 's32[1]{0}', space=sflag, size = 0x4, scoped, tag = 'scoped memory for seq2seq_forward.1']
    #allocation6 [shape = 'u8[262144]{0}', space=vmem, size = 0x40000, scoped, tag = 'input window, operand 6, single buffered']
    #allocation7 [shape = 's32[1]{0}', space=sflag, size = 0x4, scoped, tag = 'scoped memory for seq2seq_forward.1']
    #allocation8 [shape = 'u8[262144]{0}', space=vmem, size = 0x40000, scoped, tag = 'input window, operand 8, single buffered']
    #allocation9 [shape = 'u8[262144]{0}', space=vmem, size = 0x40000, scoped, tag = 'input window, operand 9, single buffered']
    #allocation10 [shape = 's32[1]{0}', space=sflag, size = 0x4, scoped, tag = 'scoped memory for seq2seq_forward.1']
    #allocation11 [shape = 'u8[524288]{0}', space=vmem, size = 0x80000, scoped, tag = 'input window, operand 11, single buffered']
    #allocation12 [shape = 'u8[524288]{0}', space=vmem, size = 0x80000, scoped, tag = 'input window, operand 13, single buffered']
    #allocation13 [shape = 's32[1]{0}', space=sflag, size = 0x4, scoped, tag = 'scoped memory for seq2seq_forward.1']
    %20 = vsyncpa [#allocation5], 0
    %21 = vsyncpa [#allocation7], 0
    %22 = vsyncpa [#allocation10], 0
    %23 = vsyncpa [#allocation13], 0
    // Predicated region
    $region2: #{seq2seq_forward.1} parent=1 // pred_check
      _
    $region3: #{seq2seq_forward.1} parent=1 // pred_check_branch
      %25 = sbr.rel (0) target = $region5
    $region4: #{seq2seq_forward.1} parent=1 // pred_region
      _
    $region5: #{seq2seq_forward.1} parent=1 // pred_fallthru
      _
    // Predicated region
    $region6: #{seq2seq_forward.1} parent=1 // pred_check
      _
    $region7: #{seq2seq_forward.1} parent=1 // pred_check_branch
      %27 = sbr.rel (0) target = $region9
    $region8: #{seq2seq_forward.1} parent=1 // pred_region
      _
    $region9: #{seq2seq_forward.1} parent=1 // pred_fallthru
      _
    // Predicated region
    $region10: #{seq2seq_forward.1} parent=1 // pred_check
      _
    $region11: #{seq2seq_forward.1} parent=1 // pred_check_branch
      %29 = sbr.rel (0) target = $region13
    $region12: #{seq2seq_forward.1} parent=1 // pred_region
      _
    $region13: #{seq2seq_forward.1} parent=1 // pred_fallthru
      _
    // Predicated region
    $region14: #{seq2seq_forward.1} parent=1 // pred_check
      _
    $region15: #{seq2seq_forward.1} parent=1 // pred_check_branch
      %31 = sbr.rel (0) target = $region17
    $region16: #{seq2seq_forward.1} parent=1 // pred_region
      _
    $region17: #{seq2seq_forward.1} parent=1 // pred_fallthru
      _
    // Predicated region
    $region18: #{seq2seq_forward.1} parent=1 // pred_check
      _
    $region19: #{seq2seq_forward.1} parent=1 // pred_check_branch
      %33 = sbr.rel (0) target = $region21
    $region20: #{seq2seq_forward.1} parent=1 // pred_region
      _
    $region21: #{seq2seq_forward.1} parent=1 // pred_fallthru
      _
    // Predicated region
    $region22: #{seq2seq_forward.1} parent=1 // pred_check
      _
    $region23: #{seq2seq_forward.1} parent=1 // pred_check_branch
      %35 = sbr.rel (0) target = $region25
    $region24: #{seq2seq_forward.1} parent=1 // pred_region
      %37 = vsyncadd [#allocation5], 0
      %s38 = sshll.u32 %s5, 4
      %s39 = int_to_ptr.hbm [resolvable:$true] %s38
      %s40 = sshll.u32 [#allocation4], 4
      %s41 = int_to_ptr.vmem [resolvable:$true] %s40
      %46 = dma.hbm_to_vmem [thread:$0]  %s39, 8192, %s41, [#allocation5], 512, 512, 32
    $region25: #{seq2seq_forward.1} parent=1 // pred_fallthru
      _
    // Predicated region
    $region26: #{seq2seq_forward.1} parent=1 // pred_check
      _
    $region27: #{seq2seq_forward.1} parent=1 // pred_check_branch
      %48 = sbr.rel (0) target = $region29
    $region28: #{seq2seq_forward.1} parent=1 // pred_region
      %50 = vsyncadd [#allocation7], 0
      %s51 = sshll.u32 %s6, 4
      %s52 = int_to_ptr.hbm [resolvable:$true] %s51
      %s53 = sshll.u32 [#allocation6], 4
      %s54 = int_to_ptr.vmem [resolvable:$true] %s53
      %59 = dma.hbm_to_vmem [thread:$0]  %s52, 8192, %s54, [#allocation7], 512, 512, 32
    $region29: #{seq2seq_forward.1} parent=1 // pred_fallthru
      _
    // Predicated region
    $region30: #{seq2seq_forward.1} parent=1 // pred_check
      _
    $region31: #{seq2seq_forward.1} parent=1 // pred_check_branch
      %61 = sbr.rel (0) target = $region33
    $region32: #{seq2seq_forward.1} parent=1 // pred_region
      _
    $region33: #{seq2seq_forward.1} parent=1 // pred_fallthru
      _
    // Predicated region
    $region34: #{seq2seq_forward.1} parent=1 // pred_check
      _
    $region35: #{seq2seq_forward.1} parent=1 // pred_check_branch
      %63 = sbr.rel (0) target = $region37
    $region36: #{seq2seq_forward.1} parent=1 // pred_region
      %65 = vsyncadd [#allocation7], 0
      %s66 = sshll.u32 %s8, 4
      %s67 = int_to_ptr.hbm [resolvable:$true] %s66
      %s68 = sshll.u32 [#allocation8], 4
      %s69 = int_to_ptr.vmem [resolvable:$true] %s68
      %74 = dma.hbm_to_vmem [thread:$0]  %s67, 8192, %s69, [#allocation7], 512, 512, 32
    $region37: #{seq2seq_forward.1} parent=1 // pred_fallthru
      _
    // Predicated region
    $region38: #{seq2seq_forward.1} parent=1 // pred_check
      _
    $region39: #{seq2seq_forward.1} parent=1 // pred_check_branch
      %76 = sbr.rel (0) target = $region41
    $region40: #{seq2seq_forward.1} parent=1 // pred_region
      %78 = vsyncadd [#allocation10], 0
      %s79 = sshll.u32 %s9, 4
      %s80 = int_to_ptr.hbm [resolvable:$true] %s79
      %s81 = sshll.u32 [#allocation9], 4
      %s82 = int_to_ptr.vmem [resolvable:$true] %s81
      %87 = dma.hbm_to_vmem [thread:$0]  %s80, 8192, %s82, [#allocation10], 512, 512, 32
    $region41: #{seq2seq_forward.1} parent=1 // pred_fallthru
      _
    // Predicated region
    $region42: #{seq2seq_forward.1} parent=1 // pred_check
      _
    $region43: #{seq2seq_forward.1} parent=1 // pred_check_branch
      %89 = sbr.rel (0) target = $region45
    $region44: #{seq2seq_forward.1} parent=1 // pred_region
      _
    $region45: #{seq2seq_forward.1} parent=1 // pred_fallthru
      _
    // Predicated region
    $region46: #{seq2seq_forward.1} parent=1 // pred_check
      _
    $region47: #{seq2seq_forward.1} parent=1 // pred_check_branch
      %91 = sbr.rel (0) target = $region49
    $region48: #{seq2seq_forward.1} parent=1 // pred_region
      %93 = vsyncadd [#allocation10], 0
      %s94 = sshll.u32 %s11, 4
      %s95 = int_to_ptr.hbm [resolvable:$true] %s94
      %s96 = sshll.u32 [#allocation11], 4
      %s97 = int_to_ptr.vmem [resolvable:$true] %s96
      %102 = dma.hbm_to_vmem [thread:$0]  %s95, 16384, %s97, [#allocation10], 512, 512, 32
    $region49: #{seq2seq_forward.1} parent=1 // pred_fallthru
      _
    // Predicated region
    $region50: #{seq2seq_forward.1} parent=1 // pred_check
      _
    $region51: #{seq2seq_forward.1} parent=1 // pred_check_branch
      %104 = sbr.rel (0) target = $region53
    $region52: #{seq2seq_forward.1} parent=1 // pred_region
      _
    $region53: #{seq2seq_forward.1} parent=1 // pred_fallthru
      _
    // Predicated region
    $region54: #{seq2seq_forward.1} parent=1 // pred_check
      _
    $region55: #{seq2seq_forward.1} parent=1 // pred_check_branch
      %106 = sbr.rel (0) target = $region57
    $region56: #{seq2seq_forward.1} parent=1 // pred_region
      %108 = vsyncadd [#allocation13], 0
      %s109 = sshll.u32 %s13, 4
      %s110 = int_to_ptr.hbm [resolvable:$true] %s109
      %s111 = sshll.u32 [#allocation12], 4
      %s112 = int_to_ptr.vmem [resolvable:$true] %s111
      %117 = dma.hbm_to_vmem [thread:$0]  %s110, 16384, %s112, [#allocation13], 512, 512, 32
    $region57: #{seq2seq_forward.1} parent=1 // pred_fallthru
      _
    // Predicated region
    $region58: #{seq2seq_forward.1} parent=1 // pred_check
      _
    $region59: #{seq2seq_forward.1} parent=1 // pred_check_branch
      %119 = sbr.rel (0) target = $region61
    $region60: #{seq2seq_forward.1} parent=1 // pred_region
      _
    $region61: #{seq2seq_forward.1} parent=1 // pred_fallthru
      _
    // Predicated region
    $region62: #{seq2seq_forward.1} parent=1 // pred_check
      _
    $region63: #{seq2seq_forward.1} parent=1 // pred_check_branch
      %121 = sbr.rel (0) target = $region65
    $region64: #{seq2seq_forward.1} parent=1 // pred_region
      %123 = dma.done [#allocation5], 8192
    $region65: #{seq2seq_forward.1} parent=1 // pred_fallthru
      _
    // Predicated region
    $region66: #{seq2seq_forward.1} parent=1 // pred_check
      _
    $region67: #{seq2seq_forward.1} parent=1 // pred_check_branch
      %125 = sbr.rel (0) target = $region69
    $region68: #{seq2seq_forward.1} parent=1 // pred_region
      %127 = dma.done [#allocation7], 8192
    $region69: #{seq2seq_forward.1} parent=1 // pred_fallthru
      _
    // Predicated region
    $region70: #{seq2seq_forward.1} parent=1 // pred_check
      _
    $region71: #{seq2seq_forward.1} parent=1 // pred_check_branch
      %129 = sbr.rel (0) target = $region73
    $region72: #{seq2seq_forward.1} parent=1 // pred_region
      %131 = dma.done [#allocation7], 8192
    $region73: #{seq2seq_forward.1} parent=1 // pred_fallthru
      _
    // Predicated region
    $region74: #{seq2seq_forward.1} parent=1 // pred_check
      _
    $region75: #{seq2seq_forward.1} parent=1 // pred_check_branch
      %133 = sbr.rel (0) target = $region77
    $region76: #{seq2seq_forward.1} parent=1 // pred_region
      %135 = dma.done [#allocation10], 8192
    $region77: #{seq2seq_forward.1} parent=1 // pred_fallthru
      _
    // Predicated region
    $region78: #{seq2seq_forward.1} parent=1 // pred_check
      _
    $region79: #{seq2seq_forward.1} parent=1 // pred_check_branch
      %137 = sbr.rel (0) target = $region81
    $region80: #{seq2seq_forward.1} parent=1 // pred_region
      %139 = dma.done [#allocation10], 16384
    $region81: #{seq2seq_forward.1} parent=1 // pred_fallthru
      _
    // Predicated region
    $region82: #{seq2seq_forward.1} parent=1 // pred_check
      _
    $region83: #{seq2seq_forward.1} parent=1 // pred_check_branch
      %141 = sbr.rel (0) target = $region85
    $region84: #{seq2seq_forward.1} parent=1 // pred_region
      %143 = dma.done [#allocation13], 16384
    $region85: #{seq2seq_forward.1} parent=1 // pred_fallthru
      _
    %v144 = vld [vmem:[#allocation4] sm:$0xff]
    %v145 = vld [vmem:[#allocation4 + $0x8] sm:$0xff]
    %v146 = vld [vmem:[#allocation4 + $0x10] sm:$0xff]
    %v147 = vld [vmem:[#allocation4 + $0x18] sm:$0xff]
    %v148 = vld [vmem:[#allocation4 + $0x20] sm:$0xff]
    %v149 = vld [vmem:[#allocation4 + $0x28] sm:$0xff]
    %v150 = vld [vmem:[#allocation4 + $0x30] sm:$0xff]
    %v151 = vld [vmem:[#allocation4 + $0x38] sm:$0xff]
    %v152 = vld [vmem:[#allocation4 + $0x40] sm:$0xff]
    %v153 = vld [vmem:[#allocation4 + $0x48] sm:$0xff]
    %v154 = vld [vmem:[#allocation4 + $0x50] sm:$0xff]
    %v155 = vld [vmem:[#allocation4 + $0x58] sm:$0xff]
    %v156 = vld [vmem:[#allocation4 + $0x60] sm:$0xff]
    %v157 = vld [vmem:[#allocation4 + $0x68] sm:$0xff]
    %v158 = vld [vmem:[#allocation4 + $0x70] sm:$0xff]
    %v159 = vld [vmem:[#allocation4 + $0x78] sm:$0xff]
    %v160 = vld [vmem:[#allocation4 + $0x80] sm:$0xff]
    %v161 = vld [vmem:[#allocation4 + $0x88] sm:$0xff]
    %v162 = vld [vmem:[#allocation4 + $0x90] sm:$0xff]
    %v163 = vld [vmem:[#allocation4 + $0x98] sm:$0xff]
    %v164 = vld [vmem:[#allocation4 + $0xa0] sm:$0xff]
    %v165 = vld [vmem:[#allocation4 + $0xa8] sm:$0xff]
    %v166 = vld [vmem:[#allocation4 + $0xb0] sm:$0xff]
    %v167 = vld [vmem:[#allocation4 + $0xb8] sm:$0xff]
    %v168 = vld [vmem:[#allocation4 + $0xc0] sm:$0xff]
    %v169 = vld [vmem:[#allocation4 + $0xc8] sm:$0xff]
    %v170 = vld [vmem:[#allocation4 + $0xd0] sm:$0xff]
    %v171 = vld [vmem:[#allocation4 + $0xd8] sm:$0xff]
    %v172 = vld [vmem:[#allocation4 + $0xe0] sm:$0xff]
    %v173 = vld [vmem:[#allocation4 + $0xe8] sm:$0xff]
    %v174 = vld [vmem:[#allocation4 + $0xf0] sm:$0xff]
    %v175 = vld [vmem:[#allocation4 + $0xf8] sm:$0xff]
    %v176 = vld [vmem:[#allocation4 + $0x100] sm:$0xff]
    %v177 = vld [vmem:[#allocation4 + $0x108] sm:$0xff]
    %v178 = vld [vmem:[#allocation4 + $0x110] sm:$0xff]
    %v179 = vld [vmem:[#allocation4 + $0x118] sm:$0xff]
    %v180 = vld [vmem:[#allocation4 + $0x120] sm:$0xff]
    %v181 = vld [vmem:[#allocation4 + $0x128] sm:$0xff]
    %v182 = vld [vmem:[#allocation4 + $0x130] sm:$0xff]
    %v183 = vld [vmem:[#allocation4 + $0x138] sm:$0xff]
    %v184 = vld [vmem:[#allocation4 + $0x140] sm:$0xff]
    %v185 = vld [vmem:[#allocation4 + $0x148] sm:$0xff]
    %v186 = vld [vmem:[#allocation4 + $0x150] sm:$0xff]
    %v187 = vld [vmem:[#allocation4 + $0x158] sm:$0xff]
    %v188 = vld [vmem:[#allocation4 + $0x160] sm:$0xff]
    %v189 = vld [vmem:[#allocation4 + $0x168] sm:$0xff]
    %v190 = vld [vmem:[#allocation4 + $0x170] sm:$0xff]
    %v191 = vld [vmem:[#allocation4 + $0x178] sm:$0xff]
    %v192 = vld [vmem:[#allocation4 + $0x180] sm:$0xff]
    %v193 = vld [vmem:[#allocation4 + $0x188] sm:$0xff]
    %v194 = vld [vmem:[#allocation4 + $0x190] sm:$0xff]
    %v195 = vld [vmem:[#allocation4 + $0x198] sm:$0xff]
    %v196 = vld [vmem:[#allocation4 + $0x1a0] sm:$0xff]
    %v197 = vld [vmem:[#allocation4 + $0x1a8] sm:$0xff]
    %v198 = vld [vmem:[#allocation4 + $0x1b0] sm:$0xff]
    %v199 = vld [vmem:[#allocation4 + $0x1b8] sm:$0xff]
    %v200 = vld [vmem:[#allocation4 + $0x1c0] sm:$0xff]
    %v201 = vld [vmem:[#allocation4 + $0x1c8] sm:$0xff]
    %v202 = vld [vmem:[#allocation4 + $0x1d0] sm:$0xff]
    %v203 = vld [vmem:[#allocation4 + $0x1d8] sm:$0xff]
    %v204 = vld [vmem:[#allocation4 + $0x1e0] sm:$0xff]
    %v205 = vld [vmem:[#allocation4 + $0x1e8] sm:$0xff]
    %v206 = vld [vmem:[#allocation4 + $0x1f0] sm:$0xff]
    %v207 = vld [vmem:[#allocation4 + $0x1f8] sm:$0xff]
    %v208 = vld [vmem:[#allocation6] sm:$0xff]
    %v209 = vld [vmem:[#allocation6 + $0x8] sm:$0xff]
    %v210 = vld [vmem:[#allocation6 + $0x10] sm:$0xff]
    %v211 = vld [vmem:[#allocation6 + $0x18] sm:$0xff]
    %v212 = vld [vmem:[#allocation6 + $0x20] sm:$0xff]
    %v213 = vld [vmem:[#allocation6 + $0x28] sm:$0xff]
    %v214 = vld [vmem:[#allocation6 + $0x30] sm:$0xff]
    %v215 = vld [vmem:[#allocation6 + $0x38] sm:$0xff]
    %v216 = vld [vmem:[#allocation6 + $0x40] sm:$0xff]
    %v217 = vld [vmem:[#allocation6 + $0x48] sm:$0xff]
    %v218 = vld [vmem:[#allocation6 + $0x50] sm:$0xff]
    %v219 = vld [vmem:[#allocation6 + $0x58] sm:$0xff]
    %v220 = vld [vmem:[#allocation6 + $0x60] sm:$0xff]
    %v221 = vld [vmem:[#allocation6 + $0x68] sm:$0xff]
    %v222 = vld [vmem:[#allocation6 + $0x70] sm:$0xff]
    %v223 = vld [vmem:[#allocation6 + $0x78] sm:$0xff]
    %v224 = vld [vmem:[#allocation6 + $0x80] sm:$0xff]
    %v225 = vld [vmem:[#allocation6 + $0x88] sm:$0xff]
    %v226 = vld [vmem:[#allocation6 + $0x90] sm:$0xff]
    %v227 = vld [vmem:[#allocation6 + $0x98] sm:$0xff]
    %v228 = vld [vmem:[#allocation6 + $0xa0] sm:$0xff]
    %v229 = vld [vmem:[#allocation6 + $0xa8] sm:$0xff]
    %v230 = vld [vmem:[#allocation6 + $0xb0] sm:$0xff]
    %v231 = vld [vmem:[#allocation6 + $0xb8] sm:$0xff]
    %v232 = vld [vmem:[#allocation6 + $0xc0] sm:$0xff]
    %v233 = vld [vmem:[#allocation6 + $0xc8] sm:$0xff]
    %v234 = vld [vmem:[#allocation6 + $0xd0] sm:$0xff]
    %v235 = vld [vmem:[#allocation6 + $0xd8] sm:$0xff]
    %v236 = vld [vmem:[#allocation6 + $0xe0] sm:$0xff]
    %v237 = vld [vmem:[#allocation6 + $0xe8] sm:$0xff]
    %v238 = vld [vmem:[#allocation6 + $0xf0] sm:$0xff]
    %v239 = vld [vmem:[#allocation6 + $0xf8] sm:$0xff]
    %v240 = vld [vmem:[#allocation6 + $0x100] sm:$0xff]
    %v241 = vld [vmem:[#allocation6 + $0x108] sm:$0xff]
    %v242 = vld [vmem:[#allocation6 + $0x110] sm:$0xff]
    %v243 = vld [vmem:[#allocation6 + $0x118] sm:$0xff]
    %v244 = vld [vmem:[#allocation6 + $0x120] sm:$0xff]
    %v245 = vld [vmem:[#allocation6 + $0x128] sm:$0xff]
    %v246 = vld [vmem:[#allocation6 + $0x130] sm:$0xff]
    %v247 = vld [vmem:[#allocation6 + $0x138] sm:$0xff]
    %v248 = vld [vmem:[#allocation6 + $0x140] sm:$0xff]
    %v249 = vld [vmem:[#allocation6 + $0x148] sm:$0xff]
    %v250 = vld [vmem:[#allocation6 + $0x150] sm:$0xff]
    %v251 = vld [vmem:[#allocation6 + $0x158] sm:$0xff]
    %v252 = vld [vmem:[#allocation6 + $0x160] sm:$0xff]
    %v253 = vld [vmem:[#allocation6 + $0x168] sm:$0xff]
    %v254 = vld [vmem:[#allocation6 + $0x170] sm:$0xff]
    %v255 = vld [vmem:[#allocation6 + $0x178] sm:$0xff]
    %v256 = vld [vmem:[#allocation6 + $0x180] sm:$0xff]
    %v257 = vld [vmem:[#allocation6 + $0x188] sm:$0xff]
    %v258 = vld [vmem:[#allocation6 + $0x190] sm:$0xff]
    %v259 = vld [vmem:[#allocation6 + $0x198] sm:$0xff]
    %v260 = vld [vmem:[#allocation6 + $0x1a0] sm:$0xff]
    %v261 = vld [vmem:[#allocation6 + $0x1a8] sm:$0xff]
    %v262 = vld [vmem:[#allocation6 + $0x1b0] sm:$0xff]
    %v263 = vld [vmem:[#allocation6 + $0x1b8] sm:$0xff]
    %v264 = vld [vmem:[#allocation6 + $0x1c0] sm:$0xff]
    %v265 = vld [vmem:[#allocation6 + $0x1c8] sm:$0xff]
    %v266 = vld [vmem:[#allocation6 + $0x1d0] sm:$0xff]
    %v267 = vld [vmem:[#allocation6 + $0x1d8] sm:$0xff]
    %v268 = vld [vmem:[#allocation6 + $0x1e0] sm:$0xff]
    %v269 = vld [vmem:[#allocation6 + $0x1e8] sm:$0xff]
    %v270 = vld [vmem:[#allocation6 + $0x1f0] sm:$0xff]
    %v271 = vld [vmem:[#allocation6 + $0x1f8] sm:$0xff]
    %v272 = vld [vmem:[%s7] sm:$0xf]
    %v273 = vld [vmem:[%s0] sm:$0xff]
    %v274 = vld [vmem:[%s0 + $0x8] sm:$0xff]
    %v275 = vld [vmem:[%s0 + $0x10] sm:$0xff]
    %v276 = vld [vmem:[%s0 + $0x18] sm:$0xff]
    %v277 = vld [vmem:[%s0 + $0x20] sm:$0xff]
    %v278 = vld [vmem:[%s0 + $0x28] sm:$0xff]
    %v279 = vld [vmem:[%s0 + $0x30] sm:$0xff]
    %v280 = vld [vmem:[%s0 + $0x38] sm:$0xff]
    %v281 = vld [vmem:[%s0 + $0x40] sm:$0xff]
    %v282 = vld [vmem:[%s0 + $0x48] sm:$0xff]
    %v284 = vperm.slane %v272, 0
    %v285 = vperm.slane %v272, 1
    %v286 = vperm.slane %v272, 2
    %v287 = vperm.slane %v272, 3
    %292 = vmatpush.msra.mxu0 %v204
    %293 = vmatpush.msra.mxu0 %v200
    %294 = vmatpush.msra.mxu0 %v196
    %295 = vmatpush.msra.mxu0 %v192
    %296 = vmatpush.msra.mxu0 %v188
    %297 = vmatpush.msra.mxu0 %v184
    %298 = vmatpush.msra.mxu0 %v180
    %299 = vmatpush.msra.mxu0 %v176
    %300 = vmatpush.msra.mxu0 %v172
    %301 = vmatpush.msra.mxu0 %v168
    %302 = vmatpush.msra.mxu0 %v164
    %303 = vmatpush.msra.mxu0 %v160
    %304 = vmatpush.msra.mxu0 %v156
    %305 = vmatpush.msra.mxu0 %v152
    %306 = vmatpush.msra.mxu0 %v148
    %307 = vmatpush.msra.mxu0 %v144
    %308 = vmatmul.f32.gmra.mxu0 %v273
    %v309 = vpop.f32.mrf.mxu0
    %v310 = vadd.f32 %v284, %v309
    %311 = vmatmul.f32.gmra.mxu0 %v274
    %v312 = vpop.f32.mrf.mxu0
    %v313 = vadd.f32 %v284, %v312
    %314 = vmatmul.f32.gmra.mxu0 %v275
    %v315 = vpop.f32.mrf.mxu0
    %v316 = vadd.f32 %v284, %v315
    %317 = vmatmul.f32.gmra.mxu0 %v276
    %v318 = vpop.f32.mrf.mxu0
    %v319 = vadd.f32 %v284, %v318
    %320 = vmatmul.f32.gmra.mxu0 %v277
    %v321 = vpop.f32.mrf.mxu0
    %v322 = vadd.f32 %v284, %v321
    %323 = vmatmul.f32.gmra.mxu0 %v278
    %v324 = vpop.f32.mrf.mxu0
    %v325 = vadd.f32 %v284, %v324
    %326 = vmatmul.f32.gmra.mxu0 %v279
    %v327 = vpop.f32.mrf.mxu0
    %v328 = vadd.f32 %v284, %v327
    %329 = vmatmul.f32.gmra.mxu0 %v280
    %v330 = vpop.f32.mrf.mxu0
    %v331 = vadd.f32 %v284, %v330
    %332 = vmatmul.f32.gmra.mxu0 %v281
    %v333 = vpop.f32.mrf.mxu0
    %v334 = vadd.f32 %v284, %v333
    %335 = vmatmul.f32.gmra.mxu0 %v282
    %v336 = vpop.f32.mrf.mxu0
    %v337 = vadd.f32 %v284, %v336
    %338 = vdwg.mxu0
    %339 = vmatpush.msra.mxu0 %v205
    %340 = vmatpush.msra.mxu0 %v201
    %341 = vmatpush.msra.mxu0 %v197
    %342 = vmatpush.msra.mxu0 %v193
    %343 = vmatpush.msra.mxu0 %v189
    %344 = vmatpush.msra.mxu0 %v185
    %345 = vmatpush.msra.mxu0 %v181
    %346 = vmatpush.msra.mxu0 %v177
    %347 = vmatpush.msra.mxu0 %v173
    %348 = vmatpush.msra.mxu0 %v169
    %349 = vmatpush.msra.mxu0 %v165
    %350 = vmatpush.msra.mxu0 %v161
    %351 = vmatpush.msra.mxu0 %v157
    %352 = vmatpush.msra.mxu0 %v153
    %353 = vmatpush.msra.mxu0 %v149
    %354 = vmatpush.msra.mxu0 %v145
    %355 = vmatmul.f32.gmra.mxu0 %v273
    %v356 = vpop.f32.mrf.mxu0
    %v357 = vadd.f32 %v285, %v356
    %358 = vmatmul.f32.gmra.mxu0 %v274
    %v359 = vpop.f32.mrf.mxu0
    %v360 = vadd.f32 %v285, %v359
    %361 = vmatmul.f32.gmra.mxu0 %v275
    %v362 = vpop.f32.mrf.mxu0
    %v363 = vadd.f32 %v285, %v362
    %364 = vmatmul.f32.gmra.mxu0 %v276
    %v365 = vpop.f32.mrf.mxu0
    %v366 = vadd.f32 %v285, %v365
    %367 = vmatmul.f32.gmra.mxu0 %v277
    %v368 = vpop.f32.mrf.mxu0
    %v369 = vadd.f32 %v285, %v368
    %370 = vmatmul.f32.gmra.mxu0 %v278
    %v371 = vpop.f32.mrf.mxu0
    %v372 = vadd.f32 %v285, %v371
    %373 = vmatmul.f32.gmra.mxu0 %v279
    %v374 = vpop.f32.mrf.mxu0
    %v375 = vadd.f32 %v285, %v374
    %376 = vmatmul.f32.gmra.mxu0 %v280
    %v377 = vpop.f32.mrf.mxu0
    %v378 = vadd.f32 %v285, %v377
    %379 = vmatmul.f32.gmra.mxu0 %v281
    %v380 = vpop.f32.mrf.mxu0
    %v381 = vadd.f32 %v285, %v380
    %382 = vmatmul.f32.gmra.mxu0 %v282
    %v383 = vpop.f32.mrf.mxu0
    %v384 = vadd.f32 %v285, %v383
    %385 = vdwg.mxu0
    %386 = vmatpush.msra.mxu0 %v206
    %387 = vmatpush.msra.mxu0 %v202
    %388 = vmatpush.msra.mxu0 %v198
    %389 = vmatpush.msra.mxu0 %v194
    %390 = vmatpush.msra.mxu0 %v190
    %391 = vmatpush.msra.mxu0 %v186
    %392 = vmatpush.msra.mxu0 %v182
    %393 = vmatpush.msra.mxu0 %v178
    %394 = vmatpush.msra.mxu0 %v174
    %395 = vmatpush.msra.mxu0 %v170
    %396 = vmatpush.msra.mxu0 %v166
    %397 = vmatpush.msra.mxu0 %v162
    %398 = vmatpush.msra.mxu0 %v158
    %399 = vmatpush.msra.mxu0 %v154
    %400 = vmatpush.msra.mxu0 %v150
    %401 = vmatpush.msra.mxu0 %v146
    %402 = vmatmul.f32.gmra.mxu0 %v273
    %v403 = vpop.f32.mrf.mxu0
    %v404 = vadd.f32 %v286, %v403
    %405 = vmatmul.f32.gmra.mxu0 %v274
    %v406 = vpop.f32.mrf.mxu0
    %v407 = vadd.f32 %v286, %v406
    %408 = vmatmul.f32.gmra.mxu0 %v275
    %v409 = vpop.f32.mrf.mxu0
    %v410 = vadd.f32 %v286, %v409
    %411 = vmatmul.f32.gmra.mxu0 %v276
    %v412 = vpop.f32.mrf.mxu0
    %v413 = vadd.f32 %v286, %v412
    %414 = vmatmul.f32.gmra.mxu0 %v277
    %v415 = vpop.f32.mrf.mxu0
    %v416 = vadd.f32 %v286, %v415
    %417 = vmatmul.f32.gmra.mxu0 %v278
    %v418 = vpop.f32.mrf.mxu0
    %v419 = vadd.f32 %v286, %v418
    %420 = vmatmul.f32.gmra.mxu0 %v279
    %v421 = vpop.f32.mrf.mxu0
    %v422 = vadd.f32 %v286, %v421
    %423 = vmatmul.f32.gmra.mxu0 %v280
    %v424 = vpop.f32.mrf.mxu0
    %v425 = vadd.f32 %v286, %v424
    %426 = vmatmul.f32.gmra.mxu0 %v281
    %v427 = vpop.f32.mrf.mxu0
    %v428 = vadd.f32 %v286, %v427
    %429 = vmatmul.f32.gmra.mxu0 %v282
    %v430 = vpop.f32.mrf.mxu0
    %v431 = vadd.f32 %v286, %v430
    %432 = vdwg.mxu0
    %433 = vmatpush.msra.mxu0 %v207
    %434 = vmatpush.msra.mxu0 %v203
    %435 = vmatpush.msra.mxu0 %v199
    %436 = vmatpush.msra.mxu0 %v195
    %437 = vmatpush.msra.mxu0 %v191
    %438 = vmatpush.msra.mxu0 %v187
    %439 = vmatpush.msra.mxu0 %v183
    %440 = vmatpush.msra.mxu0 %v179
    %441 = vmatpush.msra.mxu0 %v175
    %442 = vmatpush.msra.mxu0 %v171
    %443 = vmatpush.msra.mxu0 %v167
    %444 = vmatpush.msra.mxu0 %v163
    %445 = vmatpush.msra.mxu0 %v159
    %446 = vmatpush.msra.mxu0 %v155
    %447 = vmatpush.msra.mxu0 %v151
    %448 = vmatpush.msra.mxu0 %v147
    %449 = vmatmul.f32.gmra.mxu0 %v273
    %v450 = vpop.f32.mrf.mxu0
    %v451 = vadd.f32 %v287, %v450
    %452 = vmatmul.f32.gmra.mxu0 %v274
    %v453 = vpop.f32.mrf.mxu0
    %v454 = vadd.f32 %v287, %v453
    %455 = vmatmul.f32.gmra.mxu0 %v275
    %v456 = vpop.f32.mrf.mxu0
    %v457 = vadd.f32 %v287, %v456
    %458 = vmatmul.f32.gmra.mxu0 %v276
    %v459 = vpop.f32.mrf.mxu0
    %v460 = vadd.f32 %v287, %v459
    %461 = vmatmul.f32.gmra.mxu0 %v277
    %v462 = vpop.f32.mrf.mxu0
    %v463 = vadd.f32 %v287, %v462
    %464 = vmatmul.f32.gmra.mxu0 %v278
    %v465 = vpop.f32.mrf.mxu0
    %v466 = vadd.f32 %v287, %v465
    %467 = vmatmul.f32.gmra.mxu0 %v279
    %v468 = vpop.f32.mrf.mxu0
    %v469 = vadd.f32 %v287, %v468
    %470 = vmatmul.f32.gmra.mxu0 %v280
    %v471 = vpop.f32.mrf.mxu0
    %v472 = vadd.f32 %v287, %v471
    %473 = vmatmul.f32.gmra.mxu0 %v281
    %v474 = vpop.f32.mrf.mxu0
    %v475 = vadd.f32 %v287, %v474
    %476 = vmatmul.f32.gmra.mxu0 %v282
    %v477 = vpop.f32.mrf.mxu0
    %v478 = vadd.f32 %v287, %v477
    %479 = vdwg.mxu0
    %480 = vst [vmem:[#allocation2] sm:$0xff] %v310
    %481 = vst [vmem:[#allocation2 + $0x8] sm:$0xff] %v357
    %482 = vst [vmem:[#allocation2 + $0x10] sm:$0xff] %v404
    %483 = vst [vmem:[#allocation2 + $0x18] sm:$0xff] %v451
    %484 = vst [vmem:[#allocation2 + $0x20] sm:$0xff] %v313
    %485 = vst [vmem:[#allocation2 + $0x28] sm:$0xff] %v360
    %486 = vst [vmem:[#allocation2 + $0x30] sm:$0xff] %v407
    %487 = vst [vmem:[#allocation2 + $0x38] sm:$0xff] %v454
    %488 = vst [vmem:[#allocation2 + $0x40] sm:$0xff] %v316
    %489 = vst [vmem:[#allocation2 + $0x48] sm:$0xff] %v363
    %490 = vst [vmem:[#allocation2 + $0x50] sm:$0xff] %v410
    %491 = vst [vmem:[#allocation2 + $0x58] sm:$0xff] %v457
    %492 = vst [vmem:[#allocation2 + $0x60] sm:$0xff] %v319
    %493 = vst [vmem:[#allocation2 + $0x68] sm:$0xff] %v366
    %494 = vst [vmem:[#allocation2 + $0x70] sm:$0xff] %v413
    %495 = vst [vmem:[#allocation2 + $0x78] sm:$0xff] %v460
    %496 = vst [vmem:[#allocation2 + $0x80] sm:$0xff] %v322
    %497 = vst [vmem:[#allocation2 + $0x88] sm:$0xff] %v369
    %498 = vst [vmem:[#allocation2 + $0x90] sm:$0xff] %v416
    %499 = vst [vmem:[#allocation2 + $0x98] sm:$0xff] %v463
    %500 = vst [vmem:[#allocation2 + $0xa0] sm:$0xff] %v325
    %501 = vst [vmem:[#allocation2 + $0xa8] sm:$0xff] %v372
    %502 = vst [vmem:[#allocation2 + $0xb0] sm:$0xff] %v419
    %503 = vst [vmem:[#allocation2 + $0xb8] sm:$0xff] %v466
    %504 = vst [vmem:[#allocation2 + $0xc0] sm:$0xff] %v328
    %505 = vst [vmem:[#allocation2 + $0xc8] sm:$0xff] %v375
    %506 = vst [vmem:[#allocation2 + $0xd0] sm:$0xff] %v422
    %507 = vst [vmem:[#allocation2 + $0xd8] sm:$0xff] %v469
    %508 = vst [vmem:[#allocation2 + $0xe0] sm:$0xff] %v331
    %509 = vst [vmem:[#allocation2 + $0xe8] sm:$0xff] %v378
    %510 = vst [vmem:[#allocation2 + $0xf0] sm:$0xff] %v425
    %511 = vst [vmem:[#allocation2 + $0xf8] sm:$0xff] %v472
    %512 = vst [vmem:[#allocation2 + $0x100] sm:$0xff] %v334
    %513 = vst [vmem:[#allocation2 + $0x108] sm:$0xff] %v381
    %514 = vst [vmem:[#allocation2 + $0x110] sm:$0xff] %v428
    %515 = vst [vmem:[#allocation2 + $0x118] sm:$0xff] %v475
    %516 = vst [vmem:[#allocation2 + $0x120] sm:$0xff] %v337
    %517 = vst [vmem:[#allocation2 + $0x128] sm:$0xff] %v384
    %518 = vst [vmem:[#allocation2 + $0x130] sm:$0xff] %v431
    %519 = vst [vmem:[#allocation2 + $0x138] sm:$0xff] %v478
    %v520 = vld [vmem:[#allocation2] sm:$0xff]
    %v521 = vld [vmem:[#allocation2 + $0x8] sm:$0xff]
    %v522 = vld [vmem:[#allocation2 + $0x10] sm:$0xff]
    %v523 = vld [vmem:[#allocation2 + $0x18] sm:$0xff]
    %524 = vmatpush.msra.mxu0 %v268
    %525 = vmatpush.msra.mxu0 %v264
    %526 = vmatpush.msra.mxu0 %v260
    %527 = vmatpush.msra.mxu0 %v256
    %528 = vmatpush.msra.mxu0 %v252
    %529 = vmatpush.msra.mxu0 %v248
    %530 = vmatpush.msra.mxu0 %v244
    %531 = vmatpush.msra.mxu0 %v240
    %532 = vmatpush.msra.mxu0 %v236
    %533 = vmatpush.msra.mxu0 %v232
    %534 = vmatpush.msra.mxu0 %v228
    %535 = vmatpush.msra.mxu0 %v224
    %536 = vmatpush.msra.mxu0 %v220
    %537 = vmatpush.msra.mxu0 %v216
    %538 = vmatpush.msra.mxu0 %v212
    %539 = vmatpush.msra.mxu0 %v208
    %540 = vmatmul.f32.gmra.mxu0 0.0
    %v541 = vpop.f32.mrf.mxu0
    %v542 = vadd.f32 0.0, %v541
    %543 = vdwg.mxu0
    %544 = vmatpush.msra.mxu0 %v269
    %545 = vmatpush.msra.mxu0 %v265
    %546 = vmatpush.msra.mxu0 %v261
    %547 = vmatpush.msra.mxu0 %v257
    %548 = vmatpush.msra.mxu0 %v253
    %549 = vmatpush.msra.mxu0 %v249
    %550 = vmatpush.msra.mxu0 %v245
    %551 = vmatpush.msra.mxu0 %v241
    %552 = vmatpush.msra.mxu0 %v237
    %553 = vmatpush.msra.mxu0 %v233
    %554 = vmatpush.msra.mxu0 %v229
    %555 = vmatpush.msra.mxu0 %v225
    %556 = vmatpush.msra.mxu0 %v221
    %557 = vmatpush.msra.mxu0 %v217
    %558 = vmatpush.msra.mxu0 %v213
    %559 = vmatpush.msra.mxu0 %v209
    %560 = vmatmul.f32.gmra.mxu0 0.0
    %v561 = vpop.f32.mrf.mxu0
    %v562 = vadd.f32 0.0, %v561
    %563 = vdwg.mxu0
    %564 = vmatpush.msra.mxu0 %v270
    %565 = vmatpush.msra.mxu0 %v266
    %566 = vmatpush.msra.mxu0 %v262
    %567 = vmatpush.msra.mxu0 %v258
    %568 = vmatpush.msra.mxu0 %v254
    %569 = vmatpush.msra.mxu0 %v250
    %570 = vmatpush.msra.mxu0 %v246
    %571 = vmatpush.msra.mxu0 %v242
    %572 = vmatpush.msra.mxu0 %v238
    %573 = vmatpush.msra.mxu0 %v234
    %574 = vmatpush.msra.mxu0 %v230
    %575 = vmatpush.msra.mxu0 %v226
    %576 = vmatpush.msra.mxu0 %v222
    %577 = vmatpush.msra.mxu0 %v218
    %578 = vmatpush.msra.mxu0 %v214
    %579 = vmatpush.msra.mxu0 %v210
    %580 = vmatmul.f32.gmra.mxu0 0.0
    %v581 = vpop.f32.mrf.mxu0
    %v582 = vadd.f32 0.0, %v581
    %583 = vdwg.mxu0
    %584 = vmatpush.msra.mxu0 %v271
    %585 = vmatpush.msra.mxu0 %v267
    %586 = vmatpush.msra.mxu0 %v263
    %587 = vmatpush.msra.mxu0 %v259
    %588 = vmatpush.msra.mxu0 %v255
    %589 = vmatpush.msra.mxu0 %v251
    %590 = vmatpush.msra.mxu0 %v247
    %591 = vmatpush.msra.mxu0 %v243
    %592 = vmatpush.msra.mxu0 %v239
    %593 = vmatpush.msra.mxu0 %v235
    %594 = vmatpush.msra.mxu0 %v231
    %595 = vmatpush.msra.mxu0 %v227
    %596 = vmatpush.msra.mxu0 %v223
    %597 = vmatpush.msra.mxu0 %v219
    %598 = vmatpush.msra.mxu0 %v215
    %599 = vmatpush.msra.mxu0 %v211
    %600 = vmatmul.f32.gmra.mxu0 0.0
    %v601 = vpop.f32.mrf.mxu0
    %v602 = vadd.f32 0.0, %v601
    %603 = vdwg.mxu0
    %v604 = vadd.f32 %v520, %v542
    %v605 = vadd.f32 %v521, %v562
    %v606 = vadd.f32 %v522, %v582
    %v607 = vadd.f32 %v523, %v602
    %v608 = vxor.u32 %v604, 2147483648
    %v609 = vmul.f32 %v608, 1.442695
    %v610 = vpow.pop %v609
    %v611 = vadd.f32 %v610, 1.0
    %v612 = vrcp.pop %v611
    %v613 = vmul.f32 %v611, %v612
    %v614 = vsub.f32 1.0, %v613
    %v615 = vmul.f32 %v612, %v614
    %v616 = vadd.f32 %v612, %v615
    %vm617 = vweird.f32 %v611
    %vm618 = vweird.f32 %v612
    %vm619 = vmor %vm617, %vm618
    %v620 = vsel %vm619, %v612, %v616
    %v621 = vand.u32 2147483647, %v611
    %vm622 = vcmp.eq.f32.partialorder %v621, 8.507059e+37
    %v623 = vand.u32 %v611, 2147483648
    %v624 = vor.u32 1.1754944e-38, %v623
    %v625 = vsel %vm622, %v624, %v620
    %v626 = vmul.f32 1.0, %v625
    %v627 = vxor.u32 %v605, 2147483648
    %v628 = vmul.f32 %v627, 1.442695
    %v629 = vpow.pop %v628
    %v630 = vadd.f32 %v629, 1.0
    %v631 = vrcp.pop %v630
    %v632 = vmul.f32 %v630, %v631
    %v633 = vsub.f32 1.0, %v632
    %v634 = vmul.f32 %v631, %v633
    %v635 = vadd.f32 %v631, %v634
    %vm636 = vweird.f32 %v630
    %vm637 = vweird.f32 %v631
    %vm638 = vmor %vm636, %vm637
    %v639 = vsel %vm638, %v631, %v635
    %v640 = vand.u32 2147483647, %v630
    %vm641 = vcmp.eq.f32.partialorder %v640, 8.507059e+37
    %v642 = vand.u32 %v630, 2147483648
    %v643 = vor.u32 1.1754944e-38, %v642
    %v644 = vsel %vm641, %v643, %v639
    %v645 = vmul.f32 1.0, %v644
    %v646 = vtanh.pop %v606
    %v647 = vxor.u32 %v607, 2147483648
    %v648 = vmul.f32 %v647, 1.442695
    %v649 = vpow.pop %v648
    %v650 = vadd.f32 %v649, 1.0
    %v651 = vrcp.pop %v650
    %v652 = vmul.f32 %v650, %v651
    %v653 = vsub.f32 1.0, %v652
    %v654 = vmul.f32 %v651, %v653
    %v655 = vadd.f32 %v651, %v654
    %vm656 = vweird.f32 %v650
    %vm657 = vweird.f32 %v651
    %vm658 = vmor %vm656, %vm657
    %v659 = vsel %vm658, %v651, %v655
    %v660 = vand.u32 2147483647, %v650
    %vm661 = vcmp.eq.f32.partialorder %v660, 8.507059e+37
    %v662 = vand.u32 %v650, 2147483648
    %v663 = vor.u32 1.1754944e-38, %v662
    %v664 = vsel %vm661, %v663, %v659
    %v665 = vmul.f32 1.0, %v664
    %v666 = vmul.f32 %v645, 0.0
    %v667 = vmul.f32 %v626, %v646
    %v668 = vadd.f32 %v666, %v667
    %v669 = vtanh.pop %v668
    %v670 = vmul.f32 %v665, %v669
    %671 = vst [vmem:[#allocation3] sm:$0xff] %v670
    %s672 = scalar_lea.vmem [#allocation2], 32
    %v673 = vld [vmem:[%s672] sm:$0xff]
    %v674 = vld [vmem:[%s672 + $0x8] sm:$0xff]
    %v675 = vld [vmem:[%s672 + $0x10] sm:$0xff]
    %v676 = vld [vmem:[%s672 + $0x18] sm:$0xff]
    %677 = vmatpush.msra.mxu0 %v268
    %678 = vmatpush.msra.mxu0 %v264
    %679 = vmatpush.msra.mxu0 %v260
    %680 = vmatpush.msra.mxu0 %v256
    %681 = vmatpush.msra.mxu0 %v252
    %682 = vmatpush.msra.mxu0 %v248
    %683 = vmatpush.msra.mxu0 %v244
    %684 = vmatpush.msra.mxu0 %v240
    %685 = vmatpush.msra.mxu0 %v236
    %686 = vmatpush.msra.mxu0 %v232
    %687 = vmatpush.msra.mxu0 %v228
    %688 = vmatpush.msra.mxu0 %v224
    %689 = vmatpush.msra.mxu0 %v220
    %690 = vmatpush.msra.mxu0 %v216
    %691 = vmatpush.msra.mxu0 %v212
    %692 = vmatpush.msra.mxu0 %v208
    %693 = vmatmul.f32.gmra.mxu0 %v670
    %v694 = vpop.f32.mrf.mxu0
    %v695 = vadd.f32 0.0, %v694
    %696 = vdwg.mxu0
    %697 = vmatpush.msra.mxu0 %v269
    %698 = vmatpush.msra.mxu0 %v265
    %699 = vmatpush.msra.mxu0 %v261
    %700 = vmatpush.msra.mxu0 %v257
    %701 = vmatpush.msra.mxu0 %v253
    %702 = vmatpush.msra.mxu0 %v249
    %703 = vmatpush.msra.mxu0 %v245
    %704 = vmatpush.msra.mxu0 %v241
    %705 = vmatpush.msra.mxu0 %v237
    %706 = vmatpush.msra.mxu0 %v233
    %707 = vmatpush.msra.mxu0 %v229
    %708 = vmatpush.msra.mxu0 %v225
    %709 = vmatpush.msra.mxu0 %v221
    %710 = vmatpush.msra.mxu0 %v217
    %711 = vmatpush.msra.mxu0 %v213
    %712 = vmatpush.msra.mxu0 %v209
    %713 = vmatmul.f32.gmra.mxu0 %v670
    %v714 = vpop.f32.mrf.mxu0
    %v715 = vadd.f32 0.0, %v714
    %716 = vdwg.mxu0
    %717 = vmatpush.msra.mxu0 %v270
    %718 = vmatpush.msra.mxu0 %v266
    %719 = vmatpush.msra.mxu0 %v262
    %720 = vmatpush.msra.mxu0 %v258
    %721 = vmatpush.msra.mxu0 %v254
    %722 = vmatpush.msra.mxu0 %v250
    %723 = vmatpush.msra.mxu0 %v246
    %724 = vmatpush.msra.mxu0 %v242
    %725 = vmatpush.msra.mxu0 %v238
    %726 = vmatpush.msra.mxu0 %v234
    %727 = vmatpush.msra.mxu0 %v230
    %728 = vmatpush.msra.mxu0 %v226
    %729 = vmatpush.msra.mxu0 %v222
    %730 = vmatpush.msra.mxu0 %v218
    %731 = vmatpush.msra.mxu0 %v214
    %732 = vmatpush.msra.mxu0 %v210
    %733 = vmatmul.f32.gmra.mxu0 %v670
    %v734 = vpop.f32.mrf.mxu0
    %v735 = vadd.f32 0.0, %v734
    %736 = vdwg.mxu0
    %737 = vmatpush.msra.mxu0 %v271
    %738 = vmatpush.msra.mxu0 %v267
    %739 = vmatpush.msra.mxu0 %v263
    %740 = vmatpush.msra.mxu0 %v259
    %741 = vmatpush.msra.mxu0 %v255
    %742 = vmatpush.msra.mxu0 %v251
    %743 = vmatpush.msra.mxu0 %v247
    %744 = vmatpush.msra.mxu0 %v243
    %745 = vmatpush.msra.mxu0 %v239
    %746 = vmatpush.msra.mxu0 %v235
    %747 = vmatpush.msra.mxu0 %v231
    %748 = vmatpush.msra.mxu0 %v227
    %749 = vmatpush.msra.mxu0 %v223
    %750 = vmatpush.msra.mxu0 %v219
    %751 = vmatpush.msra.mxu0 %v215
    %752 = vmatpush.msra.mxu0 %v211
    %753 = vmatmul.f32.gmra.mxu0 %v670
    %v754 = vpop.f32.mrf.mxu0
    %v755 = vadd.f32 0.0, %v754
    %756 = vdwg.mxu0
    %v757 = vadd.f32 %v673, %v695
    %v758 = vadd.f32 %v674, %v715
    %v759 = vadd.f32 %v675, %v735
    %v760 = vadd.f32 %v676, %v755
    %v761 = vxor.u32 %v757, 2147483648
    %v762 = vmul.f32 %v761, 1.442695
    %v763 = vpow.pop %v762
    %v764 = vadd.f32 %v763, 1.0
    %v765 = vrcp.pop %v764
    %v766 = vmul.f32 %v764, %v765
    %v767 = vsub.f32 1.0, %v766
    %v768 = vmul.f32 %v765, %v767
    %v769 = vadd.f32 %v765, %v768
    %vm770 = vweird.f32 %v764
    %vm771 = vweird.f32 %v765
    %vm772 = vmor %vm770, %vm771
    %v773 = vsel %vm772, %v765, %v769
    %v774 = vand.u32 2147483647, %v764
    %vm775 = vcmp.eq.f32.partialorder %v774, 8.507059e+37
    %v776 = vand.u32 %v764, 2147483648
    %v777 = vor.u32 1.1754944e-38, %v776
    %v778 = vsel %vm775, %v777, %v773
    %v779 = vmul.f32 1.0, %v778
    %v780 = vxor.u32 %v758, 2147483648
    %v781 = vmul.f32 %v780, 1.442695
    %v782 = vpow.pop %v781
    %v783 = vadd.f32 %v782, 1.0
    %v784 = vrcp.pop %v783
    %v785 = vmul.f32 %v783, %v784
    %v786 = vsub.f32 1.0, %v785
    %v787 = vmul.f32 %v784, %v786
    %v788 = vadd.f32 %v784, %v787
    %vm789 = vweird.f32 %v783
    %vm790 = vweird.f32 %v784
    %vm791 = vmor %vm789, %vm790
    %v792 = vsel %vm791, %v784, %v788
    %v793 = vand.u32 2147483647, %v783
    %vm794 = vcmp.eq.f32.partialorder %v793, 8.507059e+37
    %v795 = vand.u32 %v783, 2147483648
    %v796 = vor.u32 1.1754944e-38, %v795
    %v797 = vsel %vm794, %v796, %v792
    %v798 = vmul.f32 1.0, %v797
    %v799 = vtanh.pop %v759
    %v800 = vxor.u32 %v760, 2147483648
    %v801 = vmul.f32 %v800, 1.442695
    %v802 = vpow.pop %v801
    %v803 = vadd.f32 %v802, 1.0
    %v804 = vrcp.pop %v803
    %v805 = vmul.f32 %v803, %v804
    %v806 = vsub.f32 1.0, %v805
    %v807 = vmul.f32 %v804, %v806
    %v808 = vadd.f32 %v804, %v807
    %vm809 = vweird.f32 %v803
    %vm810 = vweird.f32 %v804
    %vm811 = vmor %vm809, %vm810
    %v812 = vsel %vm811, %v804, %v808
    %v813 = vand.u32 2147483647, %v803
    %vm814 = vcmp.eq.f32.partialorder %v813, 8.507059e+37
    %v815 = vand.u32 %v803, 2147483648
    %v816 = vor.u32 1.1754944e-38, %v815
    %v817 = vsel %vm814, %v816, %v812
    %v818 = vmul.f32 1.0, %v817
    %v819 = vmul.f32 %v798, %v668
    %v820 = vmul.f32 %v779, %v799
    %v821 = vadd.f32 %v819, %v820
    %v822 = vtanh.pop %v821
    %v823 = vmul.f32 %v818, %v822
    %s824 = scalar_lea.vmem [#allocation3], 8
    %825 = vst [vmem:[%s824] sm:$0xff] %v823
    %s826 = scalar_lea.vmem [#allocation2], 64
    %v827 = vld [vmem:[%s826] sm:$0xff]
    %v828 = vld [vmem:[%s826 + $0x8] sm:$0xff]
    %v829 = vld [vmem:[%s826 + $0x10] sm:$0xff]
    %v830 = vld [vmem:[%s826 + $0x18] sm:$0xff]
    %831 = vmatpush.msra.mxu0 %v268
    %832 = vmatpush.msra.mxu0 %v264
    %833 = vmatpush.msra.mxu0 %v260
    %834 = vmatpush.msra.mxu0 %v256
    %835 = vmatpush.msra.mxu0 %v252
    %836 = vmatpush.msra.mxu0 %v248
    %837 = vmatpush.msra.mxu0 %v244
    %838 = vmatpush.msra.mxu0 %v240
    %839 = vmatpush.msra.mxu0 %v236
    %840 = vmatpush.msra.mxu0 %v232
    %841 = vmatpush.msra.mxu0 %v228
    %842 = vmatpush.msra.mxu0 %v224
    %843 = vmatpush.msra.mxu0 %v220
    %844 = vmatpush.msra.mxu0 %v216
    %845 = vmatpush.msra.mxu0 %v212
    %846 = vmatpush.msra.mxu0 %v208
    %847 = vmatmul.f32.gmra.mxu0 %v823
    %v848 = vpop.f32.mrf.mxu0
    %v849 = vadd.f32 0.0, %v848
    %850 = vdwg.mxu0
    %851 = vmatpush.msra.mxu0 %v269
    %852 = vmatpush.msra.mxu0 %v265
    %853 = vmatpush.msra.mxu0 %v261
    %854 = vmatpush.msra.mxu0 %v257
    %855 = vmatpush.msra.mxu0 %v253
    %856 = vmatpush.msra.mxu0 %v249
    %857 = vmatpush.msra.mxu0 %v245
    %858 = vmatpush.msra.mxu0 %v241
    %859 = vmatpush.msra.mxu0 %v237
    %860 = vmatpush.msra.mxu0 %v233
    %861 = vmatpush.msra.mxu0 %v229
    %862 = vmatpush.msra.mxu0 %v225
    %863 = vmatpush.msra.mxu0 %v221
    %864 = vmatpush.msra.mxu0 %v217
    %865 = vmatpush.msra.mxu0 %v213
    %866 = vmatpush.msra.mxu0 %v209
    %867 = vmatmul.f32.gmra.mxu0 %v823
    %v868 = vpop.f32.mrf.mxu0
    %v869 = vadd.f32 0.0, %v868
    %870 = vdwg.mxu0
    %871 = vmatpush.msra.mxu0 %v270
    %872 = vmatpush.msra.mxu0 %v266
    %873 = vmatpush.msra.mxu0 %v262
    %874 = vmatpush.msra.mxu0 %v258
    %875 = vmatpush.msra.mxu0 %v254
    %876 = vmatpush.msra.mxu0 %v250
    %877 = vmatpush.msra.mxu0 %v246
    %878 = vmatpush.msra.mxu0 %v242
    %879 = vmatpush.msra.mxu0 %v238
    %880 = vmatpush.msra.mxu0 %v234
    %881 = vmatpush.msra.mxu0 %v230
    %882 = vmatpush.msra.mxu0 %v226
    %883 = vmatpush.msra.mxu0 %v222
    %884 = vmatpush.msra.mxu0 %v218
    %885 = vmatpush.msra.mxu0 %v214
    %886 = vmatpush.msra.mxu0 %v210
    %887 = vmatmul.f32.gmra.mxu0 %v823
    %v888 = vpop.f32.mrf.mxu0
    %v889 = vadd.f32 0.0, %v888
    %890 = vdwg.mxu0
    %891 = vmatpush.msra.mxu0 %v271
    %892 = vmatpush.msra.mxu0 %v267
    %893 = vmatpush.msra.mxu0 %v263
    %894 = vmatpush.msra.mxu0 %v259
    %895 = vmatpush.msra.mxu0 %v255
    %896 = vmatpush.msra.mxu0 %v251
    %897 = vmatpush.msra.mxu0 %v247
    %898 = vmatpush.msra.mxu0 %v243
    %899 = vmatpush.msra.mxu0 %v239
    %900 = vmatpush.msra.mxu0 %v235
    %901 = vmatpush.msra.mxu0 %v231
    %902 = vmatpush.msra.mxu0 %v227
    %903 = vmatpush.msra.mxu0 %v223
    %904 = vmatpush.msra.mxu0 %v219
    %905 = vmatpush.msra.mxu0 %v215
    %906 = vmatpush.msra.mxu0 %v211
    %907 = vmatmul.f32.gmra.mxu0 %v823
    %v908 = vpop.f32.mrf.mxu0
    %v909 = vadd.f32 0.0, %v908
    %910 = vdwg.mxu0
    %v911 = vadd.f32 %v827, %v849
    %v912 = vadd.f32 %v828, %v869
    %v913 = vadd.f32 %v829, %v889
    %v914 = vadd.f32 %v830, %v909
    %v915 = vxor.u32 %v911, 2147483648
    %v916 = vmul.f32 %v915, 1.442695
    %v917 = vpow.pop %v916
    %v918 = vadd.f32 %v917, 1.0
    %v919 = vrcp.pop %v918
    %v920 = vmul.f32 %v918, %v919
    %v921 = vsub.f32 1.0, %v920
    %v922 = vmul.f32 %v919, %v921
    %v923 = vadd.f32 %v919, %v922
    %vm924 = vweird.f32 %v918
    %vm925 = vweird.f32 %v919
    %vm926 = vmor %vm924, %vm925
    %v927 = vsel %vm926, %v919, %v923
    %v928 = vand.u32 2147483647, %v918
    %vm929 = vcmp.eq.f32.partialorder %v928, 8.507059e+37
    %v930 = vand.u32 %v918, 2147483648
    %v931 = vor.u32 1.1754944e-38, %v930
    %v932 = vsel %vm929, %v931, %v927
    %v933 = vmul.f32 1.0, %v932
    %v934 = vxor.u32 %v912, 2147483648
    %v935 = vmul.f32 %v934, 1.442695
    %v936 = vpow.pop %v935
    %v937 = vadd.f32 %v936, 1.0
    %v938 = vrcp.pop %v937
    %v939 = vmul.f32 %v937, %v938
    %v940 = vsub.f32 1.0, %v939
    %v941 = vmul.f32 %v938, %v940
    %v942 = vadd.f32 %v938, %v941
    %vm943 = vweird.f32 %v937
    %vm944 = vweird.f32 %v938
    %vm945 = vmor %vm943, %vm944
    %v946 = vsel %vm945, %v938, %v942
    %v947 = vand.u32 2147483647, %v937
    %vm948 = vcmp.eq.f32.partialorder %v947, 8.507059e+37
    %v949 = vand.u32 %v937, 2147483648
    %v950 = vor.u32 1.1754944e-38, %v949
    %v951 = vsel %vm948, %v950, %v946
    %v952 = vmul.f32 1.0, %v951
    %v953 = vtanh.pop %v913
    %v954 = vxor.u32 %v914, 2147483648
    %v955 = vmul.f32 %v954, 1.442695
    %v956 = vpow.pop %v955
    %v957 = vadd.f32 %v956, 1.0
    %v958 = vrcp.pop %v957
    %v959 = vmul.f32 %v957, %v958
    %v960 = vsub.f32 1.0, %v959
    %v961 = vmul.f32 %v958, %v960
    %v962 = vadd.f32 %v958, %v961
    %vm963 = vweird.f32 %v957
    %vm964 = vweird.f32 %v958
    %vm965 = vmor %vm963, %vm964
    %v966 = vsel %vm965, %v958, %v962
    %v967 = vand.u32 2147483647, %v957
    %vm968 = vcmp.eq.f32.partialorder %v967, 8.507059e+37
    %v969 = vand.u32 %v957, 2147483648
    %v970 = vor.u32 1.1754944e-38, %v969
    %v971 = vsel %vm968, %v970, %v966
    %v972 = vmul.f32 1.0, %v971
    %v973 = vmul.f32 %v952, %v821
    %v974 = vmul.f32 %v933, %v953
    %v975 = vadd.f32 %v973, %v974
    %v976 = vtanh.pop %v975
    %v977 = vmul.f32 %v972, %v976
    %s978 = scalar_lea.vmem [#allocation3], 16
    %979 = vst [vmem:[%s978] sm:$0xff] %v977
    %s980 = scalar_lea.vmem [#allocation2], 96
    %v981 = vld [vmem:[%s980] sm:$0xff]
    %v982 = vld [vmem:[%s980 + $0x8] sm:$0xff]
    %v983 = vld [vmem:[%s980 + $0x10] sm:$0xff]
    %v984 = vld [vmem:[%s980 + $0x18] sm:$0xff]
    %985 = vmatpush.msra.mxu0 %v268
    %986 = vmatpush.msra.mxu0 %v264
    %987 = vmatpush.msra.mxu0 %v260
    %988 = vmatpush.msra.mxu0 %v256
    %989 = vmatpush.msra.mxu0 %v252
    %990 = vmatpush.msra.mxu0 %v248
    %991 = vmatpush.msra.mxu0 %v244
    %992 = vmatpush.msra.mxu0 %v240
    %993 = vmatpush.msra.mxu0 %v236
    %994 = vmatpush.msra.mxu0 %v232
    %995 = vmatpush.msra.mxu0 %v228
    %996 = vmatpush.msra.mxu0 %v224
    %997 = vmatpush.msra.mxu0 %v220
    %998 = vmatpush.msra.mxu0 %v216
    %999 = vmatpush.msra.mxu0 %v212
    %1000 = vmatpush.msra.mxu0 %v208
    %1001 = vmatmul.f32.gmra.mxu0 %v977
    %v1002 = vpop.f32.mrf.mxu0
    %v1003 = vadd.f32 0.0, %v1002
    %1004 = vdwg.mxu0
    %1005 = vmatpush.msra.mxu0 %v269
    %1006 = vmatpush.msra.mxu0 %v265
    %1007 = vmatpush.msra.mxu0 %v261
    %1008 = vmatpush.msra.mxu0 %v257
    %1009 = vmatpush.msra.mxu0 %v253
    %1010 = vmatpush.msra.mxu0 %v249
    %1011 = vmatpush.msra.mxu0 %v245
    %1012 = vmatpush.msra.mxu0 %v241
    %1013 = vmatpush.msra.mxu0 %v237
    %1014 = vmatpush.msra.mxu0 %v233
    %1015 = vmatpush.msra.mxu0 %v229
    %1016 = vmatpush.msra.mxu0 %v225
    %1017 = vmatpush.msra.mxu0 %v221
    %1018 = vmatpush.msra.mxu0 %v217
    %1019 = vmatpush.msra.mxu0 %v213
    %1020 = vmatpush.msra.mxu0 %v209
    %1021 = vmatmul.f32.gmra.mxu0 %v977
    %v1022 = vpop.f32.mrf.mxu0
    %v1023 = vadd.f32 0.0, %v1022
    %1024 = vdwg.mxu0
    %1025 = vmatpush.msra.mxu0 %v270
    %1026 = vmatpush.msra.mxu0 %v266
    %1027 = vmatpush.msra.mxu0 %v262
    %1028 = vmatpush.msra.mxu0 %v258
    %1029 = vmatpush.msra.mxu0 %v254
    %1030 = vmatpush.msra.mxu0 %v250
    %1031 = vmatpush.msra.mxu0 %v246
    %1032 = vmatpush.msra.mxu0 %v242
    %1033 = vmatpush.msra.mxu0 %v238
    %1034 = vmatpush.msra.mxu0 %v234
    %1035 = vmatpush.msra.mxu0 %v230
    %1036 = vmatpush.msra.mxu0 %v226
    %1037 = vmatpush.msra.mxu0 %v222
    %1038 = vmatpush.msra.mxu0 %v218
    %1039 = vmatpush.msra.mxu0 %v214
    %1040 = vmatpush.msra.mxu0 %v210
    %1041 = vmatmul.f32.gmra.mxu0 %v977
    %v1042 = vpop.f32.mrf.mxu0
    %v1043 = vadd.f32 0.0, %v1042
    %1044 = vdwg.mxu0
    %1045 = vmatpush.msra.mxu0 %v271
    %1046 = vmatpush.msra.mxu0 %v267
    %1047 = vmatpush.msra.mxu0 %v263
    %1048 = vmatpush.msra.mxu0 %v259
    %1049 = vmatpush.msra.mxu0 %v255
    %1050 = vmatpush.msra.mxu0 %v251
    %1051 = vmatpush.msra.mxu0 %v247
    %1052 = vmatpush.msra.mxu0 %v243
    %1053 = vmatpush.msra.mxu0 %v239
    %1054 = vmatpush.msra.mxu0 %v235
    %1055 = vmatpush.msra.mxu0 %v231
    %1056 = vmatpush.msra.mxu0 %v227
    %1057 = vmatpush.msra.mxu0 %v223
    %1058 = vmatpush.msra.mxu0 %v219
    %1059 = vmatpush.msra.mxu0 %v215
    %1060 = vmatpush.msra.mxu0 %v211
    %1061 = vmatmul.f32.gmra.mxu0 %v977
    %v1062 = vpop.f32.mrf.mxu0
    %v1063 = vadd.f32 0.0, %v1062
    %1064 = vdwg.mxu0
    %v1065 = vadd.f32 %v981, %v1003
    %v1066 = vadd.f32 %v982, %v1023
    %v1067 = vadd.f32 %v983, %v1043
    %v1068 = vadd.f32 %v984, %v1063
    %v1069 = vxor.u32 %v1065, 2147483648
    %v1070 = vmul.f32 %v1069, 1.442695
    %v1071 = vpow.pop %v1070
    %v1072 = vadd.f32 %v1071, 1.0
    %v1073 = vrcp.pop %v1072
    %v1074 = vmul.f32 %v1072, %v1073
    %v1075 = vsub.f32 1.0, %v1074
    %v1076 = vmul.f32 %v1073, %v1075
    %v1077 = vadd.f32 %v1073, %v1076
    %vm1078 = vweird.f32 %v1072
    %vm1079 = vweird.f32 %v1073
    %vm1080 = vmor %vm1078, %vm1079
    %v1081 = vsel %vm1080, %v1073, %v1077
    %v1082 = vand.u32 2147483647, %v1072
    %vm1083 = vcmp.eq.f32.partialorder %v1082, 8.507059e+37
    %v1084 = vand.u32 %v1072, 2147483648
    %v1085 = vor.u32 1.1754944e-38, %v1084
    %v1086 = vsel %vm1083, %v1085, %v1081
    %v1087 = vmul.f32 1.0, %v1086
    %v1088 = vxor.u32 %v1066, 2147483648
    %v1089 = vmul.f32 %v1088, 1.442695
    %v1090 = vpow.pop %v1089
    %v1091 = vadd.f32 %v1090, 1.0
    %v1092 = vrcp.pop %v1091
    %v1093 = vmul.f32 %v1091, %v1092
    %v1094 = vsub.f32 1.0, %v1093
    %v1095 = vmul.f32 %v1092, %v1094
    %v1096 = vadd.f32 %v1092, %v1095
    %vm1097 = vweird.f32 %v1091
    %vm1098 = vweird.f32 %v1092
    %vm1099 = vmor %vm1097, %vm1098
    %v1100 = vsel %vm1099, %v1092, %v1096
    %v1101 = vand.u32 2147483647, %v1091
    %vm1102 = vcmp.eq.f32.partialorder %v1101, 8.507059e+37
    %v1103 = vand.u32 %v1091, 2147483648
    %v1104 = vor.u32 1.1754944e-38, %v1103
    %v1105 = vsel %vm1102, %v1104, %v1100
    %v1106 = vmul.f32 1.0, %v1105
    %v1107 = vtanh.pop %v1067
    %v1108 = vxor.u32 %v1068, 2147483648
    %v1109 = vmul.f32 %v1108, 1.442695
    %v1110 = vpow.pop %v1109
    %v1111 = vadd.f32 %v1110, 1.0
    %v1112 = vrcp.pop %v1111
    %v1113 = vmul.f32 %v1111, %v1112
    %v1114 = vsub.f32 1.0, %v1113
    %v1115 = vmul.f32 %v1112, %v1114
    %v1116 = vadd.f32 %v1112, %v1115
    %vm1117 = vweird.f32 %v1111
    %vm1118 = vweird.f32 %v1112
    %vm1119 = vmor %vm1117, %vm1118
    %v1120 = vsel %vm1119, %v1112, %v1116
    %v1121 = vand.u32 2147483647, %v1111
    %vm1122 = vcmp.eq.f32.partialorder %v1121, 8.507059e+37
    %v1123 = vand.u32 %v1111, 2147483648
    %v1124 = vor.u32 1.1754944e-38, %v1123
    %v1125 = vsel %vm1122, %v1124, %v1120
    %v1126 = vmul.f32 1.0, %v1125
    %v1127 = vmul.f32 %v1106, %v975
    %v1128 = vmul.f32 %v1087, %v1107
    %v1129 = vadd.f32 %v1127, %v1128
    %v1130 = vtanh.pop %v1129
    %v1131 = vmul.f32 %v1126, %v1130
    %s1132 = scalar_lea.vmem [#allocation3], 24
    %1133 = vst [vmem:[%s1132] sm:$0xff] %v1131
    %s1134 = scalar_lea.vmem [#allocation2], 128
    %v1135 = vld [vmem:[%s1134] sm:$0xff]
    %v1136 = vld [vmem:[%s1134 + $0x8] sm:$0xff]
    %v1137 = vld [vmem:[%s1134 + $0x10] sm:$0xff]
    %v1138 = vld [vmem:[%s1134 + $0x18] sm:$0xff]
    %1139 = vmatpush.msra.mxu0 %v268
    %1140 = vmatpush.msra.mxu0 %v264
    %1141 = vmatpush.msra.mxu0 %v260
    %1142 = vmatpush.msra.mxu0 %v256
    %1143 = vmatpush.msra.mxu0 %v252
    %1144 = vmatpush.msra.mxu0 %v248
    %1145 = vmatpush.msra.mxu0 %v244
    %1146 = vmatpush.msra.mxu0 %v240
    %1147 = vmatpush.msra.mxu0 %v236
    %1148 = vmatpush.msra.mxu0 %v232
    %1149 = vmatpush.msra.mxu0 %v228
    %1150 = vmatpush.msra.mxu0 %v224
    %1151 = vmatpush.msra.mxu0 %v220
    %1152 = vmatpush.msra.mxu0 %v216
    %1153 = vmatpush.msra.mxu0 %v212
    %1154 = vmatpush.msra.mxu0 %v208
    %1155 = vmatmul.f32.gmra.mxu0 %v1131
    %v1156 = vpop.f32.mrf.mxu0
    %v1157 = vadd.f32 0.0, %v1156
    %1158 = vdwg.mxu0
    %1159 = vmatpush.msra.mxu0 %v269
    %1160 = vmatpush.msra.mxu0 %v265
    %1161 = vmatpush.msra.mxu0 %v261
    %1162 = vmatpush.msra.mxu0 %v257
    %1163 = vmatpush.msra.mxu0 %v253
    %1164 = vmatpush.msra.mxu0 %v249
    %1165 = vmatpush.msra.mxu0 %v245
    %1166 = vmatpush.msra.mxu0 %v241
    %1167 = vmatpush.msra.mxu0 %v237
    %1168 = vmatpush.msra.mxu0 %v233
    %1169 = vmatpush.msra.mxu0 %v229
    %1170 = vmatpush.msra.mxu0 %v225
    %1171 = vmatpush.msra.mxu0 %v221
    %1172 = vmatpush.msra.mxu0 %v217
    %1173 = vmatpush.msra.mxu0 %v213
    %1174 = vmatpush.msra.mxu0 %v209
    %1175 = vmatmul.f32.gmra.mxu0 %v1131
    %v1176 = vpop.f32.mrf.mxu0
    %v1177 = vadd.f32 0.0, %v1176
    %1178 = vdwg.mxu0
    %1179 = vmatpush.msra.mxu0 %v270
    %1180 = vmatpush.msra.mxu0 %v266
    %1181 = vmatpush.msra.mxu0 %v262
    %1182 = vmatpush.msra.mxu0 %v258
    %1183 = vmatpush.msra.mxu0 %v254
    %1184 = vmatpush.msra.mxu0 %v250
    %1185 = vmatpush.msra.mxu0 %v246
    %1186 = vmatpush.msra.mxu0 %v242
    %1187 = vmatpush.msra.mxu0 %v238
    %1188 = vmatpush.msra.mxu0 %v234
    %1189 = vmatpush.msra.mxu0 %v230
    %1190 = vmatpush.msra.mxu0 %v226
    %1191 = vmatpush.msra.mxu0 %v222
    %1192 = vmatpush.msra.mxu0 %v218
    %1193 = vmatpush.msra.mxu0 %v214
    %1194 = vmatpush.msra.mxu0 %v210
    %1195 = vmatmul.f32.gmra.mxu0 %v1131
    %v1196 = vpop.f32.mrf.mxu0
    %v1197 = vadd.f32 0.0, %v1196
    %1198 = vdwg.mxu0
    %1199 = vmatpush.msra.mxu0 %v271
    %1200 = vmatpush.msra.mxu0 %v267
    %1201 = vmatpush.msra.mxu0 %v263
    %1202 = vmatpush.msra.mxu0 %v259
    %1203 = vmatpush.msra.mxu0 %v255
    %1204 = vmatpush.msra.mxu0 %v251
    %1205 = vmatpush.msra.mxu0 %v247
    %1206 = vmatpush.msra.mxu0 %v243
    %1207 = vmatpush.msra.mxu0 %v239
    %1208 = vmatpush.msra.mxu0 %v235
    %1209 = vmatpush.msra.mxu0 %v231
    %1210 = vmatpush.msra.mxu0 %v227
    %1211 = vmatpush.msra.mxu0 %v223
    %1212 = vmatpush.msra.mxu0 %v219
    %1213 = vmatpush.msra.mxu0 %v215
    %1214 = vmatpush.msra.mxu0 %v211
    %1215 = vmatmul.f32.gmra.mxu0 %v1131
    %v1216 = vpop.f32.mrf.mxu0
    %v1217 = vadd.f32 0.0, %v1216
    %1218 = vdwg.mxu0
    %v1219 = vadd.f32 %v1135, %v1157
    %v1220 = vadd.f32 %v1136, %v1177
    %v1221 = vadd.f32 %v1137, %v1197
    %v1222 = vadd.f32 %v1138, %v1217
    %v1223 = vxor.u32 %v1219, 2147483648
    %v1224 = vmul.f32 %v1223, 1.442695
    %v1225 = vpow.pop %v1224
    %v1226 = vadd.f32 %v1225, 1.0
    %v1227 = vrcp.pop %v1226
    %v1228 = vmul.f32 %v1226, %v1227
    %v1229 = vsub.f32 1.0, %v1228
    %v1230 = vmul.f32 %v1227, %v1229
    %v1231 = vadd.f32 %v1227, %v1230
    %vm1232 = vweird.f32 %v1226
    %vm1233 = vweird.f32 %v1227
    %vm1234 = vmor %vm1232, %vm1233
    %v1235 = vsel %vm1234, %v1227, %v1231
    %v1236 = vand.u32 2147483647, %v1226
    %vm1237 = vcmp.eq.f32.partialorder %v1236, 8.507059e+37
    %v1238 = vand.u32 %v1226, 2147483648
    %v1239 = vor.u32 1.1754944e-38, %v1238
    %v1240 = vsel %vm1237, %v1239, %v1235
    %v1241 = vmul.f32 1.0, %v1240
    %v1242 = vxor.u32 %v1220, 2147483648
    %v1243 = vmul.f32 %v1242, 1.442695
    %v1244 = vpow.pop %v1243
    %v1245 = vadd.f32 %v1244, 1.0
    %v1246 = vrcp.pop %v1245
    %v1247 = vmul.f32 %v1245, %v1246
    %v1248 = vsub.f32 1.0, %v1247
    %v1249 = vmul.f32 %v1246, %v1248
    %v1250 = vadd.f32 %v1246, %v1249
    %vm1251 = vweird.f32 %v1245
    %vm1252 = vweird.f32 %v1246
    %vm1253 = vmor %vm1251, %vm1252
    %v1254 = vsel %vm1253, %v1246, %v1250
    %v1255 = vand.u32 2147483647, %v1245
    %vm1256 = vcmp.eq.f32.partialorder %v1255, 8.507059e+37
    %v1257 = vand.u32 %v1245, 2147483648
    %v1258 = vor.u32 1.1754944e-38, %v1257
    %v1259 = vsel %vm1256, %v1258, %v1254
    %v1260 = vmul.f32 1.0, %v1259
    %v1261 = vtanh.pop %v1221
    %v1262 = vxor.u32 %v1222, 2147483648
    %v1263 = vmul.f32 %v1262, 1.442695
    %v1264 = vpow.pop %v1263
    %v1265 = vadd.f32 %v1264, 1.0
    %v1266 = vrcp.pop %v1265
    %v1267 = vmul.f32 %v1265, %v1266
    %v1268 = vsub.f32 1.0, %v1267
    %v1269 = vmul.f32 %v1266, %v1268
    %v1270 = vadd.f32 %v1266, %v1269
    %vm1271 = vweird.f32 %v1265
    %vm1272 = vweird.f32 %v1266
    %vm1273 = vmor %vm1271, %vm1272
    %v1274 = vsel %vm1273, %v1266, %v1270
    %v1275 = vand.u32 2147483647, %v1265
    %vm1276 = vcmp.eq.f32.partialorder %v1275, 8.507059e+37
    %v1277 = vand.u32 %v1265, 2147483648
    %v1278 = vor.u32 1.1754944e-38, %v1277
    %v1279 = vsel %vm1276, %v1278, %v1274
    %v1280 = vmul.f32 1.0, %v1279
    %v1281 = vmul.f32 %v1260, %v1129
    %v1282 = vmul.f32 %v1241, %v1261
    %v1283 = vadd.f32 %v1281, %v1282
    %v1284 = vtanh.pop %v1283
    %v1285 = vmul.f32 %v1280, %v1284
    %s1286 = scalar_lea.vmem [#allocation3], 32
    %1287 = vst [vmem:[%s1286] sm:$0xff] %v1285
    %s1288 = scalar_lea.vmem [#allocation2], 160
    %v1289 = vld [vmem:[%s1288] sm:$0xff]
    %v1290 = vld [vmem:[%s1288 + $0x8] sm:$0xff]
    %v1291 = vld [vmem:[%s1288 + $0x10] sm:$0xff]
    %v1292 = vld [vmem:[%s1288 + $0x18] sm:$0xff]
    %1293 = vmatpush.msra.mxu0 %v268
    %1294 = vmatpush.msra.mxu0 %v264
    %1295 = vmatpush.msra.mxu0 %v260
    %1296 = vmatpush.msra.mxu0 %v256
    %1297 = vmatpush.msra.mxu0 %v252
    %1298 = vmatpush.msra.mxu0 %v248
    %1299 = vmatpush.msra.mxu0 %v244
    %1300 = vmatpush.msra.mxu0 %v240
    %1301 = vmatpush.msra.mxu0 %v236
    %1302 = vmatpush.msra.mxu0 %v232
    %1303 = vmatpush.msra.mxu0 %v228
    %1304 = vmatpush.msra.mxu0 %v224
    %1305 = vmatpush.msra.mxu0 %v220
    %1306 = vmatpush.msra.mxu0 %v216
    %1307 = vmatpush.msra.mxu0 %v212
    %1308 = vmatpush.msra.mxu0 %v208
    %1309 = vmatmul.f32.gmra.mxu0 %v1285
    %v1310 = vpop.f32.mrf.mxu0
    %v1311 = vadd.f32 0.0, %v1310
    %1312 = vdwg.mxu0
    %1313 = vmatpush.msra.mxu0 %v269
    %1314 = vmatpush.msra.mxu0 %v265
    %1315 = vmatpush.msra.mxu0 %v261
    %1316 = vmatpush.msra.mxu0 %v257
    %1317 = vmatpush.msra.mxu0 %v253
    %1318 = vmatpush.msra.mxu0 %v249
    %1319 = vmatpush.msra.mxu0 %v245
    %1320 = vmatpush.msra.mxu0 %v241
    %1321 = vmatpush.msra.mxu0 %v237
    %1322 = vmatpush.msra.mxu0 %v233
    %1323 = vmatpush.msra.mxu0 %v229
    %1324 = vmatpush.msra.mxu0 %v225
    %1325 = vmatpush.msra.mxu0 %v221
    %1326 = vmatpush.msra.mxu0 %v217
    %1327 = vmatpush.msra.mxu0 %v213
    %1328 = vmatpush.msra.mxu0 %v209
    %1329 = vmatmul.f32.gmra.mxu0 %v1285
    %v1330 = vpop.f32.mrf.mxu0
    %v1331 = vadd.f32 0.0, %v1330
    %1332 = vdwg.mxu0
    %1333 = vmatpush.msra.mxu0 %v270
    %1334 = vmatpush.msra.mxu0 %v266
    %1335 = vmatpush.msra.mxu0 %v262
    %1336 = vmatpush.msra.mxu0 %v258
    %1337 = vmatpush.msra.mxu0 %v254
    %1338 = vmatpush.msra.mxu0 %v250
    %1339 = vmatpush.msra.mxu0 %v246
    %1340 = vmatpush.msra.mxu0 %v242
    %1341 = vmatpush.msra.mxu0 %v238
    %1342 = vmatpush.msra.mxu0 %v234
    %1343 = vmatpush.msra.mxu0 %v230
    %1344 = vmatpush.msra.mxu0 %v226
    %1345 = vmatpush.msra.mxu0 %v222
    %1346 = vmatpush.msra.mxu0 %v218
    %1347 = vmatpush.msra.mxu0 %v214
    %1348 = vmatpush.msra.mxu0 %v210
    %1349 = vmatmul.f32.gmra.mxu0 %v1285
    %v1350 = vpop.f32.mrf.mxu0
    %v1351 = vadd.f32 0.0, %v1350
    %1352 = vdwg.mxu0
    %1353 = vmatpush.msra.mxu0 %v271
    %1354 = vmatpush.msra.mxu0 %v267
    %1355 = vmatpush.msra.mxu0 %v263
    %1356 = vmatpush.msra.mxu0 %v259
    %1357 = vmatpush.msra.mxu0 %v255
    %1358 = vmatpush.msra.mxu0 %v251
    %1359 = vmatpush.msra.mxu0 %v247
    %1360 = vmatpush.msra.mxu0 %v243
    %1361 = vmatpush.msra.mxu0 %v239
    %1362 = vmatpush.msra.mxu0 %v235
    %1363 = vmatpush.msra.mxu0 %v231
    %1364 = vmatpush.msra.mxu0 %v227
    %1365 = vmatpush.msra.mxu0 %v223
    %1366 = vmatpush.msra.mxu0 %v219
    %1367 = vmatpush.msra.mxu0 %v215
    %1368 = vmatpush.msra.mxu0 %v211
    %1369 = vmatmul.f32.gmra.mxu0 %v1285
    %v1370 = vpop.f32.mrf.mxu0
    %v1371 = vadd.f32 0.0, %v1370
    %1372 = vdwg.mxu0
    %v1373 = vadd.f32 %v1289, %v1311
    %v1374 = vadd.f32 %v1290, %v1331
    %v1375 = vadd.f32 %v1291, %v1351
    %v1376 = vadd.f32 %v1292, %v1371
    %v1377 = vxor.u32 %v1373, 2147483648
    %v1378 = vmul.f32 %v1377, 1.442695
    %v1379 = vpow.pop %v1378
    %v1380 = vadd.f32 %v1379, 1.0
    %v1381 = vrcp.pop %v1380
    %v1382 = vmul.f32 %v1380, %v1381
    %v1383 = vsub.f32 1.0, %v1382
    %v1384 = vmul.f32 %v1381, %v1383
    %v1385 = vadd.f32 %v1381, %v1384
    %vm1386 = vweird.f32 %v1380
    %vm1387 = vweird.f32 %v1381
    %vm1388 = vmor %vm1386, %vm1387
    %v1389 = vsel %vm1388, %v1381, %v1385
    %v1390 = vand.u32 2147483647, %v1380
    %vm1391 = vcmp.eq.f32.partialorder %v1390, 8.507059e+37
    %v1392 = vand.u32 %v1380, 2147483648
    %v1393 = vor.u32 1.1754944e-38, %v1392
    %v1394 = vsel %vm1391, %v1393, %v1389
    %v1395 = vmul.f32 1.0, %v1394
    %v1396 = vxor.u32 %v1374, 2147483648
    %v1397 = vmul.f32 %v1396, 1.442695
    %v1398 = vpow.pop %v1397
    %v1399 = vadd.f32 %v1398, 1.0
    %v1400 = vrcp.pop %v1399
    %v1401 = vmul.f32 %v1399, %v1400
    %v1402 = vsub.f32 1.0, %v1401
    %v1403 = vmul.f32 %v1400, %v1402
    %v1404 = vadd.f32 %v1400, %v1403
    %vm1405 = vweird.f32 %v1399
    %vm1406 = vweird.f32 %v1400
    %vm1407 = vmor %vm1405, %vm1406
    %v1408 = vsel %vm1407, %v1400, %v1404
    %v1409 = vand.u32 2147483647, %v1399
    %vm1410 = vcmp.eq.f32.partialorder %v1409, 8.507059e+37
    %v1411 = vand.u32 %v1399, 2147483648
    %v1412 = vor.u32 1.1754944e-38, %v1411
    %v1413 = vsel %vm1410, %v1412, %v1408
    %v1414 = vmul.f32 1.0, %v1413
    %v1415 = vtanh.pop %v1375
    %v1416 = vxor.u32 %v1376, 2147483648
    %v1417 = vmul.f32 %v1416, 1.442695
    %v1418 = vpow.pop %v1417
    %v1419 = vadd.f32 %v1418, 1.0
    %v1420 = vrcp.pop %v1419
    %v1421 = vmul.f32 %v1419, %v1420
    %v1422 = vsub.f32 1.0, %v1421
    %v1423 = vmul.f32 %v1420, %v1422
    %v1424 = vadd.f32 %v1420, %v1423
    %vm1425 = vweird.f32 %v1419
    %vm1426 = vweird.f32 %v1420
    %vm1427 = vmor %vm1425, %vm1426
    %v1428 = vsel %vm1427, %v1420, %v1424
    %v1429 = vand.u32 2147483647, %v1419
    %vm1430 = vcmp.eq.f32.partialorder %v1429, 8.507059e+37
    %v1431 = vand.u32 %v1419, 2147483648
    %v1432 = vor.u32 1.1754944e-38, %v1431
    %v1433 = vsel %vm1430, %v1432, %v1428
    %v1434 = vmul.f32 1.0, %v1433
    %v1435 = vmul.f32 %v1414, %v1283
    %v1436 = vmul.f32 %v1395, %v1415
    %v1437 = vadd.f32 %v1435, %v1436
    %v1438 = vtanh.pop %v1437
    %v1439 = vmul.f32 %v1434, %v1438
    %s1440 = scalar_lea.vmem [#allocation3], 40
    %1441 = vst [vmem:[%s1440] sm:$0xff] %v1439
    %s1442 = scalar_lea.vmem [#allocation2], 192
    %v1443 = vld [vmem:[%s1442] sm:$0xff]
    %v1444 = vld [vmem:[%s1442 + $0x8] sm:$0xff]
    %v1445 = vld [vmem:[%s1442 + $0x10] sm:$0xff]
    %v1446 = vld [vmem:[%s1442 + $0x18] sm:$0xff]
    %1447 = vmatpush.msra.mxu0 %v268
    %1448 = vmatpush.msra.mxu0 %v264
    %1449 = vmatpush.msra.mxu0 %v260
    %1450 = vmatpush.msra.mxu0 %v256
    %1451 = vmatpush.msra.mxu0 %v252
    %1452 = vmatpush.msra.mxu0 %v248
    %1453 = vmatpush.msra.mxu0 %v244
    %1454 = vmatpush.msra.mxu0 %v240
    %1455 = vmatpush.msra.mxu0 %v236
    %1456 = vmatpush.msra.mxu0 %v232
    %1457 = vmatpush.msra.mxu0 %v228
    %1458 = vmatpush.msra.mxu0 %v224
    %1459 = vmatpush.msra.mxu0 %v220
    %1460 = vmatpush.msra.mxu0 %v216
    %1461 = vmatpush.msra.mxu0 %v212
    %1462 = vmatpush.msra.mxu0 %v208
    %1463 = vmatmul.f32.gmra.mxu0 %v1439
    %v1464 = vpop.f32.mrf.mxu0
    %v1465 = vadd.f32 0.0, %v1464
    %1466 = vdwg.mxu0
    %1467 = vmatpush.msra.mxu0 %v269
    %1468 = vmatpush.msra.mxu0 %v265
    %1469 = vmatpush.msra.mxu0 %v261
    %1470 = vmatpush.msra.mxu0 %v257
    %1471 = vmatpush.msra.mxu0 %v253
    %1472 = vmatpush.msra.mxu0 %v249
    %1473 = vmatpush.msra.mxu0 %v245
    %1474 = vmatpush.msra.mxu0 %v241
    %1475 = vmatpush.msra.mxu0 %v237
    %1476 = vmatpush.msra.mxu0 %v233
    %1477 = vmatpush.msra.mxu0 %v229
    %1478 = vmatpush.msra.mxu0 %v225
    %1479 = vmatpush.msra.mxu0 %v221
    %1480 = vmatpush.msra.mxu0 %v217
    %1481 = vmatpush.msra.mxu0 %v213
    %1482 = vmatpush.msra.mxu0 %v209
    %1483 = vmatmul.f32.gmra.mxu0 %v1439
    %v1484 = vpop.f32.mrf.mxu0
    %v1485 = vadd.f32 0.0, %v1484
    %1486 = vdwg.mxu0
    %1487 = vmatpush.msra.mxu0 %v270
    %1488 = vmatpush.msra.mxu0 %v266
    %1489 = vmatpush.msra.mxu0 %v262
    %1490 = vmatpush.msra.mxu0 %v258
    %1491 = vmatpush.msra.mxu0 %v254
    %1492 = vmatpush.msra.mxu0 %v250
    %1493 = vmatpush.msra.mxu0 %v246
    %1494 = vmatpush.msra.mxu0 %v242
    %1495 = vmatpush.msra.mxu0 %v238
    %1496 = vmatpush.msra.mxu0 %v234
    %1497 = vmatpush.msra.mxu0 %v230
    %1498 = vmatpush.msra.mxu0 %v226
    %1499 = vmatpush.msra.mxu0 %v222
    %1500 = vmatpush.msra.mxu0 %v218
    %1501 = vmatpush.msra.mxu0 %v214
    %1502 = vmatpush.msra.mxu0 %v210
    %1503 = vmatmul.f32.gmra.mxu0 %v1439
    %v1504 = vpop.f32.mrf.mxu0
    %v1505 = vadd.f32 0.0, %v1504
    %1506 = vdwg.mxu0
    %1507 = vmatpush.msra.mxu0 %v271
    %1508 = vmatpush.msra.mxu0 %v267
    %1509 = vmatpush.msra.mxu0 %v263
    %1510 = vmatpush.msra.mxu0 %v259
    %1511 = vmatpush.msra.mxu0 %v255
    %1512 = vmatpush.msra.mxu0 %v251
    %1513 = vmatpush.msra.mxu0 %v247
    %1514 = vmatpush.msra.mxu0 %v243
    %1515 = vmatpush.msra.mxu0 %v239
    %1516 = vmatpush.msra.mxu0 %v235
    %1517 = vmatpush.msra.mxu0 %v231
    %1518 = vmatpush.msra.mxu0 %v227
    %1519 = vmatpush.msra.mxu0 %v223
    %1520 = vmatpush.msra.mxu0 %v219
    %1521 = vmatpush.msra.mxu0 %v215
    %1522 = vmatpush.msra.mxu0 %v211
    %1523 = vmatmul.f32.gmra.mxu0 %v1439
    %v1524 = vpop.f32.mrf.mxu0
    %v1525 = vadd.f32 0.0, %v1524
    %1526 = vdwg.mxu0
    %v1527 = vadd.f32 %v1443, %v1465
    %v1528 = vadd.f32 %v1444, %v1485
    %v1529 = vadd.f32 %v1445, %v1505
    %v1530 = vadd.f32 %v1446, %v1525
    %v1531 = vxor.u32 %v1527, 2147483648
    %v1532 = vmul.f32 %v1531, 1.442695
    %v1533 = vpow.pop %v1532
    %v1534 = vadd.f32 %v1533, 1.0
    %v1535 = vrcp.pop %v1534
    %v1536 = vmul.f32 %v1534, %v1535
    %v1537 = vsub.f32 1.0, %v1536
    %v1538 = vmul.f32 %v1535, %v1537
    %v1539 = vadd.f32 %v1535, %v1538
    %vm1540 = vweird.f32 %v1534
    %vm1541 = vweird.f32 %v1535
    %vm1542 = vmor %vm1540, %vm1541
    %v1543 = vsel %vm1542, %v1535, %v1539
    %v1544 = vand.u32 2147483647, %v1534
    %vm1545 = vcmp.eq.f32.partialorder %v1544, 8.507059e+37
    %v1546 = vand.u32 %v1534, 2147483648
    %v1547 = vor.u32 1.1754944e-38, %v1546
    %v1548 = vsel %vm1545, %v1547, %v1543
    %v1549 = vmul.f32 1.0, %v1548
    %v1550 = vxor.u32 %v1528, 2147483648
    %v1551 = vmul.f32 %v1550, 1.442695
    %v1552 = vpow.pop %v1551
    %v1553 = vadd.f32 %v1552, 1.0
    %v1554 = vrcp.pop %v1553
    %v1555 = vmul.f32 %v1553, %v1554
    %v1556 = vsub.f32 1.0, %v1555
    %v1557 = vmul.f32 %v1554, %v1556
    %v1558 = vadd.f32 %v1554, %v1557
    %vm1559 = vweird.f32 %v1553
    %vm1560 = vweird.f32 %v1554
    %vm1561 = vmor %vm1559, %vm1560
    %v1562 = vsel %vm1561, %v1554, %v1558
    %v1563 = vand.u32 2147483647, %v1553
    %vm1564 = vcmp.eq.f32.partialorder %v1563, 8.507059e+37
    %v1565 = vand.u32 %v1553, 2147483648
    %v1566 = vor.u32 1.1754944e-38, %v1565
    %v1567 = vsel %vm1564, %v1566, %v1562
    %v1568 = vmul.f32 1.0, %v1567
    %v1569 = vtanh.pop %v1529
    %v1570 = vxor.u32 %v1530, 2147483648
    %v1571 = vmul.f32 %v1570, 1.442695
    %v1572 = vpow.pop %v1571
    %v1573 = vadd.f32 %v1572, 1.0
    %v1574 = vrcp.pop %v1573
    %v1575 = vmul.f32 %v1573, %v1574
    %v1576 = vsub.f32 1.0, %v1575
    %v1577 = vmul.f32 %v1574, %v1576
    %v1578 = vadd.f32 %v1574, %v1577
    %vm1579 = vweird.f32 %v1573
    %vm1580 = vweird.f32 %v1574
    %vm1581 = vmor %vm1579, %vm1580
    %v1582 = vsel %vm1581, %v1574, %v1578
    %v1583 = vand.u32 2147483647, %v1573
    %vm1584 = vcmp.eq.f32.partialorder %v1583, 8.507059e+37
    %v1585 = vand.u32 %v1573, 2147483648
    %v1586 = vor.u32 1.1754944e-38, %v1585
    %v1587 = vsel %vm1584, %v1586, %v1582
    %v1588 = vmul.f32 1.0, %v1587
    %v1589 = vmul.f32 %v1568, %v1437
    %v1590 = vmul.f32 %v1549, %v1569
    %v1591 = vadd.f32 %v1589, %v1590
    %v1592 = vtanh.pop %v1591
    %v1593 = vmul.f32 %v1588, %v1592
    %s1594 = scalar_lea.vmem [#allocation3], 48
    %1595 = vst [vmem:[%s1594] sm:$0xff] %v1593
    %s1596 = scalar_lea.vmem [#allocation2], 224
    %v1597 = vld [vmem:[%s1596] sm:$0xff]
    %v1598 = vld [vmem:[%s1596 + $0x8] sm:$0xff]
    %v1599 = vld [vmem:[%s1596 + $0x10] sm:$0xff]
    %v1600 = vld [vmem:[%s1596 + $0x18] sm:$0xff]
    %1601 = vmatpush.msra.mxu0 %v268
    %1602 = vmatpush.msra.mxu0 %v264
    %1603 = vmatpush.msra.mxu0 %v260
    %1604 = vmatpush.msra.mxu0 %v256
    %1605 = vmatpush.msra.mxu0 %v252
    %1606 = vmatpush.msra.mxu0 %v248
    %1607 = vmatpush.msra.mxu0 %v244
    %1608 = vmatpush.msra.mxu0 %v240
    %1609 = vmatpush.msra.mxu0 %v236
    %1610 = vmatpush.msra.mxu0 %v232
    %1611 = vmatpush.msra.mxu0 %v228
    %1612 = vmatpush.msra.mxu0 %v224
    %1613 = vmatpush.msra.mxu0 %v220
    %1614 = vmatpush.msra.mxu0 %v216
    %1615 = vmatpush.msra.mxu0 %v212
    %1616 = vmatpush.msra.mxu0 %v208
    %1617 = vmatmul.f32.gmra.mxu0 %v1593
    %v1618 = vpop.f32.mrf.mxu0
    %v1619 = vadd.f32 0.0, %v1618
    %1620 = vdwg.mxu0
    %1621 = vmatpush.msra.mxu0 %v269
    %1622 = vmatpush.msra.mxu0 %v265
    %1623 = vmatpush.msra.mxu0 %v261
    %1624 = vmatpush.msra.mxu0 %v257
    %1625 = vmatpush.msra.mxu0 %v253
    %1626 = vmatpush.msra.mxu0 %v249
    %1627 = vmatpush.msra.mxu0 %v245
    %1628 = vmatpush.msra.mxu0 %v241
    %1629 = vmatpush.msra.mxu0 %v237
    %1630 = vmatpush.msra.mxu0 %v233
    %1631 = vmatpush.msra.mxu0 %v229
    %1632 = vmatpush.msra.mxu0 %v225
    %1633 = vmatpush.msra.mxu0 %v221
    %1634 = vmatpush.msra.mxu0 %v217
    %1635 = vmatpush.msra.mxu0 %v213
    %1636 = vmatpush.msra.mxu0 %v209
    %1637 = vmatmul.f32.gmra.mxu0 %v1593
    %v1638 = vpop.f32.mrf.mxu0
    %v1639 = vadd.f32 0.0, %v1638
    %1640 = vdwg.mxu0
    %1641 = vmatpush.msra.mxu0 %v270
    %1642 = vmatpush.msra.mxu0 %v266
    %1643 = vmatpush.msra.mxu0 %v262
    %1644 = vmatpush.msra.mxu0 %v258
    %1645 = vmatpush.msra.mxu0 %v254
    %1646 = vmatpush.msra.mxu0 %v250
    %1647 = vmatpush.msra.mxu0 %v246
    %1648 = vmatpush.msra.mxu0 %v242
    %1649 = vmatpush.msra.mxu0 %v238
    %1650 = vmatpush.msra.mxu0 %v234
    %1651 = vmatpush.msra.mxu0 %v230
    %1652 = vmatpush.msra.mxu0 %v226
    %1653 = vmatpush.msra.mxu0 %v222
    %1654 = vmatpush.msra.mxu0 %v218
    %1655 = vmatpush.msra.mxu0 %v214
    %1656 = vmatpush.msra.mxu0 %v210
    %1657 = vmatmul.f32.gmra.mxu0 %v1593
    %v1658 = vpop.f32.mrf.mxu0
    %v1659 = vadd.f32 0.0, %v1658
    %1660 = vdwg.mxu0
    %1661 = vmatpush.msra.mxu0 %v271
    %1662 = vmatpush.msra.mxu0 %v267
    %1663 = vmatpush.msra.mxu0 %v263
    %1664 = vmatpush.msra.mxu0 %v259
    %1665 = vmatpush.msra.mxu0 %v255
    %1666 = vmatpush.msra.mxu0 %v251
    %1667 = vmatpush.msra.mxu0 %v247
    %1668 = vmatpush.msra.mxu0 %v243
    %1669 = vmatpush.msra.mxu0 %v239
    %1670 = vmatpush.msra.mxu0 %v235
    %1671 = vmatpush.msra.mxu0 %v231
    %1672 = vmatpush.msra.mxu0 %v227
    %1673 = vmatpush.msra.mxu0 %v223
    %1674 = vmatpush.msra.mxu0 %v219
    %1675 = vmatpush.msra.mxu0 %v215
    %1676 = vmatpush.msra.mxu0 %v211
    %1677 = vmatmul.f32.gmra.mxu0 %v1593
    %v1678 = vpop.f32.mrf.mxu0
    %v1679 = vadd.f32 0.0, %v1678
    %1680 = vdwg.mxu0
    %v1681 = vadd.f32 %v1597, %v1619
    %v1682 = vadd.f32 %v1598, %v1639
    %v1683 = vadd.f32 %v1599, %v1659
    %v1684 = vadd.f32 %v1600, %v1679
    %v1685 = vxor.u32 %v1681, 2147483648
    %v1686 = vmul.f32 %v1685, 1.442695
    %v1687 = vpow.pop %v1686
    %v1688 = vadd.f32 %v1687, 1.0
    %v1689 = vrcp.pop %v1688
    %v1690 = vmul.f32 %v1688, %v1689
    %v1691 = vsub.f32 1.0, %v1690
    %v1692 = vmul.f32 %v1689, %v1691
    %v1693 = vadd.f32 %v1689, %v1692
    %vm1694 = vweird.f32 %v1688
    %vm1695 = vweird.f32 %v1689
    %vm1696 = vmor %vm1694, %vm1695
    %v1697 = vsel %vm1696, %v1689, %v1693
    %v1698 = vand.u32 2147483647, %v1688
    %vm1699 = vcmp.eq.f32.partialorder %v1698, 8.507059e+37
    %v1700 = vand.u32 %v1688, 2147483648
    %v1701 = vor.u32 1.1754944e-38, %v1700
    %v1702 = vsel %vm1699, %v1701, %v1697
    %v1703 = vmul.f32 1.0, %v1702
    %v1704 = vxor.u32 %v1682, 2147483648
    %v1705 = vmul.f32 %v1704, 1.442695
    %v1706 = vpow.pop %v1705
    %v1707 = vadd.f32 %v1706, 1.0
    %v1708 = vrcp.pop %v1707
    %v1709 = vmul.f32 %v1707, %v1708
    %v1710 = vsub.f32 1.0, %v1709
    %v1711 = vmul.f32 %v1708, %v1710
    %v1712 = vadd.f32 %v1708, %v1711
    %vm1713 = vweird.f32 %v1707
    %vm1714 = vweird.f32 %v1708
    %vm1715 = vmor %vm1713, %vm1714
    %v1716 = vsel %vm1715, %v1708, %v1712
    %v1717 = vand.u32 2147483647, %v1707
    %vm1718 = vcmp.eq.f32.partialorder %v1717, 8.507059e+37
    %v1719 = vand.u32 %v1707, 2147483648
    %v1720 = vor.u32 1.1754944e-38, %v1719
    %v1721 = vsel %vm1718, %v1720, %v1716
    %v1722 = vmul.f32 1.0, %v1721
    %v1723 = vtanh.pop %v1683
    %v1724 = vxor.u32 %v1684, 2147483648
    %v1725 = vmul.f32 %v1724, 1.442695
    %v1726 = vpow.pop %v1725
    %v1727 = vadd.f32 %v1726, 1.0
    %v1728 = vrcp.pop %v1727
    %v1729 = vmul.f32 %v1727, %v1728
    %v1730 = vsub.f32 1.0, %v1729
    %v1731 = vmul.f32 %v1728, %v1730
    %v1732 = vadd.f32 %v1728, %v1731
    %vm1733 = vweird.f32 %v1727
    %vm1734 = vweird.f32 %v1728
    %vm1735 = vmor %vm1733, %vm1734
    %v1736 = vsel %vm1735, %v1728, %v1732
    %v1737 = vand.u32 2147483647, %v1727
    %vm1738 = vcmp.eq.f32.partialorder %v1737, 8.507059e+37
    %v1739 = vand.u32 %v1727, 2147483648
    %v1740 = vor.u32 1.1754944e-38, %v1739
    %v1741 = vsel %vm1738, %v1740, %v1736
    %v1742 = vmul.f32 1.0, %v1741
    %v1743 = vmul.f32 %v1722, %v1591
    %v1744 = vmul.f32 %v1703, %v1723
    %v1745 = vadd.f32 %v1743, %v1744
    %v1746 = vtanh.pop %v1745
    %v1747 = vmul.f32 %v1742, %v1746
    %s1748 = scalar_lea.vmem [#allocation3], 56
    %1749 = vst [vmem:[%s1748] sm:$0xff] %v1747
    %s1750 = scalar_lea.vmem [#allocation2], 256
    %v1751 = vld [vmem:[%s1750] sm:$0xff]
    %v1752 = vld [vmem:[%s1750 + $0x8] sm:$0xff]
    %v1753 = vld [vmem:[%s1750 + $0x10] sm:$0xff]
    %v1754 = vld [vmem:[%s1750 + $0x18] sm:$0xff]
    %1755 = vmatpush.msra.mxu0 %v268
    %1756 = vmatpush.msra.mxu0 %v264
    %1757 = vmatpush.msra.mxu0 %v260
    %1758 = vmatpush.msra.mxu0 %v256
    %1759 = vmatpush.msra.mxu0 %v252
    %1760 = vmatpush.msra.mxu0 %v248
    %1761 = vmatpush.msra.mxu0 %v244
    %1762 = vmatpush.msra.mxu0 %v240
    %1763 = vmatpush.msra.mxu0 %v236
    %1764 = vmatpush.msra.mxu0 %v232
    %1765 = vmatpush.msra.mxu0 %v228
    %1766 = vmatpush.msra.mxu0 %v224
    %1767 = vmatpush.msra.mxu0 %v220
    %1768 = vmatpush.msra.mxu0 %v216
    %1769 = vmatpush.msra.mxu0 %v212
    %1770 = vmatpush.msra.mxu0 %v208
    %1771 = vmatmul.f32.gmra.mxu0 %v1747
    %v1772 = vpop.f32.mrf.mxu0
    %v1773 = vadd.f32 0.0, %v1772
    %1774 = vdwg.mxu0
    %1775 = vmatpush.msra.mxu0 %v269
    %1776 = vmatpush.msra.mxu0 %v265
    %1777 = vmatpush.msra.mxu0 %v261
    %1778 = vmatpush.msra.mxu0 %v257
    %1779 = vmatpush.msra.mxu0 %v253
    %1780 = vmatpush.msra.mxu0 %v249
    %1781 = vmatpush.msra.mxu0 %v245
    %1782 = vmatpush.msra.mxu0 %v241
    %1783 = vmatpush.msra.mxu0 %v237
    %1784 = vmatpush.msra.mxu0 %v233
    %1785 = vmatpush.msra.mxu0 %v229
    %1786 = vmatpush.msra.mxu0 %v225
    %1787 = vmatpush.msra.mxu0 %v221
    %1788 = vmatpush.msra.mxu0 %v217
    %1789 = vmatpush.msra.mxu0 %v213
    %1790 = vmatpush.msra.mxu0 %v209
    %1791 = vmatmul.f32.gmra.mxu0 %v1747
    %v1792 = vpop.f32.mrf.mxu0
    %v1793 = vadd.f32 0.0, %v1792
    %1794 = vdwg.mxu0
    %1795 = vmatpush.msra.mxu0 %v270
    %1796 = vmatpush.msra.mxu0 %v266
    %1797 = vmatpush.msra.mxu0 %v262
    %1798 = vmatpush.msra.mxu0 %v258
    %1799 = vmatpush.msra.mxu0 %v254
    %1800 = vmatpush.msra.mxu0 %v250
    %1801 = vmatpush.msra.mxu0 %v246
    %1802 = vmatpush.msra.mxu0 %v242
    %1803 = vmatpush.msra.mxu0 %v238
    %1804 = vmatpush.msra.mxu0 %v234
    %1805 = vmatpush.msra.mxu0 %v230
    %1806 = vmatpush.msra.mxu0 %v226
    %1807 = vmatpush.msra.mxu0 %v222
    %1808 = vmatpush.msra.mxu0 %v218
    %1809 = vmatpush.msra.mxu0 %v214
    %1810 = vmatpush.msra.mxu0 %v210
    %1811 = vmatmul.f32.gmra.mxu0 %v1747
    %v1812 = vpop.f32.mrf.mxu0
    %v1813 = vadd.f32 0.0, %v1812
    %1814 = vdwg.mxu0
    %1815 = vmatpush.msra.mxu0 %v271
    %1816 = vmatpush.msra.mxu0 %v267
    %1817 = vmatpush.msra.mxu0 %v263
    %1818 = vmatpush.msra.mxu0 %v259
    %1819 = vmatpush.msra.mxu0 %v255
    %1820 = vmatpush.msra.mxu0 %v251
    %1821 = vmatpush.msra.mxu0 %v247
    %1822 = vmatpush.msra.mxu0 %v243
    %1823 = vmatpush.msra.mxu0 %v239
    %1824 = vmatpush.msra.mxu0 %v235
    %1825 = vmatpush.msra.mxu0 %v231
    %1826 = vmatpush.msra.mxu0 %v227
    %1827 = vmatpush.msra.mxu0 %v223
    %1828 = vmatpush.msra.mxu0 %v219
    %1829 = vmatpush.msra.mxu0 %v215
    %1830 = vmatpush.msra.mxu0 %v211
    %1831 = vmatmul.f32.gmra.mxu0 %v1747
    %v1832 = vpop.f32.mrf.mxu0
    %v1833 = vadd.f32 0.0, %v1832
    %1834 = vdwg.mxu0
    %v1835 = vadd.f32 %v1751, %v1773
    %v1836 = vadd.f32 %v1752, %v1793
    %v1837 = vadd.f32 %v1753, %v1813
    %v1838 = vadd.f32 %v1754, %v1833
    %v1839 = vxor.u32 %v1835, 2147483648
    %v1840 = vmul.f32 %v1839, 1.442695
    %v1841 = vpow.pop %v1840
    %v1842 = vadd.f32 %v1841, 1.0
    %v1843 = vrcp.pop %v1842
    %v1844 = vmul.f32 %v1842, %v1843
    %v1845 = vsub.f32 1.0, %v1844
    %v1846 = vmul.f32 %v1843, %v1845
    %v1847 = vadd.f32 %v1843, %v1846
    %vm1848 = vweird.f32 %v1842
    %vm1849 = vweird.f32 %v1843
    %vm1850 = vmor %vm1848, %vm1849
    %v1851 = vsel %vm1850, %v1843, %v1847
    %v1852 = vand.u32 2147483647, %v1842
    %vm1853 = vcmp.eq.f32.partialorder %v1852, 8.507059e+37
    %v1854 = vand.u32 %v1842, 2147483648
    %v1855 = vor.u32 1.1754944e-38, %v1854
    %v1856 = vsel %vm1853, %v1855, %v1851
    %v1857 = vmul.f32 1.0, %v1856
    %v1858 = vxor.u32 %v1836, 2147483648
    %v1859 = vmul.f32 %v1858, 1.442695
    %v1860 = vpow.pop %v1859
    %v1861 = vadd.f32 %v1860, 1.0
    %v1862 = vrcp.pop %v1861
    %v1863 = vmul.f32 %v1861, %v1862
    %v1864 = vsub.f32 1.0, %v1863
    %v1865 = vmul.f32 %v1862, %v1864
    %v1866 = vadd.f32 %v1862, %v1865
    %vm1867 = vweird.f32 %v1861
    %vm1868 = vweird.f32 %v1862
    %vm1869 = vmor %vm1867, %vm1868
    %v1870 = vsel %vm1869, %v1862, %v1866
    %v1871 = vand.u32 2147483647, %v1861
    %vm1872 = vcmp.eq.f32.partialorder %v1871, 8.507059e+37
    %v1873 = vand.u32 %v1861, 2147483648
    %v1874 = vor.u32 1.1754944e-38, %v1873
    %v1875 = vsel %vm1872, %v1874, %v1870
    %v1876 = vmul.f32 1.0, %v1875
    %v1877 = vtanh.pop %v1837
    %v1878 = vxor.u32 %v1838, 2147483648
    %v1879 = vmul.f32 %v1878, 1.442695
    %v1880 = vpow.pop %v1879
    %v1881 = vadd.f32 %v1880, 1.0
    %v1882 = vrcp.pop %v1881
    %v1883 = vmul.f32 %v1881, %v1882
    %v1884 = vsub.f32 1.0, %v1883
    %v1885 = vmul.f32 %v1882, %v1884
    %v1886 = vadd.f32 %v1882, %v1885
    %vm1887 = vweird.f32 %v1881
    %vm1888 = vweird.f32 %v1882
    %vm1889 = vmor %vm1887, %vm1888
    %v1890 = vsel %vm1889, %v1882, %v1886
    %v1891 = vand.u32 2147483647, %v1881
    %vm1892 = vcmp.eq.f32.partialorder %v1891, 8.507059e+37
    %v1893 = vand.u32 %v1881, 2147483648
    %v1894 = vor.u32 1.1754944e-38, %v1893
    %v1895 = vsel %vm1892, %v1894, %v1890
    %v1896 = vmul.f32 1.0, %v1895
    %v1897 = vmul.f32 %v1876, %v1745
    %v1898 = vmul.f32 %v1857, %v1877
    %v1899 = vadd.f32 %v1897, %v1898
    %v1900 = vtanh.pop %v1899
    %v1901 = vmul.f32 %v1896, %v1900
    %s1902 = scalar_lea.vmem [#allocation3], 64
    %1903 = vst [vmem:[%s1902] sm:$0xff] %v1901
    %s1904 = scalar_lea.vmem [#allocation2], 288
    %v1905 = vld [vmem:[%s1904] sm:$0xff]
    %v1906 = vld [vmem:[%s1904 + $0x8] sm:$0xff]
    %v1907 = vld [vmem:[%s1904 + $0x10] sm:$0xff]
    %v1908 = vld [vmem:[%s1904 + $0x18] sm:$0xff]
    %1909 = vmatpush.msra.mxu0 %v268
    %1910 = vmatpush.msra.mxu0 %v264
    %1911 = vmatpush.msra.mxu0 %v260
    %1912 = vmatpush.msra.mxu0 %v256
    %1913 = vmatpush.msra.mxu0 %v252
    %1914 = vmatpush.msra.mxu0 %v248
    %1915 = vmatpush.msra.mxu0 %v244
    %1916 = vmatpush.msra.mxu0 %v240
    %1917 = vmatpush.msra.mxu0 %v236
    %1918 = vmatpush.msra.mxu0 %v232
    %1919 = vmatpush.msra.mxu0 %v228
    %1920 = vmatpush.msra.mxu0 %v224
    %1921 = vmatpush.msra.mxu0 %v220
    %1922 = vmatpush.msra.mxu0 %v216
    %1923 = vmatpush.msra.mxu0 %v212
    %1924 = vmatpush.msra.mxu0 %v208
    %1925 = vmatmul.f32.gmra.mxu0 %v1901
    %v1926 = vpop.f32.mrf.mxu0
    %v1927 = vadd.f32 0.0, %v1926
    %1928 = vdwg.mxu0
    %1929 = vmatpush.msra.mxu0 %v269
    %1930 = vmatpush.msra.mxu0 %v265
    %1931 = vmatpush.msra.mxu0 %v261
    %1932 = vmatpush.msra.mxu0 %v257
    %1933 = vmatpush.msra.mxu0 %v253
    %1934 = vmatpush.msra.mxu0 %v249
    %1935 = vmatpush.msra.mxu0 %v245
    %1936 = vmatpush.msra.mxu0 %v241
    %1937 = vmatpush.msra.mxu0 %v237
    %1938 = vmatpush.msra.mxu0 %v233
    %1939 = vmatpush.msra.mxu0 %v229
    %1940 = vmatpush.msra.mxu0 %v225
    %1941 = vmatpush.msra.mxu0 %v221
    %1942 = vmatpush.msra.mxu0 %v217
    %1943 = vmatpush.msra.mxu0 %v213
    %1944 = vmatpush.msra.mxu0 %v209
    %1945 = vmatmul.f32.gmra.mxu0 %v1901
    %v1946 = vpop.f32.mrf.mxu0
    %v1947 = vadd.f32 0.0, %v1946
    %1948 = vdwg.mxu0
    %1949 = vmatpush.msra.mxu0 %v270
    %1950 = vmatpush.msra.mxu0 %v266
    %1951 = vmatpush.msra.mxu0 %v262
    %1952 = vmatpush.msra.mxu0 %v258
    %1953 = vmatpush.msra.mxu0 %v254
    %1954 = vmatpush.msra.mxu0 %v250
    %1955 = vmatpush.msra.mxu0 %v246
    %1956 = vmatpush.msra.mxu0 %v242
    %1957 = vmatpush.msra.mxu0 %v238
    %1958 = vmatpush.msra.mxu0 %v234
    %1959 = vmatpush.msra.mxu0 %v230
    %1960 = vmatpush.msra.mxu0 %v226
    %1961 = vmatpush.msra.mxu0 %v222
    %1962 = vmatpush.msra.mxu0 %v218
    %1963 = vmatpush.msra.mxu0 %v214
    %1964 = vmatpush.msra.mxu0 %v210
    %1965 = vmatmul.f32.gmra.mxu0 %v1901
    %v1966 = vpop.f32.mrf.mxu0
    %v1967 = vadd.f32 0.0, %v1966
    %1968 = vdwg.mxu0
    %1969 = vmatpush.msra.mxu0 %v271
    %1970 = vmatpush.msra.mxu0 %v267
    %1971 = vmatpush.msra.mxu0 %v263
    %1972 = vmatpush.msra.mxu0 %v259
    %1973 = vmatpush.msra.mxu0 %v255
    %1974 = vmatpush.msra.mxu0 %v251
    %1975 = vmatpush.msra.mxu0 %v247
    %1976 = vmatpush.msra.mxu0 %v243
    %1977 = vmatpush.msra.mxu0 %v239
    %1978 = vmatpush.msra.mxu0 %v235
    %1979 = vmatpush.msra.mxu0 %v231
    %1980 = vmatpush.msra.mxu0 %v227
    %1981 = vmatpush.msra.mxu0 %v223
    %1982 = vmatpush.msra.mxu0 %v219
    %1983 = vmatpush.msra.mxu0 %v215
    %1984 = vmatpush.msra.mxu0 %v211
    %1985 = vmatmul.f32.gmra.mxu0 %v1901
    %v1986 = vpop.f32.mrf.mxu0
    %v1987 = vadd.f32 0.0, %v1986
    %1988 = vdwg.mxu0
    %v1989 = vadd.f32 %v1905, %v1927
    %v1990 = vadd.f32 %v1906, %v1947
    %v1991 = vadd.f32 %v1907, %v1967
    %v1992 = vadd.f32 %v1908, %v1987
    %v1993 = vxor.u32 %v1989, 2147483648
    %v1994 = vmul.f32 %v1993, 1.442695
    %v1995 = vpow.pop %v1994
    %v1996 = vadd.f32 %v1995, 1.0
    %v1997 = vrcp.pop %v1996
    %v1998 = vmul.f32 %v1996, %v1997
    %v1999 = vsub.f32 1.0, %v1998
    %v2000 = vmul.f32 %v1997, %v1999
    %v2001 = vadd.f32 %v1997, %v2000
    %vm2002 = vweird.f32 %v1996
    %vm2003 = vweird.f32 %v1997
    %vm2004 = vmor %vm2002, %vm2003
    %v2005 = vsel %vm2004, %v1997, %v2001
    %v2006 = vand.u32 2147483647, %v1996
    %vm2007 = vcmp.eq.f32.partialorder %v2006, 8.507059e+37
    %v2008 = vand.u32 %v1996, 2147483648
    %v2009 = vor.u32 1.1754944e-38, %v2008
    %v2010 = vsel %vm2007, %v2009, %v2005
    %v2011 = vmul.f32 1.0, %v2010
    %v2012 = vxor.u32 %v1990, 2147483648
    %v2013 = vmul.f32 %v2012, 1.442695
    %v2014 = vpow.pop %v2013
    %v2015 = vadd.f32 %v2014, 1.0
    %v2016 = vrcp.pop %v2015
    %v2017 = vmul.f32 %v2015, %v2016
    %v2018 = vsub.f32 1.0, %v2017
    %v2019 = vmul.f32 %v2016, %v2018
    %v2020 = vadd.f32 %v2016, %v2019
    %vm2021 = vweird.f32 %v2015
    %vm2022 = vweird.f32 %v2016
    %vm2023 = vmor %vm2021, %vm2022
    %v2024 = vsel %vm2023, %v2016, %v2020
    %v2025 = vand.u32 2147483647, %v2015
    %vm2026 = vcmp.eq.f32.partialorder %v2025, 8.507059e+37
    %v2027 = vand.u32 %v2015, 2147483648
    %v2028 = vor.u32 1.1754944e-38, %v2027
    %v2029 = vsel %vm2026, %v2028, %v2024
    %v2030 = vmul.f32 1.0, %v2029
    %v2031 = vtanh.pop %v1991
    %v2032 = vxor.u32 %v1992, 2147483648
    %v2033 = vmul.f32 %v2032, 1.442695
    %v2034 = vpow.pop %v2033
    %v2035 = vadd.f32 %v2034, 1.0
    %v2036 = vrcp.pop %v2035
    %v2037 = vmul.f32 %v2035, %v2036
    %v2038 = vsub.f32 1.0, %v2037
    %v2039 = vmul.f32 %v2036, %v2038
    %v2040 = vadd.f32 %v2036, %v2039
    %vm2041 = vweird.f32 %v2035
    %vm2042 = vweird.f32 %v2036
    %vm2043 = vmor %vm2041, %vm2042
    %v2044 = vsel %vm2043, %v2036, %v2040
    %v2045 = vand.u32 2147483647, %v2035
    %vm2046 = vcmp.eq.f32.partialorder %v2045, 8.507059e+37
    %v2047 = vand.u32 %v2035, 2147483648
    %v2048 = vor.u32 1.1754944e-38, %v2047
    %v2049 = vsel %vm2046, %v2048, %v2044
    %v2050 = vmul.f32 1.0, %v2049
    %v2051 = vmul.f32 %v2030, %v1899
    %v2052 = vmul.f32 %v2011, %v2031
    %v2053 = vadd.f32 %v2051, %v2052
    %v2054 = vtanh.pop %v2053
    %v2055 = vmul.f32 %v2050, %v2054
    %s2056 = scalar_lea.vmem [#allocation3], 72
    %2057 = vst [vmem:[%s2056] sm:$0xff] %v2055
    %v2058 = vld [vmem:[#allocation8] sm:$0xff]
    %v2059 = vld [vmem:[#allocation8 + $0x8] sm:$0xff]
    %v2060 = vld [vmem:[#allocation8 + $0x10] sm:$0xff]
    %v2061 = vld [vmem:[#allocation8 + $0x18] sm:$0xff]
    %v2062 = vld [vmem:[#allocation8 + $0x20] sm:$0xff]
    %v2063 = vld [vmem:[#allocation8 + $0x28] sm:$0xff]
    %v2064 = vld [vmem:[#allocation8 + $0x30] sm:$0xff]
    %v2065 = vld [vmem:[#allocation8 + $0x38] sm:$0xff]
    %v2066 = vld [vmem:[#allocation8 + $0x40] sm:$0xff]
    %v2067 = vld [vmem:[#allocation8 + $0x48] sm:$0xff]
    %v2068 = vld [vmem:[#allocation8 + $0x50] sm:$0xff]
    %v2069 = vld [vmem:[#allocation8 + $0x58] sm:$0xff]
    %v2070 = vld [vmem:[#allocation8 + $0x60] sm:$0xff]
    %v2071 = vld [vmem:[#allocation8 + $0x68] sm:$0xff]
    %v2072 = vld [vmem:[#allocation8 + $0x70] sm:$0xff]
    %v2073 = vld [vmem:[#allocation8 + $0x78] sm:$0xff]
    %v2074 = vld [vmem:[#allocation8 + $0x80] sm:$0xff]
    %v2075 = vld [vmem:[#allocation8 + $0x88] sm:$0xff]
    %v2076 = vld [vmem:[#allocation8 + $0x90] sm:$0xff]
    %v2077 = vld [vmem:[#allocation8 + $0x98] sm:$0xff]
    %v2078 = vld [vmem:[#allocation8 + $0xa0] sm:$0xff]
    %v2079 = vld [vmem:[#allocation8 + $0xa8] sm:$0xff]
    %v2080 = vld [vmem:[#allocation8 + $0xb0] sm:$0xff]
    %v2081 = vld [vmem:[#allocation8 + $0xb8] sm:$0xff]
    %v2082 = vld [vmem:[#allocation8 + $0xc0] sm:$0xff]
    %v2083 = vld [vmem:[#allocation8 + $0xc8] sm:$0xff]
    %v2084 = vld [vmem:[#allocation8 + $0xd0] sm:$0xff]
    %v2085 = vld [vmem:[#allocation8 + $0xd8] sm:$0xff]
    %v2086 = vld [vmem:[#allocation8 + $0xe0] sm:$0xff]
    %v2087 = vld [vmem:[#allocation8 + $0xe8] sm:$0xff]
    %v2088 = vld [vmem:[#allocation8 + $0xf0] sm:$0xff]
    %v2089 = vld [vmem:[#allocation8 + $0xf8] sm:$0xff]
    %v2090 = vld [vmem:[#allocation8 + $0x100] sm:$0xff]
    %v2091 = vld [vmem:[#allocation8 + $0x108] sm:$0xff]
    %v2092 = vld [vmem:[#allocation8 + $0x110] sm:$0xff]
    %v2093 = vld [vmem:[#allocation8 + $0x118] sm:$0xff]
    %v2094 = vld [vmem:[#allocation8 + $0x120] sm:$0xff]
    %v2095 = vld [vmem:[#allocation8 + $0x128] sm:$0xff]
    %v2096 = vld [vmem:[#allocation8 + $0x130] sm:$0xff]
    %v2097 = vld [vmem:[#allocation8 + $0x138] sm:$0xff]
    %v2098 = vld [vmem:[#allocation8 + $0x140] sm:$0xff]
    %v2099 = vld [vmem:[#allocation8 + $0x148] sm:$0xff]
    %v2100 = vld [vmem:[#allocation8 + $0x150] sm:$0xff]
    %v2101 = vld [vmem:[#allocation8 + $0x158] sm:$0xff]
    %v2102 = vld [vmem:[#allocation8 + $0x160] sm:$0xff]
    %v2103 = vld [vmem:[#allocation8 + $0x168] sm:$0xff]
    %v2104 = vld [vmem:[#allocation8 + $0x170] sm:$0xff]
    %v2105 = vld [vmem:[#allocation8 + $0x178] sm:$0xff]
    %v2106 = vld [vmem:[#allocation8 + $0x180] sm:$0xff]
    %v2107 = vld [vmem:[#allocation8 + $0x188] sm:$0xff]
    %v2108 = vld [vmem:[#allocation8 + $0x190] sm:$0xff]
    %v2109 = vld [vmem:[#allocation8 + $0x198] sm:$0xff]
    %v2110 = vld [vmem:[#allocation8 + $0x1a0] sm:$0xff]
    %v2111 = vld [vmem:[#allocation8 + $0x1a8] sm:$0xff]
    %v2112 = vld [vmem:[#allocation8 + $0x1b0] sm:$0xff]
    %v2113 = vld [vmem:[#allocation8 + $0x1b8] sm:$0xff]
    %v2114 = vld [vmem:[#allocation8 + $0x1c0] sm:$0xff]
    %v2115 = vld [vmem:[#allocation8 + $0x1c8] sm:$0xff]
    %v2116 = vld [vmem:[#allocation8 + $0x1d0] sm:$0xff]
    %v2117 = vld [vmem:[#allocation8 + $0x1d8] sm:$0xff]
    %v2118 = vld [vmem:[#allocation8 + $0x1e0] sm:$0xff]
    %v2119 = vld [vmem:[#allocation8 + $0x1e8] sm:$0xff]
    %v2120 = vld [vmem:[#allocation8 + $0x1f0] sm:$0xff]
    %v2121 = vld [vmem:[#allocation8 + $0x1f8] sm:$0xff]
    %v2122 = vld [vmem:[#allocation9] sm:$0xff]
    %v2123 = vld [vmem:[#allocation9 + $0x8] sm:$0xff]
    %v2124 = vld [vmem:[#allocation9 + $0x10] sm:$0xff]
    %v2125 = vld [vmem:[#allocation9 + $0x18] sm:$0xff]
    %v2126 = vld [vmem:[#allocation9 + $0x20] sm:$0xff]
    %v2127 = vld [vmem:[#allocation9 + $0x28] sm:$0xff]
    %v2128 = vld [vmem:[#allocation9 + $0x30] sm:$0xff]
    %v2129 = vld [vmem:[#allocation9 + $0x38] sm:$0xff]
    %v2130 = vld [vmem:[#allocation9 + $0x40] sm:$0xff]
    %v2131 = vld [vmem:[#allocation9 + $0x48] sm:$0xff]
    %v2132 = vld [vmem:[#allocation9 + $0x50] sm:$0xff]
    %v2133 = vld [vmem:[#allocation9 + $0x58] sm:$0xff]
    %v2134 = vld [vmem:[#allocation9 + $0x60] sm:$0xff]
    %v2135 = vld [vmem:[#allocation9 + $0x68] sm:$0xff]
    %v2136 = vld [vmem:[#allocation9 + $0x70] sm:$0xff]
    %v2137 = vld [vmem:[#allocation9 + $0x78] sm:$0xff]
    %v2138 = vld [vmem:[#allocation9 + $0x80] sm:$0xff]
    %v2139 = vld [vmem:[#allocation9 + $0x88] sm:$0xff]
    %v2140 = vld [vmem:[#allocation9 + $0x90] sm:$0xff]
    %v2141 = vld [vmem:[#allocation9 + $0x98] sm:$0xff]
    %v2142 = vld [vmem:[#allocation9 + $0xa0] sm:$0xff]
    %v2143 = vld [vmem:[#allocation9 + $0xa8] sm:$0xff]
    %v2144 = vld [vmem:[#allocation9 + $0xb0] sm:$0xff]
    %v2145 = vld [vmem:[#allocation9 + $0xb8] sm:$0xff]
    %v2146 = vld [vmem:[#allocation9 + $0xc0] sm:$0xff]
    %v2147 = vld [vmem:[#allocation9 + $0xc8] sm:$0xff]
    %v2148 = vld [vmem:[#allocation9 + $0xd0] sm:$0xff]
    %v2149 = vld [vmem:[#allocation9 + $0xd8] sm:$0xff]
    %v2150 = vld [vmem:[#allocation9 + $0xe0] sm:$0xff]
    %v2151 = vld [vmem:[#allocation9 + $0xe8] sm:$0xff]
    %v2152 = vld [vmem:[#allocation9 + $0xf0] sm:$0xff]
    %v2153 = vld [vmem:[#allocation9 + $0xf8] sm:$0xff]
    %v2154 = vld [vmem:[#allocation9 + $0x100] sm:$0xff]
    %v2155 = vld [vmem:[#allocation9 + $0x108] sm:$0xff]
    %v2156 = vld [vmem:[#allocation9 + $0x110] sm:$0xff]
    %v2157 = vld [vmem:[#allocation9 + $0x118] sm:$0xff]
    %v2158 = vld [vmem:[#allocation9 + $0x120] sm:$0xff]
    %v2159 = vld [vmem:[#allocation9 + $0x128] sm:$0xff]
    %v2160 = vld [vmem:[#allocation9 + $0x130] sm:$0xff]
    %v2161 = vld [vmem:[#allocation9 + $0x138] sm:$0xff]
    %v2162 = vld [vmem:[#allocation9 + $0x140] sm:$0xff]
    %v2163 = vld [vmem:[#allocation9 + $0x148] sm:$0xff]
    %v2164 = vld [vmem:[#allocation9 + $0x150] sm:$0xff]
    %v2165 = vld [vmem:[#allocation9 + $0x158] sm:$0xff]
    %v2166 = vld [vmem:[#allocation9 + $0x160] sm:$0xff]
    %v2167 = vld [vmem:[#allocation9 + $0x168] sm:$0xff]
    %v2168 = vld [vmem:[#allocation9 + $0x170] sm:$0xff]
    %v2169 = vld [vmem:[#allocation9 + $0x178] sm:$0xff]
    %v2170 = vld [vmem:[#allocation9 + $0x180] sm:$0xff]
    %v2171 = vld [vmem:[#allocation9 + $0x188] sm:$0xff]
    %v2172 = vld [vmem:[#allocation9 + $0x190] sm:$0xff]
    %v2173 = vld [vmem:[#allocation9 + $0x198] sm:$0xff]
    %v2174 = vld [vmem:[#allocation9 + $0x1a0] sm:$0xff]
    %v2175 = vld [vmem:[#allocation9 + $0x1a8] sm:$0xff]
    %v2176 = vld [vmem:[#allocation9 + $0x1b0] sm:$0xff]
    %v2177 = vld [vmem:[#allocation9 + $0x1b8] sm:$0xff]
    %v2178 = vld [vmem:[#allocation9 + $0x1c0] sm:$0xff]
    %v2179 = vld [vmem:[#allocation9 + $0x1c8] sm:$0xff]
    %v2180 = vld [vmem:[#allocation9 + $0x1d0] sm:$0xff]
    %v2181 = vld [vmem:[#allocation9 + $0x1d8] sm:$0xff]
    %v2182 = vld [vmem:[#allocation9 + $0x1e0] sm:$0xff]
    %v2183 = vld [vmem:[#allocation9 + $0x1e8] sm:$0xff]
    %v2184 = vld [vmem:[#allocation9 + $0x1f0] sm:$0xff]
    %v2185 = vld [vmem:[#allocation9 + $0x1f8] sm:$0xff]
    %v2186 = vld [vmem:[%s10] sm:$0xf]
    %v2187 = vld [vmem:[#allocation3] sm:$0xff]
    %v2188 = vld [vmem:[#allocation3 + $0x8] sm:$0xff]
    %v2189 = vld [vmem:[#allocation3 + $0x10] sm:$0xff]
    %v2190 = vld [vmem:[#allocation3 + $0x18] sm:$0xff]
    %v2191 = vld [vmem:[#allocation3 + $0x20] sm:$0xff]
    %v2192 = vld [vmem:[#allocation3 + $0x28] sm:$0xff]
    %v2193 = vld [vmem:[#allocation3 + $0x30] sm:$0xff]
    %v2194 = vld [vmem:[#allocation3 + $0x38] sm:$0xff]
    %v2195 = vld [vmem:[#allocation3 + $0x40] sm:$0xff]
    %v2196 = vld [vmem:[#allocation3 + $0x48] sm:$0xff]
    %v2198 = vperm.slane %v2186, 0
    %v2199 = vperm.slane %v2186, 1
    %v2200 = vperm.slane %v2186, 2
    %v2201 = vperm.slane %v2186, 3
    %2206 = vmatpush.msra.mxu0 %v2118
    %2207 = vmatpush.msra.mxu0 %v2114
    %2208 = vmatpush.msra.mxu0 %v2110
    %2209 = vmatpush.msra.mxu0 %v2106
    %2210 = vmatpush.msra.mxu0 %v2102
    %2211 = vmatpush.msra.mxu0 %v2098
    %2212 = vmatpush.msra.mxu0 %v2094
    %2213 = vmatpush.msra.mxu0 %v2090
    %2214 = vmatpush.msra.mxu0 %v2086
    %2215 = vmatpush.msra.mxu0 %v2082
    %2216 = vmatpush.msra.mxu0 %v2078
    %2217 = vmatpush.msra.mxu0 %v2074
    %2218 = vmatpush.msra.mxu0 %v2070
    %2219 = vmatpush.msra.mxu0 %v2066
    %2220 = vmatpush.msra.mxu0 %v2062
    %2221 = vmatpush.msra.mxu0 %v2058
    %2222 = vmatmul.f32.gmra.mxu0 %v2187
    %v2223 = vpop.f32.mrf.mxu0
    %v2224 = vadd.f32 %v2198, %v2223
    %2225 = vmatmul.f32.gmra.mxu0 %v2188
    %v2226 = vpop.f32.mrf.mxu0
    %v2227 = vadd.f32 %v2198, %v2226
    %2228 = vmatmul.f32.gmra.mxu0 %v2189
    %v2229 = vpop.f32.mrf.mxu0
    %v2230 = vadd.f32 %v2198, %v2229
    %2231 = vmatmul.f32.gmra.mxu0 %v2190
    %v2232 = vpop.f32.mrf.mxu0
    %v2233 = vadd.f32 %v2198, %v2232
    %2234 = vmatmul.f32.gmra.mxu0 %v2191
    %v2235 = vpop.f32.mrf.mxu0
    %v2236 = vadd.f32 %v2198, %v2235
    %2237 = vmatmul.f32.gmra.mxu0 %v2192
    %v2238 = vpop.f32.mrf.mxu0
    %v2239 = vadd.f32 %v2198, %v2238
    %2240 = vmatmul.f32.gmra.mxu0 %v2193
    %v2241 = vpop.f32.mrf.mxu0
    %v2242 = vadd.f32 %v2198, %v2241
    %2243 = vmatmul.f32.gmra.mxu0 %v2194
    %v2244 = vpop.f32.mrf.mxu0
    %v2245 = vadd.f32 %v2198, %v2244
    %2246 = vmatmul.f32.gmra.mxu0 %v2195
    %v2247 = vpop.f32.mrf.mxu0
    %v2248 = vadd.f32 %v2198, %v2247
    %2249 = vmatmul.f32.gmra.mxu0 %v2196
    %v2250 = vpop.f32.mrf.mxu0
    %v2251 = vadd.f32 %v2198, %v2250
    %2252 = vdwg.mxu0
    %2253 = vmatpush.msra.mxu0 %v2119
    %2254 = vmatpush.msra.mxu0 %v2115
    %2255 = vmatpush.msra.mxu0 %v2111
    %2256 = vmatpush.msra.mxu0 %v2107
    %2257 = vmatpush.msra.mxu0 %v2103
    %2258 = vmatpush.msra.mxu0 %v2099
    %2259 = vmatpush.msra.mxu0 %v2095
    %2260 = vmatpush.msra.mxu0 %v2091
    %2261 = vmatpush.msra.mxu0 %v2087
    %2262 = vmatpush.msra.mxu0 %v2083
    %2263 = vmatpush.msra.mxu0 %v2079
    %2264 = vmatpush.msra.mxu0 %v2075
    %2265 = vmatpush.msra.mxu0 %v2071
    %2266 = vmatpush.msra.mxu0 %v2067
    %2267 = vmatpush.msra.mxu0 %v2063
    %2268 = vmatpush.msra.mxu0 %v2059
    %2269 = vmatmul.f32.gmra.mxu0 %v2187
    %v2270 = vpop.f32.mrf.mxu0
    %v2271 = vadd.f32 %v2199, %v2270
    %2272 = vmatmul.f32.gmra.mxu0 %v2188
    %v2273 = vpop.f32.mrf.mxu0
    %v2274 = vadd.f32 %v2199, %v2273
    %2275 = vmatmul.f32.gmra.mxu0 %v2189
    %v2276 = vpop.f32.mrf.mxu0
    %v2277 = vadd.f32 %v2199, %v2276
    %2278 = vmatmul.f32.gmra.mxu0 %v2190
    %v2279 = vpop.f32.mrf.mxu0
    %v2280 = vadd.f32 %v2199, %v2279
    %2281 = vmatmul.f32.gmra.mxu0 %v2191
    %v2282 = vpop.f32.mrf.mxu0
    %v2283 = vadd.f32 %v2199, %v2282
    %2284 = vmatmul.f32.gmra.mxu0 %v2192
    %v2285 = vpop.f32.mrf.mxu0
    %v2286 = vadd.f32 %v2199, %v2285
    %2287 = vmatmul.f32.gmra.mxu0 %v2193
    %v2288 = vpop.f32.mrf.mxu0
    %v2289 = vadd.f32 %v2199, %v2288
    %2290 = vmatmul.f32.gmra.mxu0 %v2194
    %v2291 = vpop.f32.mrf.mxu0
    %v2292 = vadd.f32 %v2199, %v2291
    %2293 = vmatmul.f32.gmra.mxu0 %v2195
    %v2294 = vpop.f32.mrf.mxu0
    %v2295 = vadd.f32 %v2199, %v2294
    %2296 = vmatmul.f32.gmra.mxu0 %v2196
    %v2297 = vpop.f32.mrf.mxu0
    %v2298 = vadd.f32 %v2199, %v2297
    %2299 = vdwg.mxu0
    %2300 = vmatpush.msra.mxu0 %v2120
    %2301 = vmatpush.msra.mxu0 %v2116
    %2302 = vmatpush.msra.mxu0 %v2112
    %2303 = vmatpush.msra.mxu0 %v2108
    %2304 = vmatpush.msra.mxu0 %v2104
    %2305 = vmatpush.msra.mxu0 %v2100
    %2306 = vmatpush.msra.mxu0 %v2096
    %2307 = vmatpush.msra.mxu0 %v2092
    %2308 = vmatpush.msra.mxu0 %v2088
    %2309 = vmatpush.msra.mxu0 %v2084
    %2310 = vmatpush.msra.mxu0 %v2080
    %2311 = vmatpush.msra.mxu0 %v2076
    %2312 = vmatpush.msra.mxu0 %v2072
    %2313 = vmatpush.msra.mxu0 %v2068
    %2314 = vmatpush.msra.mxu0 %v2064
    %2315 = vmatpush.msra.mxu0 %v2060
    %2316 = vmatmul.f32.gmra.mxu0 %v2187
    %v2317 = vpop.f32.mrf.mxu0
    %v2318 = vadd.f32 %v2200, %v2317
    %2319 = vmatmul.f32.gmra.mxu0 %v2188
    %v2320 = vpop.f32.mrf.mxu0
    %v2321 = vadd.f32 %v2200, %v2320
    %2322 = vmatmul.f32.gmra.mxu0 %v2189
    %v2323 = vpop.f32.mrf.mxu0
    %v2324 = vadd.f32 %v2200, %v2323
    %2325 = vmatmul.f32.gmra.mxu0 %v2190
    %v2326 = vpop.f32.mrf.mxu0
    %v2327 = vadd.f32 %v2200, %v2326
    %2328 = vmatmul.f32.gmra.mxu0 %v2191
    %v2329 = vpop.f32.mrf.mxu0
    %v2330 = vadd.f32 %v2200, %v2329
    %2331 = vmatmul.f32.gmra.mxu0 %v2192
    %v2332 = vpop.f32.mrf.mxu0
    %v2333 = vadd.f32 %v2200, %v2332
    %2334 = vmatmul.f32.gmra.mxu0 %v2193
    %v2335 = vpop.f32.mrf.mxu0
    %v2336 = vadd.f32 %v2200, %v2335
    %2337 = vmatmul.f32.gmra.mxu0 %v2194
    %v2338 = vpop.f32.mrf.mxu0
    %v2339 = vadd.f32 %v2200, %v2338
    %2340 = vmatmul.f32.gmra.mxu0 %v2195
    %v2341 = vpop.f32.mrf.mxu0
    %v2342 = vadd.f32 %v2200, %v2341
    %2343 = vmatmul.f32.gmra.mxu0 %v2196
    %v2344 = vpop.f32.mrf.mxu0
    %v2345 = vadd.f32 %v2200, %v2344
    %2346 = vdwg.mxu0
    %2347 = vmatpush.msra.mxu0 %v2121
    %2348 = vmatpush.msra.mxu0 %v2117
    %2349 = vmatpush.msra.mxu0 %v2113
    %2350 = vmatpush.msra.mxu0 %v2109
    %2351 = vmatpush.msra.mxu0 %v2105
    %2352 = vmatpush.msra.mxu0 %v2101
    %2353 = vmatpush.msra.mxu0 %v2097
    %2354 = vmatpush.msra.mxu0 %v2093
    %2355 = vmatpush.msra.mxu0 %v2089
    %2356 = vmatpush.msra.mxu0 %v2085
    %2357 = vmatpush.msra.mxu0 %v2081
    %2358 = vmatpush.msra.mxu0 %v2077
    %2359 = vmatpush.msra.mxu0 %v2073
    %2360 = vmatpush.msra.mxu0 %v2069
    %2361 = vmatpush.msra.mxu0 %v2065
    %2362 = vmatpush.msra.mxu0 %v2061
    %2363 = vmatmul.f32.gmra.mxu0 %v2187
    %v2364 = vpop.f32.mrf.mxu0
    %v2365 = vadd.f32 %v2201, %v2364
    %2366 = vmatmul.f32.gmra.mxu0 %v2188
    %v2367 = vpop.f32.mrf.mxu0
    %v2368 = vadd.f32 %v2201, %v2367
    %2369 = vmatmul.f32.gmra.mxu0 %v2189
    %v2370 = vpop.f32.mrf.mxu0
    %v2371 = vadd.f32 %v2201, %v2370
    %2372 = vmatmul.f32.gmra.mxu0 %v2190
    %v2373 = vpop.f32.mrf.mxu0
    %v2374 = vadd.f32 %v2201, %v2373
    %2375 = vmatmul.f32.gmra.mxu0 %v2191
    %v2376 = vpop.f32.mrf.mxu0
    %v2377 = vadd.f32 %v2201, %v2376
    %2378 = vmatmul.f32.gmra.mxu0 %v2192
    %v2379 = vpop.f32.mrf.mxu0
    %v2380 = vadd.f32 %v2201, %v2379
    %2381 = vmatmul.f32.gmra.mxu0 %v2193
    %v2382 = vpop.f32.mrf.mxu0
    %v2383 = vadd.f32 %v2201, %v2382
    %2384 = vmatmul.f32.gmra.mxu0 %v2194
    %v2385 = vpop.f32.mrf.mxu0
    %v2386 = vadd.f32 %v2201, %v2385
    %2387 = vmatmul.f32.gmra.mxu0 %v2195
    %v2388 = vpop.f32.mrf.mxu0
    %v2389 = vadd.f32 %v2201, %v2388
    %2390 = vmatmul.f32.gmra.mxu0 %v2196
    %v2391 = vpop.f32.mrf.mxu0
    %v2392 = vadd.f32 %v2201, %v2391
    %2393 = vdwg.mxu0
    %2394 = vst [vmem:[#allocation2] sm:$0xff] %v2224
    %2395 = vst [vmem:[#allocation2 + $0x8] sm:$0xff] %v2271
    %2396 = vst [vmem:[#allocation2 + $0x10] sm:$0xff] %v2318
    %2397 = vst [vmem:[#allocation2 + $0x18] sm:$0xff] %v2365
    %2398 = vst [vmem:[#allocation2 + $0x20] sm:$0xff] %v2227
    %2399 = vst [vmem:[#allocation2 + $0x28] sm:$0xff] %v2274
    %2400 = vst [vmem:[#allocation2 + $0x30] sm:$0xff] %v2321
    %2401 = vst [vmem:[#allocation2 + $0x38] sm:$0xff] %v2368
    %2402 = vst [vmem:[#allocation2 + $0x40] sm:$0xff] %v2230
    %2403 = vst [vmem:[#allocation2 + $0x48] sm:$0xff] %v2277
    %2404 = vst [vmem:[#allocation2 + $0x50] sm:$0xff] %v2324
    %2405 = vst [vmem:[#allocation2 + $0x58] sm:$0xff] %v2371
    %2406 = vst [vmem:[#allocation2 + $0x60] sm:$0xff] %v2233
    %2407 = vst [vmem:[#allocation2 + $0x68] sm:$0xff] %v2280
    %2408 = vst [vmem:[#allocation2 + $0x70] sm:$0xff] %v2327
    %2409 = vst [vmem:[#allocation2 + $0x78] sm:$0xff] %v2374
    %2410 = vst [vmem:[#allocation2 + $0x80] sm:$0xff] %v2236
    %2411 = vst [vmem:[#allocation2 + $0x88] sm:$0xff] %v2283
    %2412 = vst [vmem:[#allocation2 + $0x90] sm:$0xff] %v2330
    %2413 = vst [vmem:[#allocation2 + $0x98] sm:$0xff] %v2377
    %2414 = vst [vmem:[#allocation2 + $0xa0] sm:$0xff] %v2239
    %2415 = vst [vmem:[#allocation2 + $0xa8] sm:$0xff] %v2286
    %2416 = vst [vmem:[#allocation2 + $0xb0] sm:$0xff] %v2333
    %2417 = vst [vmem:[#allocation2 + $0xb8] sm:$0xff] %v2380
    %2418 = vst [vmem:[#allocation2 + $0xc0] sm:$0xff] %v2242
    %2419 = vst [vmem:[#allocation2 + $0xc8] sm:$0xff] %v2289
    %2420 = vst [vmem:[#allocation2 + $0xd0] sm:$0xff] %v2336
    %2421 = vst [vmem:[#allocation2 + $0xd8] sm:$0xff] %v2383
    %2422 = vst [vmem:[#allocation2 + $0xe0] sm:$0xff] %v2245
    %2423 = vst [vmem:[#allocation2 + $0xe8] sm:$0xff] %v2292
    %2424 = vst [vmem:[#allocation2 + $0xf0] sm:$0xff] %v2339
    %2425 = vst [vmem:[#allocation2 + $0xf8] sm:$0xff] %v2386
    %2426 = vst [vmem:[#allocation2 + $0x100] sm:$0xff] %v2248
    %2427 = vst [vmem:[#allocation2 + $0x108] sm:$0xff] %v2295
    %2428 = vst [vmem:[#allocation2 + $0x110] sm:$0xff] %v2342
    %2429 = vst [vmem:[#allocation2 + $0x118] sm:$0xff] %v2389
    %2430 = vst [vmem:[#allocation2 + $0x120] sm:$0xff] %v2251
    %2431 = vst [vmem:[#allocation2 + $0x128] sm:$0xff] %v2298
    %2432 = vst [vmem:[#allocation2 + $0x130] sm:$0xff] %v2345
    %2433 = vst [vmem:[#allocation2 + $0x138] sm:$0xff] %v2392
    %v2434 = vld [vmem:[#allocation2] sm:$0xff]
    %v2435 = vld [vmem:[#allocation2 + $0x8] sm:$0xff]
    %v2436 = vld [vmem:[#allocation2 + $0x10] sm:$0xff]
    %v2437 = vld [vmem:[#allocation2 + $0x18] sm:$0xff]
    %2438 = vmatpush.msra.mxu0 %v2182
    %2439 = vmatpush.msra.mxu0 %v2178
    %2440 = vmatpush.msra.mxu0 %v2174
    %2441 = vmatpush.msra.mxu0 %v2170
    %2442 = vmatpush.msra.mxu0 %v2166
    %2443 = vmatpush.msra.mxu0 %v2162
    %2444 = vmatpush.msra.mxu0 %v2158
    %2445 = vmatpush.msra.mxu0 %v2154
    %2446 = vmatpush.msra.mxu0 %v2150
    %2447 = vmatpush.msra.mxu0 %v2146
    %2448 = vmatpush.msra.mxu0 %v2142
    %2449 = vmatpush.msra.mxu0 %v2138
    %2450 = vmatpush.msra.mxu0 %v2134
    %2451 = vmatpush.msra.mxu0 %v2130
    %2452 = vmatpush.msra.mxu0 %v2126
    %2453 = vmatpush.msra.mxu0 %v2122
    %2454 = vmatmul.f32.gmra.mxu0 0.0
    %v2455 = vpop.f32.mrf.mxu0
    %v2456 = vadd.f32 0.0, %v2455
    %2457 = vdwg.mxu0
    %2458 = vmatpush.msra.mxu0 %v2183
    %2459 = vmatpush.msra.mxu0 %v2179
    %2460 = vmatpush.msra.mxu0 %v2175
    %2461 = vmatpush.msra.mxu0 %v2171
    %2462 = vmatpush.msra.mxu0 %v2167
    %2463 = vmatpush.msra.mxu0 %v2163
    %2464 = vmatpush.msra.mxu0 %v2159
    %2465 = vmatpush.msra.mxu0 %v2155
    %2466 = vmatpush.msra.mxu0 %v2151
    %2467 = vmatpush.msra.mxu0 %v2147
    %2468 = vmatpush.msra.mxu0 %v2143
    %2469 = vmatpush.msra.mxu0 %v2139
    %2470 = vmatpush.msra.mxu0 %v2135
    %2471 = vmatpush.msra.mxu0 %v2131
    %2472 = vmatpush.msra.mxu0 %v2127
    %2473 = vmatpush.msra.mxu0 %v2123
    %2474 = vmatmul.f32.gmra.mxu0 0.0
    %v2475 = vpop.f32.mrf.mxu0
    %v2476 = vadd.f32 0.0, %v2475
    %2477 = vdwg.mxu0
    %2478 = vmatpush.msra.mxu0 %v2184
    %2479 = vmatpush.msra.mxu0 %v2180
    %2480 = vmatpush.msra.mxu0 %v2176
    %2481 = vmatpush.msra.mxu0 %v2172
    %2482 = vmatpush.msra.mxu0 %v2168
    %2483 = vmatpush.msra.mxu0 %v2164
    %2484 = vmatpush.msra.mxu0 %v2160
    %2485 = vmatpush.msra.mxu0 %v2156
    %2486 = vmatpush.msra.mxu0 %v2152
    %2487 = vmatpush.msra.mxu0 %v2148
    %2488 = vmatpush.msra.mxu0 %v2144
    %2489 = vmatpush.msra.mxu0 %v2140
    %2490 = vmatpush.msra.mxu0 %v2136
    %2491 = vmatpush.msra.mxu0 %v2132
    %2492 = vmatpush.msra.mxu0 %v2128
    %2493 = vmatpush.msra.mxu0 %v2124
    %2494 = vmatmul.f32.gmra.mxu0 0.0
    %v2495 = vpop.f32.mrf.mxu0
    %v2496 = vadd.f32 0.0, %v2495
    %2497 = vdwg.mxu0
    %2498 = vmatpush.msra.mxu0 %v2185
    %2499 = vmatpush.msra.mxu0 %v2181
    %2500 = vmatpush.msra.mxu0 %v2177
    %2501 = vmatpush.msra.mxu0 %v2173
    %2502 = vmatpush.msra.mxu0 %v2169
    %2503 = vmatpush.msra.mxu0 %v2165
    %2504 = vmatpush.msra.mxu0 %v2161
    %2505 = vmatpush.msra.mxu0 %v2157
    %2506 = vmatpush.msra.mxu0 %v2153
    %2507 = vmatpush.msra.mxu0 %v2149
    %2508 = vmatpush.msra.mxu0 %v2145
    %2509 = vmatpush.msra.mxu0 %v2141
    %2510 = vmatpush.msra.mxu0 %v2137
    %2511 = vmatpush.msra.mxu0 %v2133
    %2512 = vmatpush.msra.mxu0 %v2129
    %2513 = vmatpush.msra.mxu0 %v2125
    %2514 = vmatmul.f32.gmra.mxu0 0.0
    %v2515 = vpop.f32.mrf.mxu0
    %v2516 = vadd.f32 0.0, %v2515
    %2517 = vdwg.mxu0
    %v2518 = vadd.f32 %v2434, %v2456
    %v2519 = vadd.f32 %v2435, %v2476
    %v2520 = vadd.f32 %v2436, %v2496
    %v2521 = vadd.f32 %v2437, %v2516
    %v2522 = vxor.u32 %v2518, 2147483648
    %v2523 = vmul.f32 %v2522, 1.442695
    %v2524 = vpow.pop %v2523
    %v2525 = vadd.f32 %v2524, 1.0
    %v2526 = vrcp.pop %v2525
    %v2527 = vmul.f32 %v2525, %v2526
    %v2528 = vsub.f32 1.0, %v2527
    %v2529 = vmul.f32 %v2526, %v2528
    %v2530 = vadd.f32 %v2526, %v2529
    %vm2531 = vweird.f32 %v2525
    %vm2532 = vweird.f32 %v2526
    %vm2533 = vmor %vm2531, %vm2532
    %v2534 = vsel %vm2533, %v2526, %v2530
    %v2535 = vand.u32 2147483647, %v2525
    %vm2536 = vcmp.eq.f32.partialorder %v2535, 8.507059e+37
    %v2537 = vand.u32 %v2525, 2147483648
    %v2538 = vor.u32 1.1754944e-38, %v2537
    %v2539 = vsel %vm2536, %v2538, %v2534
    %v2540 = vmul.f32 1.0, %v2539
    %v2541 = vxor.u32 %v2519, 2147483648
    %v2542 = vmul.f32 %v2541, 1.442695
    %v2543 = vpow.pop %v2542
    %v2544 = vadd.f32 %v2543, 1.0
    %v2545 = vrcp.pop %v2544
    %v2546 = vmul.f32 %v2544, %v2545
    %v2547 = vsub.f32 1.0, %v2546
    %v2548 = vmul.f32 %v2545, %v2547
    %v2549 = vadd.f32 %v2545, %v2548
    %vm2550 = vweird.f32 %v2544
    %vm2551 = vweird.f32 %v2545
    %vm2552 = vmor %vm2550, %vm2551
    %v2553 = vsel %vm2552, %v2545, %v2549
    %v2554 = vand.u32 2147483647, %v2544
    %vm2555 = vcmp.eq.f32.partialorder %v2554, 8.507059e+37
    %v2556 = vand.u32 %v2544, 2147483648
    %v2557 = vor.u32 1.1754944e-38, %v2556
    %v2558 = vsel %vm2555, %v2557, %v2553
    %v2559 = vmul.f32 1.0, %v2558
    %v2560 = vtanh.pop %v2520
    %v2561 = vxor.u32 %v2521, 2147483648
    %v2562 = vmul.f32 %v2561, 1.442695
    %v2563 = vpow.pop %v2562
    %v2564 = vadd.f32 %v2563, 1.0
    %v2565 = vrcp.pop %v2564
    %v2566 = vmul.f32 %v2564, %v2565
    %v2567 = vsub.f32 1.0, %v2566
    %v2568 = vmul.f32 %v2565, %v2567
    %v2569 = vadd.f32 %v2565, %v2568
    %vm2570 = vweird.f32 %v2564
    %vm2571 = vweird.f32 %v2565
    %vm2572 = vmor %vm2570, %vm2571
    %v2573 = vsel %vm2572, %v2565, %v2569
    %v2574 = vand.u32 2147483647, %v2564
    %vm2575 = vcmp.eq.f32.partialorder %v2574, 8.507059e+37
    %v2576 = vand.u32 %v2564, 2147483648
    %v2577 = vor.u32 1.1754944e-38, %v2576
    %v2578 = vsel %vm2575, %v2577, %v2573
    %v2579 = vmul.f32 1.0, %v2578
    %v2580 = vmul.f32 %v2559, 0.0
    %v2581 = vmul.f32 %v2540, %v2560
    %v2582 = vadd.f32 %v2580, %v2581
    %v2583 = vtanh.pop %v2582
    %v2584 = vmul.f32 %v2579, %v2583
    %v2585 = vld [vmem:[%s672] sm:$0xff]
    %v2586 = vld [vmem:[%s672 + $0x8] sm:$0xff]
    %v2587 = vld [vmem:[%s672 + $0x10] sm:$0xff]
    %v2588 = vld [vmem:[%s672 + $0x18] sm:$0xff]
    %2589 = vmatpush.msra.mxu0 %v2182
    %2590 = vmatpush.msra.mxu0 %v2178
    %2591 = vmatpush.msra.mxu0 %v2174
    %2592 = vmatpush.msra.mxu0 %v2170
    %2593 = vmatpush.msra.mxu0 %v2166
    %2594 = vmatpush.msra.mxu0 %v2162
    %2595 = vmatpush.msra.mxu0 %v2158
    %2596 = vmatpush.msra.mxu0 %v2154
    %2597 = vmatpush.msra.mxu0 %v2150
    %2598 = vmatpush.msra.mxu0 %v2146
    %2599 = vmatpush.msra.mxu0 %v2142
    %2600 = vmatpush.msra.mxu0 %v2138
    %2601 = vmatpush.msra.mxu0 %v2134
    %2602 = vmatpush.msra.mxu0 %v2130
    %2603 = vmatpush.msra.mxu0 %v2126
    %2604 = vmatpush.msra.mxu0 %v2122
    %2605 = vmatmul.f32.gmra.mxu0 %v2584
    %v2606 = vpop.f32.mrf.mxu0
    %v2607 = vadd.f32 0.0, %v2606
    %2608 = vdwg.mxu0
    %2609 = vmatpush.msra.mxu0 %v2183
    %2610 = vmatpush.msra.mxu0 %v2179
    %2611 = vmatpush.msra.mxu0 %v2175
    %2612 = vmatpush.msra.mxu0 %v2171
    %2613 = vmatpush.msra.mxu0 %v2167
    %2614 = vmatpush.msra.mxu0 %v2163
    %2615 = vmatpush.msra.mxu0 %v2159
    %2616 = vmatpush.msra.mxu0 %v2155
    %2617 = vmatpush.msra.mxu0 %v2151
    %2618 = vmatpush.msra.mxu0 %v2147
    %2619 = vmatpush.msra.mxu0 %v2143
    %2620 = vmatpush.msra.mxu0 %v2139
    %2621 = vmatpush.msra.mxu0 %v2135
    %2622 = vmatpush.msra.mxu0 %v2131
    %2623 = vmatpush.msra.mxu0 %v2127
    %2624 = vmatpush.msra.mxu0 %v2123
    %2625 = vmatmul.f32.gmra.mxu0 %v2584
    %v2626 = vpop.f32.mrf.mxu0
    %v2627 = vadd.f32 0.0, %v2626
    %2628 = vdwg.mxu0
    %2629 = vmatpush.msra.mxu0 %v2184
    %2630 = vmatpush.msra.mxu0 %v2180
    %2631 = vmatpush.msra.mxu0 %v2176
    %2632 = vmatpush.msra.mxu0 %v2172
    %2633 = vmatpush.msra.mxu0 %v2168
    %2634 = vmatpush.msra.mxu0 %v2164
    %2635 = vmatpush.msra.mxu0 %v2160
    %2636 = vmatpush.msra.mxu0 %v2156
    %2637 = vmatpush.msra.mxu0 %v2152
    %2638 = vmatpush.msra.mxu0 %v2148
    %2639 = vmatpush.msra.mxu0 %v2144
    %2640 = vmatpush.msra.mxu0 %v2140
    %2641 = vmatpush.msra.mxu0 %v2136
    %2642 = vmatpush.msra.mxu0 %v2132
    %2643 = vmatpush.msra.mxu0 %v2128
    %2644 = vmatpush.msra.mxu0 %v2124
    %2645 = vmatmul.f32.gmra.mxu0 %v2584
    %v2646 = vpop.f32.mrf.mxu0
    %v2647 = vadd.f32 0.0, %v2646
    %2648 = vdwg.mxu0
    %2649 = vmatpush.msra.mxu0 %v2185
    %2650 = vmatpush.msra.mxu0 %v2181
    %2651 = vmatpush.msra.mxu0 %v2177
    %2652 = vmatpush.msra.mxu0 %v2173
    %2653 = vmatpush.msra.mxu0 %v2169
    %2654 = vmatpush.msra.mxu0 %v2165
    %2655 = vmatpush.msra.mxu0 %v2161
    %2656 = vmatpush.msra.mxu0 %v2157
    %2657 = vmatpush.msra.mxu0 %v2153
    %2658 = vmatpush.msra.mxu0 %v2149
    %2659 = vmatpush.msra.mxu0 %v2145
    %2660 = vmatpush.msra.mxu0 %v2141
    %2661 = vmatpush.msra.mxu0 %v2137
    %2662 = vmatpush.msra.mxu0 %v2133
    %2663 = vmatpush.msra.mxu0 %v2129
    %2664 = vmatpush.msra.mxu0 %v2125
    %2665 = vmatmul.f32.gmra.mxu0 %v2584
    %v2666 = vpop.f32.mrf.mxu0
    %v2667 = vadd.f32 0.0, %v2666
    %2668 = vdwg.mxu0
    %v2669 = vadd.f32 %v2585, %v2607
    %v2670 = vadd.f32 %v2586, %v2627
    %v2671 = vadd.f32 %v2587, %v2647
    %v2672 = vadd.f32 %v2588, %v2667
    %v2673 = vxor.u32 %v2669, 2147483648
    %v2674 = vmul.f32 %v2673, 1.442695
    %v2675 = vpow.pop %v2674
    %v2676 = vadd.f32 %v2675, 1.0
    %v2677 = vrcp.pop %v2676
    %v2678 = vmul.f32 %v2676, %v2677
    %v2679 = vsub.f32 1.0, %v2678
    %v2680 = vmul.f32 %v2677, %v2679
    %v2681 = vadd.f32 %v2677, %v2680
    %vm2682 = vweird.f32 %v2676
    %vm2683 = vweird.f32 %v2677
    %vm2684 = vmor %vm2682, %vm2683
    %v2685 = vsel %vm2684, %v2677, %v2681
    %v2686 = vand.u32 2147483647, %v2676
    %vm2687 = vcmp.eq.f32.partialorder %v2686, 8.507059e+37
    %v2688 = vand.u32 %v2676, 2147483648
    %v2689 = vor.u32 1.1754944e-38, %v2688
    %v2690 = vsel %vm2687, %v2689, %v2685
    %v2691 = vmul.f32 1.0, %v2690
    %v2692 = vxor.u32 %v2670, 2147483648
    %v2693 = vmul.f32 %v2692, 1.442695
    %v2694 = vpow.pop %v2693
    %v2695 = vadd.f32 %v2694, 1.0
    %v2696 = vrcp.pop %v2695
    %v2697 = vmul.f32 %v2695, %v2696
    %v2698 = vsub.f32 1.0, %v2697
    %v2699 = vmul.f32 %v2696, %v2698
    %v2700 = vadd.f32 %v2696, %v2699
    %vm2701 = vweird.f32 %v2695
    %vm2702 = vweird.f32 %v2696
    %vm2703 = vmor %vm2701, %vm2702
    %v2704 = vsel %vm2703, %v2696, %v2700
    %v2705 = vand.u32 2147483647, %v2695
    %vm2706 = vcmp.eq.f32.partialorder %v2705, 8.507059e+37
    %v2707 = vand.u32 %v2695, 2147483648
    %v2708 = vor.u32 1.1754944e-38, %v2707
    %v2709 = vsel %vm2706, %v2708, %v2704
    %v2710 = vmul.f32 1.0, %v2709
    %v2711 = vtanh.pop %v2671
    %v2712 = vxor.u32 %v2672, 2147483648
    %v2713 = vmul.f32 %v2712, 1.442695
    %v2714 = vpow.pop %v2713
    %v2715 = vadd.f32 %v2714, 1.0
    %v2716 = vrcp.pop %v2715
    %v2717 = vmul.f32 %v2715, %v2716
    %v2718 = vsub.f32 1.0, %v2717
    %v2719 = vmul.f32 %v2716, %v2718
    %v2720 = vadd.f32 %v2716, %v2719
    %vm2721 = vweird.f32 %v2715
    %vm2722 = vweird.f32 %v2716
    %vm2723 = vmor %vm2721, %vm2722
    %v2724 = vsel %vm2723, %v2716, %v2720
    %v2725 = vand.u32 2147483647, %v2715
    %vm2726 = vcmp.eq.f32.partialorder %v2725, 8.507059e+37
    %v2727 = vand.u32 %v2715, 2147483648
    %v2728 = vor.u32 1.1754944e-38, %v2727
    %v2729 = vsel %vm2726, %v2728, %v2724
    %v2730 = vmul.f32 1.0, %v2729
    %v2731 = vmul.f32 %v2710, %v2582
    %v2732 = vmul.f32 %v2691, %v2711
    %v2733 = vadd.f32 %v2731, %v2732
    %v2734 = vtanh.pop %v2733
    %v2735 = vmul.f32 %v2730, %v2734
    %v2736 = vld [vmem:[%s826] sm:$0xff]
    %v2737 = vld [vmem:[%s826 + $0x8] sm:$0xff]
    %v2738 = vld [vmem:[%s826 + $0x10] sm:$0xff]
    %v2739 = vld [vmem:[%s826 + $0x18] sm:$0xff]
    %2740 = vmatpush.msra.mxu0 %v2182
    %2741 = vmatpush.msra.mxu0 %v2178
    %2742 = vmatpush.msra.mxu0 %v2174
    %2743 = vmatpush.msra.mxu0 %v2170
    %2744 = vmatpush.msra.mxu0 %v2166
    %2745 = vmatpush.msra.mxu0 %v2162
    %2746 = vmatpush.msra.mxu0 %v2158
    %2747 = vmatpush.msra.mxu0 %v2154
    %2748 = vmatpush.msra.mxu0 %v2150
    %2749 = vmatpush.msra.mxu0 %v2146
    %2750 = vmatpush.msra.mxu0 %v2142
    %2751 = vmatpush.msra.mxu0 %v2138
    %2752 = vmatpush.msra.mxu0 %v2134
    %2753 = vmatpush.msra.mxu0 %v2130
    %2754 = vmatpush.msra.mxu0 %v2126
    %2755 = vmatpush.msra.mxu0 %v2122
    %2756 = vmatmul.f32.gmra.mxu0 %v2735
    %v2757 = vpop.f32.mrf.mxu0
    %v2758 = vadd.f32 0.0, %v2757
    %2759 = vdwg.mxu0
    %2760 = vmatpush.msra.mxu0 %v2183
    %2761 = vmatpush.msra.mxu0 %v2179
    %2762 = vmatpush.msra.mxu0 %v2175
    %2763 = vmatpush.msra.mxu0 %v2171
    %2764 = vmatpush.msra.mxu0 %v2167
    %2765 = vmatpush.msra.mxu0 %v2163
    %2766 = vmatpush.msra.mxu0 %v2159
    %2767 = vmatpush.msra.mxu0 %v2155
    %2768 = vmatpush.msra.mxu0 %v2151
    %2769 = vmatpush.msra.mxu0 %v2147
    %2770 = vmatpush.msra.mxu0 %v2143
    %2771 = vmatpush.msra.mxu0 %v2139
    %2772 = vmatpush.msra.mxu0 %v2135
    %2773 = vmatpush.msra.mxu0 %v2131
    %2774 = vmatpush.msra.mxu0 %v2127
    %2775 = vmatpush.msra.mxu0 %v2123
    %2776 = vmatmul.f32.gmra.mxu0 %v2735
    %v2777 = vpop.f32.mrf.mxu0
    %v2778 = vadd.f32 0.0, %v2777
    %2779 = vdwg.mxu0
    %2780 = vmatpush.msra.mxu0 %v2184
    %2781 = vmatpush.msra.mxu0 %v2180
    %2782 = vmatpush.msra.mxu0 %v2176
    %2783 = vmatpush.msra.mxu0 %v2172
    %2784 = vmatpush.msra.mxu0 %v2168
    %2785 = vmatpush.msra.mxu0 %v2164
    %2786 = vmatpush.msra.mxu0 %v2160
    %2787 = vmatpush.msra.mxu0 %v2156
    %2788 = vmatpush.msra.mxu0 %v2152
    %2789 = vmatpush.msra.mxu0 %v2148
    %2790 = vmatpush.msra.mxu0 %v2144
    %2791 = vmatpush.msra.mxu0 %v2140
    %2792 = vmatpush.msra.mxu0 %v2136
    %2793 = vmatpush.msra.mxu0 %v2132
    %2794 = vmatpush.msra.mxu0 %v2128
    %2795 = vmatpush.msra.mxu0 %v2124
    %2796 = vmatmul.f32.gmra.mxu0 %v2735
    %v2797 = vpop.f32.mrf.mxu0
    %v2798 = vadd.f32 0.0, %v2797
    %2799 = vdwg.mxu0
    %2800 = vmatpush.msra.mxu0 %v2185
    %2801 = vmatpush.msra.mxu0 %v2181
    %2802 = vmatpush.msra.mxu0 %v2177
    %2803 = vmatpush.msra.mxu0 %v2173
    %2804 = vmatpush.msra.mxu0 %v2169
    %2805 = vmatpush.msra.mxu0 %v2165
    %2806 = vmatpush.msra.mxu0 %v2161
    %2807 = vmatpush.msra.mxu0 %v2157
    %2808 = vmatpush.msra.mxu0 %v2153
    %2809 = vmatpush.msra.mxu0 %v2149
    %2810 = vmatpush.msra.mxu0 %v2145
    %2811 = vmatpush.msra.mxu0 %v2141
    %2812 = vmatpush.msra.mxu0 %v2137
    %2813 = vmatpush.msra.mxu0 %v2133
    %2814 = vmatpush.msra.mxu0 %v2129
    %2815 = vmatpush.msra.mxu0 %v2125
    %2816 = vmatmul.f32.gmra.mxu0 %v2735
    %v2817 = vpop.f32.mrf.mxu0
    %v2818 = vadd.f32 0.0, %v2817
    %2819 = vdwg.mxu0
    %v2820 = vadd.f32 %v2736, %v2758
    %v2821 = vadd.f32 %v2737, %v2778
    %v2822 = vadd.f32 %v2738, %v2798
    %v2823 = vadd.f32 %v2739, %v2818
    %v2824 = vxor.u32 %v2820, 2147483648
    %v2825 = vmul.f32 %v2824, 1.442695
    %v2826 = vpow.pop %v2825
    %v2827 = vadd.f32 %v2826, 1.0
    %v2828 = vrcp.pop %v2827
    %v2829 = vmul.f32 %v2827, %v2828
    %v2830 = vsub.f32 1.0, %v2829
    %v2831 = vmul.f32 %v2828, %v2830
    %v2832 = vadd.f32 %v2828, %v2831
    %vm2833 = vweird.f32 %v2827
    %vm2834 = vweird.f32 %v2828
    %vm2835 = vmor %vm2833, %vm2834
    %v2836 = vsel %vm2835, %v2828, %v2832
    %v2837 = vand.u32 2147483647, %v2827
    %vm2838 = vcmp.eq.f32.partialorder %v2837, 8.507059e+37
    %v2839 = vand.u32 %v2827, 2147483648
    %v2840 = vor.u32 1.1754944e-38, %v2839
    %v2841 = vsel %vm2838, %v2840, %v2836
    %v2842 = vmul.f32 1.0, %v2841
    %v2843 = vxor.u32 %v2821, 2147483648
    %v2844 = vmul.f32 %v2843, 1.442695
    %v2845 = vpow.pop %v2844
    %v2846 = vadd.f32 %v2845, 1.0
    %v2847 = vrcp.pop %v2846
    %v2848 = vmul.f32 %v2846, %v2847
    %v2849 = vsub.f32 1.0, %v2848
    %v2850 = vmul.f32 %v2847, %v2849
    %v2851 = vadd.f32 %v2847, %v2850
    %vm2852 = vweird.f32 %v2846
    %vm2853 = vweird.f32 %v2847
    %vm2854 = vmor %vm2852, %vm2853
    %v2855 = vsel %vm2854, %v2847, %v2851
    %v2856 = vand.u32 2147483647, %v2846
    %vm2857 = vcmp.eq.f32.partialorder %v2856, 8.507059e+37
    %v2858 = vand.u32 %v2846, 2147483648
    %v2859 = vor.u32 1.1754944e-38, %v2858
    %v2860 = vsel %vm2857, %v2859, %v2855
    %v2861 = vmul.f32 1.0, %v2860
    %v2862 = vtanh.pop %v2822
    %v2863 = vxor.u32 %v2823, 2147483648
    %v2864 = vmul.f32 %v2863, 1.442695
    %v2865 = vpow.pop %v2864
    %v2866 = vadd.f32 %v2865, 1.0
    %v2867 = vrcp.pop %v2866
    %v2868 = vmul.f32 %v2866, %v2867
    %v2869 = vsub.f32 1.0, %v2868
    %v2870 = vmul.f32 %v2867, %v2869
    %v2871 = vadd.f32 %v2867, %v2870
    %vm2872 = vweird.f32 %v2866
    %vm2873 = vweird.f32 %v2867
    %vm2874 = vmor %vm2872, %vm2873
    %v2875 = vsel %vm2874, %v2867, %v2871
    %v2876 = vand.u32 2147483647, %v2866
    %vm2877 = vcmp.eq.f32.partialorder %v2876, 8.507059e+37
    %v2878 = vand.u32 %v2866, 2147483648
    %v2879 = vor.u32 1.1754944e-38, %v2878
    %v2880 = vsel %vm2877, %v2879, %v2875
    %v2881 = vmul.f32 1.0, %v2880
    %v2882 = vmul.f32 %v2861, %v2733
    %v2883 = vmul.f32 %v2842, %v2862
    %v2884 = vadd.f32 %v2882, %v2883
    %v2885 = vtanh.pop %v2884
    %v2886 = vmul.f32 %v2881, %v2885
    %v2887 = vld [vmem:[%s980] sm:$0xff]
    %v2888 = vld [vmem:[%s980 + $0x8] sm:$0xff]
    %v2889 = vld [vmem:[%s980 + $0x10] sm:$0xff]
    %v2890 = vld [vmem:[%s980 + $0x18] sm:$0xff]
    %2891 = vmatpush.msra.mxu0 %v2182
    %2892 = vmatpush.msra.mxu0 %v2178
    %2893 = vmatpush.msra.mxu0 %v2174
    %2894 = vmatpush.msra.mxu0 %v2170
    %2895 = vmatpush.msra.mxu0 %v2166
    %2896 = vmatpush.msra.mxu0 %v2162
    %2897 = vmatpush.msra.mxu0 %v2158
    %2898 = vmatpush.msra.mxu0 %v2154
    %2899 = vmatpush.msra.mxu0 %v2150
    %2900 = vmatpush.msra.mxu0 %v2146
    %2901 = vmatpush.msra.mxu0 %v2142
    %2902 = vmatpush.msra.mxu0 %v2138
    %2903 = vmatpush.msra.mxu0 %v2134
    %2904 = vmatpush.msra.mxu0 %v2130
    %2905 = vmatpush.msra.mxu0 %v2126
    %2906 = vmatpush.msra.mxu0 %v2122
    %2907 = vmatmul.f32.gmra.mxu0 %v2886
    %v2908 = vpop.f32.mrf.mxu0
    %v2909 = vadd.f32 0.0, %v2908
    %2910 = vdwg.mxu0
    %2911 = vmatpush.msra.mxu0 %v2183
    %2912 = vmatpush.msra.mxu0 %v2179
    %2913 = vmatpush.msra.mxu0 %v2175
    %2914 = vmatpush.msra.mxu0 %v2171
    %2915 = vmatpush.msra.mxu0 %v2167
    %2916 = vmatpush.msra.mxu0 %v2163
    %2917 = vmatpush.msra.mxu0 %v2159
    %2918 = vmatpush.msra.mxu0 %v2155
    %2919 = vmatpush.msra.mxu0 %v2151
    %2920 = vmatpush.msra.mxu0 %v2147
    %2921 = vmatpush.msra.mxu0 %v2143
    %2922 = vmatpush.msra.mxu0 %v2139
    %2923 = vmatpush.msra.mxu0 %v2135
    %2924 = vmatpush.msra.mxu0 %v2131
    %2925 = vmatpush.msra.mxu0 %v2127
    %2926 = vmatpush.msra.mxu0 %v2123
    %2927 = vmatmul.f32.gmra.mxu0 %v2886
    %v2928 = vpop.f32.mrf.mxu0
    %v2929 = vadd.f32 0.0, %v2928
    %2930 = vdwg.mxu0
    %2931 = vmatpush.msra.mxu0 %v2184
    %2932 = vmatpush.msra.mxu0 %v2180
    %2933 = vmatpush.msra.mxu0 %v2176
    %2934 = vmatpush.msra.mxu0 %v2172
    %2935 = vmatpush.msra.mxu0 %v2168
    %2936 = vmatpush.msra.mxu0 %v2164
    %2937 = vmatpush.msra.mxu0 %v2160
    %2938 = vmatpush.msra.mxu0 %v2156
    %2939 = vmatpush.msra.mxu0 %v2152
    %2940 = vmatpush.msra.mxu0 %v2148
    %2941 = vmatpush.msra.mxu0 %v2144
    %2942 = vmatpush.msra.mxu0 %v2140
    %2943 = vmatpush.msra.mxu0 %v2136
    %2944 = vmatpush.msra.mxu0 %v2132
    %2945 = vmatpush.msra.mxu0 %v2128
    %2946 = vmatpush.msra.mxu0 %v2124
    %2947 = vmatmul.f32.gmra.mxu0 %v2886
    %v2948 = vpop.f32.mrf.mxu0
    %v2949 = vadd.f32 0.0, %v2948
    %2950 = vdwg.mxu0
    %2951 = vmatpush.msra.mxu0 %v2185
    %2952 = vmatpush.msra.mxu0 %v2181
    %2953 = vmatpush.msra.mxu0 %v2177
    %2954 = vmatpush.msra.mxu0 %v2173
    %2955 = vmatpush.msra.mxu0 %v2169
    %2956 = vmatpush.msra.mxu0 %v2165
    %2957 = vmatpush.msra.mxu0 %v2161
    %2958 = vmatpush.msra.mxu0 %v2157
    %2959 = vmatpush.msra.mxu0 %v2153
    %2960 = vmatpush.msra.mxu0 %v2149
    %2961 = vmatpush.msra.mxu0 %v2145
    %2962 = vmatpush.msra.mxu0 %v2141
    %2963 = vmatpush.msra.mxu0 %v2137
    %2964 = vmatpush.msra.mxu0 %v2133
    %2965 = vmatpush.msra.mxu0 %v2129
    %2966 = vmatpush.msra.mxu0 %v2125
    %2967 = vmatmul.f32.gmra.mxu0 %v2886
    %v2968 = vpop.f32.mrf.mxu0
    %v2969 = vadd.f32 0.0, %v2968
    %2970 = vdwg.mxu0
    %v2971 = vadd.f32 %v2887, %v2909
    %v2972 = vadd.f32 %v2888, %v2929
    %v2973 = vadd.f32 %v2889, %v2949
    %v2974 = vadd.f32 %v2890, %v2969
    %v2975 = vxor.u32 %v2971, 2147483648
    %v2976 = vmul.f32 %v2975, 1.442695
    %v2977 = vpow.pop %v2976
    %v2978 = vadd.f32 %v2977, 1.0
    %v2979 = vrcp.pop %v2978
    %v2980 = vmul.f32 %v2978, %v2979
    %v2981 = vsub.f32 1.0, %v2980
    %v2982 = vmul.f32 %v2979, %v2981
    %v2983 = vadd.f32 %v2979, %v2982
    %vm2984 = vweird.f32 %v2978
    %vm2985 = vweird.f32 %v2979
    %vm2986 = vmor %vm2984, %vm2985
    %v2987 = vsel %vm2986, %v2979, %v2983
    %v2988 = vand.u32 2147483647, %v2978
    %vm2989 = vcmp.eq.f32.partialorder %v2988, 8.507059e+37
    %v2990 = vand.u32 %v2978, 2147483648
    %v2991 = vor.u32 1.1754944e-38, %v2990
    %v2992 = vsel %vm2989, %v2991, %v2987
    %v2993 = vmul.f32 1.0, %v2992
    %v2994 = vxor.u32 %v2972, 2147483648
    %v2995 = vmul.f32 %v2994, 1.442695
    %v2996 = vpow.pop %v2995
    %v2997 = vadd.f32 %v2996, 1.0
    %v2998 = vrcp.pop %v2997
    %v2999 = vmul.f32 %v2997, %v2998
    %v3000 = vsub.f32 1.0, %v2999
    %v3001 = vmul.f32 %v2998, %v3000
    %v3002 = vadd.f32 %v2998, %v3001
    %vm3003 = vweird.f32 %v2997
    %vm3004 = vweird.f32 %v2998
    %vm3005 = vmor %vm3003, %vm3004
    %v3006 = vsel %vm3005, %v2998, %v3002
    %v3007 = vand.u32 2147483647, %v2997
    %vm3008 = vcmp.eq.f32.partialorder %v3007, 8.507059e+37
    %v3009 = vand.u32 %v2997, 2147483648
    %v3010 = vor.u32 1.1754944e-38, %v3009
    %v3011 = vsel %vm3008, %v3010, %v3006
    %v3012 = vmul.f32 1.0, %v3011
    %v3013 = vtanh.pop %v2973
    %v3014 = vxor.u32 %v2974, 2147483648
    %v3015 = vmul.f32 %v3014, 1.442695
    %v3016 = vpow.pop %v3015
    %v3017 = vadd.f32 %v3016, 1.0
    %v3018 = vrcp.pop %v3017
    %v3019 = vmul.f32 %v3017, %v3018
    %v3020 = vsub.f32 1.0, %v3019
    %v3021 = vmul.f32 %v3018, %v3020
    %v3022 = vadd.f32 %v3018, %v3021
    %vm3023 = vweird.f32 %v3017
    %vm3024 = vweird.f32 %v3018
    %vm3025 = vmor %vm3023, %vm3024
    %v3026 = vsel %vm3025, %v3018, %v3022
    %v3027 = vand.u32 2147483647, %v3017
    %vm3028 = vcmp.eq.f32.partialorder %v3027, 8.507059e+37
    %v3029 = vand.u32 %v3017, 2147483648
    %v3030 = vor.u32 1.1754944e-38, %v3029
    %v3031 = vsel %vm3028, %v3030, %v3026
    %v3032 = vmul.f32 1.0, %v3031
    %v3033 = vmul.f32 %v3012, %v2884
    %v3034 = vmul.f32 %v2993, %v3013
    %v3035 = vadd.f32 %v3033, %v3034
    %v3036 = vtanh.pop %v3035
    %v3037 = vmul.f32 %v3032, %v3036
    %v3038 = vld [vmem:[%s1134] sm:$0xff]
    %v3039 = vld [vmem:[%s1134 + $0x8] sm:$0xff]
    %v3040 = vld [vmem:[%s1134 + $0x10] sm:$0xff]
    %v3041 = vld [vmem:[%s1134 + $0x18] sm:$0xff]
    %3042 = vmatpush.msra.mxu0 %v2182
    %3043 = vmatpush.msra.mxu0 %v2178
    %3044 = vmatpush.msra.mxu0 %v2174
    %3045 = vmatpush.msra.mxu0 %v2170
    %3046 = vmatpush.msra.mxu0 %v2166
    %3047 = vmatpush.msra.mxu0 %v2162
    %3048 = vmatpush.msra.mxu0 %v2158
    %3049 = vmatpush.msra.mxu0 %v2154
    %3050 = vmatpush.msra.mxu0 %v2150
    %3051 = vmatpush.msra.mxu0 %v2146
    %3052 = vmatpush.msra.mxu0 %v2142
    %3053 = vmatpush.msra.mxu0 %v2138
    %3054 = vmatpush.msra.mxu0 %v2134
    %3055 = vmatpush.msra.mxu0 %v2130
    %3056 = vmatpush.msra.mxu0 %v2126
    %3057 = vmatpush.msra.mxu0 %v2122
    %3058 = vmatmul.f32.gmra.mxu0 %v3037
    %v3059 = vpop.f32.mrf.mxu0
    %v3060 = vadd.f32 0.0, %v3059
    %3061 = vdwg.mxu0
    %3062 = vmatpush.msra.mxu0 %v2183
    %3063 = vmatpush.msra.mxu0 %v2179
    %3064 = vmatpush.msra.mxu0 %v2175
    %3065 = vmatpush.msra.mxu0 %v2171
    %3066 = vmatpush.msra.mxu0 %v2167
    %3067 = vmatpush.msra.mxu0 %v2163
    %3068 = vmatpush.msra.mxu0 %v2159
    %3069 = vmatpush.msra.mxu0 %v2155
    %3070 = vmatpush.msra.mxu0 %v2151
    %3071 = vmatpush.msra.mxu0 %v2147
    %3072 = vmatpush.msra.mxu0 %v2143
    %3073 = vmatpush.msra.mxu0 %v2139
    %3074 = vmatpush.msra.mxu0 %v2135
    %3075 = vmatpush.msra.mxu0 %v2131
    %3076 = vmatpush.msra.mxu0 %v2127
    %3077 = vmatpush.msra.mxu0 %v2123
    %3078 = vmatmul.f32.gmra.mxu0 %v3037
    %v3079 = vpop.f32.mrf.mxu0
    %v3080 = vadd.f32 0.0, %v3079
    %3081 = vdwg.mxu0
    %3082 = vmatpush.msra.mxu0 %v2184
    %3083 = vmatpush.msra.mxu0 %v2180
    %3084 = vmatpush.msra.mxu0 %v2176
    %3085 = vmatpush.msra.mxu0 %v2172
    %3086 = vmatpush.msra.mxu0 %v2168
    %3087 = vmatpush.msra.mxu0 %v2164
    %3088 = vmatpush.msra.mxu0 %v2160
    %3089 = vmatpush.msra.mxu0 %v2156
    %3090 = vmatpush.msra.mxu0 %v2152
    %3091 = vmatpush.msra.mxu0 %v2148
    %3092 = vmatpush.msra.mxu0 %v2144
    %3093 = vmatpush.msra.mxu0 %v2140
    %3094 = vmatpush.msra.mxu0 %v2136
    %3095 = vmatpush.msra.mxu0 %v2132
    %3096 = vmatpush.msra.mxu0 %v2128
    %3097 = vmatpush.msra.mxu0 %v2124
    %3098 = vmatmul.f32.gmra.mxu0 %v3037
    %v3099 = vpop.f32.mrf.mxu0
    %v3100 = vadd.f32 0.0, %v3099
    %3101 = vdwg.mxu0
    %3102 = vmatpush.msra.mxu0 %v2185
    %3103 = vmatpush.msra.mxu0 %v2181
    %3104 = vmatpush.msra.mxu0 %v2177
    %3105 = vmatpush.msra.mxu0 %v2173
    %3106 = vmatpush.msra.mxu0 %v2169
    %3107 = vmatpush.msra.mxu0 %v2165
    %3108 = vmatpush.msra.mxu0 %v2161
    %3109 = vmatpush.msra.mxu0 %v2157
    %3110 = vmatpush.msra.mxu0 %v2153
    %3111 = vmatpush.msra.mxu0 %v2149
    %3112 = vmatpush.msra.mxu0 %v2145
    %3113 = vmatpush.msra.mxu0 %v2141
    %3114 = vmatpush.msra.mxu0 %v2137
    %3115 = vmatpush.msra.mxu0 %v2133
    %3116 = vmatpush.msra.mxu0 %v2129
    %3117 = vmatpush.msra.mxu0 %v2125
    %3118 = vmatmul.f32.gmra.mxu0 %v3037
    %v3119 = vpop.f32.mrf.mxu0
    %v3120 = vadd.f32 0.0, %v3119
    %3121 = vdwg.mxu0
    %v3122 = vadd.f32 %v3038, %v3060
    %v3123 = vadd.f32 %v3039, %v3080
    %v3124 = vadd.f32 %v3040, %v3100
    %v3125 = vadd.f32 %v3041, %v3120
    %v3126 = vxor.u32 %v3122, 2147483648
    %v3127 = vmul.f32 %v3126, 1.442695
    %v3128 = vpow.pop %v3127
    %v3129 = vadd.f32 %v3128, 1.0
    %v3130 = vrcp.pop %v3129
    %v3131 = vmul.f32 %v3129, %v3130
    %v3132 = vsub.f32 1.0, %v3131
    %v3133 = vmul.f32 %v3130, %v3132
    %v3134 = vadd.f32 %v3130, %v3133
    %vm3135 = vweird.f32 %v3129
    %vm3136 = vweird.f32 %v3130
    %vm3137 = vmor %vm3135, %vm3136
    %v3138 = vsel %vm3137, %v3130, %v3134
    %v3139 = vand.u32 2147483647, %v3129
    %vm3140 = vcmp.eq.f32.partialorder %v3139, 8.507059e+37
    %v3141 = vand.u32 %v3129, 2147483648
    %v3142 = vor.u32 1.1754944e-38, %v3141
    %v3143 = vsel %vm3140, %v3142, %v3138
    %v3144 = vmul.f32 1.0, %v3143
    %v3145 = vxor.u32 %v3123, 2147483648
    %v3146 = vmul.f32 %v3145, 1.442695
    %v3147 = vpow.pop %v3146
    %v3148 = vadd.f32 %v3147, 1.0
    %v3149 = vrcp.pop %v3148
    %v3150 = vmul.f32 %v3148, %v3149
    %v3151 = vsub.f32 1.0, %v3150
    %v3152 = vmul.f32 %v3149, %v3151
    %v3153 = vadd.f32 %v3149, %v3152
    %vm3154 = vweird.f32 %v3148
    %vm3155 = vweird.f32 %v3149
    %vm3156 = vmor %vm3154, %vm3155
    %v3157 = vsel %vm3156, %v3149, %v3153
    %v3158 = vand.u32 2147483647, %v3148
    %vm3159 = vcmp.eq.f32.partialorder %v3158, 8.507059e+37
    %v3160 = vand.u32 %v3148, 2147483648
    %v3161 = vor.u32 1.1754944e-38, %v3160
    %v3162 = vsel %vm3159, %v3161, %v3157
    %v3163 = vmul.f32 1.0, %v3162
    %v3164 = vtanh.pop %v3124
    %v3165 = vxor.u32 %v3125, 2147483648
    %v3166 = vmul.f32 %v3165, 1.442695
    %v3167 = vpow.pop %v3166
    %v3168 = vadd.f32 %v3167, 1.0
    %v3169 = vrcp.pop %v3168
    %v3170 = vmul.f32 %v3168, %v3169
    %v3171 = vsub.f32 1.0, %v3170
    %v3172 = vmul.f32 %v3169, %v3171
    %v3173 = vadd.f32 %v3169, %v3172
    %vm3174 = vweird.f32 %v3168
    %vm3175 = vweird.f32 %v3169
    %vm3176 = vmor %vm3174, %vm3175
    %v3177 = vsel %vm3176, %v3169, %v3173
    %v3178 = vand.u32 2147483647, %v3168
    %vm3179 = vcmp.eq.f32.partialorder %v3178, 8.507059e+37
    %v3180 = vand.u32 %v3168, 2147483648
    %v3181 = vor.u32 1.1754944e-38, %v3180
    %v3182 = vsel %vm3179, %v3181, %v3177
    %v3183 = vmul.f32 1.0, %v3182
    %v3184 = vmul.f32 %v3163, %v3035
    %v3185 = vmul.f32 %v3144, %v3164
    %v3186 = vadd.f32 %v3184, %v3185
    %v3187 = vtanh.pop %v3186
    %v3188 = vmul.f32 %v3183, %v3187
    %v3189 = vld [vmem:[%s1288] sm:$0xff]
    %v3190 = vld [vmem:[%s1288 + $0x8] sm:$0xff]
    %v3191 = vld [vmem:[%s1288 + $0x10] sm:$0xff]
    %v3192 = vld [vmem:[%s1288 + $0x18] sm:$0xff]
    %3193 = vmatpush.msra.mxu0 %v2182
    %3194 = vmatpush.msra.mxu0 %v2178
    %3195 = vmatpush.msra.mxu0 %v2174
    %3196 = vmatpush.msra.mxu0 %v2170
    %3197 = vmatpush.msra.mxu0 %v2166
    %3198 = vmatpush.msra.mxu0 %v2162
    %3199 = vmatpush.msra.mxu0 %v2158
    %3200 = vmatpush.msra.mxu0 %v2154
    %3201 = vmatpush.msra.mxu0 %v2150
    %3202 = vmatpush.msra.mxu0 %v2146
    %3203 = vmatpush.msra.mxu0 %v2142
    %3204 = vmatpush.msra.mxu0 %v2138
    %3205 = vmatpush.msra.mxu0 %v2134
    %3206 = vmatpush.msra.mxu0 %v2130
    %3207 = vmatpush.msra.mxu0 %v2126
    %3208 = vmatpush.msra.mxu0 %v2122
    %3209 = vmatmul.f32.gmra.mxu0 %v3188
    %v3210 = vpop.f32.mrf.mxu0
    %v3211 = vadd.f32 0.0, %v3210
    %3212 = vdwg.mxu0
    %3213 = vmatpush.msra.mxu0 %v2183
    %3214 = vmatpush.msra.mxu0 %v2179
    %3215 = vmatpush.msra.mxu0 %v2175
    %3216 = vmatpush.msra.mxu0 %v2171
    %3217 = vmatpush.msra.mxu0 %v2167
    %3218 = vmatpush.msra.mxu0 %v2163
    %3219 = vmatpush.msra.mxu0 %v2159
    %3220 = vmatpush.msra.mxu0 %v2155
    %3221 = vmatpush.msra.mxu0 %v2151
    %3222 = vmatpush.msra.mxu0 %v2147
    %3223 = vmatpush.msra.mxu0 %v2143
    %3224 = vmatpush.msra.mxu0 %v2139
    %3225 = vmatpush.msra.mxu0 %v2135
    %3226 = vmatpush.msra.mxu0 %v2131
    %3227 = vmatpush.msra.mxu0 %v2127
    %3228 = vmatpush.msra.mxu0 %v2123
    %3229 = vmatmul.f32.gmra.mxu0 %v3188
    %v3230 = vpop.f32.mrf.mxu0
    %v3231 = vadd.f32 0.0, %v3230
    %3232 = vdwg.mxu0
    %3233 = vmatpush.msra.mxu0 %v2184
    %3234 = vmatpush.msra.mxu0 %v2180
    %3235 = vmatpush.msra.mxu0 %v2176
    %3236 = vmatpush.msra.mxu0 %v2172
    %3237 = vmatpush.msra.mxu0 %v2168
    %3238 = vmatpush.msra.mxu0 %v2164
    %3239 = vmatpush.msra.mxu0 %v2160
    %3240 = vmatpush.msra.mxu0 %v2156
    %3241 = vmatpush.msra.mxu0 %v2152
    %3242 = vmatpush.msra.mxu0 %v2148
    %3243 = vmatpush.msra.mxu0 %v2144
    %3244 = vmatpush.msra.mxu0 %v2140
    %3245 = vmatpush.msra.mxu0 %v2136
    %3246 = vmatpush.msra.mxu0 %v2132
    %3247 = vmatpush.msra.mxu0 %v2128
    %3248 = vmatpush.msra.mxu0 %v2124
    %3249 = vmatmul.f32.gmra.mxu0 %v3188
    %v3250 = vpop.f32.mrf.mxu0
    %v3251 = vadd.f32 0.0, %v3250
    %3252 = vdwg.mxu0
    %3253 = vmatpush.msra.mxu0 %v2185
    %3254 = vmatpush.msra.mxu0 %v2181
    %3255 = vmatpush.msra.mxu0 %v2177
    %3256 = vmatpush.msra.mxu0 %v2173
    %3257 = vmatpush.msra.mxu0 %v2169
    %3258 = vmatpush.msra.mxu0 %v2165
    %3259 = vmatpush.msra.mxu0 %v2161
    %3260 = vmatpush.msra.mxu0 %v2157
    %3261 = vmatpush.msra.mxu0 %v2153
    %3262 = vmatpush.msra.mxu0 %v2149
    %3263 = vmatpush.msra.mxu0 %v2145
    %3264 = vmatpush.msra.mxu0 %v2141
    %3265 = vmatpush.msra.mxu0 %v2137
    %3266 = vmatpush.msra.mxu0 %v2133
    %3267 = vmatpush.msra.mxu0 %v2129
    %3268 = vmatpush.msra.mxu0 %v2125
    %3269 = vmatmul.f32.gmra.mxu0 %v3188
    %v3270 = vpop.f32.mrf.mxu0
    %v3271 = vadd.f32 0.0, %v3270
    %3272 = vdwg.mxu0
    %v3273 = vadd.f32 %v3189, %v3211
    %v3274 = vadd.f32 %v3190, %v3231
    %v3275 = vadd.f32 %v3191, %v3251
    %v3276 = vadd.f32 %v3192, %v3271
    %v3277 = vxor.u32 %v3273, 2147483648
    %v3278 = vmul.f32 %v3277, 1.442695
    %v3279 = vpow.pop %v3278
    %v3280 = vadd.f32 %v3279, 1.0
    %v3281 = vrcp.pop %v3280
    %v3282 = vmul.f32 %v3280, %v3281
    %v3283 = vsub.f32 1.0, %v3282
    %v3284 = vmul.f32 %v3281, %v3283
    %v3285 = vadd.f32 %v3281, %v3284
    %vm3286 = vweird.f32 %v3280
    %vm3287 = vweird.f32 %v3281
    %vm3288 = vmor %vm3286, %vm3287
    %v3289 = vsel %vm3288, %v3281, %v3285
    %v3290 = vand.u32 2147483647, %v3280
    %vm3291 = vcmp.eq.f32.partialorder %v3290, 8.507059e+37
    %v3292 = vand.u32 %v3280, 2147483648
    %v3293 = vor.u32 1.1754944e-38, %v3292
    %v3294 = vsel %vm3291, %v3293, %v3289
    %v3295 = vmul.f32 1.0, %v3294
    %v3296 = vxor.u32 %v3274, 2147483648
    %v3297 = vmul.f32 %v3296, 1.442695
    %v3298 = vpow.pop %v3297
    %v3299 = vadd.f32 %v3298, 1.0
    %v3300 = vrcp.pop %v3299
    %v3301 = vmul.f32 %v3299, %v3300
    %v3302 = vsub.f32 1.0, %v3301
    %v3303 = vmul.f32 %v3300, %v3302
    %v3304 = vadd.f32 %v3300, %v3303
    %vm3305 = vweird.f32 %v3299
    %vm3306 = vweird.f32 %v3300
    %vm3307 = vmor %vm3305, %vm3306
    %v3308 = vsel %vm3307, %v3300, %v3304
    %v3309 = vand.u32 2147483647, %v3299
    %vm3310 = vcmp.eq.f32.partialorder %v3309, 8.507059e+37
    %v3311 = vand.u32 %v3299, 2147483648
    %v3312 = vor.u32 1.1754944e-38, %v3311
    %v3313 = vsel %vm3310, %v3312, %v3308
    %v3314 = vmul.f32 1.0, %v3313
    %v3315 = vtanh.pop %v3275
    %v3316 = vxor.u32 %v3276, 2147483648
    %v3317 = vmul.f32 %v3316, 1.442695
    %v3318 = vpow.pop %v3317
    %v3319 = vadd.f32 %v3318, 1.0
    %v3320 = vrcp.pop %v3319
    %v3321 = vmul.f32 %v3319, %v3320
    %v3322 = vsub.f32 1.0, %v3321
    %v3323 = vmul.f32 %v3320, %v3322
    %v3324 = vadd.f32 %v3320, %v3323
    %vm3325 = vweird.f32 %v3319
    %vm3326 = vweird.f32 %v3320
    %vm3327 = vmor %vm3325, %vm3326
    %v3328 = vsel %vm3327, %v3320, %v3324
    %v3329 = vand.u32 2147483647, %v3319
    %vm3330 = vcmp.eq.f32.partialorder %v3329, 8.507059e+37
    %v3331 = vand.u32 %v3319, 2147483648
    %v3332 = vor.u32 1.1754944e-38, %v3331
    %v3333 = vsel %vm3330, %v3332, %v3328
    %v3334 = vmul.f32 1.0, %v3333
    %v3335 = vmul.f32 %v3314, %v3186
    %v3336 = vmul.f32 %v3295, %v3315
    %v3337 = vadd.f32 %v3335, %v3336
    %v3338 = vtanh.pop %v3337
    %v3339 = vmul.f32 %v3334, %v3338
    %v3340 = vld [vmem:[%s1442] sm:$0xff]
    %v3341 = vld [vmem:[%s1442 + $0x8] sm:$0xff]
    %v3342 = vld [vmem:[%s1442 + $0x10] sm:$0xff]
    %v3343 = vld [vmem:[%s1442 + $0x18] sm:$0xff]
    %3344 = vmatpush.msra.mxu0 %v2182
    %3345 = vmatpush.msra.mxu0 %v2178
    %3346 = vmatpush.msra.mxu0 %v2174
    %3347 = vmatpush.msra.mxu0 %v2170
    %3348 = vmatpush.msra.mxu0 %v2166
    %3349 = vmatpush.msra.mxu0 %v2162
    %3350 = vmatpush.msra.mxu0 %v2158
    %3351 = vmatpush.msra.mxu0 %v2154
    %3352 = vmatpush.msra.mxu0 %v2150
    %3353 = vmatpush.msra.mxu0 %v2146
    %3354 = vmatpush.msra.mxu0 %v2142
    %3355 = vmatpush.msra.mxu0 %v2138
    %3356 = vmatpush.msra.mxu0 %v2134
    %3357 = vmatpush.msra.mxu0 %v2130
    %3358 = vmatpush.msra.mxu0 %v2126
    %3359 = vmatpush.msra.mxu0 %v2122
    %3360 = vmatmul.f32.gmra.mxu0 %v3339
    %v3361 = vpop.f32.mrf.mxu0
    %v3362 = vadd.f32 0.0, %v3361
    %3363 = vdwg.mxu0
    %3364 = vmatpush.msra.mxu0 %v2183
    %3365 = vmatpush.msra.mxu0 %v2179
    %3366 = vmatpush.msra.mxu0 %v2175
    %3367 = vmatpush.msra.mxu0 %v2171
    %3368 = vmatpush.msra.mxu0 %v2167
    %3369 = vmatpush.msra.mxu0 %v2163
    %3370 = vmatpush.msra.mxu0 %v2159
    %3371 = vmatpush.msra.mxu0 %v2155
    %3372 = vmatpush.msra.mxu0 %v2151
    %3373 = vmatpush.msra.mxu0 %v2147
    %3374 = vmatpush.msra.mxu0 %v2143
    %3375 = vmatpush.msra.mxu0 %v2139
    %3376 = vmatpush.msra.mxu0 %v2135
    %3377 = vmatpush.msra.mxu0 %v2131
    %3378 = vmatpush.msra.mxu0 %v2127
    %3379 = vmatpush.msra.mxu0 %v2123
    %3380 = vmatmul.f32.gmra.mxu0 %v3339
    %v3381 = vpop.f32.mrf.mxu0
    %v3382 = vadd.f32 0.0, %v3381
    %3383 = vdwg.mxu0
    %3384 = vmatpush.msra.mxu0 %v2184
    %3385 = vmatpush.msra.mxu0 %v2180
    %3386 = vmatpush.msra.mxu0 %v2176
    %3387 = vmatpush.msra.mxu0 %v2172
    %3388 = vmatpush.msra.mxu0 %v2168
    %3389 = vmatpush.msra.mxu0 %v2164
    %3390 = vmatpush.msra.mxu0 %v2160
    %3391 = vmatpush.msra.mxu0 %v2156
    %3392 = vmatpush.msra.mxu0 %v2152
    %3393 = vmatpush.msra.mxu0 %v2148
    %3394 = vmatpush.msra.mxu0 %v2144
    %3395 = vmatpush.msra.mxu0 %v2140
    %3396 = vmatpush.msra.mxu0 %v2136
    %3397 = vmatpush.msra.mxu0 %v2132
    %3398 = vmatpush.msra.mxu0 %v2128
    %3399 = vmatpush.msra.mxu0 %v2124
    %3400 = vmatmul.f32.gmra.mxu0 %v3339
    %v3401 = vpop.f32.mrf.mxu0
    %v3402 = vadd.f32 0.0, %v3401
    %3403 = vdwg.mxu0
    %3404 = vmatpush.msra.mxu0 %v2185
    %3405 = vmatpush.msra.mxu0 %v2181
    %3406 = vmatpush.msra.mxu0 %v2177
    %3407 = vmatpush.msra.mxu0 %v2173
    %3408 = vmatpush.msra.mxu0 %v2169
    %3409 = vmatpush.msra.mxu0 %v2165
    %3410 = vmatpush.msra.mxu0 %v2161
    %3411 = vmatpush.msra.mxu0 %v2157
    %3412 = vmatpush.msra.mxu0 %v2153
    %3413 = vmatpush.msra.mxu0 %v2149
    %3414 = vmatpush.msra.mxu0 %v2145
    %3415 = vmatpush.msra.mxu0 %v2141
    %3416 = vmatpush.msra.mxu0 %v2137
    %3417 = vmatpush.msra.mxu0 %v2133
    %3418 = vmatpush.msra.mxu0 %v2129
    %3419 = vmatpush.msra.mxu0 %v2125
    %3420 = vmatmul.f32.gmra.mxu0 %v3339
    %v3421 = vpop.f32.mrf.mxu0
    %v3422 = vadd.f32 0.0, %v3421
    %3423 = vdwg.mxu0
    %v3424 = vadd.f32 %v3340, %v3362
    %v3425 = vadd.f32 %v3341, %v3382
    %v3426 = vadd.f32 %v3342, %v3402
    %v3427 = vadd.f32 %v3343, %v3422
    %v3428 = vxor.u32 %v3424, 2147483648
    %v3429 = vmul.f32 %v3428, 1.442695
    %v3430 = vpow.pop %v3429
    %v3431 = vadd.f32 %v3430, 1.0
    %v3432 = vrcp.pop %v3431
    %v3433 = vmul.f32 %v3431, %v3432
    %v3434 = vsub.f32 1.0, %v3433
    %v3435 = vmul.f32 %v3432, %v3434
    %v3436 = vadd.f32 %v3432, %v3435
    %vm3437 = vweird.f32 %v3431
    %vm3438 = vweird.f32 %v3432
    %vm3439 = vmor %vm3437, %vm3438
    %v3440 = vsel %vm3439, %v3432, %v3436
    %v3441 = vand.u32 2147483647, %v3431
    %vm3442 = vcmp.eq.f32.partialorder %v3441, 8.507059e+37
    %v3443 = vand.u32 %v3431, 2147483648
    %v3444 = vor.u32 1.1754944e-38, %v3443
    %v3445 = vsel %vm3442, %v3444, %v3440
    %v3446 = vmul.f32 1.0, %v3445
    %v3447 = vxor.u32 %v3425, 2147483648
    %v3448 = vmul.f32 %v3447, 1.442695
    %v3449 = vpow.pop %v3448
    %v3450 = vadd.f32 %v3449, 1.0
    %v3451 = vrcp.pop %v3450
    %v3452 = vmul.f32 %v3450, %v3451
    %v3453 = vsub.f32 1.0, %v3452
    %v3454 = vmul.f32 %v3451, %v3453
    %v3455 = vadd.f32 %v3451, %v3454
    %vm3456 = vweird.f32 %v3450
    %vm3457 = vweird.f32 %v3451
    %vm3458 = vmor %vm3456, %vm3457
    %v3459 = vsel %vm3458, %v3451, %v3455
    %v3460 = vand.u32 2147483647, %v3450
    %vm3461 = vcmp.eq.f32.partialorder %v3460, 8.507059e+37
    %v3462 = vand.u32 %v3450, 2147483648
    %v3463 = vor.u32 1.1754944e-38, %v3462
    %v3464 = vsel %vm3461, %v3463, %v3459
    %v3465 = vmul.f32 1.0, %v3464
    %v3466 = vtanh.pop %v3426
    %v3467 = vxor.u32 %v3427, 2147483648
    %v3468 = vmul.f32 %v3467, 1.442695
    %v3469 = vpow.pop %v3468
    %v3470 = vadd.f32 %v3469, 1.0
    %v3471 = vrcp.pop %v3470
    %v3472 = vmul.f32 %v3470, %v3471
    %v3473 = vsub.f32 1.0, %v3472
    %v3474 = vmul.f32 %v3471, %v3473
    %v3475 = vadd.f32 %v3471, %v3474
    %vm3476 = vweird.f32 %v3470
    %vm3477 = vweird.f32 %v3471
    %vm3478 = vmor %vm3476, %vm3477
    %v3479 = vsel %vm3478, %v3471, %v3475
    %v3480 = vand.u32 2147483647, %v3470
    %vm3481 = vcmp.eq.f32.partialorder %v3480, 8.507059e+37
    %v3482 = vand.u32 %v3470, 2147483648
    %v3483 = vor.u32 1.1754944e-38, %v3482
    %v3484 = vsel %vm3481, %v3483, %v3479
    %v3485 = vmul.f32 1.0, %v3484
    %v3486 = vmul.f32 %v3465, %v3337
    %v3487 = vmul.f32 %v3446, %v3466
    %v3488 = vadd.f32 %v3486, %v3487
    %v3489 = vtanh.pop %v3488
    %v3490 = vmul.f32 %v3485, %v3489
    %v3491 = vld [vmem:[%s1596] sm:$0xff]
    %v3492 = vld [vmem:[%s1596 + $0x8] sm:$0xff]
    %v3493 = vld [vmem:[%s1596 + $0x10] sm:$0xff]
    %v3494 = vld [vmem:[%s1596 + $0x18] sm:$0xff]
    %3495 = vmatpush.msra.mxu0 %v2182
    %3496 = vmatpush.msra.mxu0 %v2178
    %3497 = vmatpush.msra.mxu0 %v2174
    %3498 = vmatpush.msra.mxu0 %v2170
    %3499 = vmatpush.msra.mxu0 %v2166
    %3500 = vmatpush.msra.mxu0 %v2162
    %3501 = vmatpush.msra.mxu0 %v2158
    %3502 = vmatpush.msra.mxu0 %v2154
    %3503 = vmatpush.msra.mxu0 %v2150
    %3504 = vmatpush.msra.mxu0 %v2146
    %3505 = vmatpush.msra.mxu0 %v2142
    %3506 = vmatpush.msra.mxu0 %v2138
    %3507 = vmatpush.msra.mxu0 %v2134
    %3508 = vmatpush.msra.mxu0 %v2130
    %3509 = vmatpush.msra.mxu0 %v2126
    %3510 = vmatpush.msra.mxu0 %v2122
    %3511 = vmatmul.f32.gmra.mxu0 %v3490
    %v3512 = vpop.f32.mrf.mxu0
    %v3513 = vadd.f32 0.0, %v3512
    %3514 = vdwg.mxu0
    %3515 = vmatpush.msra.mxu0 %v2183
    %3516 = vmatpush.msra.mxu0 %v2179
    %3517 = vmatpush.msra.mxu0 %v2175
    %3518 = vmatpush.msra.mxu0 %v2171
    %3519 = vmatpush.msra.mxu0 %v2167
    %3520 = vmatpush.msra.mxu0 %v2163
    %3521 = vmatpush.msra.mxu0 %v2159
    %3522 = vmatpush.msra.mxu0 %v2155
    %3523 = vmatpush.msra.mxu0 %v2151
    %3524 = vmatpush.msra.mxu0 %v2147
    %3525 = vmatpush.msra.mxu0 %v2143
    %3526 = vmatpush.msra.mxu0 %v2139
    %3527 = vmatpush.msra.mxu0 %v2135
    %3528 = vmatpush.msra.mxu0 %v2131
    %3529 = vmatpush.msra.mxu0 %v2127
    %3530 = vmatpush.msra.mxu0 %v2123
    %3531 = vmatmul.f32.gmra.mxu0 %v3490
    %v3532 = vpop.f32.mrf.mxu0
    %v3533 = vadd.f32 0.0, %v3532
    %3534 = vdwg.mxu0
    %3535 = vmatpush.msra.mxu0 %v2184
    %3536 = vmatpush.msra.mxu0 %v2180
    %3537 = vmatpush.msra.mxu0 %v2176
    %3538 = vmatpush.msra.mxu0 %v2172
    %3539 = vmatpush.msra.mxu0 %v2168
    %3540 = vmatpush.msra.mxu0 %v2164
    %3541 = vmatpush.msra.mxu0 %v2160
    %3542 = vmatpush.msra.mxu0 %v2156
    %3543 = vmatpush.msra.mxu0 %v2152
    %3544 = vmatpush.msra.mxu0 %v2148
    %3545 = vmatpush.msra.mxu0 %v2144
    %3546 = vmatpush.msra.mxu0 %v2140
    %3547 = vmatpush.msra.mxu0 %v2136
    %3548 = vmatpush.msra.mxu0 %v2132
    %3549 = vmatpush.msra.mxu0 %v2128
    %3550 = vmatpush.msra.mxu0 %v2124
    %3551 = vmatmul.f32.gmra.mxu0 %v3490
    %v3552 = vpop.f32.mrf.mxu0
    %v3553 = vadd.f32 0.0, %v3552
    %3554 = vdwg.mxu0
    %3555 = vmatpush.msra.mxu0 %v2185
    %3556 = vmatpush.msra.mxu0 %v2181
    %3557 = vmatpush.msra.mxu0 %v2177
    %3558 = vmatpush.msra.mxu0 %v2173
    %3559 = vmatpush.msra.mxu0 %v2169
    %3560 = vmatpush.msra.mxu0 %v2165
    %3561 = vmatpush.msra.mxu0 %v2161
    %3562 = vmatpush.msra.mxu0 %v2157
    %3563 = vmatpush.msra.mxu0 %v2153
    %3564 = vmatpush.msra.mxu0 %v2149
    %3565 = vmatpush.msra.mxu0 %v2145
    %3566 = vmatpush.msra.mxu0 %v2141
    %3567 = vmatpush.msra.mxu0 %v2137
    %3568 = vmatpush.msra.mxu0 %v2133
    %3569 = vmatpush.msra.mxu0 %v2129
    %3570 = vmatpush.msra.mxu0 %v2125
    %3571 = vmatmul.f32.gmra.mxu0 %v3490
    %v3572 = vpop.f32.mrf.mxu0
    %v3573 = vadd.f32 0.0, %v3572
    %3574 = vdwg.mxu0
    %v3575 = vadd.f32 %v3491, %v3513
    %v3576 = vadd.f32 %v3492, %v3533
    %v3577 = vadd.f32 %v3493, %v3553
    %v3578 = vadd.f32 %v3494, %v3573
    %v3579 = vxor.u32 %v3575, 2147483648
    %v3580 = vmul.f32 %v3579, 1.442695
    %v3581 = vpow.pop %v3580
    %v3582 = vadd.f32 %v3581, 1.0
    %v3583 = vrcp.pop %v3582
    %v3584 = vmul.f32 %v3582, %v3583
    %v3585 = vsub.f32 1.0, %v3584
    %v3586 = vmul.f32 %v3583, %v3585
    %v3587 = vadd.f32 %v3583, %v3586
    %vm3588 = vweird.f32 %v3582
    %vm3589 = vweird.f32 %v3583
    %vm3590 = vmor %vm3588, %vm3589
    %v3591 = vsel %vm3590, %v3583, %v3587
    %v3592 = vand.u32 2147483647, %v3582
    %vm3593 = vcmp.eq.f32.partialorder %v3592, 8.507059e+37
    %v3594 = vand.u32 %v3582, 2147483648
    %v3595 = vor.u32 1.1754944e-38, %v3594
    %v3596 = vsel %vm3593, %v3595, %v3591
    %v3597 = vmul.f32 1.0, %v3596
    %v3598 = vxor.u32 %v3576, 2147483648
    %v3599 = vmul.f32 %v3598, 1.442695
    %v3600 = vpow.pop %v3599
    %v3601 = vadd.f32 %v3600, 1.0
    %v3602 = vrcp.pop %v3601
    %v3603 = vmul.f32 %v3601, %v3602
    %v3604 = vsub.f32 1.0, %v3603
    %v3605 = vmul.f32 %v3602, %v3604
    %v3606 = vadd.f32 %v3602, %v3605
    %vm3607 = vweird.f32 %v3601
    %vm3608 = vweird.f32 %v3602
    %vm3609 = vmor %vm3607, %vm3608
    %v3610 = vsel %vm3609, %v3602, %v3606
    %v3611 = vand.u32 2147483647, %v3601
    %vm3612 = vcmp.eq.f32.partialorder %v3611, 8.507059e+37
    %v3613 = vand.u32 %v3601, 2147483648
    %v3614 = vor.u32 1.1754944e-38, %v3613
    %v3615 = vsel %vm3612, %v3614, %v3610
    %v3616 = vmul.f32 1.0, %v3615
    %v3617 = vtanh.pop %v3577
    %v3618 = vxor.u32 %v3578, 2147483648
    %v3619 = vmul.f32 %v3618, 1.442695
    %v3620 = vpow.pop %v3619
    %v3621 = vadd.f32 %v3620, 1.0
    %v3622 = vrcp.pop %v3621
    %v3623 = vmul.f32 %v3621, %v3622
    %v3624 = vsub.f32 1.0, %v3623
    %v3625 = vmul.f32 %v3622, %v3624
    %v3626 = vadd.f32 %v3622, %v3625
    %vm3627 = vweird.f32 %v3621
    %vm3628 = vweird.f32 %v3622
    %vm3629 = vmor %vm3627, %vm3628
    %v3630 = vsel %vm3629, %v3622, %v3626
    %v3631 = vand.u32 2147483647, %v3621
    %vm3632 = vcmp.eq.f32.partialorder %v3631, 8.507059e+37
    %v3633 = vand.u32 %v3621, 2147483648
    %v3634 = vor.u32 1.1754944e-38, %v3633
    %v3635 = vsel %vm3632, %v3634, %v3630
    %v3636 = vmul.f32 1.0, %v3635
    %v3637 = vmul.f32 %v3616, %v3488
    %v3638 = vmul.f32 %v3597, %v3617
    %v3639 = vadd.f32 %v3637, %v3638
    %v3640 = vtanh.pop %v3639
    %v3641 = vmul.f32 %v3636, %v3640
    %v3642 = vld [vmem:[%s1750] sm:$0xff]
    %v3643 = vld [vmem:[%s1750 + $0x8] sm:$0xff]
    %v3644 = vld [vmem:[%s1750 + $0x10] sm:$0xff]
    %v3645 = vld [vmem:[%s1750 + $0x18] sm:$0xff]
    %3646 = vmatpush.msra.mxu0 %v2182
    %3647 = vmatpush.msra.mxu0 %v2178
    %3648 = vmatpush.msra.mxu0 %v2174
    %3649 = vmatpush.msra.mxu0 %v2170
    %3650 = vmatpush.msra.mxu0 %v2166
    %3651 = vmatpush.msra.mxu0 %v2162
    %3652 = vmatpush.msra.mxu0 %v2158
    %3653 = vmatpush.msra.mxu0 %v2154
    %3654 = vmatpush.msra.mxu0 %v2150
    %3655 = vmatpush.msra.mxu0 %v2146
    %3656 = vmatpush.msra.mxu0 %v2142
    %3657 = vmatpush.msra.mxu0 %v2138
    %3658 = vmatpush.msra.mxu0 %v2134
    %3659 = vmatpush.msra.mxu0 %v2130
    %3660 = vmatpush.msra.mxu0 %v2126
    %3661 = vmatpush.msra.mxu0 %v2122
    %3662 = vmatmul.f32.gmra.mxu0 %v3641
    %v3663 = vpop.f32.mrf.mxu0
    %v3664 = vadd.f32 0.0, %v3663
    %3665 = vdwg.mxu0
    %3666 = vmatpush.msra.mxu0 %v2183
    %3667 = vmatpush.msra.mxu0 %v2179
    %3668 = vmatpush.msra.mxu0 %v2175
    %3669 = vmatpush.msra.mxu0 %v2171
    %3670 = vmatpush.msra.mxu0 %v2167
    %3671 = vmatpush.msra.mxu0 %v2163
    %3672 = vmatpush.msra.mxu0 %v2159
    %3673 = vmatpush.msra.mxu0 %v2155
    %3674 = vmatpush.msra.mxu0 %v2151
    %3675 = vmatpush.msra.mxu0 %v2147
    %3676 = vmatpush.msra.mxu0 %v2143
    %3677 = vmatpush.msra.mxu0 %v2139
    %3678 = vmatpush.msra.mxu0 %v2135
    %3679 = vmatpush.msra.mxu0 %v2131
    %3680 = vmatpush.msra.mxu0 %v2127
    %3681 = vmatpush.msra.mxu0 %v2123
    %3682 = vmatmul.f32.gmra.mxu0 %v3641
    %v3683 = vpop.f32.mrf.mxu0
    %v3684 = vadd.f32 0.0, %v3683
    %3685 = vdwg.mxu0
    %3686 = vmatpush.msra.mxu0 %v2184
    %3687 = vmatpush.msra.mxu0 %v2180
    %3688 = vmatpush.msra.mxu0 %v2176
    %3689 = vmatpush.msra.mxu0 %v2172
    %3690 = vmatpush.msra.mxu0 %v2168
    %3691 = vmatpush.msra.mxu0 %v2164
    %3692 = vmatpush.msra.mxu0 %v2160
    %3693 = vmatpush.msra.mxu0 %v2156
    %3694 = vmatpush.msra.mxu0 %v2152
    %3695 = vmatpush.msra.mxu0 %v2148
    %3696 = vmatpush.msra.mxu0 %v2144
    %3697 = vmatpush.msra.mxu0 %v2140
    %3698 = vmatpush.msra.mxu0 %v2136
    %3699 = vmatpush.msra.mxu0 %v2132
    %3700 = vmatpush.msra.mxu0 %v2128
    %3701 = vmatpush.msra.mxu0 %v2124
    %3702 = vmatmul.f32.gmra.mxu0 %v3641
    %v3703 = vpop.f32.mrf.mxu0
    %v3704 = vadd.f32 0.0, %v3703
    %3705 = vdwg.mxu0
    %3706 = vmatpush.msra.mxu0 %v2185
    %3707 = vmatpush.msra.mxu0 %v2181
    %3708 = vmatpush.msra.mxu0 %v2177
    %3709 = vmatpush.msra.mxu0 %v2173
    %3710 = vmatpush.msra.mxu0 %v2169
    %3711 = vmatpush.msra.mxu0 %v2165
    %3712 = vmatpush.msra.mxu0 %v2161
    %3713 = vmatpush.msra.mxu0 %v2157
    %3714 = vmatpush.msra.mxu0 %v2153
    %3715 = vmatpush.msra.mxu0 %v2149
    %3716 = vmatpush.msra.mxu0 %v2145
    %3717 = vmatpush.msra.mxu0 %v2141
    %3718 = vmatpush.msra.mxu0 %v2137
    %3719 = vmatpush.msra.mxu0 %v2133
    %3720 = vmatpush.msra.mxu0 %v2129
    %3721 = vmatpush.msra.mxu0 %v2125
    %3722 = vmatmul.f32.gmra.mxu0 %v3641
    %v3723 = vpop.f32.mrf.mxu0
    %v3724 = vadd.f32 0.0, %v3723
    %3725 = vdwg.mxu0
    %v3726 = vadd.f32 %v3642, %v3664
    %v3727 = vadd.f32 %v3643, %v3684
    %v3728 = vadd.f32 %v3644, %v3704
    %v3729 = vadd.f32 %v3645, %v3724
    %v3730 = vxor.u32 %v3726, 2147483648
    %v3731 = vmul.f32 %v3730, 1.442695
    %v3732 = vpow.pop %v3731
    %v3733 = vadd.f32 %v3732, 1.0
    %v3734 = vrcp.pop %v3733
    %v3735 = vmul.f32 %v3733, %v3734
    %v3736 = vsub.f32 1.0, %v3735
    %v3737 = vmul.f32 %v3734, %v3736
    %v3738 = vadd.f32 %v3734, %v3737
    %vm3739 = vweird.f32 %v3733
    %vm3740 = vweird.f32 %v3734
    %vm3741 = vmor %vm3739, %vm3740
    %v3742 = vsel %vm3741, %v3734, %v3738
    %v3743 = vand.u32 2147483647, %v3733
    %vm3744 = vcmp.eq.f32.partialorder %v3743, 8.507059e+37
    %v3745 = vand.u32 %v3733, 2147483648
    %v3746 = vor.u32 1.1754944e-38, %v3745
    %v3747 = vsel %vm3744, %v3746, %v3742
    %v3748 = vmul.f32 1.0, %v3747
    %v3749 = vxor.u32 %v3727, 2147483648
    %v3750 = vmul.f32 %v3749, 1.442695
    %v3751 = vpow.pop %v3750
    %v3752 = vadd.f32 %v3751, 1.0
    %v3753 = vrcp.pop %v3752
    %v3754 = vmul.f32 %v3752, %v3753
    %v3755 = vsub.f32 1.0, %v3754
    %v3756 = vmul.f32 %v3753, %v3755
    %v3757 = vadd.f32 %v3753, %v3756
    %vm3758 = vweird.f32 %v3752
    %vm3759 = vweird.f32 %v3753
    %vm3760 = vmor %vm3758, %vm3759
    %v3761 = vsel %vm3760, %v3753, %v3757
    %v3762 = vand.u32 2147483647, %v3752
    %vm3763 = vcmp.eq.f32.partialorder %v3762, 8.507059e+37
    %v3764 = vand.u32 %v3752, 2147483648
    %v3765 = vor.u32 1.1754944e-38, %v3764
    %v3766 = vsel %vm3763, %v3765, %v3761
    %v3767 = vmul.f32 1.0, %v3766
    %v3768 = vtanh.pop %v3728
    %v3769 = vxor.u32 %v3729, 2147483648
    %v3770 = vmul.f32 %v3769, 1.442695
    %v3771 = vpow.pop %v3770
    %v3772 = vadd.f32 %v3771, 1.0
    %v3773 = vrcp.pop %v3772
    %v3774 = vmul.f32 %v3772, %v3773
    %v3775 = vsub.f32 1.0, %v3774
    %v3776 = vmul.f32 %v3773, %v3775
    %v3777 = vadd.f32 %v3773, %v3776
    %vm3778 = vweird.f32 %v3772
    %vm3779 = vweird.f32 %v3773
    %vm3780 = vmor %vm3778, %vm3779
    %v3781 = vsel %vm3780, %v3773, %v3777
    %v3782 = vand.u32 2147483647, %v3772
    %vm3783 = vcmp.eq.f32.partialorder %v3782, 8.507059e+37
    %v3784 = vand.u32 %v3772, 2147483648
    %v3785 = vor.u32 1.1754944e-38, %v3784
    %v3786 = vsel %vm3783, %v3785, %v3781
    %v3787 = vmul.f32 1.0, %v3786
    %v3788 = vmul.f32 %v3767, %v3639
    %v3789 = vmul.f32 %v3748, %v3768
    %v3790 = vadd.f32 %v3788, %v3789
    %v3791 = vtanh.pop %v3790
    %v3792 = vmul.f32 %v3787, %v3791
    %v3793 = vld [vmem:[%s1904] sm:$0xff]
    %v3794 = vld [vmem:[%s1904 + $0x8] sm:$0xff]
    %v3795 = vld [vmem:[%s1904 + $0x10] sm:$0xff]
    %v3796 = vld [vmem:[%s1904 + $0x18] sm:$0xff]
    %3797 = vmatpush.msra.mxu0 %v2182
    %3798 = vmatpush.msra.mxu0 %v2178
    %3799 = vmatpush.msra.mxu0 %v2174
    %3800 = vmatpush.msra.mxu0 %v2170
    %3801 = vmatpush.msra.mxu0 %v2166
    %3802 = vmatpush.msra.mxu0 %v2162
    %3803 = vmatpush.msra.mxu0 %v2158
    %3804 = vmatpush.msra.mxu0 %v2154
    %3805 = vmatpush.msra.mxu0 %v2150
    %3806 = vmatpush.msra.mxu0 %v2146
    %3807 = vmatpush.msra.mxu0 %v2142
    %3808 = vmatpush.msra.mxu0 %v2138
    %3809 = vmatpush.msra.mxu0 %v2134
    %3810 = vmatpush.msra.mxu0 %v2130
    %3811 = vmatpush.msra.mxu0 %v2126
    %3812 = vmatpush.msra.mxu0 %v2122
    %3813 = vmatmul.f32.gmra.mxu0 %v3792
    %v3814 = vpop.f32.mrf.mxu0
    %v3815 = vadd.f32 0.0, %v3814
    %3816 = vdwg.mxu0
    %3817 = vmatpush.msra.mxu0 %v2183
    %3818 = vmatpush.msra.mxu0 %v2179
    %3819 = vmatpush.msra.mxu0 %v2175
    %3820 = vmatpush.msra.mxu0 %v2171
    %3821 = vmatpush.msra.mxu0 %v2167
    %3822 = vmatpush.msra.mxu0 %v2163
    %3823 = vmatpush.msra.mxu0 %v2159
    %3824 = vmatpush.msra.mxu0 %v2155
    %3825 = vmatpush.msra.mxu0 %v2151
    %3826 = vmatpush.msra.mxu0 %v2147
    %3827 = vmatpush.msra.mxu0 %v2143
    %3828 = vmatpush.msra.mxu0 %v2139
    %3829 = vmatpush.msra.mxu0 %v2135
    %3830 = vmatpush.msra.mxu0 %v2131
    %3831 = vmatpush.msra.mxu0 %v2127
    %3832 = vmatpush.msra.mxu0 %v2123
    %3833 = vmatmul.f32.gmra.mxu0 %v3792
    %v3834 = vpop.f32.mrf.mxu0
    %v3835 = vadd.f32 0.0, %v3834
    %3836 = vdwg.mxu0
    %3837 = vmatpush.msra.mxu0 %v2184
    %3838 = vmatpush.msra.mxu0 %v2180
    %3839 = vmatpush.msra.mxu0 %v2176
    %3840 = vmatpush.msra.mxu0 %v2172
    %3841 = vmatpush.msra.mxu0 %v2168
    %3842 = vmatpush.msra.mxu0 %v2164
    %3843 = vmatpush.msra.mxu0 %v2160
    %3844 = vmatpush.msra.mxu0 %v2156
    %3845 = vmatpush.msra.mxu0 %v2152
    %3846 = vmatpush.msra.mxu0 %v2148
    %3847 = vmatpush.msra.mxu0 %v2144
    %3848 = vmatpush.msra.mxu0 %v2140
    %3849 = vmatpush.msra.mxu0 %v2136
    %3850 = vmatpush.msra.mxu0 %v2132
    %3851 = vmatpush.msra.mxu0 %v2128
    %3852 = vmatpush.msra.mxu0 %v2124
    %3853 = vmatmul.f32.gmra.mxu0 %v3792
    %v3854 = vpop.f32.mrf.mxu0
    %v3855 = vadd.f32 0.0, %v3854
    %3856 = vdwg.mxu0
    %3857 = vmatpush.msra.mxu0 %v2185
    %3858 = vmatpush.msra.mxu0 %v2181
    %3859 = vmatpush.msra.mxu0 %v2177
    %3860 = vmatpush.msra.mxu0 %v2173
    %3861 = vmatpush.msra.mxu0 %v2169
    %3862 = vmatpush.msra.mxu0 %v2165
    %3863 = vmatpush.msra.mxu0 %v2161
    %3864 = vmatpush.msra.mxu0 %v2157
    %3865 = vmatpush.msra.mxu0 %v2153
    %3866 = vmatpush.msra.mxu0 %v2149
    %3867 = vmatpush.msra.mxu0 %v2145
    %3868 = vmatpush.msra.mxu0 %v2141
    %3869 = vmatpush.msra.mxu0 %v2137
    %3870 = vmatpush.msra.mxu0 %v2133
    %3871 = vmatpush.msra.mxu0 %v2129
    %3872 = vmatpush.msra.mxu0 %v2125
    %3873 = vmatmul.f32.gmra.mxu0 %v3792
    %v3874 = vpop.f32.mrf.mxu0
    %v3875 = vadd.f32 0.0, %v3874
    %3876 = vdwg.mxu0
    %v3877 = vadd.f32 %v3793, %v3815
    %v3878 = vadd.f32 %v3794, %v3835
    %v3879 = vadd.f32 %v3795, %v3855
    %v3880 = vadd.f32 %v3796, %v3875
    %v3881 = vxor.u32 %v3877, 2147483648
    %v3882 = vmul.f32 %v3881, 1.442695
    %v3883 = vpow.pop %v3882
    %v3884 = vadd.f32 %v3883, 1.0
    %v3885 = vrcp.pop %v3884
    %v3886 = vmul.f32 %v3884, %v3885
    %v3887 = vsub.f32 1.0, %v3886
    %v3888 = vmul.f32 %v3885, %v3887
    %v3889 = vadd.f32 %v3885, %v3888
    %vm3890 = vweird.f32 %v3884
    %vm3891 = vweird.f32 %v3885
    %vm3892 = vmor %vm3890, %vm3891
    %v3893 = vsel %vm3892, %v3885, %v3889
    %v3894 = vand.u32 2147483647, %v3884
    %vm3895 = vcmp.eq.f32.partialorder %v3894, 8.507059e+37
    %v3896 = vand.u32 %v3884, 2147483648
    %v3897 = vor.u32 1.1754944e-38, %v3896
    %v3898 = vsel %vm3895, %v3897, %v3893
    %v3899 = vmul.f32 1.0, %v3898
    %v3900 = vxor.u32 %v3878, 2147483648
    %v3901 = vmul.f32 %v3900, 1.442695
    %v3902 = vpow.pop %v3901
    %v3903 = vadd.f32 %v3902, 1.0
    %v3904 = vrcp.pop %v3903
    %v3905 = vmul.f32 %v3903, %v3904
    %v3906 = vsub.f32 1.0, %v3905
    %v3907 = vmul.f32 %v3904, %v3906
    %v3908 = vadd.f32 %v3904, %v3907
    %vm3909 = vweird.f32 %v3903
    %vm3910 = vweird.f32 %v3904
    %vm3911 = vmor %vm3909, %vm3910
    %v3912 = vsel %vm3911, %v3904, %v3908
    %v3913 = vand.u32 2147483647, %v3903
    %vm3914 = vcmp.eq.f32.partialorder %v3913, 8.507059e+37
    %v3915 = vand.u32 %v3903, 2147483648
    %v3916 = vor.u32 1.1754944e-38, %v3915
    %v3917 = vsel %vm3914, %v3916, %v3912
    %v3918 = vmul.f32 1.0, %v3917
    %v3919 = vtanh.pop %v3879
    %v3920 = vxor.u32 %v3880, 2147483648
    %v3921 = vmul.f32 %v3920, 1.442695
    %v3922 = vpow.pop %v3921
    %v3923 = vadd.f32 %v3922, 1.0
    %v3924 = vrcp.pop %v3923
    %v3925 = vmul.f32 %v3923, %v3924
    %v3926 = vsub.f32 1.0, %v3925
    %v3927 = vmul.f32 %v3924, %v3926
    %v3928 = vadd.f32 %v3924, %v3927
    %vm3929 = vweird.f32 %v3923
    %vm3930 = vweird.f32 %v3924
    %vm3931 = vmor %vm3929, %vm3930
    %v3932 = vsel %vm3931, %v3924, %v3928
    %v3933 = vand.u32 2147483647, %v3923
    %vm3934 = vcmp.eq.f32.partialorder %v3933, 8.507059e+37
    %v3935 = vand.u32 %v3923, 2147483648
    %v3936 = vor.u32 1.1754944e-38, %v3935
    %v3937 = vsel %vm3934, %v3936, %v3932
    %v3938 = vmul.f32 1.0, %v3937
    %v3939 = vmul.f32 %v3918, %v3790
    %v3940 = vmul.f32 %v3899, %v3919
    %v3941 = vadd.f32 %v3939, %v3940
    %v3942 = vtanh.pop %v3941
    %v3943 = vmul.f32 %v3938, %v3942
    %v3944 = vld [vmem:[#allocation11] sm:$0xff]
    %v3945 = vld [vmem:[#allocation11 + $0x8] sm:$0xff]
    %v3946 = vld [vmem:[#allocation11 + $0x10] sm:$0xff]
    %v3947 = vld [vmem:[#allocation11 + $0x18] sm:$0xff]
    %v3948 = vld [vmem:[#allocation11 + $0x20] sm:$0xff]
    %v3949 = vld [vmem:[#allocation11 + $0x28] sm:$0xff]
    %v3950 = vld [vmem:[#allocation11 + $0x30] sm:$0xff]
    %v3951 = vld [vmem:[#allocation11 + $0x38] sm:$0xff]
    %v3952 = vld [vmem:[#allocation11 + $0x40] sm:$0xff]
    %v3953 = vld [vmem:[#allocation11 + $0x48] sm:$0xff]
    %v3954 = vld [vmem:[#allocation11 + $0x50] sm:$0xff]
    %v3955 = vld [vmem:[#allocation11 + $0x58] sm:$0xff]
    %v3956 = vld [vmem:[#allocation11 + $0x60] sm:$0xff]
    %v3957 = vld [vmem:[#allocation11 + $0x68] sm:$0xff]
    %v3958 = vld [vmem:[#allocation11 + $0x70] sm:$0xff]
    %v3959 = vld [vmem:[#allocation11 + $0x78] sm:$0xff]
    %v3960 = vld [vmem:[#allocation11 + $0x80] sm:$0xff]
    %v3961 = vld [vmem:[#allocation11 + $0x88] sm:$0xff]
    %v3962 = vld [vmem:[#allocation11 + $0x90] sm:$0xff]
    %v3963 = vld [vmem:[#allocation11 + $0x98] sm:$0xff]
    %v3964 = vld [vmem:[#allocation11 + $0xa0] sm:$0xff]
    %v3965 = vld [vmem:[#allocation11 + $0xa8] sm:$0xff]
    %v3966 = vld [vmem:[#allocation11 + $0xb0] sm:$0xff]
    %v3967 = vld [vmem:[#allocation11 + $0xb8] sm:$0xff]
    %v3968 = vld [vmem:[#allocation11 + $0xc0] sm:$0xff]
    %v3969 = vld [vmem:[#allocation11 + $0xc8] sm:$0xff]
    %v3970 = vld [vmem:[#allocation11 + $0xd0] sm:$0xff]
    %v3971 = vld [vmem:[#allocation11 + $0xd8] sm:$0xff]
    %v3972 = vld [vmem:[#allocation11 + $0xe0] sm:$0xff]
    %v3973 = vld [vmem:[#allocation11 + $0xe8] sm:$0xff]
    %v3974 = vld [vmem:[#allocation11 + $0xf0] sm:$0xff]
    %v3975 = vld [vmem:[#allocation11 + $0xf8] sm:$0xff]
    %v3976 = vld [vmem:[#allocation11 + $0x100] sm:$0xff]
    %v3977 = vld [vmem:[#allocation11 + $0x108] sm:$0xff]
    %v3978 = vld [vmem:[#allocation11 + $0x110] sm:$0xff]
    %v3979 = vld [vmem:[#allocation11 + $0x118] sm:$0xff]
    %v3980 = vld [vmem:[#allocation11 + $0x120] sm:$0xff]
    %v3981 = vld [vmem:[#allocation11 + $0x128] sm:$0xff]
    %v3982 = vld [vmem:[#allocation11 + $0x130] sm:$0xff]
    %v3983 = vld [vmem:[#allocation11 + $0x138] sm:$0xff]
    %v3984 = vld [vmem:[#allocation11 + $0x140] sm:$0xff]
    %v3985 = vld [vmem:[#allocation11 + $0x148] sm:$0xff]
    %v3986 = vld [vmem:[#allocation11 + $0x150] sm:$0xff]
    %v3987 = vld [vmem:[#allocation11 + $0x158] sm:$0xff]
    %v3988 = vld [vmem:[#allocation11 + $0x160] sm:$0xff]
    %v3989 = vld [vmem:[#allocation11 + $0x168] sm:$0xff]
    %v3990 = vld [vmem:[#allocation11 + $0x170] sm:$0xff]
    %v3991 = vld [vmem:[#allocation11 + $0x178] sm:$0xff]
    %v3992 = vld [vmem:[#allocation11 + $0x180] sm:$0xff]
    %v3993 = vld [vmem:[#allocation11 + $0x188] sm:$0xff]
    %v3994 = vld [vmem:[#allocation11 + $0x190] sm:$0xff]
    %v3995 = vld [vmem:[#allocation11 + $0x198] sm:$0xff]
    %v3996 = vld [vmem:[#allocation11 + $0x1a0] sm:$0xff]
    %v3997 = vld [vmem:[#allocation11 + $0x1a8] sm:$0xff]
    %v3998 = vld [vmem:[#allocation11 + $0x1b0] sm:$0xff]
    %v3999 = vld [vmem:[#allocation11 + $0x1b8] sm:$0xff]
    %v4000 = vld [vmem:[#allocation11 + $0x1c0] sm:$0xff]
    %v4001 = vld [vmem:[#allocation11 + $0x1c8] sm:$0xff]
    %v4002 = vld [vmem:[#allocation11 + $0x1d0] sm:$0xff]
    %v4003 = vld [vmem:[#allocation11 + $0x1d8] sm:$0xff]
    %v4004 = vld [vmem:[#allocation11 + $0x1e0] sm:$0xff]
    %v4005 = vld [vmem:[#allocation11 + $0x1e8] sm:$0xff]
    %v4006 = vld [vmem:[#allocation11 + $0x1f0] sm:$0xff]
    %v4007 = vld [vmem:[#allocation11 + $0x1f8] sm:$0xff]
    %v4008 = vld [vmem:[#allocation11 + $0x200] sm:$0xff]
    %v4009 = vld [vmem:[#allocation11 + $0x208] sm:$0xff]
    %v4010 = vld [vmem:[#allocation11 + $0x210] sm:$0xff]
    %v4011 = vld [vmem:[#allocation11 + $0x218] sm:$0xff]
    %v4012 = vld [vmem:[#allocation11 + $0x220] sm:$0xff]
    %v4013 = vld [vmem:[#allocation11 + $0x228] sm:$0xff]
    %v4014 = vld [vmem:[#allocation11 + $0x230] sm:$0xff]
    %v4015 = vld [vmem:[#allocation11 + $0x238] sm:$0xff]
    %v4016 = vld [vmem:[#allocation11 + $0x240] sm:$0xff]
    %v4017 = vld [vmem:[#allocation11 + $0x248] sm:$0xff]
    %v4018 = vld [vmem:[#allocation11 + $0x250] sm:$0xff]
    %v4019 = vld [vmem:[#allocation11 + $0x258] sm:$0xff]
    %v4020 = vld [vmem:[#allocation11 + $0x260] sm:$0xff]
    %v4021 = vld [vmem:[#allocation11 + $0x268] sm:$0xff]
    %v4022 = vld [vmem:[#allocation11 + $0x270] sm:$0xff]
    %v4023 = vld [vmem:[#allocation11 + $0x278] sm:$0xff]
    %v4024 = vld [vmem:[#allocation11 + $0x280] sm:$0xff]
    %v4025 = vld [vmem:[#allocation11 + $0x288] sm:$0xff]
    %v4026 = vld [vmem:[#allocation11 + $0x290] sm:$0xff]
    %v4027 = vld [vmem:[#allocation11 + $0x298] sm:$0xff]
    %v4028 = vld [vmem:[#allocation11 + $0x2a0] sm:$0xff]
    %v4029 = vld [vmem:[#allocation11 + $0x2a8] sm:$0xff]
    %v4030 = vld [vmem:[#allocation11 + $0x2b0] sm:$0xff]
    %v4031 = vld [vmem:[#allocation11 + $0x2b8] sm:$0xff]
    %v4032 = vld [vmem:[#allocation11 + $0x2c0] sm:$0xff]
    %v4033 = vld [vmem:[#allocation11 + $0x2c8] sm:$0xff]
    %v4034 = vld [vmem:[#allocation11 + $0x2d0] sm:$0xff]
    %v4035 = vld [vmem:[#allocation11 + $0x2d8] sm:$0xff]
    %v4036 = vld [vmem:[#allocation11 + $0x2e0] sm:$0xff]
    %v4037 = vld [vmem:[#allocation11 + $0x2e8] sm:$0xff]
    %v4038 = vld [vmem:[#allocation11 + $0x2f0] sm:$0xff]
    %v4039 = vld [vmem:[#allocation11 + $0x2f8] sm:$0xff]
    %v4040 = vld [vmem:[#allocation11 + $0x300] sm:$0xff]
    %v4041 = vld [vmem:[#allocation11 + $0x308] sm:$0xff]
    %v4042 = vld [vmem:[#allocation11 + $0x310] sm:$0xff]
    %v4043 = vld [vmem:[#allocation11 + $0x318] sm:$0xff]
    %v4044 = vld [vmem:[#allocation11 + $0x320] sm:$0xff]
    %v4045 = vld [vmem:[#allocation11 + $0x328] sm:$0xff]
    %v4046 = vld [vmem:[#allocation11 + $0x330] sm:$0xff]
    %v4047 = vld [vmem:[#allocation11 + $0x338] sm:$0xff]
    %v4048 = vld [vmem:[#allocation11 + $0x340] sm:$0xff]
    %v4049 = vld [vmem:[#allocation11 + $0x348] sm:$0xff]
    %v4050 = vld [vmem:[#allocation11 + $0x350] sm:$0xff]
    %v4051 = vld [vmem:[#allocation11 + $0x358] sm:$0xff]
    %v4052 = vld [vmem:[#allocation11 + $0x360] sm:$0xff]
    %v4053 = vld [vmem:[#allocation11 + $0x368] sm:$0xff]
    %v4054 = vld [vmem:[#allocation11 + $0x370] sm:$0xff]
    %v4055 = vld [vmem:[#allocation11 + $0x378] sm:$0xff]
    %v4056 = vld [vmem:[#allocation11 + $0x380] sm:$0xff]
    %v4057 = vld [vmem:[#allocation11 + $0x388] sm:$0xff]
    %v4058 = vld [vmem:[#allocation11 + $0x390] sm:$0xff]
    %v4059 = vld [vmem:[#allocation11 + $0x398] sm:$0xff]
    %v4060 = vld [vmem:[#allocation11 + $0x3a0] sm:$0xff]
    %v4061 = vld [vmem:[#allocation11 + $0x3a8] sm:$0xff]
    %v4062 = vld [vmem:[#allocation11 + $0x3b0] sm:$0xff]
    %v4063 = vld [vmem:[#allocation11 + $0x3b8] sm:$0xff]
    %v4064 = vld [vmem:[#allocation11 + $0x3c0] sm:$0xff]
    %v4065 = vld [vmem:[#allocation11 + $0x3c8] sm:$0xff]
    %v4066 = vld [vmem:[#allocation11 + $0x3d0] sm:$0xff]
    %v4067 = vld [vmem:[#allocation11 + $0x3d8] sm:$0xff]
    %v4068 = vld [vmem:[#allocation11 + $0x3e0] sm:$0xff]
    %v4069 = vld [vmem:[#allocation11 + $0x3e8] sm:$0xff]
    %v4070 = vld [vmem:[#allocation11 + $0x3f0] sm:$0xff]
    %v4071 = vld [vmem:[#allocation11 + $0x3f8] sm:$0xff]
    %v4072 = vld [vmem:[#allocation12] sm:$0xff]
    %v4073 = vld [vmem:[#allocation12 + $0x8] sm:$0xff]
    %v4074 = vld [vmem:[#allocation12 + $0x10] sm:$0xff]
    %v4075 = vld [vmem:[#allocation12 + $0x18] sm:$0xff]
    %v4076 = vld [vmem:[#allocation12 + $0x20] sm:$0xff]
    %v4077 = vld [vmem:[#allocation12 + $0x28] sm:$0xff]
    %v4078 = vld [vmem:[#allocation12 + $0x30] sm:$0xff]
    %v4079 = vld [vmem:[#allocation12 + $0x38] sm:$0xff]
    %v4080 = vld [vmem:[#allocation12 + $0x40] sm:$0xff]
    %v4081 = vld [vmem:[#allocation12 + $0x48] sm:$0xff]
    %v4082 = vld [vmem:[#allocation12 + $0x50] sm:$0xff]
    %v4083 = vld [vmem:[#allocation12 + $0x58] sm:$0xff]
    %v4084 = vld [vmem:[#allocation12 + $0x60] sm:$0xff]
    %v4085 = vld [vmem:[#allocation12 + $0x68] sm:$0xff]
    %v4086 = vld [vmem:[#allocation12 + $0x70] sm:$0xff]
    %v4087 = vld [vmem:[#allocation12 + $0x78] sm:$0xff]
    %v4088 = vld [vmem:[#allocation12 + $0x80] sm:$0xff]
    %v4089 = vld [vmem:[#allocation12 + $0x88] sm:$0xff]
    %v4090 = vld [vmem:[#allocation12 + $0x90] sm:$0xff]
    %v4091 = vld [vmem:[#allocation12 + $0x98] sm:$0xff]
    %v4092 = vld [vmem:[#allocation12 + $0xa0] sm:$0xff]
    %v4093 = vld [vmem:[#allocation12 + $0xa8] sm:$0xff]
    %v4094 = vld [vmem:[#allocation12 + $0xb0] sm:$0xff]
    %v4095 = vld [vmem:[#allocation12 + $0xb8] sm:$0xff]
    %v4096 = vld [vmem:[#allocation12 + $0xc0] sm:$0xff]
    %v4097 = vld [vmem:[#allocation12 + $0xc8] sm:$0xff]
    %v4098 = vld [vmem:[#allocation12 + $0xd0] sm:$0xff]
    %v4099 = vld [vmem:[#allocation12 + $0xd8] sm:$0xff]
    %v4100 = vld [vmem:[#allocation12 + $0xe0] sm:$0xff]
    %v4101 = vld [vmem:[#allocation12 + $0xe8] sm:$0xff]
    %v4102 = vld [vmem:[#allocation12 + $0xf0] sm:$0xff]
    %v4103 = vld [vmem:[#allocation12 + $0xf8] sm:$0xff]
    %v4104 = vld [vmem:[#allocation12 + $0x100] sm:$0xff]
    %v4105 = vld [vmem:[#allocation12 + $0x108] sm:$0xff]
    %v4106 = vld [vmem:[#allocation12 + $0x110] sm:$0xff]
    %v4107 = vld [vmem:[#allocation12 + $0x118] sm:$0xff]
    %v4108 = vld [vmem:[#allocation12 + $0x120] sm:$0xff]
    %v4109 = vld [vmem:[#allocation12 + $0x128] sm:$0xff]
    %v4110 = vld [vmem:[#allocation12 + $0x130] sm:$0xff]
    %v4111 = vld [vmem:[#allocation12 + $0x138] sm:$0xff]
    %v4112 = vld [vmem:[#allocation12 + $0x140] sm:$0xff]
    %v4113 = vld [vmem:[#allocation12 + $0x148] sm:$0xff]
    %v4114 = vld [vmem:[#allocation12 + $0x150] sm:$0xff]
    %v4115 = vld [vmem:[#allocation12 + $0x158] sm:$0xff]
    %v4116 = vld [vmem:[#allocation12 + $0x160] sm:$0xff]
    %v4117 = vld [vmem:[#allocation12 + $0x168] sm:$0xff]
    %v4118 = vld [vmem:[#allocation12 + $0x170] sm:$0xff]
    %v4119 = vld [vmem:[#allocation12 + $0x178] sm:$0xff]
    %v4120 = vld [vmem:[#allocation12 + $0x180] sm:$0xff]
    %v4121 = vld [vmem:[#allocation12 + $0x188] sm:$0xff]
    %v4122 = vld [vmem:[#allocation12 + $0x190] sm:$0xff]
    %v4123 = vld [vmem:[#allocation12 + $0x198] sm:$0xff]
    %v4124 = vld [vmem:[#allocation12 + $0x1a0] sm:$0xff]
    %v4125 = vld [vmem:[#allocation12 + $0x1a8] sm:$0xff]
    %v4126 = vld [vmem:[#allocation12 + $0x1b0] sm:$0xff]
    %v4127 = vld [vmem:[#allocation12 + $0x1b8] sm:$0xff]
    %v4128 = vld [vmem:[#allocation12 + $0x1c0] sm:$0xff]
    %v4129 = vld [vmem:[#allocation12 + $0x1c8] sm:$0xff]
    %v4130 = vld [vmem:[#allocation12 + $0x1d0] sm:$0xff]
    %v4131 = vld [vmem:[#allocation12 + $0x1d8] sm:$0xff]
    %v4132 = vld [vmem:[#allocation12 + $0x1e0] sm:$0xff]
    %v4133 = vld [vmem:[#allocation12 + $0x1e8] sm:$0xff]
    %v4134 = vld [vmem:[#allocation12 + $0x1f0] sm:$0xff]
    %v4135 = vld [vmem:[#allocation12 + $0x1f8] sm:$0xff]
    %v4136 = vld [vmem:[#allocation12 + $0x200] sm:$0xff]
    %v4137 = vld [vmem:[#allocation12 + $0x208] sm:$0xff]
    %v4138 = vld [vmem:[#allocation12 + $0x210] sm:$0xff]
    %v4139 = vld [vmem:[#allocation12 + $0x218] sm:$0xff]
    %v4140 = vld [vmem:[#allocation12 + $0x220] sm:$0xff]
    %v4141 = vld [vmem:[#allocation12 + $0x228] sm:$0xff]
    %v4142 = vld [vmem:[#allocation12 + $0x230] sm:$0xff]
    %v4143 = vld [vmem:[#allocation12 + $0x238] sm:$0xff]
    %v4144 = vld [vmem:[#allocation12 + $0x240] sm:$0xff]
    %v4145 = vld [vmem:[#allocation12 + $0x248] sm:$0xff]
    %v4146 = vld [vmem:[#allocation12 + $0x250] sm:$0xff]
    %v4147 = vld [vmem:[#allocation12 + $0x258] sm:$0xff]
    %v4148 = vld [vmem:[#allocation12 + $0x260] sm:$0xff]
    %v4149 = vld [vmem:[#allocation12 + $0x268] sm:$0xff]
    %v4150 = vld [vmem:[#allocation12 + $0x270] sm:$0xff]
    %v4151 = vld [vmem:[#allocation12 + $0x278] sm:$0xff]
    %v4152 = vld [vmem:[#allocation12 + $0x280] sm:$0xff]
    %v4153 = vld [vmem:[#allocation12 + $0x288] sm:$0xff]
    %v4154 = vld [vmem:[#allocation12 + $0x290] sm:$0xff]
    %v4155 = vld [vmem:[#allocation12 + $0x298] sm:$0xff]
    %v4156 = vld [vmem:[#allocation12 + $0x2a0] sm:$0xff]
    %v4157 = vld [vmem:[#allocation12 + $0x2a8] sm:$0xff]
    %v4158 = vld [vmem:[#allocation12 + $0x2b0] sm:$0xff]
    %v4159 = vld [vmem:[#allocation12 + $0x2b8] sm:$0xff]
    %v4160 = vld [vmem:[#allocation12 + $0x2c0] sm:$0xff]
    %v4161 = vld [vmem:[#allocation12 + $0x2c8] sm:$0xff]
    %v4162 = vld [vmem:[#allocation12 + $0x2d0] sm:$0xff]
    %v4163 = vld [vmem:[#allocation12 + $0x2d8] sm:$0xff]
    %v4164 = vld [vmem:[#allocation12 + $0x2e0] sm:$0xff]
    %v4165 = vld [vmem:[#allocation12 + $0x2e8] sm:$0xff]
    %v4166 = vld [vmem:[#allocation12 + $0x2f0] sm:$0xff]
    %v4167 = vld [vmem:[#allocation12 + $0x2f8] sm:$0xff]
    %v4168 = vld [vmem:[#allocation12 + $0x300] sm:$0xff]
    %v4169 = vld [vmem:[#allocation12 + $0x308] sm:$0xff]
    %v4170 = vld [vmem:[#allocation12 + $0x310] sm:$0xff]
    %v4171 = vld [vmem:[#allocation12 + $0x318] sm:$0xff]
    %v4172 = vld [vmem:[#allocation12 + $0x320] sm:$0xff]
    %v4173 = vld [vmem:[#allocation12 + $0x328] sm:$0xff]
    %v4174 = vld [vmem:[#allocation12 + $0x330] sm:$0xff]
    %v4175 = vld [vmem:[#allocation12 + $0x338] sm:$0xff]
    %v4176 = vld [vmem:[#allocation12 + $0x340] sm:$0xff]
    %v4177 = vld [vmem:[#allocation12 + $0x348] sm:$0xff]
    %v4178 = vld [vmem:[#allocation12 + $0x350] sm:$0xff]
    %v4179 = vld [vmem:[#allocation12 + $0x358] sm:$0xff]
    %v4180 = vld [vmem:[#allocation12 + $0x360] sm:$0xff]
    %v4181 = vld [vmem:[#allocation12 + $0x368] sm:$0xff]
    %v4182 = vld [vmem:[#allocation12 + $0x370] sm:$0xff]
    %v4183 = vld [vmem:[#allocation12 + $0x378] sm:$0xff]
    %v4184 = vld [vmem:[#allocation12 + $0x380] sm:$0xff]
    %v4185 = vld [vmem:[#allocation12 + $0x388] sm:$0xff]
    %v4186 = vld [vmem:[#allocation12 + $0x390] sm:$0xff]
    %v4187 = vld [vmem:[#allocation12 + $0x398] sm:$0xff]
    %v4188 = vld [vmem:[#allocation12 + $0x3a0] sm:$0xff]
    %v4189 = vld [vmem:[#allocation12 + $0x3a8] sm:$0xff]
    %v4190 = vld [vmem:[#allocation12 + $0x3b0] sm:$0xff]
    %v4191 = vld [vmem:[#allocation12 + $0x3b8] sm:$0xff]
    %v4192 = vld [vmem:[#allocation12 + $0x3c0] sm:$0xff]
    %v4193 = vld [vmem:[#allocation12 + $0x3c8] sm:$0xff]
    %v4194 = vld [vmem:[#allocation12 + $0x3d0] sm:$0xff]
    %v4195 = vld [vmem:[#allocation12 + $0x3d8] sm:$0xff]
    %v4196 = vld [vmem:[#allocation12 + $0x3e0] sm:$0xff]
    %v4197 = vld [vmem:[#allocation12 + $0x3e8] sm:$0xff]
    %v4198 = vld [vmem:[#allocation12 + $0x3f0] sm:$0xff]
    %v4199 = vld [vmem:[#allocation12 + $0x3f8] sm:$0xff]
    %v4200 = vld [vmem:[%s12] sm:$0xf]
    %v4202 = vperm.slane %v4200, 0
    %v4203 = vperm.slane %v4200, 1
    %v4204 = vperm.slane %v4200, 2
    %v4205 = vperm.slane %v4200, 3
    %v4210 = vld [vmem:[%s14] sm:$0xf]
    %v4212 = vperm.slane %v4210, 0
    %v4213 = vperm.slane %v4210, 1
    %v4214 = vperm.slane %v4210, 2
    %v4215 = vperm.slane %v4210, 3
    %v4220 = vld [vmem:[%s3] sm:$0xff]
    %v4221 = vld [vmem:[%s3 + $0x8] sm:$0xff]
    %v4222 = vld [vmem:[%s3 + $0x10] sm:$0xff]
    %v4223 = vld [vmem:[%s3 + $0x18] sm:$0xff]
    %v4224 = vld [vmem:[%s3 + $0x20] sm:$0xff]
    %v4225 = vld [vmem:[%s3 + $0x28] sm:$0xff]
    %v4226 = vld [vmem:[%s3 + $0x30] sm:$0xff]
    %v4227 = vld [vmem:[%s3 + $0x38] sm:$0xff]
    %v4228 = vld [vmem:[%s3 + $0x40] sm:$0xff]
    %v4229 = vld [vmem:[%s3 + $0x48] sm:$0xff]
    %v4230 = vld [vmem:[%s3 + $0x50] sm:$0xff]
    %v4231 = vld [vmem:[%s3 + $0x58] sm:$0xff]
    %v4232 = vld [vmem:[%s3 + $0x60] sm:$0xff]
    %v4233 = vld [vmem:[%s3 + $0x68] sm:$0xff]
    %v4234 = vld [vmem:[%s3 + $0x70] sm:$0xff]
    %v4235 = vld [vmem:[%s3 + $0x78] sm:$0xff]
    %v4236 = vld [vmem:[%s4] sm:$0x1]
    %v4238 = vperm.slane %v4236, 0
    %v4240 = vld [vmem:[%s2] sm:$0xff]
    %v4241 = vld [vmem:[%s2 + $0x8] sm:$0xff]
    %v4242 = vld [vmem:[%s2 + $0x10] sm:$0xff]
    %v4243 = vld [vmem:[%s2 + $0x18] sm:$0xff]
    %v4244 = vld [vmem:[%s2 + $0x20] sm:$0xff]
    %v4245 = vld [vmem:[%s2 + $0x28] sm:$0xff]
    %v4246 = vld [vmem:[%s2 + $0x30] sm:$0xff]
    %v4247 = vld [vmem:[%s2 + $0x38] sm:$0xff]
    %v4248 = vld [vmem:[%s2 + $0x40] sm:$0xff]
    %v4249 = vld [vmem:[%s2 + $0x48] sm:$0xff]
    %v4250 = vld [vmem:[%s2 + $0x50] sm:$0xff]
    %v4251 = vld [vmem:[%s2 + $0x58] sm:$0xff]
    %v4252 = vld [vmem:[%s2 + $0x60] sm:$0xff]
    %v4253 = vld [vmem:[%s2 + $0x68] sm:$0xff]
    %v4254 = vld [vmem:[%s2 + $0x70] sm:$0xff]
    %v4255 = vld [vmem:[%s2 + $0x78] sm:$0xff]
    %v4256 = vlaneseq
    %v4257 = vand.u32 %v4256, 127
    %v4258 = vcvt.s32.f32 %v4257
    %4259 = vst [vmem:[%s15] sm:$0xff] 0.0
    %v4260 = vld [vmem:[%s1] sm:$0xff]
    %4261 = vmatpush.msra.mxu0 %v4004
    %4262 = vmatpush.msra.mxu0 %v4000
    %4263 = vmatpush.msra.mxu0 %v3996
    %4264 = vmatpush.msra.mxu0 %v3992
    %4265 = vmatpush.msra.mxu0 %v3988
    %4266 = vmatpush.msra.mxu0 %v3984
    %4267 = vmatpush.msra.mxu0 %v3980
    %4268 = vmatpush.msra.mxu0 %v3976
    %4269 = vmatpush.msra.mxu0 %v3972
    %4270 = vmatpush.msra.mxu0 %v3968
    %4271 = vmatpush.msra.mxu0 %v3964
    %4272 = vmatpush.msra.mxu0 %v3960
    %4273 = vmatpush.msra.mxu0 %v3956
    %4274 = vmatpush.msra.mxu0 %v3952
    %4275 = vmatpush.msra.mxu0 %v3948
    %4276 = vmatpush.msra.mxu0 %v3944
    %4277 = vmatmul.f32.gmra.mxu0 %v4260
    %v4278 = vpop.f32.mrf.mxu0
    %v4279 = vadd.f32 %v4202, %v4278
    %4280 = vdwg.mxu0
    %4281 = vmatpush.msra.mxu0 %v4068
    %4282 = vmatpush.msra.mxu0 %v4064
    %4283 = vmatpush.msra.mxu0 %v4060
    %4284 = vmatpush.msra.mxu0 %v4056
    %4285 = vmatpush.msra.mxu0 %v4052
    %4286 = vmatpush.msra.mxu0 %v4048
    %4287 = vmatpush.msra.mxu0 %v4044
    %4288 = vmatpush.msra.mxu0 %v4040
    %4289 = vmatpush.msra.mxu0 %v4036
    %4290 = vmatpush.msra.mxu0 %v4032
    %4291 = vmatpush.msra.mxu0 %v4028
    %4292 = vmatpush.msra.mxu0 %v4024
    %4293 = vmatpush.msra.mxu0 %v4020
    %4294 = vmatpush.msra.mxu0 %v4016
    %4295 = vmatpush.msra.mxu0 %v4012
    %4296 = vmatpush.msra.mxu0 %v4008
    %4297 = vmatmul.f32.gmra.mxu0 %v2055
    %v4298 = vpop.f32.mrf.mxu0
    %v4299 = vadd.f32 %v4279, %v4298
    %4300 = vdwg.mxu0
    %4301 = vmatpush.msra.mxu0 %v4005
    %4302 = vmatpush.msra.mxu0 %v4001
    %4303 = vmatpush.msra.mxu0 %v3997
    %4304 = vmatpush.msra.mxu0 %v3993
    %4305 = vmatpush.msra.mxu0 %v3989
    %4306 = vmatpush.msra.mxu0 %v3985
    %4307 = vmatpush.msra.mxu0 %v3981
    %4308 = vmatpush.msra.mxu0 %v3977
    %4309 = vmatpush.msra.mxu0 %v3973
    %4310 = vmatpush.msra.mxu0 %v3969
    %4311 = vmatpush.msra.mxu0 %v3965
    %4312 = vmatpush.msra.mxu0 %v3961
    %4313 = vmatpush.msra.mxu0 %v3957
    %4314 = vmatpush.msra.mxu0 %v3953
    %4315 = vmatpush.msra.mxu0 %v3949
    %4316 = vmatpush.msra.mxu0 %v3945
    %4317 = vmatmul.f32.gmra.mxu0 %v4260
    %v4318 = vpop.f32.mrf.mxu0
    %v4319 = vadd.f32 %v4203, %v4318
    %4320 = vdwg.mxu0
    %4321 = vmatpush.msra.mxu0 %v4069
    %4322 = vmatpush.msra.mxu0 %v4065
    %4323 = vmatpush.msra.mxu0 %v4061
    %4324 = vmatpush.msra.mxu0 %v4057
    %4325 = vmatpush.msra.mxu0 %v4053
    %4326 = vmatpush.msra.mxu0 %v4049
    %4327 = vmatpush.msra.mxu0 %v4045
    %4328 = vmatpush.msra.mxu0 %v4041
    %4329 = vmatpush.msra.mxu0 %v4037
    %4330 = vmatpush.msra.mxu0 %v4033
    %4331 = vmatpush.msra.mxu0 %v4029
    %4332 = vmatpush.msra.mxu0 %v4025
    %4333 = vmatpush.msra.mxu0 %v4021
    %4334 = vmatpush.msra.mxu0 %v4017
    %4335 = vmatpush.msra.mxu0 %v4013
    %4336 = vmatpush.msra.mxu0 %v4009
    %4337 = vmatmul.f32.gmra.mxu0 %v2055
    %v4338 = vpop.f32.mrf.mxu0
    %v4339 = vadd.f32 %v4319, %v4338
    %4340 = vdwg.mxu0
    %4341 = vmatpush.msra.mxu0 %v4006
    %4342 = vmatpush.msra.mxu0 %v4002
    %4343 = vmatpush.msra.mxu0 %v3998
    %4344 = vmatpush.msra.mxu0 %v3994
    %4345 = vmatpush.msra.mxu0 %v3990
    %4346 = vmatpush.msra.mxu0 %v3986
    %4347 = vmatpush.msra.mxu0 %v3982
    %4348 = vmatpush.msra.mxu0 %v3978
    %4349 = vmatpush.msra.mxu0 %v3974
    %4350 = vmatpush.msra.mxu0 %v3970
    %4351 = vmatpush.msra.mxu0 %v3966
    %4352 = vmatpush.msra.mxu0 %v3962
    %4353 = vmatpush.msra.mxu0 %v3958
    %4354 = vmatpush.msra.mxu0 %v3954
    %4355 = vmatpush.msra.mxu0 %v3950
    %4356 = vmatpush.msra.mxu0 %v3946
    %4357 = vmatmul.f32.gmra.mxu0 %v4260
    %v4358 = vpop.f32.mrf.mxu0
    %v4359 = vadd.f32 %v4204, %v4358
    %4360 = vdwg.mxu0
    %4361 = vmatpush.msra.mxu0 %v4070
    %4362 = vmatpush.msra.mxu0 %v4066
    %4363 = vmatpush.msra.mxu0 %v4062
    %4364 = vmatpush.msra.mxu0 %v4058
    %4365 = vmatpush.msra.mxu0 %v4054
    %4366 = vmatpush.msra.mxu0 %v4050
    %4367 = vmatpush.msra.mxu0 %v4046
    %4368 = vmatpush.msra.mxu0 %v4042
    %4369 = vmatpush.msra.mxu0 %v4038
    %4370 = vmatpush.msra.mxu0 %v4034
    %4371 = vmatpush.msra.mxu0 %v4030
    %4372 = vmatpush.msra.mxu0 %v4026
    %4373 = vmatpush.msra.mxu0 %v4022
    %4374 = vmatpush.msra.mxu0 %v4018
    %4375 = vmatpush.msra.mxu0 %v4014
    %4376 = vmatpush.msra.mxu0 %v4010
    %4377 = vmatmul.f32.gmra.mxu0 %v2055
    %v4378 = vpop.f32.mrf.mxu0
    %v4379 = vadd.f32 %v4359, %v4378
    %4380 = vdwg.mxu0
    %4381 = vmatpush.msra.mxu0 %v4007
    %4382 = vmatpush.msra.mxu0 %v4003
    %4383 = vmatpush.msra.mxu0 %v3999
    %4384 = vmatpush.msra.mxu0 %v3995
    %4385 = vmatpush.msra.mxu0 %v3991
    %4386 = vmatpush.msra.mxu0 %v3987
    %4387 = vmatpush.msra.mxu0 %v3983
    %4388 = vmatpush.msra.mxu0 %v3979
    %4389 = vmatpush.msra.mxu0 %v3975
    %4390 = vmatpush.msra.mxu0 %v3971
    %4391 = vmatpush.msra.mxu0 %v3967
    %4392 = vmatpush.msra.mxu0 %v3963
    %4393 = vmatpush.msra.mxu0 %v3959
    %4394 = vmatpush.msra.mxu0 %v3955
    %4395 = vmatpush.msra.mxu0 %v3951
    %4396 = vmatpush.msra.mxu0 %v3947
    %4397 = vmatmul.f32.gmra.mxu0 %v4260
    %v4398 = vpop.f32.mrf.mxu0
    %v4399 = vadd.f32 %v4205, %v4398
    %4400 = vdwg.mxu0
    %4401 = vmatpush.msra.mxu0 %v4071
    %4402 = vmatpush.msra.mxu0 %v4067
    %4403 = vmatpush.msra.mxu0 %v4063
    %4404 = vmatpush.msra.mxu0 %v4059
    %4405 = vmatpush.msra.mxu0 %v4055
    %4406 = vmatpush.msra.mxu0 %v4051
    %4407 = vmatpush.msra.mxu0 %v4047
    %4408 = vmatpush.msra.mxu0 %v4043
    %4409 = vmatpush.msra.mxu0 %v4039
    %4410 = vmatpush.msra.mxu0 %v4035
    %4411 = vmatpush.msra.mxu0 %v4031
    %4412 = vmatpush.msra.mxu0 %v4027
    %4413 = vmatpush.msra.mxu0 %v4023
    %4414 = vmatpush.msra.mxu0 %v4019
    %4415 = vmatpush.msra.mxu0 %v4015
    %4416 = vmatpush.msra.mxu0 %v4011
    %4417 = vmatmul.f32.gmra.mxu0 %v2055
    %v4418 = vpop.f32.mrf.mxu0
    %v4419 = vadd.f32 %v4399, %v4418
    %4420 = vdwg.mxu0
    %v4421 = vxor.u32 %v4299, 2147483648
    %v4422 = vmul.f32 %v4421, 1.442695
    %v4423 = vpow.pop %v4422
    %v4424 = vadd.f32 %v4423, 1.0
    %v4425 = vrcp.pop %v4424
    %v4426 = vmul.f32 %v4424, %v4425
    %v4427 = vsub.f32 1.0, %v4426
    %v4428 = vmul.f32 %v4425, %v4427
    %v4429 = vadd.f32 %v4425, %v4428
    %vm4430 = vweird.f32 %v4424
    %vm4431 = vweird.f32 %v4425
    %vm4432 = vmor %vm4430, %vm4431
    %v4433 = vsel %vm4432, %v4425, %v4429
    %v4434 = vand.u32 2147483647, %v4424
    %vm4435 = vcmp.eq.f32.partialorder %v4434, 8.507059e+37
    %v4436 = vand.u32 %v4424, 2147483648
    %v4437 = vor.u32 1.1754944e-38, %v4436
    %v4438 = vsel %vm4435, %v4437, %v4433
    %v4439 = vmul.f32 1.0, %v4438
    %v4440 = vxor.u32 %v4339, 2147483648
    %v4441 = vmul.f32 %v4440, 1.442695
    %v4442 = vpow.pop %v4441
    %v4443 = vadd.f32 %v4442, 1.0
    %v4444 = vrcp.pop %v4443
    %v4445 = vmul.f32 %v4443, %v4444
    %v4446 = vsub.f32 1.0, %v4445
    %v4447 = vmul.f32 %v4444, %v4446
    %v4448 = vadd.f32 %v4444, %v4447
    %vm4449 = vweird.f32 %v4443
    %vm4450 = vweird.f32 %v4444
    %vm4451 = vmor %vm4449, %vm4450
    %v4452 = vsel %vm4451, %v4444, %v4448
    %v4453 = vand.u32 2147483647, %v4443
    %vm4454 = vcmp.eq.f32.partialorder %v4453, 8.507059e+37
    %v4455 = vand.u32 %v4443, 2147483648
    %v4456 = vor.u32 1.1754944e-38, %v4455
    %v4457 = vsel %vm4454, %v4456, %v4452
    %v4458 = vmul.f32 1.0, %v4457
    %v4459 = vtanh.pop %v4379
    %v4460 = vxor.u32 %v4419, 2147483648
    %v4461 = vmul.f32 %v4460, 1.442695
    %v4462 = vpow.pop %v4461
    %v4463 = vadd.f32 %v4462, 1.0
    %v4464 = vrcp.pop %v4463
    %v4465 = vmul.f32 %v4463, %v4464
    %v4466 = vsub.f32 1.0, %v4465
    %v4467 = vmul.f32 %v4464, %v4466
    %v4468 = vadd.f32 %v4464, %v4467
    %vm4469 = vweird.f32 %v4463
    %vm4470 = vweird.f32 %v4464
    %vm4471 = vmor %vm4469, %vm4470
    %v4472 = vsel %vm4471, %v4464, %v4468
    %v4473 = vand.u32 2147483647, %v4463
    %vm4474 = vcmp.eq.f32.partialorder %v4473, 8.507059e+37
    %v4475 = vand.u32 %v4463, 2147483648
    %v4476 = vor.u32 1.1754944e-38, %v4475
    %v4477 = vsel %vm4474, %v4476, %v4472
    %v4478 = vmul.f32 1.0, %v4477
    %v4479 = vmul.f32 %v4458, %v2053
    %v4480 = vmul.f32 %v4439, %v4459
    %v4481 = vadd.f32 %v4479, %v4480
    %v4482 = vtanh.pop %v4481
    %v4483 = vmul.f32 %v4478, %v4482
    %4484 = vmatpush.msra.mxu0 %v4132
    %4485 = vmatpush.msra.mxu0 %v4128
    %4486 = vmatpush.msra.mxu0 %v4124
    %4487 = vmatpush.msra.mxu0 %v4120
    %4488 = vmatpush.msra.mxu0 %v4116
    %4489 = vmatpush.msra.mxu0 %v4112
    %4490 = vmatpush.msra.mxu0 %v4108
    %4491 = vmatpush.msra.mxu0 %v4104
    %4492 = vmatpush.msra.mxu0 %v4100
    %4493 = vmatpush.msra.mxu0 %v4096
    %4494 = vmatpush.msra.mxu0 %v4092
    %4495 = vmatpush.msra.mxu0 %v4088
    %4496 = vmatpush.msra.mxu0 %v4084
    %4497 = vmatpush.msra.mxu0 %v4080
    %4498 = vmatpush.msra.mxu0 %v4076
    %4499 = vmatpush.msra.mxu0 %v4072
    %4500 = vmatmul.f32.gmra.mxu0 %v4483
    %v4501 = vpop.f32.mrf.mxu0
    %v4502 = vadd.f32 %v4212, %v4501
    %4503 = vdwg.mxu0
    %4504 = vmatpush.msra.mxu0 %v4196
    %4505 = vmatpush.msra.mxu0 %v4192
    %4506 = vmatpush.msra.mxu0 %v4188
    %4507 = vmatpush.msra.mxu0 %v4184
    %4508 = vmatpush.msra.mxu0 %v4180
    %4509 = vmatpush.msra.mxu0 %v4176
    %4510 = vmatpush.msra.mxu0 %v4172
    %4511 = vmatpush.msra.mxu0 %v4168
    %4512 = vmatpush.msra.mxu0 %v4164
    %4513 = vmatpush.msra.mxu0 %v4160
    %4514 = vmatpush.msra.mxu0 %v4156
    %4515 = vmatpush.msra.mxu0 %v4152
    %4516 = vmatpush.msra.mxu0 %v4148
    %4517 = vmatpush.msra.mxu0 %v4144
    %4518 = vmatpush.msra.mxu0 %v4140
    %4519 = vmatpush.msra.mxu0 %v4136
    %4520 = vmatmul.f32.gmra.mxu0 %v3943
    %v4521 = vpop.f32.mrf.mxu0
    %v4522 = vadd.f32 %v4502, %v4521
    %4523 = vdwg.mxu0
    %4524 = vmatpush.msra.mxu0 %v4133
    %4525 = vmatpush.msra.mxu0 %v4129
    %4526 = vmatpush.msra.mxu0 %v4125
    %4527 = vmatpush.msra.mxu0 %v4121
    %4528 = vmatpush.msra.mxu0 %v4117
    %4529 = vmatpush.msra.mxu0 %v4113
    %4530 = vmatpush.msra.mxu0 %v4109
    %4531 = vmatpush.msra.mxu0 %v4105
    %4532 = vmatpush.msra.mxu0 %v4101
    %4533 = vmatpush.msra.mxu0 %v4097
    %4534 = vmatpush.msra.mxu0 %v4093
    %4535 = vmatpush.msra.mxu0 %v4089
    %4536 = vmatpush.msra.mxu0 %v4085
    %4537 = vmatpush.msra.mxu0 %v4081
    %4538 = vmatpush.msra.mxu0 %v4077
    %4539 = vmatpush.msra.mxu0 %v4073
    %4540 = vmatmul.f32.gmra.mxu0 %v4483
    %v4541 = vpop.f32.mrf.mxu0
    %v4542 = vadd.f32 %v4213, %v4541
    %4543 = vdwg.mxu0
    %4544 = vmatpush.msra.mxu0 %v4197
    %4545 = vmatpush.msra.mxu0 %v4193
    %4546 = vmatpush.msra.mxu0 %v4189
    %4547 = vmatpush.msra.mxu0 %v4185
    %4548 = vmatpush.msra.mxu0 %v4181
    %4549 = vmatpush.msra.mxu0 %v4177
    %4550 = vmatpush.msra.mxu0 %v4173
    %4551 = vmatpush.msra.mxu0 %v4169
    %4552 = vmatpush.msra.mxu0 %v4165
    %4553 = vmatpush.msra.mxu0 %v4161
    %4554 = vmatpush.msra.mxu0 %v4157
    %4555 = vmatpush.msra.mxu0 %v4153
    %4556 = vmatpush.msra.mxu0 %v4149
    %4557 = vmatpush.msra.mxu0 %v4145
    %4558 = vmatpush.msra.mxu0 %v4141
    %4559 = vmatpush.msra.mxu0 %v4137
    %4560 = vmatmul.f32.gmra.mxu0 %v3943
    %v4561 = vpop.f32.mrf.mxu0
    %v4562 = vadd.f32 %v4542, %v4561
    %4563 = vdwg.mxu0
    %4564 = vmatpush.msra.mxu0 %v4134
    %4565 = vmatpush.msra.mxu0 %v4130
    %4566 = vmatpush.msra.mxu0 %v4126
    %4567 = vmatpush.msra.mxu0 %v4122
    %4568 = vmatpush.msra.mxu0 %v4118
    %4569 = vmatpush.msra.mxu0 %v4114
    %4570 = vmatpush.msra.mxu0 %v4110
    %4571 = vmatpush.msra.mxu0 %v4106
    %4572 = vmatpush.msra.mxu0 %v4102
    %4573 = vmatpush.msra.mxu0 %v4098
    %4574 = vmatpush.msra.mxu0 %v4094
    %4575 = vmatpush.msra.mxu0 %v4090
    %4576 = vmatpush.msra.mxu0 %v4086
    %4577 = vmatpush.msra.mxu0 %v4082
    %4578 = vmatpush.msra.mxu0 %v4078
    %4579 = vmatpush.msra.mxu0 %v4074
    %4580 = vmatmul.f32.gmra.mxu0 %v4483
    %v4581 = vpop.f32.mrf.mxu0
    %v4582 = vadd.f32 %v4214, %v4581
    %4583 = vdwg.mxu0
    %4584 = vmatpush.msra.mxu0 %v4198
    %4585 = vmatpush.msra.mxu0 %v4194
    %4586 = vmatpush.msra.mxu0 %v4190
    %4587 = vmatpush.msra.mxu0 %v4186
    %4588 = vmatpush.msra.mxu0 %v4182
    %4589 = vmatpush.msra.mxu0 %v4178
    %4590 = vmatpush.msra.mxu0 %v4174
    %4591 = vmatpush.msra.mxu0 %v4170
    %4592 = vmatpush.msra.mxu0 %v4166
    %4593 = vmatpush.msra.mxu0 %v4162
    %4594 = vmatpush.msra.mxu0 %v4158
    %4595 = vmatpush.msra.mxu0 %v4154
    %4596 = vmatpush.msra.mxu0 %v4150
    %4597 = vmatpush.msra.mxu0 %v4146
    %4598 = vmatpush.msra.mxu0 %v4142
    %4599 = vmatpush.msra.mxu0 %v4138
    %4600 = vmatmul.f32.gmra.mxu0 %v3943
    %v4601 = vpop.f32.mrf.mxu0
    %v4602 = vadd.f32 %v4582, %v4601
    %4603 = vdwg.mxu0
    %4604 = vmatpush.msra.mxu0 %v4135
    %4605 = vmatpush.msra.mxu0 %v4131
    %4606 = vmatpush.msra.mxu0 %v4127
    %4607 = vmatpush.msra.mxu0 %v4123
    %4608 = vmatpush.msra.mxu0 %v4119
    %4609 = vmatpush.msra.mxu0 %v4115
    %4610 = vmatpush.msra.mxu0 %v4111
    %4611 = vmatpush.msra.mxu0 %v4107
    %4612 = vmatpush.msra.mxu0 %v4103
    %4613 = vmatpush.msra.mxu0 %v4099
    %4614 = vmatpush.msra.mxu0 %v4095
    %4615 = vmatpush.msra.mxu0 %v4091
    %4616 = vmatpush.msra.mxu0 %v4087
    %4617 = vmatpush.msra.mxu0 %v4083
    %4618 = vmatpush.msra.mxu0 %v4079
    %4619 = vmatpush.msra.mxu0 %v4075
    %4620 = vmatmul.f32.gmra.mxu0 %v4483
    %v4621 = vpop.f32.mrf.mxu0
    %v4622 = vadd.f32 %v4215, %v4621
    %4623 = vdwg.mxu0
    %4624 = vmatpush.msra.mxu0 %v4199
    %4625 = vmatpush.msra.mxu0 %v4195
    %4626 = vmatpush.msra.mxu0 %v4191
    %4627 = vmatpush.msra.mxu0 %v4187
    %4628 = vmatpush.msra.mxu0 %v4183
    %4629 = vmatpush.msra.mxu0 %v4179
    %4630 = vmatpush.msra.mxu0 %v4175
    %4631 = vmatpush.msra.mxu0 %v4171
    %4632 = vmatpush.msra.mxu0 %v4167
    %4633 = vmatpush.msra.mxu0 %v4163
    %4634 = vmatpush.msra.mxu0 %v4159
    %4635 = vmatpush.msra.mxu0 %v4155
    %4636 = vmatpush.msra.mxu0 %v4151
    %4637 = vmatpush.msra.mxu0 %v4147
    %4638 = vmatpush.msra.mxu0 %v4143
    %4639 = vmatpush.msra.mxu0 %v4139
    %4640 = vmatmul.f32.gmra.mxu0 %v3943
    %v4641 = vpop.f32.mrf.mxu0
    %v4642 = vadd.f32 %v4622, %v4641
    %4643 = vdwg.mxu0
    %v4644 = vxor.u32 %v4522, 2147483648
    %v4645 = vmul.f32 %v4644, 1.442695
    %v4646 = vpow.pop %v4645
    %v4647 = vadd.f32 %v4646, 1.0
    %v4648 = vrcp.pop %v4647
    %v4649 = vmul.f32 %v4647, %v4648
    %v4650 = vsub.f32 1.0, %v4649
    %v4651 = vmul.f32 %v4648, %v4650
    %v4652 = vadd.f32 %v4648, %v4651
    %vm4653 = vweird.f32 %v4647
    %vm4654 = vweird.f32 %v4648
    %vm4655 = vmor %vm4653, %vm4654
    %v4656 = vsel %vm4655, %v4648, %v4652
    %v4657 = vand.u32 2147483647, %v4647
    %vm4658 = vcmp.eq.f32.partialorder %v4657, 8.507059e+37
    %v4659 = vand.u32 %v4647, 2147483648
    %v4660 = vor.u32 1.1754944e-38, %v4659
    %v4661 = vsel %vm4658, %v4660, %v4656
    %v4662 = vmul.f32 1.0, %v4661
    %v4663 = vxor.u32 %v4562, 2147483648
    %v4664 = vmul.f32 %v4663, 1.442695
    %v4665 = vpow.pop %v4664
    %v4666 = vadd.f32 %v4665, 1.0
    %v4667 = vrcp.pop %v4666
    %v4668 = vmul.f32 %v4666, %v4667
    %v4669 = vsub.f32 1.0, %v4668
    %v4670 = vmul.f32 %v4667, %v4669
    %v4671 = vadd.f32 %v4667, %v4670
    %vm4672 = vweird.f32 %v4666
    %vm4673 = vweird.f32 %v4667
    %vm4674 = vmor %vm4672, %vm4673
    %v4675 = vsel %vm4674, %v4667, %v4671
    %v4676 = vand.u32 2147483647, %v4666
    %vm4677 = vcmp.eq.f32.partialorder %v4676, 8.507059e+37
    %v4678 = vand.u32 %v4666, 2147483648
    %v4679 = vor.u32 1.1754944e-38, %v4678
    %v4680 = vsel %vm4677, %v4679, %v4675
    %v4681 = vmul.f32 1.0, %v4680
    %v4682 = vtanh.pop %v4602
    %v4683 = vxor.u32 %v4642, 2147483648
    %v4684 = vmul.f32 %v4683, 1.442695
    %v4685 = vpow.pop %v4684
    %v4686 = vadd.f32 %v4685, 1.0
    %v4687 = vrcp.pop %v4686
    %v4688 = vmul.f32 %v4686, %v4687
    %v4689 = vsub.f32 1.0, %v4688
    %v4690 = vmul.f32 %v4687, %v4689
    %v4691 = vadd.f32 %v4687, %v4690
    %vm4692 = vweird.f32 %v4686
    %vm4693 = vweird.f32 %v4687
    %vm4694 = vmor %vm4692, %vm4693
    %v4695 = vsel %vm4694, %v4687, %v4691
    %v4696 = vand.u32 2147483647, %v4686
    %vm4697 = vcmp.eq.f32.partialorder %v4696, 8.507059e+37
    %v4698 = vand.u32 %v4686, 2147483648
    %v4699 = vor.u32 1.1754944e-38, %v4698
    %v4700 = vsel %vm4697, %v4699, %v4695
    %v4701 = vmul.f32 1.0, %v4700
    %v4702 = vmul.f32 %v4681, %v3941
    %v4703 = vmul.f32 %v4662, %v4682
    %v4704 = vadd.f32 %v4702, %v4703
    %v4705 = vtanh.pop %v4704
    %v4706 = vmul.f32 %v4701, %v4705
    %4707 = vmatpush.msra.mxu0 %v4235
    %4708 = vmatpush.msra.mxu0 %v4234
    %4709 = vmatpush.msra.mxu0 %v4233
    %4710 = vmatpush.msra.mxu0 %v4232
    %4711 = vmatpush.msra.mxu0 %v4231
    %4712 = vmatpush.msra.mxu0 %v4230
    %4713 = vmatpush.msra.mxu0 %v4229
    %4714 = vmatpush.msra.mxu0 %v4228
    %4715 = vmatpush.msra.mxu0 %v4227
    %4716 = vmatpush.msra.mxu0 %v4226
    %4717 = vmatpush.msra.mxu0 %v4225
    %4718 = vmatpush.msra.mxu0 %v4224
    %4719 = vmatpush.msra.mxu0 %v4223
    %4720 = vmatpush.msra.mxu0 %v4222
    %4721 = vmatpush.msra.mxu0 %v4221
    %4722 = vmatpush.msra.mxu0 %v4220
    %4723 = vmatmul.f32.gmra.mxu0 %v4706
    %v4724 = vpop.f32.mrf.mxu0
    %v4725 = vadd.f32 %v4238, %v4724
    %4726 = vdwg.mxu0
    %s4727 = scalar_lea.vmem %s15, 8
    %4728 = vst [vmem:[%s4727] sm:$0xff] %v4725
    %4729 = vmax.xlane.f32.xlu0 %v4725
    %v4730 = vpop.xlane.xlu0 %4729
    %vm4731 = vcmp.eq.f32.partialorder %v4725, %v4730
    %v4732 = vsel %vm4731, %v4258, 128.0
    %4733 = vmin.xlane.f32.xlu0 %v4732
    %v4734 = vpop.xlane.xlu0 %4733
    %vm4735 = vcmp.eq.f32.partialorder %v4258, %v4734
    %v4736 = vsel %vm4735, 1, 0
    %v4737 = vcvt.s32.f32 %v4736
    %4738 = vmatpush.msra.mxu0 %v4255
    %4739 = vmatpush.msra.mxu0 %v4254
    %4740 = vmatpush.msra.mxu0 %v4253
    %4741 = vmatpush.msra.mxu0 %v4252
    %4742 = vmatpush.msra.mxu0 %v4251
    %4743 = vmatpush.msra.mxu0 %v4250
    %4744 = vmatpush.msra.mxu0 %v4249
    %4745 = vmatpush.msra.mxu0 %v4248
    %4746 = vmatpush.msra.mxu0 %v4247
    %4747 = vmatpush.msra.mxu0 %v4246
    %4748 = vmatpush.msra.mxu0 %v4245
    %4749 = vmatpush.msra.mxu0 %v4244
    %4750 = vmatpush.msra.mxu0 %v4243
    %4751 = vmatpush.msra.mxu0 %v4242
    %4752 = vmatpush.msra.mxu0 %v4241
    %4753 = vmatpush.msra.mxu0 %v4240
    %4754 = vmatmul.f32.gmra.mxu0 %v4737
    %v4755 = vpop.f32.mrf.mxu0
    %v4756 = vadd.f32 0.0, %v4755
    %4757 = vdwg.mxu0
    %4758 = vmatpush.msra.mxu0 %v4004
    %4759 = vmatpush.msra.mxu0 %v4000
    %4760 = vmatpush.msra.mxu0 %v3996
    %4761 = vmatpush.msra.mxu0 %v3992
    %4762 = vmatpush.msra.mxu0 %v3988
    %4763 = vmatpush.msra.mxu0 %v3984
    %4764 = vmatpush.msra.mxu0 %v3980
    %4765 = vmatpush.msra.mxu0 %v3976
    %4766 = vmatpush.msra.mxu0 %v3972
    %4767 = vmatpush.msra.mxu0 %v3968
    %4768 = vmatpush.msra.mxu0 %v3964
    %4769 = vmatpush.msra.mxu0 %v3960
    %4770 = vmatpush.msra.mxu0 %v3956
    %4771 = vmatpush.msra.mxu0 %v3952
    %4772 = vmatpush.msra.mxu0 %v3948
    %4773 = vmatpush.msra.mxu0 %v3944
    %4774 = vmatmul.f32.gmra.mxu0 %v4756
    %v4775 = vpop.f32.mrf.mxu0
    %v4776 = vadd.f32 %v4202, %v4775
    %4777 = vdwg.mxu0
    %4778 = vmatpush.msra.mxu0 %v4068
    %4779 = vmatpush.msra.mxu0 %v4064
    %4780 = vmatpush.msra.mxu0 %v4060
    %4781 = vmatpush.msra.mxu0 %v4056
    %4782 = vmatpush.msra.mxu0 %v4052
    %4783 = vmatpush.msra.mxu0 %v4048
    %4784 = vmatpush.msra.mxu0 %v4044
    %4785 = vmatpush.msra.mxu0 %v4040
    %4786 = vmatpush.msra.mxu0 %v4036
    %4787 = vmatpush.msra.mxu0 %v4032
    %4788 = vmatpush.msra.mxu0 %v4028
    %4789 = vmatpush.msra.mxu0 %v4024
    %4790 = vmatpush.msra.mxu0 %v4020
    %4791 = vmatpush.msra.mxu0 %v4016
    %4792 = vmatpush.msra.mxu0 %v4012
    %4793 = vmatpush.msra.mxu0 %v4008
    %4794 = vmatmul.f32.gmra.mxu0 %v4483
    %v4795 = vpop.f32.mrf.mxu0
    %v4796 = vadd.f32 %v4776, %v4795
    %4797 = vdwg.mxu0
    %4798 = vmatpush.msra.mxu0 %v4005
    %4799 = vmatpush.msra.mxu0 %v4001
    %4800 = vmatpush.msra.mxu0 %v3997
    %4801 = vmatpush.msra.mxu0 %v3993
    %4802 = vmatpush.msra.mxu0 %v3989
    %4803 = vmatpush.msra.mxu0 %v3985
    %4804 = vmatpush.msra.mxu0 %v3981
    %4805 = vmatpush.msra.mxu0 %v3977
    %4806 = vmatpush.msra.mxu0 %v3973
    %4807 = vmatpush.msra.mxu0 %v3969
    %4808 = vmatpush.msra.mxu0 %v3965
    %4809 = vmatpush.msra.mxu0 %v3961
    %4810 = vmatpush.msra.mxu0 %v3957
    %4811 = vmatpush.msra.mxu0 %v3953
    %4812 = vmatpush.msra.mxu0 %v3949
    %4813 = vmatpush.msra.mxu0 %v3945
    %4814 = vmatmul.f32.gmra.mxu0 %v4756
    %v4815 = vpop.f32.mrf.mxu0
    %v4816 = vadd.f32 %v4203, %v4815
    %4817 = vdwg.mxu0
    %4818 = vmatpush.msra.mxu0 %v4069
    %4819 = vmatpush.msra.mxu0 %v4065
    %4820 = vmatpush.msra.mxu0 %v4061
    %4821 = vmatpush.msra.mxu0 %v4057
    %4822 = vmatpush.msra.mxu0 %v4053
    %4823 = vmatpush.msra.mxu0 %v4049
    %4824 = vmatpush.msra.mxu0 %v4045
    %4825 = vmatpush.msra.mxu0 %v4041
    %4826 = vmatpush.msra.mxu0 %v4037
    %4827 = vmatpush.msra.mxu0 %v4033
    %4828 = vmatpush.msra.mxu0 %v4029
    %4829 = vmatpush.msra.mxu0 %v4025
    %4830 = vmatpush.msra.mxu0 %v4021
    %4831 = vmatpush.msra.mxu0 %v4017
    %4832 = vmatpush.msra.mxu0 %v4013
    %4833 = vmatpush.msra.mxu0 %v4009
    %4834 = vmatmul.f32.gmra.mxu0 %v4483
    %v4835 = vpop.f32.mrf.mxu0
    %v4836 = vadd.f32 %v4816, %v4835
    %4837 = vdwg.mxu0
    %4838 = vmatpush.msra.mxu0 %v4006
    %4839 = vmatpush.msra.mxu0 %v4002
    %4840 = vmatpush.msra.mxu0 %v3998
    %4841 = vmatpush.msra.mxu0 %v3994
    %4842 = vmatpush.msra.mxu0 %v3990
    %4843 = vmatpush.msra.mxu0 %v3986
    %4844 = vmatpush.msra.mxu0 %v3982
    %4845 = vmatpush.msra.mxu0 %v3978
    %4846 = vmatpush.msra.mxu0 %v3974
    %4847 = vmatpush.msra.mxu0 %v3970
    %4848 = vmatpush.msra.mxu0 %v3966
    %4849 = vmatpush.msra.mxu0 %v3962
    %4850 = vmatpush.msra.mxu0 %v3958
    %4851 = vmatpush.msra.mxu0 %v3954
    %4852 = vmatpush.msra.mxu0 %v3950
    %4853 = vmatpush.msra.mxu0 %v3946
    %4854 = vmatmul.f32.gmra.mxu0 %v4756
    %v4855 = vpop.f32.mrf.mxu0
    %v4856 = vadd.f32 %v4204, %v4855
    %4857 = vdwg.mxu0
    %4858 = vmatpush.msra.mxu0 %v4070
    %4859 = vmatpush.msra.mxu0 %v4066
    %4860 = vmatpush.msra.mxu0 %v4062
    %4861 = vmatpush.msra.mxu0 %v4058
    %4862 = vmatpush.msra.mxu0 %v4054
    %4863 = vmatpush.msra.mxu0 %v4050
    %4864 = vmatpush.msra.mxu0 %v4046
    %4865 = vmatpush.msra.mxu0 %v4042
    %4866 = vmatpush.msra.mxu0 %v4038
    %4867 = vmatpush.msra.mxu0 %v4034
    %4868 = vmatpush.msra.mxu0 %v4030
    %4869 = vmatpush.msra.mxu0 %v4026
    %4870 = vmatpush.msra.mxu0 %v4022
    %4871 = vmatpush.msra.mxu0 %v4018
    %4872 = vmatpush.msra.mxu0 %v4014
    %4873 = vmatpush.msra.mxu0 %v4010
    %4874 = vmatmul.f32.gmra.mxu0 %v4483
    %v4875 = vpop.f32.mrf.mxu0
    %v4876 = vadd.f32 %v4856, %v4875
    %4877 = vdwg.mxu0
    %4878 = vmatpush.msra.mxu0 %v4007
    %4879 = vmatpush.msra.mxu0 %v4003
    %4880 = vmatpush.msra.mxu0 %v3999
    %4881 = vmatpush.msra.mxu0 %v3995
    %4882 = vmatpush.msra.mxu0 %v3991
    %4883 = vmatpush.msra.mxu0 %v3987
    %4884 = vmatpush.msra.mxu0 %v3983
    %4885 = vmatpush.msra.mxu0 %v3979
    %4886 = vmatpush.msra.mxu0 %v3975
    %4887 = vmatpush.msra.mxu0 %v3971
    %4888 = vmatpush.msra.mxu0 %v3967
    %4889 = vmatpush.msra.mxu0 %v3963
    %4890 = vmatpush.msra.mxu0 %v3959
    %4891 = vmatpush.msra.mxu0 %v3955
    %4892 = vmatpush.msra.mxu0 %v3951
    %4893 = vmatpush.msra.mxu0 %v3947
    %4894 = vmatmul.f32.gmra.mxu0 %v4756
    %v4895 = vpop.f32.mrf.mxu0
    %v4896 = vadd.f32 %v4205, %v4895
    %4897 = vdwg.mxu0
    %4898 = vmatpush.msra.mxu0 %v4071
    %4899 = vmatpush.msra.mxu0 %v4067
    %4900 = vmatpush.msra.mxu0 %v4063
    %4901 = vmatpush.msra.mxu0 %v4059
    %4902 = vmatpush.msra.mxu0 %v4055
    %4903 = vmatpush.msra.mxu0 %v4051
    %4904 = vmatpush.msra.mxu0 %v4047
    %4905 = vmatpush.msra.mxu0 %v4043
    %4906 = vmatpush.msra.mxu0 %v4039
    %4907 = vmatpush.msra.mxu0 %v4035
    %4908 = vmatpush.msra.mxu0 %v4031
    %4909 = vmatpush.msra.mxu0 %v4027
    %4910 = vmatpush.msra.mxu0 %v4023
    %4911 = vmatpush.msra.mxu0 %v4019
    %4912 = vmatpush.msra.mxu0 %v4015
    %4913 = vmatpush.msra.mxu0 %v4011
    %4914 = vmatmul.f32.gmra.mxu0 %v4483
    %v4915 = vpop.f32.mrf.mxu0
    %v4916 = vadd.f32 %v4896, %v4915
    %4917 = vdwg.mxu0
    %v4918 = vxor.u32 %v4796, 2147483648
    %v4919 = vmul.f32 %v4918, 1.442695
    %v4920 = vpow.pop %v4919
    %v4921 = vadd.f32 %v4920, 1.0
    %v4922 = vrcp.pop %v4921
    %v4923 = vmul.f32 %v4921, %v4922
    %v4924 = vsub.f32 1.0, %v4923
    %v4925 = vmul.f32 %v4922, %v4924
    %v4926 = vadd.f32 %v4922, %v4925
    %vm4927 = vweird.f32 %v4921
    %vm4928 = vweird.f32 %v4922
    %vm4929 = vmor %vm4927, %vm4928
    %v4930 = vsel %vm4929, %v4922, %v4926
    %v4931 = vand.u32 2147483647, %v4921
    %vm4932 = vcmp.eq.f32.partialorder %v4931, 8.507059e+37
    %v4933 = vand.u32 %v4921, 2147483648
    %v4934 = vor.u32 1.1754944e-38, %v4933
    %v4935 = vsel %vm4932, %v4934, %v4930
    %v4936 = vmul.f32 1.0, %v4935
    %v4937 = vxor.u32 %v4836, 2147483648
    %v4938 = vmul.f32 %v4937, 1.442695
    %v4939 = vpow.pop %v4938
    %v4940 = vadd.f32 %v4939, 1.0
    %v4941 = vrcp.pop %v4940
    %v4942 = vmul.f32 %v4940, %v4941
    %v4943 = vsub.f32 1.0, %v4942
    %v4944 = vmul.f32 %v4941, %v4943
    %v4945 = vadd.f32 %v4941, %v4944
    %vm4946 = vweird.f32 %v4940
    %vm4947 = vweird.f32 %v4941
    %vm4948 = vmor %vm4946, %vm4947
    %v4949 = vsel %vm4948, %v4941, %v4945
    %v4950 = vand.u32 2147483647, %v4940
    %vm4951 = vcmp.eq.f32.partialorder %v4950, 8.507059e+37
    %v4952 = vand.u32 %v4940, 2147483648
    %v4953 = vor.u32 1.1754944e-38, %v4952
    %v4954 = vsel %vm4951, %v4953, %v4949
    %v4955 = vmul.f32 1.0, %v4954
    %v4956 = vtanh.pop %v4876
    %v4957 = vxor.u32 %v4916, 2147483648
    %v4958 = vmul.f32 %v4957, 1.442695
    %v4959 = vpow.pop %v4958
    %v4960 = vadd.f32 %v4959, 1.0
    %v4961 = vrcp.pop %v4960
    %v4962 = vmul.f32 %v4960, %v4961
    %v4963 = vsub.f32 1.0, %v4962
    %v4964 = vmul.f32 %v4961, %v4963
    %v4965 = vadd.f32 %v4961, %v4964
    %vm4966 = vweird.f32 %v4960
    %vm4967 = vweird.f32 %v4961
    %vm4968 = vmor %vm4966, %vm4967
    %v4969 = vsel %vm4968, %v4961, %v4965
    %v4970 = vand.u32 2147483647, %v4960
    %vm4971 = vcmp.eq.f32.partialorder %v4970, 8.507059e+37
    %v4972 = vand.u32 %v4960, 2147483648
    %v4973 = vor.u32 1.1754944e-38, %v4972
    %v4974 = vsel %vm4971, %v4973, %v4969
    %v4975 = vmul.f32 1.0, %v4974
    %v4976 = vmul.f32 %v4955, %v4481
    %v4977 = vmul.f32 %v4936, %v4956
    %v4978 = vadd.f32 %v4976, %v4977
    %v4979 = vtanh.pop %v4978
    %v4980 = vmul.f32 %v4975, %v4979
    %4981 = vmatpush.msra.mxu0 %v4132
    %4982 = vmatpush.msra.mxu0 %v4128
    %4983 = vmatpush.msra.mxu0 %v4124
    %4984 = vmatpush.msra.mxu0 %v4120
    %4985 = vmatpush.msra.mxu0 %v4116
    %4986 = vmatpush.msra.mxu0 %v4112
    %4987 = vmatpush.msra.mxu0 %v4108
    %4988 = vmatpush.msra.mxu0 %v4104
    %4989 = vmatpush.msra.mxu0 %v4100
    %4990 = vmatpush.msra.mxu0 %v4096
    %4991 = vmatpush.msra.mxu0 %v4092
    %4992 = vmatpush.msra.mxu0 %v4088
    %4993 = vmatpush.msra.mxu0 %v4084
    %4994 = vmatpush.msra.mxu0 %v4080
    %4995 = vmatpush.msra.mxu0 %v4076
    %4996 = vmatpush.msra.mxu0 %v4072
    %4997 = vmatmul.f32.gmra.mxu0 %v4980
    %v4998 = vpop.f32.mrf.mxu0
    %v4999 = vadd.f32 %v4212, %v4998
    %5000 = vdwg.mxu0
    %5001 = vmatpush.msra.mxu0 %v4196
    %5002 = vmatpush.msra.mxu0 %v4192
    %5003 = vmatpush.msra.mxu0 %v4188
    %5004 = vmatpush.msra.mxu0 %v4184
    %5005 = vmatpush.msra.mxu0 %v4180
    %5006 = vmatpush.msra.mxu0 %v4176
    %5007 = vmatpush.msra.mxu0 %v4172
    %5008 = vmatpush.msra.mxu0 %v4168
    %5009 = vmatpush.msra.mxu0 %v4164
    %5010 = vmatpush.msra.mxu0 %v4160
    %5011 = vmatpush.msra.mxu0 %v4156
    %5012 = vmatpush.msra.mxu0 %v4152
    %5013 = vmatpush.msra.mxu0 %v4148
    %5014 = vmatpush.msra.mxu0 %v4144
    %5015 = vmatpush.msra.mxu0 %v4140
    %5016 = vmatpush.msra.mxu0 %v4136
    %5017 = vmatmul.f32.gmra.mxu0 %v4706
    %v5018 = vpop.f32.mrf.mxu0
    %v5019 = vadd.f32 %v4999, %v5018
    %5020 = vdwg.mxu0
    %5021 = vmatpush.msra.mxu0 %v4133
    %5022 = vmatpush.msra.mxu0 %v4129
    %5023 = vmatpush.msra.mxu0 %v4125
    %5024 = vmatpush.msra.mxu0 %v4121
    %5025 = vmatpush.msra.mxu0 %v4117
    %5026 = vmatpush.msra.mxu0 %v4113
    %5027 = vmatpush.msra.mxu0 %v4109
    %5028 = vmatpush.msra.mxu0 %v4105
    %5029 = vmatpush.msra.mxu0 %v4101
    %5030 = vmatpush.msra.mxu0 %v4097
    %5031 = vmatpush.msra.mxu0 %v4093
    %5032 = vmatpush.msra.mxu0 %v4089
    %5033 = vmatpush.msra.mxu0 %v4085
    %5034 = vmatpush.msra.mxu0 %v4081
    %5035 = vmatpush.msra.mxu0 %v4077
    %5036 = vmatpush.msra.mxu0 %v4073
    %5037 = vmatmul.f32.gmra.mxu0 %v4980
    %v5038 = vpop.f32.mrf.mxu0
    %v5039 = vadd.f32 %v4213, %v5038
    %5040 = vdwg.mxu0
    %5041 = vmatpush.msra.mxu0 %v4197
    %5042 = vmatpush.msra.mxu0 %v4193
    %5043 = vmatpush.msra.mxu0 %v4189
    %5044 = vmatpush.msra.mxu0 %v4185
    %5045 = vmatpush.msra.mxu0 %v4181
    %5046 = vmatpush.msra.mxu0 %v4177
    %5047 = vmatpush.msra.mxu0 %v4173
    %5048 = vmatpush.msra.mxu0 %v4169
    %5049 = vmatpush.msra.mxu0 %v4165
    %5050 = vmatpush.msra.mxu0 %v4161
    %5051 = vmatpush.msra.mxu0 %v4157
    %5052 = vmatpush.msra.mxu0 %v4153
    %5053 = vmatpush.msra.mxu0 %v4149
    %5054 = vmatpush.msra.mxu0 %v4145
    %5055 = vmatpush.msra.mxu0 %v4141
    %5056 = vmatpush.msra.mxu0 %v4137
    %5057 = vmatmul.f32.gmra.mxu0 %v4706
    %v5058 = vpop.f32.mrf.mxu0
    %v5059 = vadd.f32 %v5039, %v5058
    %5060 = vdwg.mxu0
    %5061 = vmatpush.msra.mxu0 %v4134
    %5062 = vmatpush.msra.mxu0 %v4130
    %5063 = vmatpush.msra.mxu0 %v4126
    %5064 = vmatpush.msra.mxu0 %v4122
    %5065 = vmatpush.msra.mxu0 %v4118
    %5066 = vmatpush.msra.mxu0 %v4114
    %5067 = vmatpush.msra.mxu0 %v4110
    %5068 = vmatpush.msra.mxu0 %v4106
    %5069 = vmatpush.msra.mxu0 %v4102
    %5070 = vmatpush.msra.mxu0 %v4098
    %5071 = vmatpush.msra.mxu0 %v4094
    %5072 = vmatpush.msra.mxu0 %v4090
    %5073 = vmatpush.msra.mxu0 %v4086
    %5074 = vmatpush.msra.mxu0 %v4082
    %5075 = vmatpush.msra.mxu0 %v4078
    %5076 = vmatpush.msra.mxu0 %v4074
    %5077 = vmatmul.f32.gmra.mxu0 %v4980
    %v5078 = vpop.f32.mrf.mxu0
    %v5079 = vadd.f32 %v4214, %v5078
    %5080 = vdwg.mxu0
    %5081 = vmatpush.msra.mxu0 %v4198
    %5082 = vmatpush.msra.mxu0 %v4194
    %5083 = vmatpush.msra.mxu0 %v4190
    %5084 = vmatpush.msra.mxu0 %v4186
    %5085 = vmatpush.msra.mxu0 %v4182
    %5086 = vmatpush.msra.mxu0 %v4178
    %5087 = vmatpush.msra.mxu0 %v4174
    %5088 = vmatpush.msra.mxu0 %v4170
    %5089 = vmatpush.msra.mxu0 %v4166
    %5090 = vmatpush.msra.mxu0 %v4162
    %5091 = vmatpush.msra.mxu0 %v4158
    %5092 = vmatpush.msra.mxu0 %v4154
    %5093 = vmatpush.msra.mxu0 %v4150
    %5094 = vmatpush.msra.mxu0 %v4146
    %5095 = vmatpush.msra.mxu0 %v4142
    %5096 = vmatpush.msra.mxu0 %v4138
    %5097 = vmatmul.f32.gmra.mxu0 %v4706
    %v5098 = vpop.f32.mrf.mxu0
    %v5099 = vadd.f32 %v5079, %v5098
    %5100 = vdwg.mxu0
    %5101 = vmatpush.msra.mxu0 %v4135
    %5102 = vmatpush.msra.mxu0 %v4131
    %5103 = vmatpush.msra.mxu0 %v4127
    %5104 = vmatpush.msra.mxu0 %v4123
    %5105 = vmatpush.msra.mxu0 %v4119
    %5106 = vmatpush.msra.mxu0 %v4115
    %5107 = vmatpush.msra.mxu0 %v4111
    %5108 = vmatpush.msra.mxu0 %v4107
    %5109 = vmatpush.msra.mxu0 %v4103
    %5110 = vmatpush.msra.mxu0 %v4099
    %5111 = vmatpush.msra.mxu0 %v4095
    %5112 = vmatpush.msra.mxu0 %v4091
    %5113 = vmatpush.msra.mxu0 %v4087
    %5114 = vmatpush.msra.mxu0 %v4083
    %5115 = vmatpush.msra.mxu0 %v4079
    %5116 = vmatpush.msra.mxu0 %v4075
    %5117 = vmatmul.f32.gmra.mxu0 %v4980
    %v5118 = vpop.f32.mrf.mxu0
    %v5119 = vadd.f32 %v4215, %v5118
    %5120 = vdwg.mxu0
    %5121 = vmatpush.msra.mxu0 %v4199
    %5122 = vmatpush.msra.mxu0 %v4195
    %5123 = vmatpush.msra.mxu0 %v4191
    %5124 = vmatpush.msra.mxu0 %v4187
    %5125 = vmatpush.msra.mxu0 %v4183
    %5126 = vmatpush.msra.mxu0 %v4179
    %5127 = vmatpush.msra.mxu0 %v4175
    %5128 = vmatpush.msra.mxu0 %v4171
    %5129 = vmatpush.msra.mxu0 %v4167
    %5130 = vmatpush.msra.mxu0 %v4163
    %5131 = vmatpush.msra.mxu0 %v4159
    %5132 = vmatpush.msra.mxu0 %v4155
    %5133 = vmatpush.msra.mxu0 %v4151
    %5134 = vmatpush.msra.mxu0 %v4147
    %5135 = vmatpush.msra.mxu0 %v4143
    %5136 = vmatpush.msra.mxu0 %v4139
    %5137 = vmatmul.f32.gmra.mxu0 %v4706
    %v5138 = vpop.f32.mrf.mxu0
    %v5139 = vadd.f32 %v5119, %v5138
    %5140 = vdwg.mxu0
    %v5141 = vxor.u32 %v5019, 2147483648
    %v5142 = vmul.f32 %v5141, 1.442695
    %v5143 = vpow.pop %v5142
    %v5144 = vadd.f32 %v5143, 1.0
    %v5145 = vrcp.pop %v5144
    %v5146 = vmul.f32 %v5144, %v5145
    %v5147 = vsub.f32 1.0, %v5146
    %v5148 = vmul.f32 %v5145, %v5147
    %v5149 = vadd.f32 %v5145, %v5148
    %vm5150 = vweird.f32 %v5144
    %vm5151 = vweird.f32 %v5145
    %vm5152 = vmor %vm5150, %vm5151
    %v5153 = vsel %vm5152, %v5145, %v5149
    %v5154 = vand.u32 2147483647, %v5144
    %vm5155 = vcmp.eq.f32.partialorder %v5154, 8.507059e+37
    %v5156 = vand.u32 %v5144, 2147483648
    %v5157 = vor.u32 1.1754944e-38, %v5156
    %v5158 = vsel %vm5155, %v5157, %v5153
    %v5159 = vmul.f32 1.0, %v5158
    %v5160 = vxor.u32 %v5059, 2147483648
    %v5161 = vmul.f32 %v5160, 1.442695
    %v5162 = vpow.pop %v5161
    %v5163 = vadd.f32 %v5162, 1.0
    %v5164 = vrcp.pop %v5163
    %v5165 = vmul.f32 %v5163, %v5164
    %v5166 = vsub.f32 1.0, %v5165
    %v5167 = vmul.f32 %v5164, %v5166
    %v5168 = vadd.f32 %v5164, %v5167
    %vm5169 = vweird.f32 %v5163
    %vm5170 = vweird.f32 %v5164
    %vm5171 = vmor %vm5169, %vm5170
    %v5172 = vsel %vm5171, %v5164, %v5168
    %v5173 = vand.u32 2147483647, %v5163
    %vm5174 = vcmp.eq.f32.partialorder %v5173, 8.507059e+37
    %v5175 = vand.u32 %v5163, 2147483648
    %v5176 = vor.u32 1.1754944e-38, %v5175
    %v5177 = vsel %vm5174, %v5176, %v5172
    %v5178 = vmul.f32 1.0, %v5177
    %v5179 = vtanh.pop %v5099
    %v5180 = vxor.u32 %v5139, 2147483648
    %v5181 = vmul.f32 %v5180, 1.442695
    %v5182 = vpow.pop %v5181
    %v5183 = vadd.f32 %v5182, 1.0
    %v5184 = vrcp.pop %v5183
    %v5185 = vmul.f32 %v5183, %v5184
    %v5186 = vsub.f32 1.0, %v5185
    %v5187 = vmul.f32 %v5184, %v5186
    %v5188 = vadd.f32 %v5184, %v5187
    %vm5189 = vweird.f32 %v5183
    %vm5190 = vweird.f32 %v5184
    %vm5191 = vmor %vm5189, %vm5190
    %v5192 = vsel %vm5191, %v5184, %v5188
    %v5193 = vand.u32 2147483647, %v5183
    %vm5194 = vcmp.eq.f32.partialorder %v5193, 8.507059e+37
    %v5195 = vand.u32 %v5183, 2147483648
    %v5196 = vor.u32 1.1754944e-38, %v5195
    %v5197 = vsel %vm5194, %v5196, %v5192
    %v5198 = vmul.f32 1.0, %v5197
    %v5199 = vmul.f32 %v5178, %v4704
    %v5200 = vmul.f32 %v5159, %v5179
    %v5201 = vadd.f32 %v5199, %v5200
    %v5202 = vtanh.pop %v5201
    %v5203 = vmul.f32 %v5198, %v5202
    %5204 = vmatpush.msra.mxu0 %v4235
    %5205 = vmatpush.msra.mxu0 %v4234
    %5206 = vmatpush.msra.mxu0 %v4233
    %5207 = vmatpush.msra.mxu0 %v4232
    %5208 = vmatpush.msra.mxu0 %v4231
    %5209 = vmatpush.msra.mxu0 %v4230
    %5210 = vmatpush.msra.mxu0 %v4229
    %5211 = vmatpush.msra.mxu0 %v4228
    %5212 = vmatpush.msra.mxu0 %v4227
    %5213 = vmatpush.msra.mxu0 %v4226
    %5214 = vmatpush.msra.mxu0 %v4225
    %5215 = vmatpush.msra.mxu0 %v4224
    %5216 = vmatpush.msra.mxu0 %v4223
    %5217 = vmatpush.msra.mxu0 %v4222
    %5218 = vmatpush.msra.mxu0 %v4221
    %5219 = vmatpush.msra.mxu0 %v4220
    %5220 = vmatmul.f32.gmra.mxu0 %v5203
    %v5221 = vpop.f32.mrf.mxu0
    %v5222 = vadd.f32 %v4238, %v5221
    %5223 = vdwg.mxu0
    %s5224 = scalar_lea.vmem %s15, 16
    %5225 = vst [vmem:[%s5224] sm:$0xff] %v5222
    %5226 = vmax.xlane.f32.xlu0 %v5222
    %v5227 = vpop.xlane.xlu0 %5226
    %vm5228 = vcmp.eq.f32.partialorder %v5222, %v5227
    %v5229 = vsel %vm5228, %v4258, 128.0
    %5230 = vmin.xlane.f32.xlu0 %v5229
    %v5231 = vpop.xlane.xlu0 %5230
    %vm5232 = vcmp.eq.f32.partialorder %v4258, %v5231
    %v5233 = vsel %vm5232, 1, 0
    %v5234 = vcvt.s32.f32 %v5233
    %5235 = vmatpush.msra.mxu0 %v4255
    %5236 = vmatpush.msra.mxu0 %v4254
    %5237 = vmatpush.msra.mxu0 %v4253
    %5238 = vmatpush.msra.mxu0 %v4252
    %5239 = vmatpush.msra.mxu0 %v4251
    %5240 = vmatpush.msra.mxu0 %v4250
    %5241 = vmatpush.msra.mxu0 %v4249
    %5242 = vmatpush.msra.mxu0 %v4248
    %5243 = vmatpush.msra.mxu0 %v4247
    %5244 = vmatpush.msra.mxu0 %v4246
    %5245 = vmatpush.msra.mxu0 %v4245
    %5246 = vmatpush.msra.mxu0 %v4244
    %5247 = vmatpush.msra.mxu0 %v4243
    %5248 = vmatpush.msra.mxu0 %v4242
    %5249 = vmatpush.msra.mxu0 %v4241
    %5250 = vmatpush.msra.mxu0 %v4240
    %5251 = vmatmul.f32.gmra.mxu0 %v5234
    %v5252 = vpop.f32.mrf.mxu0
    %v5253 = vadd.f32 0.0, %v5252
    %5254 = vdwg.mxu0
    %5255 = vmatpush.msra.mxu0 %v4004
    %5256 = vmatpush.msra.mxu0 %v4000
    %5257 = vmatpush.msra.mxu0 %v3996
    %5258 = vmatpush.msra.mxu0 %v3992
    %5259 = vmatpush.msra.mxu0 %v3988
    %5260 = vmatpush.msra.mxu0 %v3984
    %5261 = vmatpush.msra.mxu0 %v3980
    %5262 = vmatpush.msra.mxu0 %v3976
    %5263 = vmatpush.msra.mxu0 %v3972
    %5264 = vmatpush.msra.mxu0 %v3968
    %5265 = vmatpush.msra.mxu0 %v3964
    %5266 = vmatpush.msra.mxu0 %v3960
    %5267 = vmatpush.msra.mxu0 %v3956
    %5268 = vmatpush.msra.mxu0 %v3952
    %5269 = vmatpush.msra.mxu0 %v3948
    %5270 = vmatpush.msra.mxu0 %v3944
    %5271 = vmatmul.f32.gmra.mxu0 %v5253
    %v5272 = vpop.f32.mrf.mxu0
    %v5273 = vadd.f32 %v4202, %v5272
    %5274 = vdwg.mxu0
    %5275 = vmatpush.msra.mxu0 %v4068
    %5276 = vmatpush.msra.mxu0 %v4064
    %5277 = vmatpush.msra.mxu0 %v4060
    %5278 = vmatpush.msra.mxu0 %v4056
    %5279 = vmatpush.msra.mxu0 %v4052
    %5280 = vmatpush.msra.mxu0 %v4048
    %5281 = vmatpush.msra.mxu0 %v4044
    %5282 = vmatpush.msra.mxu0 %v4040
    %5283 = vmatpush.msra.mxu0 %v4036
    %5284 = vmatpush.msra.mxu0 %v4032
    %5285 = vmatpush.msra.mxu0 %v4028
    %5286 = vmatpush.msra.mxu0 %v4024
    %5287 = vmatpush.msra.mxu0 %v4020
    %5288 = vmatpush.msra.mxu0 %v4016
    %5289 = vmatpush.msra.mxu0 %v4012
    %5290 = vmatpush.msra.mxu0 %v4008
    %5291 = vmatmul.f32.gmra.mxu0 %v4980
    %v5292 = vpop.f32.mrf.mxu0
    %v5293 = vadd.f32 %v5273, %v5292
    %5294 = vdwg.mxu0
    %5295 = vmatpush.msra.mxu0 %v4005
    %5296 = vmatpush.msra.mxu0 %v4001
    %5297 = vmatpush.msra.mxu0 %v3997
    %5298 = vmatpush.msra.mxu0 %v3993
    %5299 = vmatpush.msra.mxu0 %v3989
    %5300 = vmatpush.msra.mxu0 %v3985
    %5301 = vmatpush.msra.mxu0 %v3981
    %5302 = vmatpush.msra.mxu0 %v3977
    %5303 = vmatpush.msra.mxu0 %v3973
    %5304 = vmatpush.msra.mxu0 %v3969
    %5305 = vmatpush.msra.mxu0 %v3965
    %5306 = vmatpush.msra.mxu0 %v3961
    %5307 = vmatpush.msra.mxu0 %v3957
    %5308 = vmatpush.msra.mxu0 %v3953
    %5309 = vmatpush.msra.mxu0 %v3949
    %5310 = vmatpush.msra.mxu0 %v3945
    %5311 = vmatmul.f32.gmra.mxu0 %v5253
    %v5312 = vpop.f32.mrf.mxu0
    %v5313 = vadd.f32 %v4203, %v5312
    %5314 = vdwg.mxu0
    %5315 = vmatpush.msra.mxu0 %v4069
    %5316 = vmatpush.msra.mxu0 %v4065
    %5317 = vmatpush.msra.mxu0 %v4061
    %5318 = vmatpush.msra.mxu0 %v4057
    %5319 = vmatpush.msra.mxu0 %v4053
    %5320 = vmatpush.msra.mxu0 %v4049
    %5321 = vmatpush.msra.mxu0 %v4045
    %5322 = vmatpush.msra.mxu0 %v4041
    %5323 = vmatpush.msra.mxu0 %v4037
    %5324 = vmatpush.msra.mxu0 %v4033
    %5325 = vmatpush.msra.mxu0 %v4029
    %5326 = vmatpush.msra.mxu0 %v4025
    %5327 = vmatpush.msra.mxu0 %v4021
    %5328 = vmatpush.msra.mxu0 %v4017
    %5329 = vmatpush.msra.mxu0 %v4013
    %5330 = vmatpush.msra.mxu0 %v4009
    %5331 = vmatmul.f32.gmra.mxu0 %v4980
    %v5332 = vpop.f32.mrf.mxu0
    %v5333 = vadd.f32 %v5313, %v5332
    %5334 = vdwg.mxu0
    %5335 = vmatpush.msra.mxu0 %v4006
    %5336 = vmatpush.msra.mxu0 %v4002
    %5337 = vmatpush.msra.mxu0 %v3998
    %5338 = vmatpush.msra.mxu0 %v3994
    %5339 = vmatpush.msra.mxu0 %v3990
    %5340 = vmatpush.msra.mxu0 %v3986
    %5341 = vmatpush.msra.mxu0 %v3982
    %5342 = vmatpush.msra.mxu0 %v3978
    %5343 = vmatpush.msra.mxu0 %v3974
    %5344 = vmatpush.msra.mxu0 %v3970
    %5345 = vmatpush.msra.mxu0 %v3966
    %5346 = vmatpush.msra.mxu0 %v3962
    %5347 = vmatpush.msra.mxu0 %v3958
    %5348 = vmatpush.msra.mxu0 %v3954
    %5349 = vmatpush.msra.mxu0 %v3950
    %5350 = vmatpush.msra.mxu0 %v3946
    %5351 = vmatmul.f32.gmra.mxu0 %v5253
    %v5352 = vpop.f32.mrf.mxu0
    %v5353 = vadd.f32 %v4204, %v5352
    %5354 = vdwg.mxu0
    %5355 = vmatpush.msra.mxu0 %v4070
    %5356 = vmatpush.msra.mxu0 %v4066
    %5357 = vmatpush.msra.mxu0 %v4062
    %5358 = vmatpush.msra.mxu0 %v4058
    %5359 = vmatpush.msra.mxu0 %v4054
    %5360 = vmatpush.msra.mxu0 %v4050
    %5361 = vmatpush.msra.mxu0 %v4046
    %5362 = vmatpush.msra.mxu0 %v4042
    %5363 = vmatpush.msra.mxu0 %v4038
    %5364 = vmatpush.msra.mxu0 %v4034
    %5365 = vmatpush.msra.mxu0 %v4030
    %5366 = vmatpush.msra.mxu0 %v4026
    %5367 = vmatpush.msra.mxu0 %v4022
    %5368 = vmatpush.msra.mxu0 %v4018
    %5369 = vmatpush.msra.mxu0 %v4014
    %5370 = vmatpush.msra.mxu0 %v4010
    %5371 = vmatmul.f32.gmra.mxu0 %v4980
    %v5372 = vpop.f32.mrf.mxu0
    %v5373 = vadd.f32 %v5353, %v5372
    %5374 = vdwg.mxu0
    %5375 = vmatpush.msra.mxu0 %v4007
    %5376 = vmatpush.msra.mxu0 %v4003
    %5377 = vmatpush.msra.mxu0 %v3999
    %5378 = vmatpush.msra.mxu0 %v3995
    %5379 = vmatpush.msra.mxu0 %v3991
    %5380 = vmatpush.msra.mxu0 %v3987
    %5381 = vmatpush.msra.mxu0 %v3983
    %5382 = vmatpush.msra.mxu0 %v3979
    %5383 = vmatpush.msra.mxu0 %v3975
    %5384 = vmatpush.msra.mxu0 %v3971
    %5385 = vmatpush.msra.mxu0 %v3967
    %5386 = vmatpush.msra.mxu0 %v3963
    %5387 = vmatpush.msra.mxu0 %v3959
    %5388 = vmatpush.msra.mxu0 %v3955
    %5389 = vmatpush.msra.mxu0 %v3951
    %5390 = vmatpush.msra.mxu0 %v3947
    %5391 = vmatmul.f32.gmra.mxu0 %v5253
    %v5392 = vpop.f32.mrf.mxu0
    %v5393 = vadd.f32 %v4205, %v5392
    %5394 = vdwg.mxu0
    %5395 = vmatpush.msra.mxu0 %v4071
    %5396 = vmatpush.msra.mxu0 %v4067
    %5397 = vmatpush.msra.mxu0 %v4063
    %5398 = vmatpush.msra.mxu0 %v4059
    %5399 = vmatpush.msra.mxu0 %v4055
    %5400 = vmatpush.msra.mxu0 %v4051
    %5401 = vmatpush.msra.mxu0 %v4047
    %5402 = vmatpush.msra.mxu0 %v4043
    %5403 = vmatpush.msra.mxu0 %v4039
    %5404 = vmatpush.msra.mxu0 %v4035
    %5405 = vmatpush.msra.mxu0 %v4031
    %5406 = vmatpush.msra.mxu0 %v4027
    %5407 = vmatpush.msra.mxu0 %v4023
    %5408 = vmatpush.msra.mxu0 %v4019
    %5409 = vmatpush.msra.mxu0 %v4015
    %5410 = vmatpush.msra.mxu0 %v4011
    %5411 = vmatmul.f32.gmra.mxu0 %v4980
    %v5412 = vpop.f32.mrf.mxu0
    %v5413 = vadd.f32 %v5393, %v5412
    %5414 = vdwg.mxu0
    %v5415 = vxor.u32 %v5293, 2147483648
    %v5416 = vmul.f32 %v5415, 1.442695
    %v5417 = vpow.pop %v5416
    %v5418 = vadd.f32 %v5417, 1.0
    %v5419 = vrcp.pop %v5418
    %v5420 = vmul.f32 %v5418, %v5419
    %v5421 = vsub.f32 1.0, %v5420
    %v5422 = vmul.f32 %v5419, %v5421
    %v5423 = vadd.f32 %v5419, %v5422
    %vm5424 = vweird.f32 %v5418
    %vm5425 = vweird.f32 %v5419
    %vm5426 = vmor %vm5424, %vm5425
    %v5427 = vsel %vm5426, %v5419, %v5423
    %v5428 = vand.u32 2147483647, %v5418
    %vm5429 = vcmp.eq.f32.partialorder %v5428, 8.507059e+37
    %v5430 = vand.u32 %v5418, 2147483648
    %v5431 = vor.u32 1.1754944e-38, %v5430
    %v5432 = vsel %vm5429, %v5431, %v5427
    %v5433 = vmul.f32 1.0, %v5432
    %v5434 = vxor.u32 %v5333, 2147483648
    %v5435 = vmul.f32 %v5434, 1.442695
    %v5436 = vpow.pop %v5435
    %v5437 = vadd.f32 %v5436, 1.0
    %v5438 = vrcp.pop %v5437
    %v5439 = vmul.f32 %v5437, %v5438
    %v5440 = vsub.f32 1.0, %v5439
    %v5441 = vmul.f32 %v5438, %v5440
    %v5442 = vadd.f32 %v5438, %v5441
    %vm5443 = vweird.f32 %v5437
    %vm5444 = vweird.f32 %v5438
    %vm5445 = vmor %vm5443, %vm5444
    %v5446 = vsel %vm5445, %v5438, %v5442
    %v5447 = vand.u32 2147483647, %v5437
    %vm5448 = vcmp.eq.f32.partialorder %v5447, 8.507059e+37
    %v5449 = vand.u32 %v5437, 2147483648
    %v5450 = vor.u32 1.1754944e-38, %v5449
    %v5451 = vsel %vm5448, %v5450, %v5446
    %v5452 = vmul.f32 1.0, %v5451
    %v5453 = vtanh.pop %v5373
    %v5454 = vxor.u32 %v5413, 2147483648
    %v5455 = vmul.f32 %v5454, 1.442695
    %v5456 = vpow.pop %v5455
    %v5457 = vadd.f32 %v5456, 1.0
    %v5458 = vrcp.pop %v5457
    %v5459 = vmul.f32 %v5457, %v5458
    %v5460 = vsub.f32 1.0, %v5459
    %v5461 = vmul.f32 %v5458, %v5460
    %v5462 = vadd.f32 %v5458, %v5461
    %vm5463 = vweird.f32 %v5457
    %vm5464 = vweird.f32 %v5458
    %vm5465 = vmor %vm5463, %vm5464
    %v5466 = vsel %vm5465, %v5458, %v5462
    %v5467 = vand.u32 2147483647, %v5457
    %vm5468 = vcmp.eq.f32.partialorder %v5467, 8.507059e+37
    %v5469 = vand.u32 %v5457, 2147483648
    %v5470 = vor.u32 1.1754944e-38, %v5469
    %v5471 = vsel %vm5468, %v5470, %v5466
    %v5472 = vmul.f32 1.0, %v5471
    %v5473 = vmul.f32 %v5452, %v4978
    %v5474 = vmul.f32 %v5433, %v5453
    %v5475 = vadd.f32 %v5473, %v5474
    %v5476 = vtanh.pop %v5475
    %v5477 = vmul.f32 %v5472, %v5476
    %5478 = vmatpush.msra.mxu0 %v4132
    %5479 = vmatpush.msra.mxu0 %v4128
    %5480 = vmatpush.msra.mxu0 %v4124
    %5481 = vmatpush.msra.mxu0 %v4120
    %5482 = vmatpush.msra.mxu0 %v4116
    %5483 = vmatpush.msra.mxu0 %v4112
    %5484 = vmatpush.msra.mxu0 %v4108
    %5485 = vmatpush.msra.mxu0 %v4104
    %5486 = vmatpush.msra.mxu0 %v4100
    %5487 = vmatpush.msra.mxu0 %v4096
    %5488 = vmatpush.msra.mxu0 %v4092
    %5489 = vmatpush.msra.mxu0 %v4088
    %5490 = vmatpush.msra.mxu0 %v4084
    %5491 = vmatpush.msra.mxu0 %v4080
    %5492 = vmatpush.msra.mxu0 %v4076
    %5493 = vmatpush.msra.mxu0 %v4072
    %5494 = vmatmul.f32.gmra.mxu0 %v5477
    %v5495 = vpop.f32.mrf.mxu0
    %v5496 = vadd.f32 %v4212, %v5495
    %5497 = vdwg.mxu0
    %5498 = vmatpush.msra.mxu0 %v4196
    %5499 = vmatpush.msra.mxu0 %v4192
    %5500 = vmatpush.msra.mxu0 %v4188
    %5501 = vmatpush.msra.mxu0 %v4184
    %5502 = vmatpush.msra.mxu0 %v4180
    %5503 = vmatpush.msra.mxu0 %v4176
    %5504 = vmatpush.msra.mxu0 %v4172
    %5505 = vmatpush.msra.mxu0 %v4168
    %5506 = vmatpush.msra.mxu0 %v4164
    %5507 = vmatpush.msra.mxu0 %v4160
    %5508 = vmatpush.msra.mxu0 %v4156
    %5509 = vmatpush.msra.mxu0 %v4152
    %5510 = vmatpush.msra.mxu0 %v4148
    %5511 = vmatpush.msra.mxu0 %v4144
    %5512 = vmatpush.msra.mxu0 %v4140
    %5513 = vmatpush.msra.mxu0 %v4136
    %5514 = vmatmul.f32.gmra.mxu0 %v5203
    %v5515 = vpop.f32.mrf.mxu0
    %v5516 = vadd.f32 %v5496, %v5515
    %5517 = vdwg.mxu0
    %5518 = vmatpush.msra.mxu0 %v4133
    %5519 = vmatpush.msra.mxu0 %v4129
    %5520 = vmatpush.msra.mxu0 %v4125
    %5521 = vmatpush.msra.mxu0 %v4121
    %5522 = vmatpush.msra.mxu0 %v4117
    %5523 = vmatpush.msra.mxu0 %v4113
    %5524 = vmatpush.msra.mxu0 %v4109
    %5525 = vmatpush.msra.mxu0 %v4105
    %5526 = vmatpush.msra.mxu0 %v4101
    %5527 = vmatpush.msra.mxu0 %v4097
    %5528 = vmatpush.msra.mxu0 %v4093
    %5529 = vmatpush.msra.mxu0 %v4089
    %5530 = vmatpush.msra.mxu0 %v4085
    %5531 = vmatpush.msra.mxu0 %v4081
    %5532 = vmatpush.msra.mxu0 %v4077
    %5533 = vmatpush.msra.mxu0 %v4073
    %5534 = vmatmul.f32.gmra.mxu0 %v5477
    %v5535 = vpop.f32.mrf.mxu0
    %v5536 = vadd.f32 %v4213, %v5535
    %5537 = vdwg.mxu0
    %5538 = vmatpush.msra.mxu0 %v4197
    %5539 = vmatpush.msra.mxu0 %v4193
    %5540 = vmatpush.msra.mxu0 %v4189
    %5541 = vmatpush.msra.mxu0 %v4185
    %5542 = vmatpush.msra.mxu0 %v4181
    %5543 = vmatpush.msra.mxu0 %v4177
    %5544 = vmatpush.msra.mxu0 %v4173
    %5545 = vmatpush.msra.mxu0 %v4169
    %5546 = vmatpush.msra.mxu0 %v4165
    %5547 = vmatpush.msra.mxu0 %v4161
    %5548 = vmatpush.msra.mxu0 %v4157
    %5549 = vmatpush.msra.mxu0 %v4153
    %5550 = vmatpush.msra.mxu0 %v4149
    %5551 = vmatpush.msra.mxu0 %v4145
    %5552 = vmatpush.msra.mxu0 %v4141
    %5553 = vmatpush.msra.mxu0 %v4137
    %5554 = vmatmul.f32.gmra.mxu0 %v5203
    %v5555 = vpop.f32.mrf.mxu0
    %v5556 = vadd.f32 %v5536, %v5555
    %5557 = vdwg.mxu0
    %5558 = vmatpush.msra.mxu0 %v4134
    %5559 = vmatpush.msra.mxu0 %v4130
    %5560 = vmatpush.msra.mxu0 %v4126
    %5561 = vmatpush.msra.mxu0 %v4122
    %5562 = vmatpush.msra.mxu0 %v4118
    %5563 = vmatpush.msra.mxu0 %v4114
    %5564 = vmatpush.msra.mxu0 %v4110
    %5565 = vmatpush.msra.mxu0 %v4106
    %5566 = vmatpush.msra.mxu0 %v4102
    %5567 = vmatpush.msra.mxu0 %v4098
    %5568 = vmatpush.msra.mxu0 %v4094
    %5569 = vmatpush.msra.mxu0 %v4090
    %5570 = vmatpush.msra.mxu0 %v4086
    %5571 = vmatpush.msra.mxu0 %v4082
    %5572 = vmatpush.msra.mxu0 %v4078
    %5573 = vmatpush.msra.mxu0 %v4074
    %5574 = vmatmul.f32.gmra.mxu0 %v5477
    %v5575 = vpop.f32.mrf.mxu0
    %v5576 = vadd.f32 %v4214, %v5575
    %5577 = vdwg.mxu0
    %5578 = vmatpush.msra.mxu0 %v4198
    %5579 = vmatpush.msra.mxu0 %v4194
    %5580 = vmatpush.msra.mxu0 %v4190
    %5581 = vmatpush.msra.mxu0 %v4186
    %5582 = vmatpush.msra.mxu0 %v4182
    %5583 = vmatpush.msra.mxu0 %v4178
    %5584 = vmatpush.msra.mxu0 %v4174
    %5585 = vmatpush.msra.mxu0 %v4170
    %5586 = vmatpush.msra.mxu0 %v4166
    %5587 = vmatpush.msra.mxu0 %v4162
    %5588 = vmatpush.msra.mxu0 %v4158
    %5589 = vmatpush.msra.mxu0 %v4154
    %5590 = vmatpush.msra.mxu0 %v4150
    %5591 = vmatpush.msra.mxu0 %v4146
    %5592 = vmatpush.msra.mxu0 %v4142
    %5593 = vmatpush.msra.mxu0 %v4138
    %5594 = vmatmul.f32.gmra.mxu0 %v5203
    %v5595 = vpop.f32.mrf.mxu0
    %v5596 = vadd.f32 %v5576, %v5595
    %5597 = vdwg.mxu0
    %5598 = vmatpush.msra.mxu0 %v4135
    %5599 = vmatpush.msra.mxu0 %v4131
    %5600 = vmatpush.msra.mxu0 %v4127
    %5601 = vmatpush.msra.mxu0 %v4123
    %5602 = vmatpush.msra.mxu0 %v4119
    %5603 = vmatpush.msra.mxu0 %v4115
    %5604 = vmatpush.msra.mxu0 %v4111
    %5605 = vmatpush.msra.mxu0 %v4107
    %5606 = vmatpush.msra.mxu0 %v4103
    %5607 = vmatpush.msra.mxu0 %v4099
    %5608 = vmatpush.msra.mxu0 %v4095
    %5609 = vmatpush.msra.mxu0 %v4091
    %5610 = vmatpush.msra.mxu0 %v4087
    %5611 = vmatpush.msra.mxu0 %v4083
    %5612 = vmatpush.msra.mxu0 %v4079
    %5613 = vmatpush.msra.mxu0 %v4075
    %5614 = vmatmul.f32.gmra.mxu0 %v5477
    %v5615 = vpop.f32.mrf.mxu0
    %v5616 = vadd.f32 %v4215, %v5615
    %5617 = vdwg.mxu0
    %5618 = vmatpush.msra.mxu0 %v4199
    %5619 = vmatpush.msra.mxu0 %v4195
    %5620 = vmatpush.msra.mxu0 %v4191
    %5621 = vmatpush.msra.mxu0 %v4187
    %5622 = vmatpush.msra.mxu0 %v4183
    %5623 = vmatpush.msra.mxu0 %v4179
    %5624 = vmatpush.msra.mxu0 %v4175
    %5625 = vmatpush.msra.mxu0 %v4171
    %5626 = vmatpush.msra.mxu0 %v4167
    %5627 = vmatpush.msra.mxu0 %v4163
    %5628 = vmatpush.msra.mxu0 %v4159
    %5629 = vmatpush.msra.mxu0 %v4155
    %5630 = vmatpush.msra.mxu0 %v4151
    %5631 = vmatpush.msra.mxu0 %v4147
    %5632 = vmatpush.msra.mxu0 %v4143
    %5633 = vmatpush.msra.mxu0 %v4139
    %5634 = vmatmul.f32.gmra.mxu0 %v5203
    %v5635 = vpop.f32.mrf.mxu0
    %v5636 = vadd.f32 %v5616, %v5635
    %5637 = vdwg.mxu0
    %v5638 = vxor.u32 %v5516, 2147483648
    %v5639 = vmul.f32 %v5638, 1.442695
    %v5640 = vpow.pop %v5639
    %v5641 = vadd.f32 %v5640, 1.0
    %v5642 = vrcp.pop %v5641
    %v5643 = vmul.f32 %v5641, %v5642
    %v5644 = vsub.f32 1.0, %v5643
    %v5645 = vmul.f32 %v5642, %v5644
    %v5646 = vadd.f32 %v5642, %v5645
    %vm5647 = vweird.f32 %v5641
    %vm5648 = vweird.f32 %v5642
    %vm5649 = vmor %vm5647, %vm5648
    %v5650 = vsel %vm5649, %v5642, %v5646
    %v5651 = vand.u32 2147483647, %v5641
    %vm5652 = vcmp.eq.f32.partialorder %v5651, 8.507059e+37
    %v5653 = vand.u32 %v5641, 2147483648
    %v5654 = vor.u32 1.1754944e-38, %v5653
    %v5655 = vsel %vm5652, %v5654, %v5650
    %v5656 = vmul.f32 1.0, %v5655
    %v5657 = vxor.u32 %v5556, 2147483648
    %v5658 = vmul.f32 %v5657, 1.442695
    %v5659 = vpow.pop %v5658
    %v5660 = vadd.f32 %v5659, 1.0
    %v5661 = vrcp.pop %v5660
    %v5662 = vmul.f32 %v5660, %v5661
    %v5663 = vsub.f32 1.0, %v5662
    %v5664 = vmul.f32 %v5661, %v5663
    %v5665 = vadd.f32 %v5661, %v5664
    %vm5666 = vweird.f32 %v5660
    %vm5667 = vweird.f32 %v5661
    %vm5668 = vmor %vm5666, %vm5667
    %v5669 = vsel %vm5668, %v5661, %v5665
    %v5670 = vand.u32 2147483647, %v5660
    %vm5671 = vcmp.eq.f32.partialorder %v5670, 8.507059e+37
    %v5672 = vand.u32 %v5660, 2147483648
    %v5673 = vor.u32 1.1754944e-38, %v5672
    %v5674 = vsel %vm5671, %v5673, %v5669
    %v5675 = vmul.f32 1.0, %v5674
    %v5676 = vtanh.pop %v5596
    %v5677 = vxor.u32 %v5636, 2147483648
    %v5678 = vmul.f32 %v5677, 1.442695
    %v5679 = vpow.pop %v5678
    %v5680 = vadd.f32 %v5679, 1.0
    %v5681 = vrcp.pop %v5680
    %v5682 = vmul.f32 %v5680, %v5681
    %v5683 = vsub.f32 1.0, %v5682
    %v5684 = vmul.f32 %v5681, %v5683
    %v5685 = vadd.f32 %v5681, %v5684
    %vm5686 = vweird.f32 %v5680
    %vm5687 = vweird.f32 %v5681
    %vm5688 = vmor %vm5686, %vm5687
    %v5689 = vsel %vm5688, %v5681, %v5685
    %v5690 = vand.u32 2147483647, %v5680
    %vm5691 = vcmp.eq.f32.partialorder %v5690, 8.507059e+37
    %v5692 = vand.u32 %v5680, 2147483648
    %v5693 = vor.u32 1.1754944e-38, %v5692
    %v5694 = vsel %vm5691, %v5693, %v5689
    %v5695 = vmul.f32 1.0, %v5694
    %v5696 = vmul.f32 %v5675, %v5201
    %v5697 = vmul.f32 %v5656, %v5676
    %v5698 = vadd.f32 %v5696, %v5697
    %v5699 = vtanh.pop %v5698
    %v5700 = vmul.f32 %v5695, %v5699
    %5701 = vmatpush.msra.mxu0 %v4235
    %5702 = vmatpush.msra.mxu0 %v4234
    %5703 = vmatpush.msra.mxu0 %v4233
    %5704 = vmatpush.msra.mxu0 %v4232
    %5705 = vmatpush.msra.mxu0 %v4231
    %5706 = vmatpush.msra.mxu0 %v4230
    %5707 = vmatpush.msra.mxu0 %v4229
    %5708 = vmatpush.msra.mxu0 %v4228
    %5709 = vmatpush.msra.mxu0 %v4227
    %5710 = vmatpush.msra.mxu0 %v4226
    %5711 = vmatpush.msra.mxu0 %v4225
    %5712 = vmatpush.msra.mxu0 %v4224
    %5713 = vmatpush.msra.mxu0 %v4223
    %5714 = vmatpush.msra.mxu0 %v4222
    %5715 = vmatpush.msra.mxu0 %v4221
    %5716 = vmatpush.msra.mxu0 %v4220
    %5717 = vmatmul.f32.gmra.mxu0 %v5700
    %v5718 = vpop.f32.mrf.mxu0
    %v5719 = vadd.f32 %v4238, %v5718
    %5720 = vdwg.mxu0
    %s5721 = scalar_lea.vmem %s15, 24
    %5722 = vst [vmem:[%s5721] sm:$0xff] %v5719
    %5723 = vmax.xlane.f32.xlu0 %v5719
    %v5724 = vpop.xlane.xlu0 %5723
    %vm5725 = vcmp.eq.f32.partialorder %v5719, %v5724
    %v5726 = vsel %vm5725, %v4258, 128.0
    %5727 = vmin.xlane.f32.xlu0 %v5726
    %v5728 = vpop.xlane.xlu0 %5727
    %vm5729 = vcmp.eq.f32.partialorder %v4258, %v5728
    %v5730 = vsel %vm5729, 1, 0
    %v5731 = vcvt.s32.f32 %v5730
    %5732 = vmatpush.msra.mxu0 %v4255
    %5733 = vmatpush.msra.mxu0 %v4254
    %5734 = vmatpush.msra.mxu0 %v4253
    %5735 = vmatpush.msra.mxu0 %v4252
    %5736 = vmatpush.msra.mxu0 %v4251
    %5737 = vmatpush.msra.mxu0 %v4250
    %5738 = vmatpush.msra.mxu0 %v4249
    %5739 = vmatpush.msra.mxu0 %v4248
    %5740 = vmatpush.msra.mxu0 %v4247
    %5741 = vmatpush.msra.mxu0 %v4246
    %5742 = vmatpush.msra.mxu0 %v4245
    %5743 = vmatpush.msra.mxu0 %v4244
    %5744 = vmatpush.msra.mxu0 %v4243
    %5745 = vmatpush.msra.mxu0 %v4242
    %5746 = vmatpush.msra.mxu0 %v4241
    %5747 = vmatpush.msra.mxu0 %v4240
    %5748 = vmatmul.f32.gmra.mxu0 %v5731
    %v5749 = vpop.f32.mrf.mxu0
    %v5750 = vadd.f32 0.0, %v5749
    %5751 = vdwg.mxu0
    %5752 = vmatpush.msra.mxu0 %v4004
    %5753 = vmatpush.msra.mxu0 %v4000
    %5754 = vmatpush.msra.mxu0 %v3996
    %5755 = vmatpush.msra.mxu0 %v3992
    %5756 = vmatpush.msra.mxu0 %v3988
    %5757 = vmatpush.msra.mxu0 %v3984
    %5758 = vmatpush.msra.mxu0 %v3980
    %5759 = vmatpush.msra.mxu0 %v3976
    %5760 = vmatpush.msra.mxu0 %v3972
    %5761 = vmatpush.msra.mxu0 %v3968
    %5762 = vmatpush.msra.mxu0 %v3964
    %5763 = vmatpush.msra.mxu0 %v3960
    %5764 = vmatpush.msra.mxu0 %v3956
    %5765 = vmatpush.msra.mxu0 %v3952
    %5766 = vmatpush.msra.mxu0 %v3948
    %5767 = vmatpush.msra.mxu0 %v3944
    %5768 = vmatmul.f32.gmra.mxu0 %v5750
    %v5769 = vpop.f32.mrf.mxu0
    %v5770 = vadd.f32 %v4202, %v5769
    %5771 = vdwg.mxu0
    %5772 = vmatpush.msra.mxu0 %v4068
    %5773 = vmatpush.msra.mxu0 %v4064
    %5774 = vmatpush.msra.mxu0 %v4060
    %5775 = vmatpush.msra.mxu0 %v4056
    %5776 = vmatpush.msra.mxu0 %v4052
    %5777 = vmatpush.msra.mxu0 %v4048
    %5778 = vmatpush.msra.mxu0 %v4044
    %5779 = vmatpush.msra.mxu0 %v4040
    %5780 = vmatpush.msra.mxu0 %v4036
    %5781 = vmatpush.msra.mxu0 %v4032
    %5782 = vmatpush.msra.mxu0 %v4028
    %5783 = vmatpush.msra.mxu0 %v4024
    %5784 = vmatpush.msra.mxu0 %v4020
    %5785 = vmatpush.msra.mxu0 %v4016
    %5786 = vmatpush.msra.mxu0 %v4012
    %5787 = vmatpush.msra.mxu0 %v4008
    %5788 = vmatmul.f32.gmra.mxu0 %v5477
    %v5789 = vpop.f32.mrf.mxu0
    %v5790 = vadd.f32 %v5770, %v5789
    %5791 = vdwg.mxu0
    %5792 = vmatpush.msra.mxu0 %v4005
    %5793 = vmatpush.msra.mxu0 %v4001
    %5794 = vmatpush.msra.mxu0 %v3997
    %5795 = vmatpush.msra.mxu0 %v3993
    %5796 = vmatpush.msra.mxu0 %v3989
    %5797 = vmatpush.msra.mxu0 %v3985
    %5798 = vmatpush.msra.mxu0 %v3981
    %5799 = vmatpush.msra.mxu0 %v3977
    %5800 = vmatpush.msra.mxu0 %v3973
    %5801 = vmatpush.msra.mxu0 %v3969
    %5802 = vmatpush.msra.mxu0 %v3965
    %5803 = vmatpush.msra.mxu0 %v3961
    %5804 = vmatpush.msra.mxu0 %v3957
    %5805 = vmatpush.msra.mxu0 %v3953
    %5806 = vmatpush.msra.mxu0 %v3949
    %5807 = vmatpush.msra.mxu0 %v3945
    %5808 = vmatmul.f32.gmra.mxu0 %v5750
    %v5809 = vpop.f32.mrf.mxu0
    %v5810 = vadd.f32 %v4203, %v5809
    %5811 = vdwg.mxu0
    %5812 = vmatpush.msra.mxu0 %v4069
    %5813 = vmatpush.msra.mxu0 %v4065
    %5814 = vmatpush.msra.mxu0 %v4061
    %5815 = vmatpush.msra.mxu0 %v4057
    %5816 = vmatpush.msra.mxu0 %v4053
    %5817 = vmatpush.msra.mxu0 %v4049
    %5818 = vmatpush.msra.mxu0 %v4045
    %5819 = vmatpush.msra.mxu0 %v4041
    %5820 = vmatpush.msra.mxu0 %v4037
    %5821 = vmatpush.msra.mxu0 %v4033
    %5822 = vmatpush.msra.mxu0 %v4029
    %5823 = vmatpush.msra.mxu0 %v4025
    %5824 = vmatpush.msra.mxu0 %v4021
    %5825 = vmatpush.msra.mxu0 %v4017
    %5826 = vmatpush.msra.mxu0 %v4013
    %5827 = vmatpush.msra.mxu0 %v4009
    %5828 = vmatmul.f32.gmra.mxu0 %v5477
    %v5829 = vpop.f32.mrf.mxu0
    %v5830 = vadd.f32 %v5810, %v5829
    %5831 = vdwg.mxu0
    %5832 = vmatpush.msra.mxu0 %v4006
    %5833 = vmatpush.msra.mxu0 %v4002
    %5834 = vmatpush.msra.mxu0 %v3998
    %5835 = vmatpush.msra.mxu0 %v3994
    %5836 = vmatpush.msra.mxu0 %v3990
    %5837 = vmatpush.msra.mxu0 %v3986
    %5838 = vmatpush.msra.mxu0 %v3982
    %5839 = vmatpush.msra.mxu0 %v3978
    %5840 = vmatpush.msra.mxu0 %v3974
    %5841 = vmatpush.msra.mxu0 %v3970
    %5842 = vmatpush.msra.mxu0 %v3966
    %5843 = vmatpush.msra.mxu0 %v3962
    %5844 = vmatpush.msra.mxu0 %v3958
    %5845 = vmatpush.msra.mxu0 %v3954
    %5846 = vmatpush.msra.mxu0 %v3950
    %5847 = vmatpush.msra.mxu0 %v3946
    %5848 = vmatmul.f32.gmra.mxu0 %v5750
    %v5849 = vpop.f32.mrf.mxu0
    %v5850 = vadd.f32 %v4204, %v5849
    %5851 = vdwg.mxu0
    %5852 = vmatpush.msra.mxu0 %v4070
    %5853 = vmatpush.msra.mxu0 %v4066
    %5854 = vmatpush.msra.mxu0 %v4062
    %5855 = vmatpush.msra.mxu0 %v4058
    %5856 = vmatpush.msra.mxu0 %v4054
    %5857 = vmatpush.msra.mxu0 %v4050
    %5858 = vmatpush.msra.mxu0 %v4046
    %5859 = vmatpush.msra.mxu0 %v4042
    %5860 = vmatpush.msra.mxu0 %v4038
    %5861 = vmatpush.msra.mxu0 %v4034
    %5862 = vmatpush.msra.mxu0 %v4030
    %5863 = vmatpush.msra.mxu0 %v4026
    %5864 = vmatpush.msra.mxu0 %v4022
    %5865 = vmatpush.msra.mxu0 %v4018
    %5866 = vmatpush.msra.mxu0 %v4014
    %5867 = vmatpush.msra.mxu0 %v4010
    %5868 = vmatmul.f32.gmra.mxu0 %v5477
    %v5869 = vpop.f32.mrf.mxu0
    %v5870 = vadd.f32 %v5850, %v5869
    %5871 = vdwg.mxu0
    %5872 = vmatpush.msra.mxu0 %v4007
    %5873 = vmatpush.msra.mxu0 %v4003
    %5874 = vmatpush.msra.mxu0 %v3999
    %5875 = vmatpush.msra.mxu0 %v3995
    %5876 = vmatpush.msra.mxu0 %v3991
    %5877 = vmatpush.msra.mxu0 %v3987
    %5878 = vmatpush.msra.mxu0 %v3983
    %5879 = vmatpush.msra.mxu0 %v3979
    %5880 = vmatpush.msra.mxu0 %v3975
    %5881 = vmatpush.msra.mxu0 %v3971
    %5882 = vmatpush.msra.mxu0 %v3967
    %5883 = vmatpush.msra.mxu0 %v3963
    %5884 = vmatpush.msra.mxu0 %v3959
    %5885 = vmatpush.msra.mxu0 %v3955
    %5886 = vmatpush.msra.mxu0 %v3951
    %5887 = vmatpush.msra.mxu0 %v3947
    %5888 = vmatmul.f32.gmra.mxu0 %v5750
    %v5889 = vpop.f32.mrf.mxu0
    %v5890 = vadd.f32 %v4205, %v5889
    %5891 = vdwg.mxu0
    %5892 = vmatpush.msra.mxu0 %v4071
    %5893 = vmatpush.msra.mxu0 %v4067
    %5894 = vmatpush.msra.mxu0 %v4063
    %5895 = vmatpush.msra.mxu0 %v4059
    %5896 = vmatpush.msra.mxu0 %v4055
    %5897 = vmatpush.msra.mxu0 %v4051
    %5898 = vmatpush.msra.mxu0 %v4047
    %5899 = vmatpush.msra.mxu0 %v4043
    %5900 = vmatpush.msra.mxu0 %v4039
    %5901 = vmatpush.msra.mxu0 %v4035
    %5902 = vmatpush.msra.mxu0 %v4031
    %5903 = vmatpush.msra.mxu0 %v4027
    %5904 = vmatpush.msra.mxu0 %v4023
    %5905 = vmatpush.msra.mxu0 %v4019
    %5906 = vmatpush.msra.mxu0 %v4015
    %5907 = vmatpush.msra.mxu0 %v4011
    %5908 = vmatmul.f32.gmra.mxu0 %v5477
    %v5909 = vpop.f32.mrf.mxu0
    %v5910 = vadd.f32 %v5890, %v5909
    %5911 = vdwg.mxu0
    %v5912 = vxor.u32 %v5790, 2147483648
    %v5913 = vmul.f32 %v5912, 1.442695
    %v5914 = vpow.pop %v5913
    %v5915 = vadd.f32 %v5914, 1.0
    %v5916 = vrcp.pop %v5915
    %v5917 = vmul.f32 %v5915, %v5916
    %v5918 = vsub.f32 1.0, %v5917
    %v5919 = vmul.f32 %v5916, %v5918
    %v5920 = vadd.f32 %v5916, %v5919
    %vm5921 = vweird.f32 %v5915
    %vm5922 = vweird.f32 %v5916
    %vm5923 = vmor %vm5921, %vm5922
    %v5924 = vsel %vm5923, %v5916, %v5920
    %v5925 = vand.u32 2147483647, %v5915
    %vm5926 = vcmp.eq.f32.partialorder %v5925, 8.507059e+37
    %v5927 = vand.u32 %v5915, 2147483648
    %v5928 = vor.u32 1.1754944e-38, %v5927
    %v5929 = vsel %vm5926, %v5928, %v5924
    %v5930 = vmul.f32 1.0, %v5929
    %v5931 = vxor.u32 %v5830, 2147483648
    %v5932 = vmul.f32 %v5931, 1.442695
    %v5933 = vpow.pop %v5932
    %v5934 = vadd.f32 %v5933, 1.0
    %v5935 = vrcp.pop %v5934
    %v5936 = vmul.f32 %v5934, %v5935
    %v5937 = vsub.f32 1.0, %v5936
    %v5938 = vmul.f32 %v5935, %v5937
    %v5939 = vadd.f32 %v5935, %v5938
    %vm5940 = vweird.f32 %v5934
    %vm5941 = vweird.f32 %v5935
    %vm5942 = vmor %vm5940, %vm5941
    %v5943 = vsel %vm5942, %v5935, %v5939
    %v5944 = vand.u32 2147483647, %v5934
    %vm5945 = vcmp.eq.f32.partialorder %v5944, 8.507059e+37
    %v5946 = vand.u32 %v5934, 2147483648
    %v5947 = vor.u32 1.1754944e-38, %v5946
    %v5948 = vsel %vm5945, %v5947, %v5943
    %v5949 = vmul.f32 1.0, %v5948
    %v5950 = vtanh.pop %v5870
    %v5951 = vxor.u32 %v5910, 2147483648
    %v5952 = vmul.f32 %v5951, 1.442695
    %v5953 = vpow.pop %v5952
    %v5954 = vadd.f32 %v5953, 1.0
    %v5955 = vrcp.pop %v5954
    %v5956 = vmul.f32 %v5954, %v5955
    %v5957 = vsub.f32 1.0, %v5956
    %v5958 = vmul.f32 %v5955, %v5957
    %v5959 = vadd.f32 %v5955, %v5958
    %vm5960 = vweird.f32 %v5954
    %vm5961 = vweird.f32 %v5955
    %vm5962 = vmor %vm5960, %vm5961
    %v5963 = vsel %vm5962, %v5955, %v5959
    %v5964 = vand.u32 2147483647, %v5954
    %vm5965 = vcmp.eq.f32.partialorder %v5964, 8.507059e+37
    %v5966 = vand.u32 %v5954, 2147483648
    %v5967 = vor.u32 1.1754944e-38, %v5966
    %v5968 = vsel %vm5965, %v5967, %v5963
    %v5969 = vmul.f32 1.0, %v5968
    %v5970 = vmul.f32 %v5949, %v5475
    %v5971 = vmul.f32 %v5930, %v5950
    %v5972 = vadd.f32 %v5970, %v5971
    %v5973 = vtanh.pop %v5972
    %v5974 = vmul.f32 %v5969, %v5973
    %5975 = vmatpush.msra.mxu0 %v4132
    %5976 = vmatpush.msra.mxu0 %v4128
    %5977 = vmatpush.msra.mxu0 %v4124
    %5978 = vmatpush.msra.mxu0 %v4120
    %5979 = vmatpush.msra.mxu0 %v4116
    %5980 = vmatpush.msra.mxu0 %v4112
    %5981 = vmatpush.msra.mxu0 %v4108
    %5982 = vmatpush.msra.mxu0 %v4104
    %5983 = vmatpush.msra.mxu0 %v4100
    %5984 = vmatpush.msra.mxu0 %v4096
    %5985 = vmatpush.msra.mxu0 %v4092
    %5986 = vmatpush.msra.mxu0 %v4088
    %5987 = vmatpush.msra.mxu0 %v4084
    %5988 = vmatpush.msra.mxu0 %v4080
    %5989 = vmatpush.msra.mxu0 %v4076
    %5990 = vmatpush.msra.mxu0 %v4072
    %5991 = vmatmul.f32.gmra.mxu0 %v5974
    %v5992 = vpop.f32.mrf.mxu0
    %v5993 = vadd.f32 %v4212, %v5992
    %5994 = vdwg.mxu0
    %5995 = vmatpush.msra.mxu0 %v4196
    %5996 = vmatpush.msra.mxu0 %v4192
    %5997 = vmatpush.msra.mxu0 %v4188
    %5998 = vmatpush.msra.mxu0 %v4184
    %5999 = vmatpush.msra.mxu0 %v4180
    %6000 = vmatpush.msra.mxu0 %v4176
    %6001 = vmatpush.msra.mxu0 %v4172
    %6002 = vmatpush.msra.mxu0 %v4168
    %6003 = vmatpush.msra.mxu0 %v4164
    %6004 = vmatpush.msra.mxu0 %v4160
    %6005 = vmatpush.msra.mxu0 %v4156
    %6006 = vmatpush.msra.mxu0 %v4152
    %6007 = vmatpush.msra.mxu0 %v4148
    %6008 = vmatpush.msra.mxu0 %v4144
    %6009 = vmatpush.msra.mxu0 %v4140
    %6010 = vmatpush.msra.mxu0 %v4136
    %6011 = vmatmul.f32.gmra.mxu0 %v5700
    %v6012 = vpop.f32.mrf.mxu0
    %v6013 = vadd.f32 %v5993, %v6012
    %6014 = vdwg.mxu0
    %6015 = vmatpush.msra.mxu0 %v4133
    %6016 = vmatpush.msra.mxu0 %v4129
    %6017 = vmatpush.msra.mxu0 %v4125
    %6018 = vmatpush.msra.mxu0 %v4121
    %6019 = vmatpush.msra.mxu0 %v4117
    %6020 = vmatpush.msra.mxu0 %v4113
    %6021 = vmatpush.msra.mxu0 %v4109
    %6022 = vmatpush.msra.mxu0 %v4105
    %6023 = vmatpush.msra.mxu0 %v4101
    %6024 = vmatpush.msra.mxu0 %v4097
    %6025 = vmatpush.msra.mxu0 %v4093
    %6026 = vmatpush.msra.mxu0 %v4089
    %6027 = vmatpush.msra.mxu0 %v4085
    %6028 = vmatpush.msra.mxu0 %v4081
    %6029 = vmatpush.msra.mxu0 %v4077
    %6030 = vmatpush.msra.mxu0 %v4073
    %6031 = vmatmul.f32.gmra.mxu0 %v5974
    %v6032 = vpop.f32.mrf.mxu0
    %v6033 = vadd.f32 %v4213, %v6032
    %6034 = vdwg.mxu0
    %6035 = vmatpush.msra.mxu0 %v4197
    %6036 = vmatpush.msra.mxu0 %v4193
    %6037 = vmatpush.msra.mxu0 %v4189
    %6038 = vmatpush.msra.mxu0 %v4185
    %6039 = vmatpush.msra.mxu0 %v4181
    %6040 = vmatpush.msra.mxu0 %v4177
    %6041 = vmatpush.msra.mxu0 %v4173
    %6042 = vmatpush.msra.mxu0 %v4169
    %6043 = vmatpush.msra.mxu0 %v4165
    %6044 = vmatpush.msra.mxu0 %v4161
    %6045 = vmatpush.msra.mxu0 %v4157
    %6046 = vmatpush.msra.mxu0 %v4153
    %6047 = vmatpush.msra.mxu0 %v4149
    %6048 = vmatpush.msra.mxu0 %v4145
    %6049 = vmatpush.msra.mxu0 %v4141
    %6050 = vmatpush.msra.mxu0 %v4137
    %6051 = vmatmul.f32.gmra.mxu0 %v5700
    %v6052 = vpop.f32.mrf.mxu0
    %v6053 = vadd.f32 %v6033, %v6052
    %6054 = vdwg.mxu0
    %6055 = vmatpush.msra.mxu0 %v4134
    %6056 = vmatpush.msra.mxu0 %v4130
    %6057 = vmatpush.msra.mxu0 %v4126
    %6058 = vmatpush.msra.mxu0 %v4122
    %6059 = vmatpush.msra.mxu0 %v4118
    %6060 = vmatpush.msra.mxu0 %v4114
    %6061 = vmatpush.msra.mxu0 %v4110
    %6062 = vmatpush.msra.mxu0 %v4106
    %6063 = vmatpush.msra.mxu0 %v4102
    %6064 = vmatpush.msra.mxu0 %v4098
    %6065 = vmatpush.msra.mxu0 %v4094
    %6066 = vmatpush.msra.mxu0 %v4090
    %6067 = vmatpush.msra.mxu0 %v4086
    %6068 = vmatpush.msra.mxu0 %v4082
    %6069 = vmatpush.msra.mxu0 %v4078
    %6070 = vmatpush.msra.mxu0 %v4074
    %6071 = vmatmul.f32.gmra.mxu0 %v5974
    %v6072 = vpop.f32.mrf.mxu0
    %v6073 = vadd.f32 %v4214, %v6072
    %6074 = vdwg.mxu0
    %6075 = vmatpush.msra.mxu0 %v4198
    %6076 = vmatpush.msra.mxu0 %v4194
    %6077 = vmatpush.msra.mxu0 %v4190
    %6078 = vmatpush.msra.mxu0 %v4186
    %6079 = vmatpush.msra.mxu0 %v4182
    %6080 = vmatpush.msra.mxu0 %v4178
    %6081 = vmatpush.msra.mxu0 %v4174
    %6082 = vmatpush.msra.mxu0 %v4170
    %6083 = vmatpush.msra.mxu0 %v4166
    %6084 = vmatpush.msra.mxu0 %v4162
    %6085 = vmatpush.msra.mxu0 %v4158
    %6086 = vmatpush.msra.mxu0 %v4154
    %6087 = vmatpush.msra.mxu0 %v4150
    %6088 = vmatpush.msra.mxu0 %v4146
    %6089 = vmatpush.msra.mxu0 %v4142
    %6090 = vmatpush.msra.mxu0 %v4138
    %6091 = vmatmul.f32.gmra.mxu0 %v5700
    %v6092 = vpop.f32.mrf.mxu0
    %v6093 = vadd.f32 %v6073, %v6092
    %6094 = vdwg.mxu0
    %6095 = vmatpush.msra.mxu0 %v4135
    %6096 = vmatpush.msra.mxu0 %v4131
    %6097 = vmatpush.msra.mxu0 %v4127
    %6098 = vmatpush.msra.mxu0 %v4123
    %6099 = vmatpush.msra.mxu0 %v4119
    %6100 = vmatpush.msra.mxu0 %v4115
    %6101 = vmatpush.msra.mxu0 %v4111
    %6102 = vmatpush.msra.mxu0 %v4107
    %6103 = vmatpush.msra.mxu0 %v4103
    %6104 = vmatpush.msra.mxu0 %v4099
    %6105 = vmatpush.msra.mxu0 %v4095
    %6106 = vmatpush.msra.mxu0 %v4091
    %6107 = vmatpush.msra.mxu0 %v4087
    %6108 = vmatpush.msra.mxu0 %v4083
    %6109 = vmatpush.msra.mxu0 %v4079
    %6110 = vmatpush.msra.mxu0 %v4075
    %6111 = vmatmul.f32.gmra.mxu0 %v5974
    %v6112 = vpop.f32.mrf.mxu0
    %v6113 = vadd.f32 %v4215, %v6112
    %6114 = vdwg.mxu0
    %6115 = vmatpush.msra.mxu0 %v4199
    %6116 = vmatpush.msra.mxu0 %v4195
    %6117 = vmatpush.msra.mxu0 %v4191
    %6118 = vmatpush.msra.mxu0 %v4187
    %6119 = vmatpush.msra.mxu0 %v4183
    %6120 = vmatpush.msra.mxu0 %v4179
    %6121 = vmatpush.msra.mxu0 %v4175
    %6122 = vmatpush.msra.mxu0 %v4171
    %6123 = vmatpush.msra.mxu0 %v4167
    %6124 = vmatpush.msra.mxu0 %v4163
    %6125 = vmatpush.msra.mxu0 %v4159
    %6126 = vmatpush.msra.mxu0 %v4155
    %6127 = vmatpush.msra.mxu0 %v4151
    %6128 = vmatpush.msra.mxu0 %v4147
    %6129 = vmatpush.msra.mxu0 %v4143
    %6130 = vmatpush.msra.mxu0 %v4139
    %6131 = vmatmul.f32.gmra.mxu0 %v5700
    %v6132 = vpop.f32.mrf.mxu0
    %v6133 = vadd.f32 %v6113, %v6132
    %6134 = vdwg.mxu0
    %v6135 = vxor.u32 %v6013, 2147483648
    %v6136 = vmul.f32 %v6135, 1.442695
    %v6137 = vpow.pop %v6136
    %v6138 = vadd.f32 %v6137, 1.0
    %v6139 = vrcp.pop %v6138
    %v6140 = vmul.f32 %v6138, %v6139
    %v6141 = vsub.f32 1.0, %v6140
    %v6142 = vmul.f32 %v6139, %v6141
    %v6143 = vadd.f32 %v6139, %v6142
    %vm6144 = vweird.f32 %v6138
    %vm6145 = vweird.f32 %v6139
    %vm6146 = vmor %vm6144, %vm6145
    %v6147 = vsel %vm6146, %v6139, %v6143
    %v6148 = vand.u32 2147483647, %v6138
    %vm6149 = vcmp.eq.f32.partialorder %v6148, 8.507059e+37
    %v6150 = vand.u32 %v6138, 2147483648
    %v6151 = vor.u32 1.1754944e-38, %v6150
    %v6152 = vsel %vm6149, %v6151, %v6147
    %v6153 = vmul.f32 1.0, %v6152
    %v6154 = vxor.u32 %v6053, 2147483648
    %v6155 = vmul.f32 %v6154, 1.442695
    %v6156 = vpow.pop %v6155
    %v6157 = vadd.f32 %v6156, 1.0
    %v6158 = vrcp.pop %v6157
    %v6159 = vmul.f32 %v6157, %v6158
    %v6160 = vsub.f32 1.0, %v6159
    %v6161 = vmul.f32 %v6158, %v6160
    %v6162 = vadd.f32 %v6158, %v6161
    %vm6163 = vweird.f32 %v6157
    %vm6164 = vweird.f32 %v6158
    %vm6165 = vmor %vm6163, %vm6164
    %v6166 = vsel %vm6165, %v6158, %v6162
    %v6167 = vand.u32 2147483647, %v6157
    %vm6168 = vcmp.eq.f32.partialorder %v6167, 8.507059e+37
    %v6169 = vand.u32 %v6157, 2147483648
    %v6170 = vor.u32 1.1754944e-38, %v6169
    %v6171 = vsel %vm6168, %v6170, %v6166
    %v6172 = vmul.f32 1.0, %v6171
    %v6173 = vtanh.pop %v6093
    %v6174 = vxor.u32 %v6133, 2147483648
    %v6175 = vmul.f32 %v6174, 1.442695
    %v6176 = vpow.pop %v6175
    %v6177 = vadd.f32 %v6176, 1.0
    %v6178 = vrcp.pop %v6177
    %v6179 = vmul.f32 %v6177, %v6178
    %v6180 = vsub.f32 1.0, %v6179
    %v6181 = vmul.f32 %v6178, %v6180
    %v6182 = vadd.f32 %v6178, %v6181
    %vm6183 = vweird.f32 %v6177
    %vm6184 = vweird.f32 %v6178
    %vm6185 = vmor %vm6183, %vm6184
    %v6186 = vsel %vm6185, %v6178, %v6182
    %v6187 = vand.u32 2147483647, %v6177
    %vm6188 = vcmp.eq.f32.partialorder %v6187, 8.507059e+37
    %v6189 = vand.u32 %v6177, 2147483648
    %v6190 = vor.u32 1.1754944e-38, %v6189
    %v6191 = vsel %vm6188, %v6190, %v6186
    %v6192 = vmul.f32 1.0, %v6191
    %v6193 = vmul.f32 %v6172, %v5698
    %v6194 = vmul.f32 %v6153, %v6173
    %v6195 = vadd.f32 %v6193, %v6194
    %v6196 = vtanh.pop %v6195
    %v6197 = vmul.f32 %v6192, %v6196
    %6198 = vmatpush.msra.mxu0 %v4235
    %6199 = vmatpush.msra.mxu0 %v4234
    %6200 = vmatpush.msra.mxu0 %v4233
    %6201 = vmatpush.msra.mxu0 %v4232
    %6202 = vmatpush.msra.mxu0 %v4231
    %6203 = vmatpush.msra.mxu0 %v4230
    %6204 = vmatpush.msra.mxu0 %v4229
    %6205 = vmatpush.msra.mxu0 %v4228
    %6206 = vmatpush.msra.mxu0 %v4227
    %6207 = vmatpush.msra.mxu0 %v4226
    %6208 = vmatpush.msra.mxu0 %v4225
    %6209 = vmatpush.msra.mxu0 %v4224
    %6210 = vmatpush.msra.mxu0 %v4223
    %6211 = vmatpush.msra.mxu0 %v4222
    %6212 = vmatpush.msra.mxu0 %v4221
    %6213 = vmatpush.msra.mxu0 %v4220
    %6214 = vmatmul.f32.gmra.mxu0 %v6197
    %v6215 = vpop.f32.mrf.mxu0
    %v6216 = vadd.f32 %v4238, %v6215
    %6217 = vdwg.mxu0
    %s6218 = scalar_lea.vmem %s15, 32
    %6219 = vst [vmem:[%s6218] sm:$0xff] %v6216
    %6220 = vmax.xlane.f32.xlu0 %v6216
    %v6221 = vpop.xlane.xlu0 %6220
    %vm6222 = vcmp.eq.f32.partialorder %v6216, %v6221
    %v6223 = vsel %vm6222, %v4258, 128.0
    %6224 = vmin.xlane.f32.xlu0 %v6223
    %v6225 = vpop.xlane.xlu0 %6224
    %vm6226 = vcmp.eq.f32.partialorder %v4258, %v6225
    %v6227 = vsel %vm6226, 1, 0
    %v6228 = vcvt.s32.f32 %v6227
    %6229 = vmatpush.msra.mxu0 %v4255
    %6230 = vmatpush.msra.mxu0 %v4254
    %6231 = vmatpush.msra.mxu0 %v4253
    %6232 = vmatpush.msra.mxu0 %v4252
    %6233 = vmatpush.msra.mxu0 %v4251
    %6234 = vmatpush.msra.mxu0 %v4250
    %6235 = vmatpush.msra.mxu0 %v4249
    %6236 = vmatpush.msra.mxu0 %v4248
    %6237 = vmatpush.msra.mxu0 %v4247
    %6238 = vmatpush.msra.mxu0 %v4246
    %6239 = vmatpush.msra.mxu0 %v4245
    %6240 = vmatpush.msra.mxu0 %v4244
    %6241 = vmatpush.msra.mxu0 %v4243
    %6242 = vmatpush.msra.mxu0 %v4242
    %6243 = vmatpush.msra.mxu0 %v4241
    %6244 = vmatpush.msra.mxu0 %v4240
    %6245 = vmatmul.f32.gmra.mxu0 %v6228
    %v6246 = vpop.f32.mrf.mxu0
    %v6247 = vadd.f32 0.0, %v6246
    %6248 = vdwg.mxu0
    %6249 = vmatpush.msra.mxu0 %v4004
    %6250 = vmatpush.msra.mxu0 %v4000
    %6251 = vmatpush.msra.mxu0 %v3996
    %6252 = vmatpush.msra.mxu0 %v3992
    %6253 = vmatpush.msra.mxu0 %v3988
    %6254 = vmatpush.msra.mxu0 %v3984
    %6255 = vmatpush.msra.mxu0 %v3980
    %6256 = vmatpush.msra.mxu0 %v3976
    %6257 = vmatpush.msra.mxu0 %v3972
    %6258 = vmatpush.msra.mxu0 %v3968
    %6259 = vmatpush.msra.mxu0 %v3964
    %6260 = vmatpush.msra.mxu0 %v3960
    %6261 = vmatpush.msra.mxu0 %v3956
    %6262 = vmatpush.msra.mxu0 %v3952
    %6263 = vmatpush.msra.mxu0 %v3948
    %6264 = vmatpush.msra.mxu0 %v3944
    %6265 = vmatmul.f32.gmra.mxu0 %v6247
    %v6266 = vpop.f32.mrf.mxu0
    %v6267 = vadd.f32 %v4202, %v6266
    %6268 = vdwg.mxu0
    %6269 = vmatpush.msra.mxu0 %v4068
    %6270 = vmatpush.msra.mxu0 %v4064
    %6271 = vmatpush.msra.mxu0 %v4060
    %6272 = vmatpush.msra.mxu0 %v4056
    %6273 = vmatpush.msra.mxu0 %v4052
    %6274 = vmatpush.msra.mxu0 %v4048
    %6275 = vmatpush.msra.mxu0 %v4044
    %6276 = vmatpush.msra.mxu0 %v4040
    %6277 = vmatpush.msra.mxu0 %v4036
    %6278 = vmatpush.msra.mxu0 %v4032
    %6279 = vmatpush.msra.mxu0 %v4028
    %6280 = vmatpush.msra.mxu0 %v4024
    %6281 = vmatpush.msra.mxu0 %v4020
    %6282 = vmatpush.msra.mxu0 %v4016
    %6283 = vmatpush.msra.mxu0 %v4012
    %6284 = vmatpush.msra.mxu0 %v4008
    %6285 = vmatmul.f32.gmra.mxu0 %v5974
    %v6286 = vpop.f32.mrf.mxu0
    %v6287 = vadd.f32 %v6267, %v6286
    %6288 = vdwg.mxu0
    %6289 = vmatpush.msra.mxu0 %v4005
    %6290 = vmatpush.msra.mxu0 %v4001
    %6291 = vmatpush.msra.mxu0 %v3997
    %6292 = vmatpush.msra.mxu0 %v3993
    %6293 = vmatpush.msra.mxu0 %v3989
    %6294 = vmatpush.msra.mxu0 %v3985
    %6295 = vmatpush.msra.mxu0 %v3981
    %6296 = vmatpush.msra.mxu0 %v3977
    %6297 = vmatpush.msra.mxu0 %v3973
    %6298 = vmatpush.msra.mxu0 %v3969
    %6299 = vmatpush.msra.mxu0 %v3965
    %6300 = vmatpush.msra.mxu0 %v3961
    %6301 = vmatpush.msra.mxu0 %v3957
    %6302 = vmatpush.msra.mxu0 %v3953
    %6303 = vmatpush.msra.mxu0 %v3949
    %6304 = vmatpush.msra.mxu0 %v3945
    %6305 = vmatmul.f32.gmra.mxu0 %v6247
    %v6306 = vpop.f32.mrf.mxu0
    %v6307 = vadd.f32 %v4203, %v6306
    %6308 = vdwg.mxu0
    %6309 = vmatpush.msra.mxu0 %v4069
    %6310 = vmatpush.msra.mxu0 %v4065
    %6311 = vmatpush.msra.mxu0 %v4061
    %6312 = vmatpush.msra.mxu0 %v4057
    %6313 = vmatpush.msra.mxu0 %v4053
    %6314 = vmatpush.msra.mxu0 %v4049
    %6315 = vmatpush.msra.mxu0 %v4045
    %6316 = vmatpush.msra.mxu0 %v4041
    %6317 = vmatpush.msra.mxu0 %v4037
    %6318 = vmatpush.msra.mxu0 %v4033
    %6319 = vmatpush.msra.mxu0 %v4029
    %6320 = vmatpush.msra.mxu0 %v4025
    %6321 = vmatpush.msra.mxu0 %v4021
    %6322 = vmatpush.msra.mxu0 %v4017
    %6323 = vmatpush.msra.mxu0 %v4013
    %6324 = vmatpush.msra.mxu0 %v4009
    %6325 = vmatmul.f32.gmra.mxu0 %v5974
    %v6326 = vpop.f32.mrf.mxu0
    %v6327 = vadd.f32 %v6307, %v6326
    %6328 = vdwg.mxu0
    %6329 = vmatpush.msra.mxu0 %v4006
    %6330 = vmatpush.msra.mxu0 %v4002
    %6331 = vmatpush.msra.mxu0 %v3998
    %6332 = vmatpush.msra.mxu0 %v3994
    %6333 = vmatpush.msra.mxu0 %v3990
    %6334 = vmatpush.msra.mxu0 %v3986
    %6335 = vmatpush.msra.mxu0 %v3982
    %6336 = vmatpush.msra.mxu0 %v3978
    %6337 = vmatpush.msra.mxu0 %v3974
    %6338 = vmatpush.msra.mxu0 %v3970
    %6339 = vmatpush.msra.mxu0 %v3966
    %6340 = vmatpush.msra.mxu0 %v3962
    %6341 = vmatpush.msra.mxu0 %v3958
    %6342 = vmatpush.msra.mxu0 %v3954
    %6343 = vmatpush.msra.mxu0 %v3950
    %6344 = vmatpush.msra.mxu0 %v3946
    %6345 = vmatmul.f32.gmra.mxu0 %v6247
    %v6346 = vpop.f32.mrf.mxu0
    %v6347 = vadd.f32 %v4204, %v6346
    %6348 = vdwg.mxu0
    %6349 = vmatpush.msra.mxu0 %v4070
    %6350 = vmatpush.msra.mxu0 %v4066
    %6351 = vmatpush.msra.mxu0 %v4062
    %6352 = vmatpush.msra.mxu0 %v4058
    %6353 = vmatpush.msra.mxu0 %v4054
    %6354 = vmatpush.msra.mxu0 %v4050
    %6355 = vmatpush.msra.mxu0 %v4046
    %6356 = vmatpush.msra.mxu0 %v4042
    %6357 = vmatpush.msra.mxu0 %v4038
    %6358 = vmatpush.msra.mxu0 %v4034
    %6359 = vmatpush.msra.mxu0 %v4030
    %6360 = vmatpush.msra.mxu0 %v4026
    %6361 = vmatpush.msra.mxu0 %v4022
    %6362 = vmatpush.msra.mxu0 %v4018
    %6363 = vmatpush.msra.mxu0 %v4014
    %6364 = vmatpush.msra.mxu0 %v4010
    %6365 = vmatmul.f32.gmra.mxu0 %v5974
    %v6366 = vpop.f32.mrf.mxu0
    %v6367 = vadd.f32 %v6347, %v6366
    %6368 = vdwg.mxu0
    %6369 = vmatpush.msra.mxu0 %v4007
    %6370 = vmatpush.msra.mxu0 %v4003
    %6371 = vmatpush.msra.mxu0 %v3999
    %6372 = vmatpush.msra.mxu0 %v3995
    %6373 = vmatpush.msra.mxu0 %v3991
    %6374 = vmatpush.msra.mxu0 %v3987
    %6375 = vmatpush.msra.mxu0 %v3983
    %6376 = vmatpush.msra.mxu0 %v3979
    %6377 = vmatpush.msra.mxu0 %v3975
    %6378 = vmatpush.msra.mxu0 %v3971
    %6379 = vmatpush.msra.mxu0 %v3967
    %6380 = vmatpush.msra.mxu0 %v3963
    %6381 = vmatpush.msra.mxu0 %v3959
    %6382 = vmatpush.msra.mxu0 %v3955
    %6383 = vmatpush.msra.mxu0 %v3951
    %6384 = vmatpush.msra.mxu0 %v3947
    %6385 = vmatmul.f32.gmra.mxu0 %v6247
    %v6386 = vpop.f32.mrf.mxu0
    %v6387 = vadd.f32 %v4205, %v6386
    %6388 = vdwg.mxu0
    %6389 = vmatpush.msra.mxu0 %v4071
    %6390 = vmatpush.msra.mxu0 %v4067
    %6391 = vmatpush.msra.mxu0 %v4063
    %6392 = vmatpush.msra.mxu0 %v4059
    %6393 = vmatpush.msra.mxu0 %v4055
    %6394 = vmatpush.msra.mxu0 %v4051
    %6395 = vmatpush.msra.mxu0 %v4047
    %6396 = vmatpush.msra.mxu0 %v4043
    %6397 = vmatpush.msra.mxu0 %v4039
    %6398 = vmatpush.msra.mxu0 %v4035
    %6399 = vmatpush.msra.mxu0 %v4031
    %6400 = vmatpush.msra.mxu0 %v4027
    %6401 = vmatpush.msra.mxu0 %v4023
    %6402 = vmatpush.msra.mxu0 %v4019
    %6403 = vmatpush.msra.mxu0 %v4015
    %6404 = vmatpush.msra.mxu0 %v4011
    %6405 = vmatmul.f32.gmra.mxu0 %v5974
    %v6406 = vpop.f32.mrf.mxu0
    %v6407 = vadd.f32 %v6387, %v6406
    %6408 = vdwg.mxu0
    %v6409 = vxor.u32 %v6287, 2147483648
    %v6410 = vmul.f32 %v6409, 1.442695
    %v6411 = vpow.pop %v6410
    %v6412 = vadd.f32 %v6411, 1.0
    %v6413 = vrcp.pop %v6412
    %v6414 = vmul.f32 %v6412, %v6413
    %v6415 = vsub.f32 1.0, %v6414
    %v6416 = vmul.f32 %v6413, %v6415
    %v6417 = vadd.f32 %v6413, %v6416
    %vm6418 = vweird.f32 %v6412
    %vm6419 = vweird.f32 %v6413
    %vm6420 = vmor %vm6418, %vm6419
    %v6421 = vsel %vm6420, %v6413, %v6417
    %v6422 = vand.u32 2147483647, %v6412
    %vm6423 = vcmp.eq.f32.partialorder %v6422, 8.507059e+37
    %v6424 = vand.u32 %v6412, 2147483648
    %v6425 = vor.u32 1.1754944e-38, %v6424
    %v6426 = vsel %vm6423, %v6425, %v6421
    %v6427 = vmul.f32 1.0, %v6426
    %v6428 = vxor.u32 %v6327, 2147483648
    %v6429 = vmul.f32 %v6428, 1.442695
    %v6430 = vpow.pop %v6429
    %v6431 = vadd.f32 %v6430, 1.0
    %v6432 = vrcp.pop %v6431
    %v6433 = vmul.f32 %v6431, %v6432
    %v6434 = vsub.f32 1.0, %v6433
    %v6435 = vmul.f32 %v6432, %v6434
    %v6436 = vadd.f32 %v6432, %v6435
    %vm6437 = vweird.f32 %v6431
    %vm6438 = vweird.f32 %v6432
    %vm6439 = vmor %vm6437, %vm6438
    %v6440 = vsel %vm6439, %v6432, %v6436
    %v6441 = vand.u32 2147483647, %v6431
    %vm6442 = vcmp.eq.f32.partialorder %v6441, 8.507059e+37
    %v6443 = vand.u32 %v6431, 2147483648
    %v6444 = vor.u32 1.1754944e-38, %v6443
    %v6445 = vsel %vm6442, %v6444, %v6440
    %v6446 = vmul.f32 1.0, %v6445
    %v6447 = vtanh.pop %v6367
    %v6448 = vxor.u32 %v6407, 2147483648
    %v6449 = vmul.f32 %v6448, 1.442695
    %v6450 = vpow.pop %v6449
    %v6451 = vadd.f32 %v6450, 1.0
    %v6452 = vrcp.pop %v6451
    %v6453 = vmul.f32 %v6451, %v6452
    %v6454 = vsub.f32 1.0, %v6453
    %v6455 = vmul.f32 %v6452, %v6454
    %v6456 = vadd.f32 %v6452, %v6455
    %vm6457 = vweird.f32 %v6451
    %vm6458 = vweird.f32 %v6452
    %vm6459 = vmor %vm6457, %vm6458
    %v6460 = vsel %vm6459, %v6452, %v6456
    %v6461 = vand.u32 2147483647, %v6451
    %vm6462 = vcmp.eq.f32.partialorder %v6461, 8.507059e+37
    %v6463 = vand.u32 %v6451, 2147483648
    %v6464 = vor.u32 1.1754944e-38, %v6463
    %v6465 = vsel %vm6462, %v6464, %v6460
    %v6466 = vmul.f32 1.0, %v6465
    %v6467 = vmul.f32 %v6446, %v5972
    %v6468 = vmul.f32 %v6427, %v6447
    %v6469 = vadd.f32 %v6467, %v6468
    %v6470 = vtanh.pop %v6469
    %v6471 = vmul.f32 %v6466, %v6470
    %6472 = vmatpush.msra.mxu0 %v4132
    %6473 = vmatpush.msra.mxu0 %v4128
    %6474 = vmatpush.msra.mxu0 %v4124
    %6475 = vmatpush.msra.mxu0 %v4120
    %6476 = vmatpush.msra.mxu0 %v4116
    %6477 = vmatpush.msra.mxu0 %v4112
    %6478 = vmatpush.msra.mxu0 %v4108
    %6479 = vmatpush.msra.mxu0 %v4104
    %6480 = vmatpush.msra.mxu0 %v4100
    %6481 = vmatpush.msra.mxu0 %v4096
    %6482 = vmatpush.msra.mxu0 %v4092
    %6483 = vmatpush.msra.mxu0 %v4088
    %6484 = vmatpush.msra.mxu0 %v4084
    %6485 = vmatpush.msra.mxu0 %v4080
    %6486 = vmatpush.msra.mxu0 %v4076
    %6487 = vmatpush.msra.mxu0 %v4072
    %6488 = vmatmul.f32.gmra.mxu0 %v6471
    %v6489 = vpop.f32.mrf.mxu0
    %v6490 = vadd.f32 %v4212, %v6489
    %6491 = vdwg.mxu0
    %6492 = vmatpush.msra.mxu0 %v4196
    %6493 = vmatpush.msra.mxu0 %v4192
    %6494 = vmatpush.msra.mxu0 %v4188
    %6495 = vmatpush.msra.mxu0 %v4184
    %6496 = vmatpush.msra.mxu0 %v4180
    %6497 = vmatpush.msra.mxu0 %v4176
    %6498 = vmatpush.msra.mxu0 %v4172
    %6499 = vmatpush.msra.mxu0 %v4168
    %6500 = vmatpush.msra.mxu0 %v4164
    %6501 = vmatpush.msra.mxu0 %v4160
    %6502 = vmatpush.msra.mxu0 %v4156
    %6503 = vmatpush.msra.mxu0 %v4152
    %6504 = vmatpush.msra.mxu0 %v4148
    %6505 = vmatpush.msra.mxu0 %v4144
    %6506 = vmatpush.msra.mxu0 %v4140
    %6507 = vmatpush.msra.mxu0 %v4136
    %6508 = vmatmul.f32.gmra.mxu0 %v6197
    %v6509 = vpop.f32.mrf.mxu0
    %v6510 = vadd.f32 %v6490, %v6509
    %6511 = vdwg.mxu0
    %6512 = vmatpush.msra.mxu0 %v4133
    %6513 = vmatpush.msra.mxu0 %v4129
    %6514 = vmatpush.msra.mxu0 %v4125
    %6515 = vmatpush.msra.mxu0 %v4121
    %6516 = vmatpush.msra.mxu0 %v4117
    %6517 = vmatpush.msra.mxu0 %v4113
    %6518 = vmatpush.msra.mxu0 %v4109
    %6519 = vmatpush.msra.mxu0 %v4105
    %6520 = vmatpush.msra.mxu0 %v4101
    %6521 = vmatpush.msra.mxu0 %v4097
    %6522 = vmatpush.msra.mxu0 %v4093
    %6523 = vmatpush.msra.mxu0 %v4089
    %6524 = vmatpush.msra.mxu0 %v4085
    %6525 = vmatpush.msra.mxu0 %v4081
    %6526 = vmatpush.msra.mxu0 %v4077
    %6527 = vmatpush.msra.mxu0 %v4073
    %6528 = vmatmul.f32.gmra.mxu0 %v6471
    %v6529 = vpop.f32.mrf.mxu0
    %v6530 = vadd.f32 %v4213, %v6529
    %6531 = vdwg.mxu0
    %6532 = vmatpush.msra.mxu0 %v4197
    %6533 = vmatpush.msra.mxu0 %v4193
    %6534 = vmatpush.msra.mxu0 %v4189
    %6535 = vmatpush.msra.mxu0 %v4185
    %6536 = vmatpush.msra.mxu0 %v4181
    %6537 = vmatpush.msra.mxu0 %v4177
    %6538 = vmatpush.msra.mxu0 %v4173
    %6539 = vmatpush.msra.mxu0 %v4169
    %6540 = vmatpush.msra.mxu0 %v4165
    %6541 = vmatpush.msra.mxu0 %v4161
    %6542 = vmatpush.msra.mxu0 %v4157
    %6543 = vmatpush.msra.mxu0 %v4153
    %6544 = vmatpush.msra.mxu0 %v4149
    %6545 = vmatpush.msra.mxu0 %v4145
    %6546 = vmatpush.msra.mxu0 %v4141
    %6547 = vmatpush.msra.mxu0 %v4137
    %6548 = vmatmul.f32.gmra.mxu0 %v6197
    %v6549 = vpop.f32.mrf.mxu0
    %v6550 = vadd.f32 %v6530, %v6549
    %6551 = vdwg.mxu0
    %6552 = vmatpush.msra.mxu0 %v4134
    %6553 = vmatpush.msra.mxu0 %v4130
    %6554 = vmatpush.msra.mxu0 %v4126
    %6555 = vmatpush.msra.mxu0 %v4122
    %6556 = vmatpush.msra.mxu0 %v4118
    %6557 = vmatpush.msra.mxu0 %v4114
    %6558 = vmatpush.msra.mxu0 %v4110
    %6559 = vmatpush.msra.mxu0 %v4106
    %6560 = vmatpush.msra.mxu0 %v4102
    %6561 = vmatpush.msra.mxu0 %v4098
    %6562 = vmatpush.msra.mxu0 %v4094
    %6563 = vmatpush.msra.mxu0 %v4090
    %6564 = vmatpush.msra.mxu0 %v4086
    %6565 = vmatpush.msra.mxu0 %v4082
    %6566 = vmatpush.msra.mxu0 %v4078
    %6567 = vmatpush.msra.mxu0 %v4074
    %6568 = vmatmul.f32.gmra.mxu0 %v6471
    %v6569 = vpop.f32.mrf.mxu0
    %v6570 = vadd.f32 %v4214, %v6569
    %6571 = vdwg.mxu0
    %6572 = vmatpush.msra.mxu0 %v4198
    %6573 = vmatpush.msra.mxu0 %v4194
    %6574 = vmatpush.msra.mxu0 %v4190
    %6575 = vmatpush.msra.mxu0 %v4186
    %6576 = vmatpush.msra.mxu0 %v4182
    %6577 = vmatpush.msra.mxu0 %v4178
    %6578 = vmatpush.msra.mxu0 %v4174
    %6579 = vmatpush.msra.mxu0 %v4170
    %6580 = vmatpush.msra.mxu0 %v4166
    %6581 = vmatpush.msra.mxu0 %v4162
    %6582 = vmatpush.msra.mxu0 %v4158
    %6583 = vmatpush.msra.mxu0 %v4154
    %6584 = vmatpush.msra.mxu0 %v4150
    %6585 = vmatpush.msra.mxu0 %v4146
    %6586 = vmatpush.msra.mxu0 %v4142
    %6587 = vmatpush.msra.mxu0 %v4138
    %6588 = vmatmul.f32.gmra.mxu0 %v6197
    %v6589 = vpop.f32.mrf.mxu0
    %v6590 = vadd.f32 %v6570, %v6589
    %6591 = vdwg.mxu0
    %6592 = vmatpush.msra.mxu0 %v4135
    %6593 = vmatpush.msra.mxu0 %v4131
    %6594 = vmatpush.msra.mxu0 %v4127
    %6595 = vmatpush.msra.mxu0 %v4123
    %6596 = vmatpush.msra.mxu0 %v4119
    %6597 = vmatpush.msra.mxu0 %v4115
    %6598 = vmatpush.msra.mxu0 %v4111
    %6599 = vmatpush.msra.mxu0 %v4107
    %6600 = vmatpush.msra.mxu0 %v4103
    %6601 = vmatpush.msra.mxu0 %v4099
    %6602 = vmatpush.msra.mxu0 %v4095
    %6603 = vmatpush.msra.mxu0 %v4091
    %6604 = vmatpush.msra.mxu0 %v4087
    %6605 = vmatpush.msra.mxu0 %v4083
    %6606 = vmatpush.msra.mxu0 %v4079
    %6607 = vmatpush.msra.mxu0 %v4075
    %6608 = vmatmul.f32.gmra.mxu0 %v6471
    %v6609 = vpop.f32.mrf.mxu0
    %v6610 = vadd.f32 %v4215, %v6609
    %6611 = vdwg.mxu0
    %6612 = vmatpush.msra.mxu0 %v4199
    %6613 = vmatpush.msra.mxu0 %v4195
    %6614 = vmatpush.msra.mxu0 %v4191
    %6615 = vmatpush.msra.mxu0 %v4187
    %6616 = vmatpush.msra.mxu0 %v4183
    %6617 = vmatpush.msra.mxu0 %v4179
    %6618 = vmatpush.msra.mxu0 %v4175
    %6619 = vmatpush.msra.mxu0 %v4171
    %6620 = vmatpush.msra.mxu0 %v4167
    %6621 = vmatpush.msra.mxu0 %v4163
    %6622 = vmatpush.msra.mxu0 %v4159
    %6623 = vmatpush.msra.mxu0 %v4155
    %6624 = vmatpush.msra.mxu0 %v4151
    %6625 = vmatpush.msra.mxu0 %v4147
    %6626 = vmatpush.msra.mxu0 %v4143
    %6627 = vmatpush.msra.mxu0 %v4139
    %6628 = vmatmul.f32.gmra.mxu0 %v6197
    %v6629 = vpop.f32.mrf.mxu0
    %v6630 = vadd.f32 %v6610, %v6629
    %6631 = vdwg.mxu0
    %v6632 = vxor.u32 %v6510, 2147483648
    %v6633 = vmul.f32 %v6632, 1.442695
    %v6634 = vpow.pop %v6633
    %v6635 = vadd.f32 %v6634, 1.0
    %v6636 = vrcp.pop %v6635
    %v6637 = vmul.f32 %v6635, %v6636
    %v6638 = vsub.f32 1.0, %v6637
    %v6639 = vmul.f32 %v6636, %v6638
    %v6640 = vadd.f32 %v6636, %v6639
    %vm6641 = vweird.f32 %v6635
    %vm6642 = vweird.f32 %v6636
    %vm6643 = vmor %vm6641, %vm6642
    %v6644 = vsel %vm6643, %v6636, %v6640
    %v6645 = vand.u32 2147483647, %v6635
    %vm6646 = vcmp.eq.f32.partialorder %v6645, 8.507059e+37
    %v6647 = vand.u32 %v6635, 2147483648
    %v6648 = vor.u32 1.1754944e-38, %v6647
    %v6649 = vsel %vm6646, %v6648, %v6644
    %v6650 = vmul.f32 1.0, %v6649
    %v6651 = vxor.u32 %v6550, 2147483648
    %v6652 = vmul.f32 %v6651, 1.442695
    %v6653 = vpow.pop %v6652
    %v6654 = vadd.f32 %v6653, 1.0
    %v6655 = vrcp.pop %v6654
    %v6656 = vmul.f32 %v6654, %v6655
    %v6657 = vsub.f32 1.0, %v6656
    %v6658 = vmul.f32 %v6655, %v6657
    %v6659 = vadd.f32 %v6655, %v6658
    %vm6660 = vweird.f32 %v6654
    %vm6661 = vweird.f32 %v6655
    %vm6662 = vmor %vm6660, %vm6661
    %v6663 = vsel %vm6662, %v6655, %v6659
    %v6664 = vand.u32 2147483647, %v6654
    %vm6665 = vcmp.eq.f32.partialorder %v6664, 8.507059e+37
    %v6666 = vand.u32 %v6654, 2147483648
    %v6667 = vor.u32 1.1754944e-38, %v6666
    %v6668 = vsel %vm6665, %v6667, %v6663
    %v6669 = vmul.f32 1.0, %v6668
    %v6670 = vtanh.pop %v6590
    %v6671 = vxor.u32 %v6630, 2147483648
    %v6672 = vmul.f32 %v6671, 1.442695
    %v6673 = vpow.pop %v6672
    %v6674 = vadd.f32 %v6673, 1.0
    %v6675 = vrcp.pop %v6674
    %v6676 = vmul.f32 %v6674, %v6675
    %v6677 = vsub.f32 1.0, %v6676
    %v6678 = vmul.f32 %v6675, %v6677
    %v6679 = vadd.f32 %v6675, %v6678
    %vm6680 = vweird.f32 %v6674
    %vm6681 = vweird.f32 %v6675
    %vm6682 = vmor %vm6680, %vm6681
    %v6683 = vsel %vm6682, %v6675, %v6679
    %v6684 = vand.u32 2147483647, %v6674
    %vm6685 = vcmp.eq.f32.partialorder %v6684, 8.507059e+37
    %v6686 = vand.u32 %v6674, 2147483648
    %v6687 = vor.u32 1.1754944e-38, %v6686
    %v6688 = vsel %vm6685, %v6687, %v6683
    %v6689 = vmul.f32 1.0, %v6688
    %v6690 = vmul.f32 %v6669, %v6195
    %v6691 = vmul.f32 %v6650, %v6670
    %v6692 = vadd.f32 %v6690, %v6691
    %v6693 = vtanh.pop %v6692
    %v6694 = vmul.f32 %v6689, %v6693
    %6695 = vmatpush.msra.mxu0 %v4235
    %6696 = vmatpush.msra.mxu0 %v4234
    %6697 = vmatpush.msra.mxu0 %v4233
    %6698 = vmatpush.msra.mxu0 %v4232
    %6699 = vmatpush.msra.mxu0 %v4231
    %6700 = vmatpush.msra.mxu0 %v4230
    %6701 = vmatpush.msra.mxu0 %v4229
    %6702 = vmatpush.msra.mxu0 %v4228
    %6703 = vmatpush.msra.mxu0 %v4227
    %6704 = vmatpush.msra.mxu0 %v4226
    %6705 = vmatpush.msra.mxu0 %v4225
    %6706 = vmatpush.msra.mxu0 %v4224
    %6707 = vmatpush.msra.mxu0 %v4223
    %6708 = vmatpush.msra.mxu0 %v4222
    %6709 = vmatpush.msra.mxu0 %v4221
    %6710 = vmatpush.msra.mxu0 %v4220
    %6711 = vmatmul.f32.gmra.mxu0 %v6694
    %v6712 = vpop.f32.mrf.mxu0
    %v6713 = vadd.f32 %v4238, %v6712
    %6714 = vdwg.mxu0
    %s6715 = scalar_lea.vmem %s15, 40
    %6716 = vst [vmem:[%s6715] sm:$0xff] %v6713
    %6717 = vmax.xlane.f32.xlu0 %v6713
    %v6718 = vpop.xlane.xlu0 %6717
    %vm6719 = vcmp.eq.f32.partialorder %v6713, %v6718
    %v6720 = vsel %vm6719, %v4258, 128.0
    %6721 = vmin.xlane.f32.xlu0 %v6720
    %v6722 = vpop.xlane.xlu0 %6721
    %vm6723 = vcmp.eq.f32.partialorder %v4258, %v6722
    %v6724 = vsel %vm6723, 1, 0
    %v6725 = vcvt.s32.f32 %v6724
    %6726 = vmatpush.msra.mxu0 %v4255
    %6727 = vmatpush.msra.mxu0 %v4254
    %6728 = vmatpush.msra.mxu0 %v4253
    %6729 = vmatpush.msra.mxu0 %v4252
    %6730 = vmatpush.msra.mxu0 %v4251
    %6731 = vmatpush.msra.mxu0 %v4250
    %6732 = vmatpush.msra.mxu0 %v4249
    %6733 = vmatpush.msra.mxu0 %v4248
    %6734 = vmatpush.msra.mxu0 %v4247
    %6735 = vmatpush.msra.mxu0 %v4246
    %6736 = vmatpush.msra.mxu0 %v4245
    %6737 = vmatpush.msra.mxu0 %v4244
    %6738 = vmatpush.msra.mxu0 %v4243
    %6739 = vmatpush.msra.mxu0 %v4242
    %6740 = vmatpush.msra.mxu0 %v4241
    %6741 = vmatpush.msra.mxu0 %v4240
    %6742 = vmatmul.f32.gmra.mxu0 %v6725
    %v6743 = vpop.f32.mrf.mxu0
    %v6744 = vadd.f32 0.0, %v6743
    %6745 = vdwg.mxu0
    %6746 = vmatpush.msra.mxu0 %v4004
    %6747 = vmatpush.msra.mxu0 %v4000
    %6748 = vmatpush.msra.mxu0 %v3996
    %6749 = vmatpush.msra.mxu0 %v3992
    %6750 = vmatpush.msra.mxu0 %v3988
    %6751 = vmatpush.msra.mxu0 %v3984
    %6752 = vmatpush.msra.mxu0 %v3980
    %6753 = vmatpush.msra.mxu0 %v3976
    %6754 = vmatpush.msra.mxu0 %v3972
    %6755 = vmatpush.msra.mxu0 %v3968
    %6756 = vmatpush.msra.mxu0 %v3964
    %6757 = vmatpush.msra.mxu0 %v3960
    %6758 = vmatpush.msra.mxu0 %v3956
    %6759 = vmatpush.msra.mxu0 %v3952
    %6760 = vmatpush.msra.mxu0 %v3948
    %6761 = vmatpush.msra.mxu0 %v3944
    %6762 = vmatmul.f32.gmra.mxu0 %v6744
    %v6763 = vpop.f32.mrf.mxu0
    %v6764 = vadd.f32 %v4202, %v6763
    %6765 = vdwg.mxu0
    %6766 = vmatpush.msra.mxu0 %v4068
    %6767 = vmatpush.msra.mxu0 %v4064
    %6768 = vmatpush.msra.mxu0 %v4060
    %6769 = vmatpush.msra.mxu0 %v4056
    %6770 = vmatpush.msra.mxu0 %v4052
    %6771 = vmatpush.msra.mxu0 %v4048
    %6772 = vmatpush.msra.mxu0 %v4044
    %6773 = vmatpush.msra.mxu0 %v4040
    %6774 = vmatpush.msra.mxu0 %v4036
    %6775 = vmatpush.msra.mxu0 %v4032
    %6776 = vmatpush.msra.mxu0 %v4028
    %6777 = vmatpush.msra.mxu0 %v4024
    %6778 = vmatpush.msra.mxu0 %v4020
    %6779 = vmatpush.msra.mxu0 %v4016
    %6780 = vmatpush.msra.mxu0 %v4012
    %6781 = vmatpush.msra.mxu0 %v4008
    %6782 = vmatmul.f32.gmra.mxu0 %v6471
    %v6783 = vpop.f32.mrf.mxu0
    %v6784 = vadd.f32 %v6764, %v6783
    %6785 = vdwg.mxu0
    %6786 = vmatpush.msra.mxu0 %v4005
    %6787 = vmatpush.msra.mxu0 %v4001
    %6788 = vmatpush.msra.mxu0 %v3997
    %6789 = vmatpush.msra.mxu0 %v3993
    %6790 = vmatpush.msra.mxu0 %v3989
    %6791 = vmatpush.msra.mxu0 %v3985
    %6792 = vmatpush.msra.mxu0 %v3981
    %6793 = vmatpush.msra.mxu0 %v3977
    %6794 = vmatpush.msra.mxu0 %v3973
    %6795 = vmatpush.msra.mxu0 %v3969
    %6796 = vmatpush.msra.mxu0 %v3965
    %6797 = vmatpush.msra.mxu0 %v3961
    %6798 = vmatpush.msra.mxu0 %v3957
    %6799 = vmatpush.msra.mxu0 %v3953
    %6800 = vmatpush.msra.mxu0 %v3949
    %6801 = vmatpush.msra.mxu0 %v3945
    %6802 = vmatmul.f32.gmra.mxu0 %v6744
    %v6803 = vpop.f32.mrf.mxu0
    %v6804 = vadd.f32 %v4203, %v6803
    %6805 = vdwg.mxu0
    %6806 = vmatpush.msra.mxu0 %v4069
    %6807 = vmatpush.msra.mxu0 %v4065
    %6808 = vmatpush.msra.mxu0 %v4061
    %6809 = vmatpush.msra.mxu0 %v4057
    %6810 = vmatpush.msra.mxu0 %v4053
    %6811 = vmatpush.msra.mxu0 %v4049
    %6812 = vmatpush.msra.mxu0 %v4045
    %6813 = vmatpush.msra.mxu0 %v4041
    %6814 = vmatpush.msra.mxu0 %v4037
    %6815 = vmatpush.msra.mxu0 %v4033
    %6816 = vmatpush.msra.mxu0 %v4029
    %6817 = vmatpush.msra.mxu0 %v4025
    %6818 = vmatpush.msra.mxu0 %v4021
    %6819 = vmatpush.msra.mxu0 %v4017
    %6820 = vmatpush.msra.mxu0 %v4013
    %6821 = vmatpush.msra.mxu0 %v4009
    %6822 = vmatmul.f32.gmra.mxu0 %v6471
    %v6823 = vpop.f32.mrf.mxu0
    %v6824 = vadd.f32 %v6804, %v6823
    %6825 = vdwg.mxu0
    %6826 = vmatpush.msra.mxu0 %v4006
    %6827 = vmatpush.msra.mxu0 %v4002
    %6828 = vmatpush.msra.mxu0 %v3998
    %6829 = vmatpush.msra.mxu0 %v3994
    %6830 = vmatpush.msra.mxu0 %v3990
    %6831 = vmatpush.msra.mxu0 %v3986
    %6832 = vmatpush.msra.mxu0 %v3982
    %6833 = vmatpush.msra.mxu0 %v3978
    %6834 = vmatpush.msra.mxu0 %v3974
    %6835 = vmatpush.msra.mxu0 %v3970
    %6836 = vmatpush.msra.mxu0 %v3966
    %6837 = vmatpush.msra.mxu0 %v3962
    %6838 = vmatpush.msra.mxu0 %v3958
    %6839 = vmatpush.msra.mxu0 %v3954
    %6840 = vmatpush.msra.mxu0 %v3950
    %6841 = vmatpush.msra.mxu0 %v3946
    %6842 = vmatmul.f32.gmra.mxu0 %v6744
    %v6843 = vpop.f32.mrf.mxu0
    %v6844 = vadd.f32 %v4204, %v6843
    %6845 = vdwg.mxu0
    %6846 = vmatpush.msra.mxu0 %v4070
    %6847 = vmatpush.msra.mxu0 %v4066
    %6848 = vmatpush.msra.mxu0 %v4062
    %6849 = vmatpush.msra.mxu0 %v4058
    %6850 = vmatpush.msra.mxu0 %v4054
    %6851 = vmatpush.msra.mxu0 %v4050
    %6852 = vmatpush.msra.mxu0 %v4046
    %6853 = vmatpush.msra.mxu0 %v4042
    %6854 = vmatpush.msra.mxu0 %v4038
    %6855 = vmatpush.msra.mxu0 %v4034
    %6856 = vmatpush.msra.mxu0 %v4030
    %6857 = vmatpush.msra.mxu0 %v4026
    %6858 = vmatpush.msra.mxu0 %v4022
    %6859 = vmatpush.msra.mxu0 %v4018
    %6860 = vmatpush.msra.mxu0 %v4014
    %6861 = vmatpush.msra.mxu0 %v4010
    %6862 = vmatmul.f32.gmra.mxu0 %v6471
    %v6863 = vpop.f32.mrf.mxu0
    %v6864 = vadd.f32 %v6844, %v6863
    %6865 = vdwg.mxu0
    %6866 = vmatpush.msra.mxu0 %v4007
    %6867 = vmatpush.msra.mxu0 %v4003
    %6868 = vmatpush.msra.mxu0 %v3999
    %6869 = vmatpush.msra.mxu0 %v3995
    %6870 = vmatpush.msra.mxu0 %v3991
    %6871 = vmatpush.msra.mxu0 %v3987
    %6872 = vmatpush.msra.mxu0 %v3983
    %6873 = vmatpush.msra.mxu0 %v3979
    %6874 = vmatpush.msra.mxu0 %v3975
    %6875 = vmatpush.msra.mxu0 %v3971
    %6876 = vmatpush.msra.mxu0 %v3967
    %6877 = vmatpush.msra.mxu0 %v3963
    %6878 = vmatpush.msra.mxu0 %v3959
    %6879 = vmatpush.msra.mxu0 %v3955
    %6880 = vmatpush.msra.mxu0 %v3951
    %6881 = vmatpush.msra.mxu0 %v3947
    %6882 = vmatmul.f32.gmra.mxu0 %v6744
    %v6883 = vpop.f32.mrf.mxu0
    %v6884 = vadd.f32 %v4205, %v6883
    %6885 = vdwg.mxu0
    %6886 = vmatpush.msra.mxu0 %v4071
    %6887 = vmatpush.msra.mxu0 %v4067
    %6888 = vmatpush.msra.mxu0 %v4063
    %6889 = vmatpush.msra.mxu0 %v4059
    %6890 = vmatpush.msra.mxu0 %v4055
    %6891 = vmatpush.msra.mxu0 %v4051
    %6892 = vmatpush.msra.mxu0 %v4047
    %6893 = vmatpush.msra.mxu0 %v4043
    %6894 = vmatpush.msra.mxu0 %v4039
    %6895 = vmatpush.msra.mxu0 %v4035
    %6896 = vmatpush.msra.mxu0 %v4031
    %6897 = vmatpush.msra.mxu0 %v4027
    %6898 = vmatpush.msra.mxu0 %v4023
    %6899 = vmatpush.msra.mxu0 %v4019
    %6900 = vmatpush.msra.mxu0 %v4015
    %6901 = vmatpush.msra.mxu0 %v4011
    %6902 = vmatmul.f32.gmra.mxu0 %v6471
    %v6903 = vpop.f32.mrf.mxu0
    %v6904 = vadd.f32 %v6884, %v6903
    %6905 = vdwg.mxu0
    %v6906 = vxor.u32 %v6784, 2147483648
    %v6907 = vmul.f32 %v6906, 1.442695
    %v6908 = vpow.pop %v6907
    %v6909 = vadd.f32 %v6908, 1.0
    %v6910 = vrcp.pop %v6909
    %v6911 = vmul.f32 %v6909, %v6910
    %v6912 = vsub.f32 1.0, %v6911
    %v6913 = vmul.f32 %v6910, %v6912
    %v6914 = vadd.f32 %v6910, %v6913
    %vm6915 = vweird.f32 %v6909
    %vm6916 = vweird.f32 %v6910
    %vm6917 = vmor %vm6915, %vm6916
    %v6918 = vsel %vm6917, %v6910, %v6914
    %v6919 = vand.u32 2147483647, %v6909
    %vm6920 = vcmp.eq.f32.partialorder %v6919, 8.507059e+37
    %v6921 = vand.u32 %v6909, 2147483648
    %v6922 = vor.u32 1.1754944e-38, %v6921
    %v6923 = vsel %vm6920, %v6922, %v6918
    %v6924 = vmul.f32 1.0, %v6923
    %v6925 = vxor.u32 %v6824, 2147483648
    %v6926 = vmul.f32 %v6925, 1.442695
    %v6927 = vpow.pop %v6926
    %v6928 = vadd.f32 %v6927, 1.0
    %v6929 = vrcp.pop %v6928
    %v6930 = vmul.f32 %v6928, %v6929
    %v6931 = vsub.f32 1.0, %v6930
    %v6932 = vmul.f32 %v6929, %v6931
    %v6933 = vadd.f32 %v6929, %v6932
    %vm6934 = vweird.f32 %v6928
    %vm6935 = vweird.f32 %v6929
    %vm6936 = vmor %vm6934, %vm6935
    %v6937 = vsel %vm6936, %v6929, %v6933
    %v6938 = vand.u32 2147483647, %v6928
    %vm6939 = vcmp.eq.f32.partialorder %v6938, 8.507059e+37
    %v6940 = vand.u32 %v6928, 2147483648
    %v6941 = vor.u32 1.1754944e-38, %v6940
    %v6942 = vsel %vm6939, %v6941, %v6937
    %v6943 = vmul.f32 1.0, %v6942
    %v6944 = vtanh.pop %v6864
    %v6945 = vxor.u32 %v6904, 2147483648
    %v6946 = vmul.f32 %v6945, 1.442695
    %v6947 = vpow.pop %v6946
    %v6948 = vadd.f32 %v6947, 1.0
    %v6949 = vrcp.pop %v6948
    %v6950 = vmul.f32 %v6948, %v6949
    %v6951 = vsub.f32 1.0, %v6950
    %v6952 = vmul.f32 %v6949, %v6951
    %v6953 = vadd.f32 %v6949, %v6952
    %vm6954 = vweird.f32 %v6948
    %vm6955 = vweird.f32 %v6949
    %vm6956 = vmor %vm6954, %vm6955
    %v6957 = vsel %vm6956, %v6949, %v6953
    %v6958 = vand.u32 2147483647, %v6948
    %vm6959 = vcmp.eq.f32.partialorder %v6958, 8.507059e+37
    %v6960 = vand.u32 %v6948, 2147483648
    %v6961 = vor.u32 1.1754944e-38, %v6960
    %v6962 = vsel %vm6959, %v6961, %v6957
    %v6963 = vmul.f32 1.0, %v6962
    %v6964 = vmul.f32 %v6943, %v6469
    %v6965 = vmul.f32 %v6924, %v6944
    %v6966 = vadd.f32 %v6964, %v6965
    %v6967 = vtanh.pop %v6966
    %v6968 = vmul.f32 %v6963, %v6967
    %6969 = vmatpush.msra.mxu0 %v4132
    %6970 = vmatpush.msra.mxu0 %v4128
    %6971 = vmatpush.msra.mxu0 %v4124
    %6972 = vmatpush.msra.mxu0 %v4120
    %6973 = vmatpush.msra.mxu0 %v4116
    %6974 = vmatpush.msra.mxu0 %v4112
    %6975 = vmatpush.msra.mxu0 %v4108
    %6976 = vmatpush.msra.mxu0 %v4104
    %6977 = vmatpush.msra.mxu0 %v4100
    %6978 = vmatpush.msra.mxu0 %v4096
    %6979 = vmatpush.msra.mxu0 %v4092
    %6980 = vmatpush.msra.mxu0 %v4088
    %6981 = vmatpush.msra.mxu0 %v4084
    %6982 = vmatpush.msra.mxu0 %v4080
    %6983 = vmatpush.msra.mxu0 %v4076
    %6984 = vmatpush.msra.mxu0 %v4072
    %6985 = vmatmul.f32.gmra.mxu0 %v6968
    %v6986 = vpop.f32.mrf.mxu0
    %v6987 = vadd.f32 %v4212, %v6986
    %6988 = vdwg.mxu0
    %6989 = vmatpush.msra.mxu0 %v4196
    %6990 = vmatpush.msra.mxu0 %v4192
    %6991 = vmatpush.msra.mxu0 %v4188
    %6992 = vmatpush.msra.mxu0 %v4184
    %6993 = vmatpush.msra.mxu0 %v4180
    %6994 = vmatpush.msra.mxu0 %v4176
    %6995 = vmatpush.msra.mxu0 %v4172
    %6996 = vmatpush.msra.mxu0 %v4168
    %6997 = vmatpush.msra.mxu0 %v4164
    %6998 = vmatpush.msra.mxu0 %v4160
    %6999 = vmatpush.msra.mxu0 %v4156
    %7000 = vmatpush.msra.mxu0 %v4152
    %7001 = vmatpush.msra.mxu0 %v4148
    %7002 = vmatpush.msra.mxu0 %v4144
    %7003 = vmatpush.msra.mxu0 %v4140
    %7004 = vmatpush.msra.mxu0 %v4136
    %7005 = vmatmul.f32.gmra.mxu0 %v6694
    %v7006 = vpop.f32.mrf.mxu0
    %v7007 = vadd.f32 %v6987, %v7006
    %7008 = vdwg.mxu0
    %7009 = vmatpush.msra.mxu0 %v4133
    %7010 = vmatpush.msra.mxu0 %v4129
    %7011 = vmatpush.msra.mxu0 %v4125
    %7012 = vmatpush.msra.mxu0 %v4121
    %7013 = vmatpush.msra.mxu0 %v4117
    %7014 = vmatpush.msra.mxu0 %v4113
    %7015 = vmatpush.msra.mxu0 %v4109
    %7016 = vmatpush.msra.mxu0 %v4105
    %7017 = vmatpush.msra.mxu0 %v4101
    %7018 = vmatpush.msra.mxu0 %v4097
    %7019 = vmatpush.msra.mxu0 %v4093
    %7020 = vmatpush.msra.mxu0 %v4089
    %7021 = vmatpush.msra.mxu0 %v4085
    %7022 = vmatpush.msra.mxu0 %v4081
    %7023 = vmatpush.msra.mxu0 %v4077
    %7024 = vmatpush.msra.mxu0 %v4073
    %7025 = vmatmul.f32.gmra.mxu0 %v6968
    %v7026 = vpop.f32.mrf.mxu0
    %v7027 = vadd.f32 %v4213, %v7026
    %7028 = vdwg.mxu0
    %7029 = vmatpush.msra.mxu0 %v4197
    %7030 = vmatpush.msra.mxu0 %v4193
    %7031 = vmatpush.msra.mxu0 %v4189
    %7032 = vmatpush.msra.mxu0 %v4185
    %7033 = vmatpush.msra.mxu0 %v4181
    %7034 = vmatpush.msra.mxu0 %v4177
    %7035 = vmatpush.msra.mxu0 %v4173
    %7036 = vmatpush.msra.mxu0 %v4169
    %7037 = vmatpush.msra.mxu0 %v4165
    %7038 = vmatpush.msra.mxu0 %v4161
    %7039 = vmatpush.msra.mxu0 %v4157
    %7040 = vmatpush.msra.mxu0 %v4153
    %7041 = vmatpush.msra.mxu0 %v4149
    %7042 = vmatpush.msra.mxu0 %v4145
    %7043 = vmatpush.msra.mxu0 %v4141
    %7044 = vmatpush.msra.mxu0 %v4137
    %7045 = vmatmul.f32.gmra.mxu0 %v6694
    %v7046 = vpop.f32.mrf.mxu0
    %v7047 = vadd.f32 %v7027, %v7046
    %7048 = vdwg.mxu0
    %7049 = vmatpush.msra.mxu0 %v4134
    %7050 = vmatpush.msra.mxu0 %v4130
    %7051 = vmatpush.msra.mxu0 %v4126
    %7052 = vmatpush.msra.mxu0 %v4122
    %7053 = vmatpush.msra.mxu0 %v4118
    %7054 = vmatpush.msra.mxu0 %v4114
    %7055 = vmatpush.msra.mxu0 %v4110
    %7056 = vmatpush.msra.mxu0 %v4106
    %7057 = vmatpush.msra.mxu0 %v4102
    %7058 = vmatpush.msra.mxu0 %v4098
    %7059 = vmatpush.msra.mxu0 %v4094
    %7060 = vmatpush.msra.mxu0 %v4090
    %7061 = vmatpush.msra.mxu0 %v4086
    %7062 = vmatpush.msra.mxu0 %v4082
    %7063 = vmatpush.msra.mxu0 %v4078
    %7064 = vmatpush.msra.mxu0 %v4074
    %7065 = vmatmul.f32.gmra.mxu0 %v6968
    %v7066 = vpop.f32.mrf.mxu0
    %v7067 = vadd.f32 %v4214, %v7066
    %7068 = vdwg.mxu0
    %7069 = vmatpush.msra.mxu0 %v4198
    %7070 = vmatpush.msra.mxu0 %v4194
    %7071 = vmatpush.msra.mxu0 %v4190
    %7072 = vmatpush.msra.mxu0 %v4186
    %7073 = vmatpush.msra.mxu0 %v4182
    %7074 = vmatpush.msra.mxu0 %v4178
    %7075 = vmatpush.msra.mxu0 %v4174
    %7076 = vmatpush.msra.mxu0 %v4170
    %7077 = vmatpush.msra.mxu0 %v4166
    %7078 = vmatpush.msra.mxu0 %v4162
    %7079 = vmatpush.msra.mxu0 %v4158
    %7080 = vmatpush.msra.mxu0 %v4154
    %7081 = vmatpush.msra.mxu0 %v4150
    %7082 = vmatpush.msra.mxu0 %v4146
    %7083 = vmatpush.msra.mxu0 %v4142
    %7084 = vmatpush.msra.mxu0 %v4138
    %7085 = vmatmul.f32.gmra.mxu0 %v6694
    %v7086 = vpop.f32.mrf.mxu0
    %v7087 = vadd.f32 %v7067, %v7086
    %7088 = vdwg.mxu0
    %7089 = vmatpush.msra.mxu0 %v4135
    %7090 = vmatpush.msra.mxu0 %v4131
    %7091 = vmatpush.msra.mxu0 %v4127
    %7092 = vmatpush.msra.mxu0 %v4123
    %7093 = vmatpush.msra.mxu0 %v4119
    %7094 = vmatpush.msra.mxu0 %v4115
    %7095 = vmatpush.msra.mxu0 %v4111
    %7096 = vmatpush.msra.mxu0 %v4107
    %7097 = vmatpush.msra.mxu0 %v4103
    %7098 = vmatpush.msra.mxu0 %v4099
    %7099 = vmatpush.msra.mxu0 %v4095
    %7100 = vmatpush.msra.mxu0 %v4091
    %7101 = vmatpush.msra.mxu0 %v4087
    %7102 = vmatpush.msra.mxu0 %v4083
    %7103 = vmatpush.msra.mxu0 %v4079
    %7104 = vmatpush.msra.mxu0 %v4075
    %7105 = vmatmul.f32.gmra.mxu0 %v6968
    %v7106 = vpop.f32.mrf.mxu0
    %v7107 = vadd.f32 %v4215, %v7106
    %7108 = vdwg.mxu0
    %7109 = vmatpush.msra.mxu0 %v4199
    %7110 = vmatpush.msra.mxu0 %v4195
    %7111 = vmatpush.msra.mxu0 %v4191
    %7112 = vmatpush.msra.mxu0 %v4187
    %7113 = vmatpush.msra.mxu0 %v4183
    %7114 = vmatpush.msra.mxu0 %v4179
    %7115 = vmatpush.msra.mxu0 %v4175
    %7116 = vmatpush.msra.mxu0 %v4171
    %7117 = vmatpush.msra.mxu0 %v4167
    %7118 = vmatpush.msra.mxu0 %v4163
    %7119 = vmatpush.msra.mxu0 %v4159
    %7120 = vmatpush.msra.mxu0 %v4155
    %7121 = vmatpush.msra.mxu0 %v4151
    %7122 = vmatpush.msra.mxu0 %v4147
    %7123 = vmatpush.msra.mxu0 %v4143
    %7124 = vmatpush.msra.mxu0 %v4139
    %7125 = vmatmul.f32.gmra.mxu0 %v6694
    %v7126 = vpop.f32.mrf.mxu0
    %v7127 = vadd.f32 %v7107, %v7126
    %7128 = vdwg.mxu0
    %v7129 = vxor.u32 %v7007, 2147483648
    %v7130 = vmul.f32 %v7129, 1.442695
    %v7131 = vpow.pop %v7130
    %v7132 = vadd.f32 %v7131, 1.0
    %v7133 = vrcp.pop %v7132
    %v7134 = vmul.f32 %v7132, %v7133
    %v7135 = vsub.f32 1.0, %v7134
    %v7136 = vmul.f32 %v7133, %v7135
    %v7137 = vadd.f32 %v7133, %v7136
    %vm7138 = vweird.f32 %v7132
    %vm7139 = vweird.f32 %v7133
    %vm7140 = vmor %vm7138, %vm7139
    %v7141 = vsel %vm7140, %v7133, %v7137
    %v7142 = vand.u32 2147483647, %v7132
    %vm7143 = vcmp.eq.f32.partialorder %v7142, 8.507059e+37
    %v7144 = vand.u32 %v7132, 2147483648
    %v7145 = vor.u32 1.1754944e-38, %v7144
    %v7146 = vsel %vm7143, %v7145, %v7141
    %v7147 = vmul.f32 1.0, %v7146
    %v7148 = vxor.u32 %v7047, 2147483648
    %v7149 = vmul.f32 %v7148, 1.442695
    %v7150 = vpow.pop %v7149
    %v7151 = vadd.f32 %v7150, 1.0
    %v7152 = vrcp.pop %v7151
    %v7153 = vmul.f32 %v7151, %v7152
    %v7154 = vsub.f32 1.0, %v7153
    %v7155 = vmul.f32 %v7152, %v7154
    %v7156 = vadd.f32 %v7152, %v7155
    %vm7157 = vweird.f32 %v7151
    %vm7158 = vweird.f32 %v7152
    %vm7159 = vmor %vm7157, %vm7158
    %v7160 = vsel %vm7159, %v7152, %v7156
    %v7161 = vand.u32 2147483647, %v7151
    %vm7162 = vcmp.eq.f32.partialorder %v7161, 8.507059e+37
    %v7163 = vand.u32 %v7151, 2147483648
    %v7164 = vor.u32 1.1754944e-38, %v7163
    %v7165 = vsel %vm7162, %v7164, %v7160
    %v7166 = vmul.f32 1.0, %v7165
    %v7167 = vtanh.pop %v7087
    %v7168 = vxor.u32 %v7127, 2147483648
    %v7169 = vmul.f32 %v7168, 1.442695
    %v7170 = vpow.pop %v7169
    %v7171 = vadd.f32 %v7170, 1.0
    %v7172 = vrcp.pop %v7171
    %v7173 = vmul.f32 %v7171, %v7172
    %v7174 = vsub.f32 1.0, %v7173
    %v7175 = vmul.f32 %v7172, %v7174
    %v7176 = vadd.f32 %v7172, %v7175
    %vm7177 = vweird.f32 %v7171
    %vm7178 = vweird.f32 %v7172
    %vm7179 = vmor %vm7177, %vm7178
    %v7180 = vsel %vm7179, %v7172, %v7176
    %v7181 = vand.u32 2147483647, %v7171
    %vm7182 = vcmp.eq.f32.partialorder %v7181, 8.507059e+37
    %v7183 = vand.u32 %v7171, 2147483648
    %v7184 = vor.u32 1.1754944e-38, %v7183
    %v7185 = vsel %vm7182, %v7184, %v7180
    %v7186 = vmul.f32 1.0, %v7185
    %v7187 = vmul.f32 %v7166, %v6692
    %v7188 = vmul.f32 %v7147, %v7167
    %v7189 = vadd.f32 %v7187, %v7188
    %v7190 = vtanh.pop %v7189
    %v7191 = vmul.f32 %v7186, %v7190
    %7192 = vmatpush.msra.mxu0 %v4235
    %7193 = vmatpush.msra.mxu0 %v4234
    %7194 = vmatpush.msra.mxu0 %v4233
    %7195 = vmatpush.msra.mxu0 %v4232
    %7196 = vmatpush.msra.mxu0 %v4231
    %7197 = vmatpush.msra.mxu0 %v4230
    %7198 = vmatpush.msra.mxu0 %v4229
    %7199 = vmatpush.msra.mxu0 %v4228
    %7200 = vmatpush.msra.mxu0 %v4227
    %7201 = vmatpush.msra.mxu0 %v4226
    %7202 = vmatpush.msra.mxu0 %v4225
    %7203 = vmatpush.msra.mxu0 %v4224
    %7204 = vmatpush.msra.mxu0 %v4223
    %7205 = vmatpush.msra.mxu0 %v4222
    %7206 = vmatpush.msra.mxu0 %v4221
    %7207 = vmatpush.msra.mxu0 %v4220
    %7208 = vmatmul.f32.gmra.mxu0 %v7191
    %v7209 = vpop.f32.mrf.mxu0
    %v7210 = vadd.f32 %v4238, %v7209
    %7211 = vdwg.mxu0
    %s7212 = scalar_lea.vmem %s15, 48
    %7213 = vst [vmem:[%s7212] sm:$0xff] %v7210
    %7214 = vmax.xlane.f32.xlu0 %v7210
    %v7215 = vpop.xlane.xlu0 %7214
    %vm7216 = vcmp.eq.f32.partialorder %v7210, %v7215
    %v7217 = vsel %vm7216, %v4258, 128.0
    %7218 = vmin.xlane.f32.xlu0 %v7217
    %v7219 = vpop.xlane.xlu0 %7218
    %vm7220 = vcmp.eq.f32.partialorder %v4258, %v7219
    %v7221 = vsel %vm7220, 1, 0
    %v7222 = vcvt.s32.f32 %v7221
    %7223 = vmatpush.msra.mxu0 %v4255
    %7224 = vmatpush.msra.mxu0 %v4254
    %7225 = vmatpush.msra.mxu0 %v4253
    %7226 = vmatpush.msra.mxu0 %v4252
    %7227 = vmatpush.msra.mxu0 %v4251
    %7228 = vmatpush.msra.mxu0 %v4250
    %7229 = vmatpush.msra.mxu0 %v4249
    %7230 = vmatpush.msra.mxu0 %v4248
    %7231 = vmatpush.msra.mxu0 %v4247
    %7232 = vmatpush.msra.mxu0 %v4246
    %7233 = vmatpush.msra.mxu0 %v4245
    %7234 = vmatpush.msra.mxu0 %v4244
    %7235 = vmatpush.msra.mxu0 %v4243
    %7236 = vmatpush.msra.mxu0 %v4242
    %7237 = vmatpush.msra.mxu0 %v4241
    %7238 = vmatpush.msra.mxu0 %v4240
    %7239 = vmatmul.f32.gmra.mxu0 %v7222
    %v7240 = vpop.f32.mrf.mxu0
    %v7241 = vadd.f32 0.0, %v7240
    %7242 = vdwg.mxu0
    %7243 = vmatpush.msra.mxu0 %v4004
    %7244 = vmatpush.msra.mxu0 %v4000
    %7245 = vmatpush.msra.mxu0 %v3996
    %7246 = vmatpush.msra.mxu0 %v3992
    %7247 = vmatpush.msra.mxu0 %v3988
    %7248 = vmatpush.msra.mxu0 %v3984
    %7249 = vmatpush.msra.mxu0 %v3980
    %7250 = vmatpush.msra.mxu0 %v3976
    %7251 = vmatpush.msra.mxu0 %v3972
    %7252 = vmatpush.msra.mxu0 %v3968
    %7253 = vmatpush.msra.mxu0 %v3964
    %7254 = vmatpush.msra.mxu0 %v3960
    %7255 = vmatpush.msra.mxu0 %v3956
    %7256 = vmatpush.msra.mxu0 %v3952
    %7257 = vmatpush.msra.mxu0 %v3948
    %7258 = vmatpush.msra.mxu0 %v3944
    %7259 = vmatmul.f32.gmra.mxu0 %v7241
    %v7260 = vpop.f32.mrf.mxu0
    %v7261 = vadd.f32 %v4202, %v7260
    %7262 = vdwg.mxu0
    %7263 = vmatpush.msra.mxu0 %v4068
    %7264 = vmatpush.msra.mxu0 %v4064
    %7265 = vmatpush.msra.mxu0 %v4060
    %7266 = vmatpush.msra.mxu0 %v4056
    %7267 = vmatpush.msra.mxu0 %v4052
    %7268 = vmatpush.msra.mxu0 %v4048
    %7269 = vmatpush.msra.mxu0 %v4044
    %7270 = vmatpush.msra.mxu0 %v4040
    %7271 = vmatpush.msra.mxu0 %v4036
    %7272 = vmatpush.msra.mxu0 %v4032
    %7273 = vmatpush.msra.mxu0 %v4028
    %7274 = vmatpush.msra.mxu0 %v4024
    %7275 = vmatpush.msra.mxu0 %v4020
    %7276 = vmatpush.msra.mxu0 %v4016
    %7277 = vmatpush.msra.mxu0 %v4012
    %7278 = vmatpush.msra.mxu0 %v4008
    %7279 = vmatmul.f32.gmra.mxu0 %v6968
    %v7280 = vpop.f32.mrf.mxu0
    %v7281 = vadd.f32 %v7261, %v7280
    %7282 = vdwg.mxu0
    %7283 = vmatpush.msra.mxu0 %v4005
    %7284 = vmatpush.msra.mxu0 %v4001
    %7285 = vmatpush.msra.mxu0 %v3997
    %7286 = vmatpush.msra.mxu0 %v3993
    %7287 = vmatpush.msra.mxu0 %v3989
    %7288 = vmatpush.msra.mxu0 %v3985
    %7289 = vmatpush.msra.mxu0 %v3981
    %7290 = vmatpush.msra.mxu0 %v3977
    %7291 = vmatpush.msra.mxu0 %v3973
    %7292 = vmatpush.msra.mxu0 %v3969
    %7293 = vmatpush.msra.mxu0 %v3965
    %7294 = vmatpush.msra.mxu0 %v3961
    %7295 = vmatpush.msra.mxu0 %v3957
    %7296 = vmatpush.msra.mxu0 %v3953
    %7297 = vmatpush.msra.mxu0 %v3949
    %7298 = vmatpush.msra.mxu0 %v3945
    %7299 = vmatmul.f32.gmra.mxu0 %v7241
    %v7300 = vpop.f32.mrf.mxu0
    %v7301 = vadd.f32 %v4203, %v7300
    %7302 = vdwg.mxu0
    %7303 = vmatpush.msra.mxu0 %v4069
    %7304 = vmatpush.msra.mxu0 %v4065
    %7305 = vmatpush.msra.mxu0 %v4061
    %7306 = vmatpush.msra.mxu0 %v4057
    %7307 = vmatpush.msra.mxu0 %v4053
    %7308 = vmatpush.msra.mxu0 %v4049
    %7309 = vmatpush.msra.mxu0 %v4045
    %7310 = vmatpush.msra.mxu0 %v4041
    %7311 = vmatpush.msra.mxu0 %v4037
    %7312 = vmatpush.msra.mxu0 %v4033
    %7313 = vmatpush.msra.mxu0 %v4029
    %7314 = vmatpush.msra.mxu0 %v4025
    %7315 = vmatpush.msra.mxu0 %v4021
    %7316 = vmatpush.msra.mxu0 %v4017
    %7317 = vmatpush.msra.mxu0 %v4013
    %7318 = vmatpush.msra.mxu0 %v4009
    %7319 = vmatmul.f32.gmra.mxu0 %v6968
    %v7320 = vpop.f32.mrf.mxu0
    %v7321 = vadd.f32 %v7301, %v7320
    %7322 = vdwg.mxu0
    %7323 = vmatpush.msra.mxu0 %v4006
    %7324 = vmatpush.msra.mxu0 %v4002
    %7325 = vmatpush.msra.mxu0 %v3998
    %7326 = vmatpush.msra.mxu0 %v3994
    %7327 = vmatpush.msra.mxu0 %v3990
    %7328 = vmatpush.msra.mxu0 %v3986
    %7329 = vmatpush.msra.mxu0 %v3982
    %7330 = vmatpush.msra.mxu0 %v3978
    %7331 = vmatpush.msra.mxu0 %v3974
    %7332 = vmatpush.msra.mxu0 %v3970
    %7333 = vmatpush.msra.mxu0 %v3966
    %7334 = vmatpush.msra.mxu0 %v3962
    %7335 = vmatpush.msra.mxu0 %v3958
    %7336 = vmatpush.msra.mxu0 %v3954
    %7337 = vmatpush.msra.mxu0 %v3950
    %7338 = vmatpush.msra.mxu0 %v3946
    %7339 = vmatmul.f32.gmra.mxu0 %v7241
    %v7340 = vpop.f32.mrf.mxu0
    %v7341 = vadd.f32 %v4204, %v7340
    %7342 = vdwg.mxu0
    %7343 = vmatpush.msra.mxu0 %v4070
    %7344 = vmatpush.msra.mxu0 %v4066
    %7345 = vmatpush.msra.mxu0 %v4062
    %7346 = vmatpush.msra.mxu0 %v4058
    %7347 = vmatpush.msra.mxu0 %v4054
    %7348 = vmatpush.msra.mxu0 %v4050
    %7349 = vmatpush.msra.mxu0 %v4046
    %7350 = vmatpush.msra.mxu0 %v4042
    %7351 = vmatpush.msra.mxu0 %v4038
    %7352 = vmatpush.msra.mxu0 %v4034
    %7353 = vmatpush.msra.mxu0 %v4030
    %7354 = vmatpush.msra.mxu0 %v4026
    %7355 = vmatpush.msra.mxu0 %v4022
    %7356 = vmatpush.msra.mxu0 %v4018
    %7357 = vmatpush.msra.mxu0 %v4014
    %7358 = vmatpush.msra.mxu0 %v4010
    %7359 = vmatmul.f32.gmra.mxu0 %v6968
    %v7360 = vpop.f32.mrf.mxu0
    %v7361 = vadd.f32 %v7341, %v7360
    %7362 = vdwg.mxu0
    %7363 = vmatpush.msra.mxu0 %v4007
    %7364 = vmatpush.msra.mxu0 %v4003
    %7365 = vmatpush.msra.mxu0 %v3999
    %7366 = vmatpush.msra.mxu0 %v3995
    %7367 = vmatpush.msra.mxu0 %v3991
    %7368 = vmatpush.msra.mxu0 %v3987
    %7369 = vmatpush.msra.mxu0 %v3983
    %7370 = vmatpush.msra.mxu0 %v3979
    %7371 = vmatpush.msra.mxu0 %v3975
    %7372 = vmatpush.msra.mxu0 %v3971
    %7373 = vmatpush.msra.mxu0 %v3967
    %7374 = vmatpush.msra.mxu0 %v3963
    %7375 = vmatpush.msra.mxu0 %v3959
    %7376 = vmatpush.msra.mxu0 %v3955
    %7377 = vmatpush.msra.mxu0 %v3951
    %7378 = vmatpush.msra.mxu0 %v3947
    %7379 = vmatmul.f32.gmra.mxu0 %v7241
    %v7380 = vpop.f32.mrf.mxu0
    %v7381 = vadd.f32 %v4205, %v7380
    %7382 = vdwg.mxu0
    %7383 = vmatpush.msra.mxu0 %v4071
    %7384 = vmatpush.msra.mxu0 %v4067
    %7385 = vmatpush.msra.mxu0 %v4063
    %7386 = vmatpush.msra.mxu0 %v4059
    %7387 = vmatpush.msra.mxu0 %v4055
    %7388 = vmatpush.msra.mxu0 %v4051
    %7389 = vmatpush.msra.mxu0 %v4047
    %7390 = vmatpush.msra.mxu0 %v4043
    %7391 = vmatpush.msra.mxu0 %v4039
    %7392 = vmatpush.msra.mxu0 %v4035
    %7393 = vmatpush.msra.mxu0 %v4031
    %7394 = vmatpush.msra.mxu0 %v4027
    %7395 = vmatpush.msra.mxu0 %v4023
    %7396 = vmatpush.msra.mxu0 %v4019
    %7397 = vmatpush.msra.mxu0 %v4015
    %7398 = vmatpush.msra.mxu0 %v4011
    %7399 = vmatmul.f32.gmra.mxu0 %v6968
    %v7400 = vpop.f32.mrf.mxu0
    %v7401 = vadd.f32 %v7381, %v7400
    %7402 = vdwg.mxu0
    %v7403 = vxor.u32 %v7281, 2147483648
    %v7404 = vmul.f32 %v7403, 1.442695
    %v7405 = vpow.pop %v7404
    %v7406 = vadd.f32 %v7405, 1.0
    %v7407 = vrcp.pop %v7406
    %v7408 = vmul.f32 %v7406, %v7407
    %v7409 = vsub.f32 1.0, %v7408
    %v7410 = vmul.f32 %v7407, %v7409
    %v7411 = vadd.f32 %v7407, %v7410
    %vm7412 = vweird.f32 %v7406
    %vm7413 = vweird.f32 %v7407
    %vm7414 = vmor %vm7412, %vm7413
    %v7415 = vsel %vm7414, %v7407, %v7411
    %v7416 = vand.u32 2147483647, %v7406
    %vm7417 = vcmp.eq.f32.partialorder %v7416, 8.507059e+37
    %v7418 = vand.u32 %v7406, 2147483648
    %v7419 = vor.u32 1.1754944e-38, %v7418
    %v7420 = vsel %vm7417, %v7419, %v7415
    %v7421 = vmul.f32 1.0, %v7420
    %v7422 = vxor.u32 %v7321, 2147483648
    %v7423 = vmul.f32 %v7422, 1.442695
    %v7424 = vpow.pop %v7423
    %v7425 = vadd.f32 %v7424, 1.0
    %v7426 = vrcp.pop %v7425
    %v7427 = vmul.f32 %v7425, %v7426
    %v7428 = vsub.f32 1.0, %v7427
    %v7429 = vmul.f32 %v7426, %v7428
    %v7430 = vadd.f32 %v7426, %v7429
    %vm7431 = vweird.f32 %v7425
    %vm7432 = vweird.f32 %v7426
    %vm7433 = vmor %vm7431, %vm7432
    %v7434 = vsel %vm7433, %v7426, %v7430
    %v7435 = vand.u32 2147483647, %v7425
    %vm7436 = vcmp.eq.f32.partialorder %v7435, 8.507059e+37
    %v7437 = vand.u32 %v7425, 2147483648
    %v7438 = vor.u32 1.1754944e-38, %v7437
    %v7439 = vsel %vm7436, %v7438, %v7434
    %v7440 = vmul.f32 1.0, %v7439
    %v7441 = vtanh.pop %v7361
    %v7442 = vxor.u32 %v7401, 2147483648
    %v7443 = vmul.f32 %v7442, 1.442695
    %v7444 = vpow.pop %v7443
    %v7445 = vadd.f32 %v7444, 1.0
    %v7446 = vrcp.pop %v7445
    %v7447 = vmul.f32 %v7445, %v7446
    %v7448 = vsub.f32 1.0, %v7447
    %v7449 = vmul.f32 %v7446, %v7448
    %v7450 = vadd.f32 %v7446, %v7449
    %vm7451 = vweird.f32 %v7445
    %vm7452 = vweird.f32 %v7446
    %vm7453 = vmor %vm7451, %vm7452
    %v7454 = vsel %vm7453, %v7446, %v7450
    %v7455 = vand.u32 2147483647, %v7445
    %vm7456 = vcmp.eq.f32.partialorder %v7455, 8.507059e+37
    %v7457 = vand.u32 %v7445, 2147483648
    %v7458 = vor.u32 1.1754944e-38, %v7457
    %v7459 = vsel %vm7456, %v7458, %v7454
    %v7460 = vmul.f32 1.0, %v7459
    %v7461 = vmul.f32 %v7440, %v6966
    %v7462 = vmul.f32 %v7421, %v7441
    %v7463 = vadd.f32 %v7461, %v7462
    %v7464 = vtanh.pop %v7463
    %v7465 = vmul.f32 %v7460, %v7464
    %7466 = vmatpush.msra.mxu0 %v4132
    %7467 = vmatpush.msra.mxu0 %v4128
    %7468 = vmatpush.msra.mxu0 %v4124
    %7469 = vmatpush.msra.mxu0 %v4120
    %7470 = vmatpush.msra.mxu0 %v4116
    %7471 = vmatpush.msra.mxu0 %v4112
    %7472 = vmatpush.msra.mxu0 %v4108
    %7473 = vmatpush.msra.mxu0 %v4104
    %7474 = vmatpush.msra.mxu0 %v4100
    %7475 = vmatpush.msra.mxu0 %v4096
    %7476 = vmatpush.msra.mxu0 %v4092
    %7477 = vmatpush.msra.mxu0 %v4088
    %7478 = vmatpush.msra.mxu0 %v4084
    %7479 = vmatpush.msra.mxu0 %v4080
    %7480 = vmatpush.msra.mxu0 %v4076
    %7481 = vmatpush.msra.mxu0 %v4072
    %7482 = vmatmul.f32.gmra.mxu0 %v7465
    %v7483 = vpop.f32.mrf.mxu0
    %v7484 = vadd.f32 %v4212, %v7483
    %7485 = vdwg.mxu0
    %7486 = vmatpush.msra.mxu0 %v4196
    %7487 = vmatpush.msra.mxu0 %v4192
    %7488 = vmatpush.msra.mxu0 %v4188
    %7489 = vmatpush.msra.mxu0 %v4184
    %7490 = vmatpush.msra.mxu0 %v4180
    %7491 = vmatpush.msra.mxu0 %v4176
    %7492 = vmatpush.msra.mxu0 %v4172
    %7493 = vmatpush.msra.mxu0 %v4168
    %7494 = vmatpush.msra.mxu0 %v4164
    %7495 = vmatpush.msra.mxu0 %v4160
    %7496 = vmatpush.msra.mxu0 %v4156
    %7497 = vmatpush.msra.mxu0 %v4152
    %7498 = vmatpush.msra.mxu0 %v4148
    %7499 = vmatpush.msra.mxu0 %v4144
    %7500 = vmatpush.msra.mxu0 %v4140
    %7501 = vmatpush.msra.mxu0 %v4136
    %7502 = vmatmul.f32.gmra.mxu0 %v7191
    %v7503 = vpop.f32.mrf.mxu0
    %v7504 = vadd.f32 %v7484, %v7503
    %7505 = vdwg.mxu0
    %7506 = vmatpush.msra.mxu0 %v4133
    %7507 = vmatpush.msra.mxu0 %v4129
    %7508 = vmatpush.msra.mxu0 %v4125
    %7509 = vmatpush.msra.mxu0 %v4121
    %7510 = vmatpush.msra.mxu0 %v4117
    %7511 = vmatpush.msra.mxu0 %v4113
    %7512 = vmatpush.msra.mxu0 %v4109
    %7513 = vmatpush.msra.mxu0 %v4105
    %7514 = vmatpush.msra.mxu0 %v4101
    %7515 = vmatpush.msra.mxu0 %v4097
    %7516 = vmatpush.msra.mxu0 %v4093
    %7517 = vmatpush.msra.mxu0 %v4089
    %7518 = vmatpush.msra.mxu0 %v4085
    %7519 = vmatpush.msra.mxu0 %v4081
    %7520 = vmatpush.msra.mxu0 %v4077
    %7521 = vmatpush.msra.mxu0 %v4073
    %7522 = vmatmul.f32.gmra.mxu0 %v7465
    %v7523 = vpop.f32.mrf.mxu0
    %v7524 = vadd.f32 %v4213, %v7523
    %7525 = vdwg.mxu0
    %7526 = vmatpush.msra.mxu0 %v4197
    %7527 = vmatpush.msra.mxu0 %v4193
    %7528 = vmatpush.msra.mxu0 %v4189
    %7529 = vmatpush.msra.mxu0 %v4185
    %7530 = vmatpush.msra.mxu0 %v4181
    %7531 = vmatpush.msra.mxu0 %v4177
    %7532 = vmatpush.msra.mxu0 %v4173
    %7533 = vmatpush.msra.mxu0 %v4169
    %7534 = vmatpush.msra.mxu0 %v4165
    %7535 = vmatpush.msra.mxu0 %v4161
    %7536 = vmatpush.msra.mxu0 %v4157
    %7537 = vmatpush.msra.mxu0 %v4153
    %7538 = vmatpush.msra.mxu0 %v4149
    %7539 = vmatpush.msra.mxu0 %v4145
    %7540 = vmatpush.msra.mxu0 %v4141
    %7541 = vmatpush.msra.mxu0 %v4137
    %7542 = vmatmul.f32.gmra.mxu0 %v7191
    %v7543 = vpop.f32.mrf.mxu0
    %v7544 = vadd.f32 %v7524, %v7543
    %7545 = vdwg.mxu0
    %7546 = vmatpush.msra.mxu0 %v4134
    %7547 = vmatpush.msra.mxu0 %v4130
    %7548 = vmatpush.msra.mxu0 %v4126
    %7549 = vmatpush.msra.mxu0 %v4122
    %7550 = vmatpush.msra.mxu0 %v4118
    %7551 = vmatpush.msra.mxu0 %v4114
    %7552 = vmatpush.msra.mxu0 %v4110
    %7553 = vmatpush.msra.mxu0 %v4106
    %7554 = vmatpush.msra.mxu0 %v4102
    %7555 = vmatpush.msra.mxu0 %v4098
    %7556 = vmatpush.msra.mxu0 %v4094
    %7557 = vmatpush.msra.mxu0 %v4090
    %7558 = vmatpush.msra.mxu0 %v4086
    %7559 = vmatpush.msra.mxu0 %v4082
    %7560 = vmatpush.msra.mxu0 %v4078
    %7561 = vmatpush.msra.mxu0 %v4074
    %7562 = vmatmul.f32.gmra.mxu0 %v7465
    %v7563 = vpop.f32.mrf.mxu0
    %v7564 = vadd.f32 %v4214, %v7563
    %7565 = vdwg.mxu0
    %7566 = vmatpush.msra.mxu0 %v4198
    %7567 = vmatpush.msra.mxu0 %v4194
    %7568 = vmatpush.msra.mxu0 %v4190
    %7569 = vmatpush.msra.mxu0 %v4186
    %7570 = vmatpush.msra.mxu0 %v4182
    %7571 = vmatpush.msra.mxu0 %v4178
    %7572 = vmatpush.msra.mxu0 %v4174
    %7573 = vmatpush.msra.mxu0 %v4170
    %7574 = vmatpush.msra.mxu0 %v4166
    %7575 = vmatpush.msra.mxu0 %v4162
    %7576 = vmatpush.msra.mxu0 %v4158
    %7577 = vmatpush.msra.mxu0 %v4154
    %7578 = vmatpush.msra.mxu0 %v4150
    %7579 = vmatpush.msra.mxu0 %v4146
    %7580 = vmatpush.msra.mxu0 %v4142
    %7581 = vmatpush.msra.mxu0 %v4138
    %7582 = vmatmul.f32.gmra.mxu0 %v7191
    %v7583 = vpop.f32.mrf.mxu0
    %v7584 = vadd.f32 %v7564, %v7583
    %7585 = vdwg.mxu0
    %7586 = vmatpush.msra.mxu0 %v4135
    %7587 = vmatpush.msra.mxu0 %v4131
    %7588 = vmatpush.msra.mxu0 %v4127
    %7589 = vmatpush.msra.mxu0 %v4123
    %7590 = vmatpush.msra.mxu0 %v4119
    %7591 = vmatpush.msra.mxu0 %v4115
    %7592 = vmatpush.msra.mxu0 %v4111
    %7593 = vmatpush.msra.mxu0 %v4107
    %7594 = vmatpush.msra.mxu0 %v4103
    %7595 = vmatpush.msra.mxu0 %v4099
    %7596 = vmatpush.msra.mxu0 %v4095
    %7597 = vmatpush.msra.mxu0 %v4091
    %7598 = vmatpush.msra.mxu0 %v4087
    %7599 = vmatpush.msra.mxu0 %v4083
    %7600 = vmatpush.msra.mxu0 %v4079
    %7601 = vmatpush.msra.mxu0 %v4075
    %7602 = vmatmul.f32.gmra.mxu0 %v7465
    %v7603 = vpop.f32.mrf.mxu0
    %v7604 = vadd.f32 %v4215, %v7603
    %7605 = vdwg.mxu0
    %7606 = vmatpush.msra.mxu0 %v4199
    %7607 = vmatpush.msra.mxu0 %v4195
    %7608 = vmatpush.msra.mxu0 %v4191
    %7609 = vmatpush.msra.mxu0 %v4187
    %7610 = vmatpush.msra.mxu0 %v4183
    %7611 = vmatpush.msra.mxu0 %v4179
    %7612 = vmatpush.msra.mxu0 %v4175
    %7613 = vmatpush.msra.mxu0 %v4171
    %7614 = vmatpush.msra.mxu0 %v4167
    %7615 = vmatpush.msra.mxu0 %v4163
    %7616 = vmatpush.msra.mxu0 %v4159
    %7617 = vmatpush.msra.mxu0 %v4155
    %7618 = vmatpush.msra.mxu0 %v4151
    %7619 = vmatpush.msra.mxu0 %v4147
    %7620 = vmatpush.msra.mxu0 %v4143
    %7621 = vmatpush.msra.mxu0 %v4139
    %7622 = vmatmul.f32.gmra.mxu0 %v7191
    %v7623 = vpop.f32.mrf.mxu0
    %v7624 = vadd.f32 %v7604, %v7623
    %7625 = vdwg.mxu0
    %v7626 = vxor.u32 %v7504, 2147483648
    %v7627 = vmul.f32 %v7626, 1.442695
    %v7628 = vpow.pop %v7627
    %v7629 = vadd.f32 %v7628, 1.0
    %v7630 = vrcp.pop %v7629
    %v7631 = vmul.f32 %v7629, %v7630
    %v7632 = vsub.f32 1.0, %v7631
    %v7633 = vmul.f32 %v7630, %v7632
    %v7634 = vadd.f32 %v7630, %v7633
    %vm7635 = vweird.f32 %v7629
    %vm7636 = vweird.f32 %v7630
    %vm7637 = vmor %vm7635, %vm7636
    %v7638 = vsel %vm7637, %v7630, %v7634
    %v7639 = vand.u32 2147483647, %v7629
    %vm7640 = vcmp.eq.f32.partialorder %v7639, 8.507059e+37
    %v7641 = vand.u32 %v7629, 2147483648
    %v7642 = vor.u32 1.1754944e-38, %v7641
    %v7643 = vsel %vm7640, %v7642, %v7638
    %v7644 = vmul.f32 1.0, %v7643
    %v7645 = vxor.u32 %v7544, 2147483648
    %v7646 = vmul.f32 %v7645, 1.442695
    %v7647 = vpow.pop %v7646
    %v7648 = vadd.f32 %v7647, 1.0
    %v7649 = vrcp.pop %v7648
    %v7650 = vmul.f32 %v7648, %v7649
    %v7651 = vsub.f32 1.0, %v7650
    %v7652 = vmul.f32 %v7649, %v7651
    %v7653 = vadd.f32 %v7649, %v7652
    %vm7654 = vweird.f32 %v7648
    %vm7655 = vweird.f32 %v7649
    %vm7656 = vmor %vm7654, %vm7655
    %v7657 = vsel %vm7656, %v7649, %v7653
    %v7658 = vand.u32 2147483647, %v7648
    %vm7659 = vcmp.eq.f32.partialorder %v7658, 8.507059e+37
    %v7660 = vand.u32 %v7648, 2147483648
    %v7661 = vor.u32 1.1754944e-38, %v7660
    %v7662 = vsel %vm7659, %v7661, %v7657
    %v7663 = vmul.f32 1.0, %v7662
    %v7664 = vtanh.pop %v7584
    %v7665 = vxor.u32 %v7624, 2147483648
    %v7666 = vmul.f32 %v7665, 1.442695
    %v7667 = vpow.pop %v7666
    %v7668 = vadd.f32 %v7667, 1.0
    %v7669 = vrcp.pop %v7668
    %v7670 = vmul.f32 %v7668, %v7669
    %v7671 = vsub.f32 1.0, %v7670
    %v7672 = vmul.f32 %v7669, %v7671
    %v7673 = vadd.f32 %v7669, %v7672
    %vm7674 = vweird.f32 %v7668
    %vm7675 = vweird.f32 %v7669
    %vm7676 = vmor %vm7674, %vm7675
    %v7677 = vsel %vm7676, %v7669, %v7673
    %v7678 = vand.u32 2147483647, %v7668
    %vm7679 = vcmp.eq.f32.partialorder %v7678, 8.507059e+37
    %v7680 = vand.u32 %v7668, 2147483648
    %v7681 = vor.u32 1.1754944e-38, %v7680
    %v7682 = vsel %vm7679, %v7681, %v7677
    %v7683 = vmul.f32 1.0, %v7682
    %v7684 = vmul.f32 %v7663, %v7189
    %v7685 = vmul.f32 %v7644, %v7664
    %v7686 = vadd.f32 %v7684, %v7685
    %v7687 = vtanh.pop %v7686
    %v7688 = vmul.f32 %v7683, %v7687
    %7689 = vmatpush.msra.mxu0 %v4235
    %7690 = vmatpush.msra.mxu0 %v4234
    %7691 = vmatpush.msra.mxu0 %v4233
    %7692 = vmatpush.msra.mxu0 %v4232
    %7693 = vmatpush.msra.mxu0 %v4231
    %7694 = vmatpush.msra.mxu0 %v4230
    %7695 = vmatpush.msra.mxu0 %v4229
    %7696 = vmatpush.msra.mxu0 %v4228
    %7697 = vmatpush.msra.mxu0 %v4227
    %7698 = vmatpush.msra.mxu0 %v4226
    %7699 = vmatpush.msra.mxu0 %v4225
    %7700 = vmatpush.msra.mxu0 %v4224
    %7701 = vmatpush.msra.mxu0 %v4223
    %7702 = vmatpush.msra.mxu0 %v4222
    %7703 = vmatpush.msra.mxu0 %v4221
    %7704 = vmatpush.msra.mxu0 %v4220
    %7705 = vmatmul.f32.gmra.mxu0 %v7688
    %v7706 = vpop.f32.mrf.mxu0
    %v7707 = vadd.f32 %v4238, %v7706
    %7708 = vdwg.mxu0
    %s7709 = scalar_lea.vmem %s15, 56
    %7710 = vst [vmem:[%s7709] sm:$0xff] %v7707
    // Predicated region
    $region86: #{seq2seq_forward.1} parent=1 // pred_check
      _
    $region87: #{seq2seq_forward.1} parent=1 // pred_check_branch
      %7712 = sbr.rel (0) target = $region89
    $region88: #{seq2seq_forward.1} parent=1 // pred_region
      _
    $region89: #{seq2seq_forward.1} parent=1 // pred_fallthru
      _
    // Predicated region
    $region90: #{seq2seq_forward.1} parent=1 // pred_check
      _
    $region91: #{seq2seq_forward.1} parent=1 // pred_check_branch
      %7714 = sbr.rel (0) target = $region93
    $region92: #{seq2seq_forward.1} parent=1 // pred_region
      _
    $region93: #{seq2seq_forward.1} parent=1 // pred_fallthru
      _
    %7715 = vsyncpa [#allocation5], 1
    %7716 = vsyncpa [#allocation7], 1
    %7717 = vsyncpa [#allocation10], 1
    %7718 = vsyncpa [#allocation13], 1

</llo_original>
